<compile_context>
chip_gen: v6e
topology: v6e:2x2x1
jax: 0.10.0
libtpu: 0.0.40
codegen_flags: <defaults>
</compile_context>

<pallas_src>
from functools import partial

import jax
import jax.numpy as jnp
from jax.experimental import pallas as pl
from jax.experimental.pallas import tpu as pltpu

NEG_SLOPE = 0.01   # nn.LeakyReLU default negative_slope
LANE = 128


# ---------------------------------------------------------------------------
# Parameters (deterministic synthetic init, PyTorch layouts)
# ---------------------------------------------------------------------------
def init_params(key, in_channels=3, num_points=14):
    ks = jax.random.split(key, 12)
    s = 0.05

    def w(k, shape):
        return jax.random.normal(k, shape, jnp.float32) * s

    return {
        # conv1: Conv2d(in, in, k=2, s=2)
        "conv1_w": w(ks[0], (in_channels, in_channels, 2, 2)),
        "conv1_b": w(ks[1], (in_channels,)),
        # TODO(synk): the real pretrained EfficientNet-B1 backbone (BN/SiLU/SE
        # blocks) is not replicated; deterministic linear stand-in stride-2
        # conv producing the same 1280-channel feature map.
        "eff_w": w(ks[2], (1280, in_channels, 2, 2)),
        "eff_b": w(ks[3], (1280,)),
        # conv2: Conv2d(1280, 512, k=1, s=1)
        "conv2_w": w(ks[4], (512, 1280, 1, 1)),
        "conv2_b": w(ks[5], (512,)),
        # conv3: Conv2d(512, 256, k=2, s=2)
        "conv3_w": w(ks[6], (256, 512, 2, 2)),
        "conv3_b": w(ks[7], (256,)),
        # conv4: Conv2d(256, 256, k=2, s=2)
        "conv4_w": w(ks[8], (256, 256, 2, 2)),
        "conv4_b": w(ks[9], (256,)),
        # conv5: Conv2d(256, num_points*3, k=2, s=2)
        "conv5_w": w(ks[10], (num_points * 3, 256, 2, 2)),
        "conv5_b": w(ks[11], (num_points * 3,)),
    }


# ---------------------------------------------------------------------------
# One-time weight preparation:
#  * fold conv1 + effnet-stand-in + 1x1 conv2 into one stride-4 conv (f32),
#  * K-pad stage A's weight to 128 rows,
#  * concatenate each k=2 conv's 4 kernel-position matrices along K,
#  * pad conv5 output channels to 128 lanes,
#  * cast MXU operands to bf16 (biases stay f32 for the f32 epilogue).
# ---------------------------------------------------------------------------
def prepare_fused_params(params):
    w1, b1 = params["conv1_w"], params["conv1_b"]        # (C, C, 2, 2), (C,)
    we, be = params["eff_w"], params["eff_b"]            # (1280, C, 2, 2)
    w2, b2 = params["conv2_w"], params["conv2_b"]        # (512, 1280, 1, 1)
    C = w1.shape[1]

    # conv1 (s2) followed by eff (s2)  ==  one stride-4 conv:
    #   wf[d, c, 2r+p, 2s+q] = sum_k we[d, k, r, s] * w1[k, c, p, q]
    wf = jnp.einsum("dkrs,kcpq->dcrpsq", we, w1).reshape(1280, C, 4, 4)
    bf = be + jnp.einsum("dkrs,k->d", we, b1)
    # 1x1 conv2 on top is a plain channel matmul -> fold once more.
    w2m = w2.reshape(512, 1280)
    wA = jnp.einsum("ed,dcuv->ecuv", w2m, wf)            # (512, C, 4, 4)
    bA = b2 + w2m @ bf                                   # (512,)
    wA_m = wA.reshape(512, C * 16).T                     # (C*16, 512), K=(c,u,v)
    wA_m = jnp.pad(wA_m, ((0, LANE - C * 16), (0, 0)))   # lane-dense K = 128

    def conv_k2_cat(w):
        # (Cout, Cin, 2, 2) -> (4*Cin, Cout); K index = t*Cin + cin, t = kh*2+kw
        cout, cin = w.shape[0], w.shape[1]
        return jnp.transpose(w, (2, 3, 1, 0)).reshape(4 * cin, cout)

    w3c = conv_k2_cat(params["conv3_w"])                 # (2048, 256)
    w4c = conv_k2_cat(params["conv4_w"])                 # (1024, 256)
    w5c = conv_k2_cat(params["conv5_w"])                 # (1024, 42)
    npad = LANE - w5c.shape[-1]
    w5c = jnp.pad(w5c, ((0, 0), (0, npad)))              # lane-dense output
    b5p = jnp.pad(params["conv5_b"], (0, npad))

    bf16 = jnp.bfloat16
    return {
        "wA": wA_m.astype(bf16), "bA": bA.reshape(1, -1),
        "w3": w3c.astype(bf16), "b3": params["conv3_b"].reshape(1, -1),
        "w4": w4c.astype(bf16), "b4": params["conv4_b"].reshape(1, -1),
        "w5": w5c.astype(bf16), "b5": b5p.reshape(1, -1),
    }


# ---------------------------------------------------------------------------
# Input im2col (plain JAX, one transpose for the whole forward pass).
# ---------------------------------------------------------------------------
def _pick_batch_tile(batch):
    # Stage-B M = 16*bt: 256 rows (fills v6e/v7x MXU) when batch allows,
    # otherwise 128 rows (fills v5e MXU); keeps all slices 8-row aligned.
    return 16 if batch >= 16 else 8


def _im2col_tiled(x, bt):
    """Stride-4 patch extraction grouped into batch tiles of size `bt`.

    Global row order: (tile, p1, q1, p2, q2, p3, q3, b_local); feature order
    (c, u, v), zero-padded from C*16 to 128 lanes.  Within a tile every
    downstream conv stage's kernel position is outermost at its level and
    batch is innermost, so each stage consumes contiguous row blocks and
    writes contiguous column slabs of the next stage's LHS.
    """
    B, C, H, W = x.shape
    g = -(-B // bt)
    bpad = g * bt
    if bpad != B:
        x = jnp.pad(x, ((0, bpad - B), (0, 0), (0, 0), (0, 0)))
    xr = x.reshape(g, bt, C, 2, 2, 2, 4, 2, 2, 2, 4)
    #               g  b  c p3 p2 p1  u q3 q2 q1  v
    a = jnp.transpose(xr, (0, 5, 9, 4, 8, 3, 7, 1, 2, 6, 10))
    #                 -> (g, p1, q1, p2, q2, p3, q3, b, c, u, v)
    a = a.reshape(g * 64 * bt, C * 16)
    a = jnp.pad(a, ((0, 0), (0, LANE - C * 16)))
    return a.astype(jnp.bfloat16), g, bpad


# ---------------------------------------------------------------------------
# Fused head kernel: 4 matmul stages, weights VMEM-resident across grid steps,
# bf16 column-slab intermediates, f32 epilogues.
# ---------------------------------------------------------------------------
def _fused_head_kernel(a_ref, wa_ref, ba_ref, w3_ref, b3_ref, w4_ref, b4_ref,
                       w5_ref, b5_ref, o_ref, y1_ref, y2_ref, y3_ref):
    bt = o_ref.shape[0]
    bf16 = jnp.bfloat16
    f32 = jnp.float32

    def lrelu(v):
        return jnp.where(v >= 0.0, v, NEG_SLOPE * v)

    # Stage A: folded conv1 + effnet stand-in + 1x1 conv2, LeakyReLU.
    # 4 dots (one per conv3 kernel position), each written to a column slab
    # of y1 so stage B is a single large-K matmul.
    ma = 16 * bt
    na = wa_ref.shape[1]                                  # 512
    for t in range(4):
        lhs = a_ref[t * ma:(t + 1) * ma, :]               # (16*bt, 128) bf16
        r = jnp.dot(lhs, wa_ref[...], preferred_element_type=f32)
        y1_ref[:, t * na:(t + 1) * na] = lrelu(r + ba_ref[...]).astype(bf16)

    # Stage B: conv3 (k=2, s=2) as ONE (16*bt, 2048) x (2048, 256) matmul.
    n3 = w3_ref.shape[1]
    rb = jnp.dot(y1_ref[...], w3_ref[...], preferred_element_type=f32)
    actb = lrelu(rb + b3_ref[...])                        # (16*bt, 256) f32
    mb = 4 * bt
    for t in range(4):
        y2_ref[:, t * n3:(t + 1) * n3] = actb[t * mb:(t + 1) * mb, :].astype(bf16)

    # Stage C: conv4 (k=2, s=2) as ONE (4*bt, 1024) x (1024, 256) matmul.
    n4 = w4_ref.shape[1]
    rc = jnp.dot(y2_ref[...], w4_ref[...], preferred_element_type=f32)
    actc = lrelu(rc + b4_ref[...])                        # (4*bt, 256) f32
    for t in range(4):
        y3_ref[:, t * n4:(t + 1) * n4] = actc[t * bt:(t + 1) * bt, :].astype(bf16)

    # Stage D: conv5 (dropout is identity at inference) + sigmoid.
    rd = jnp.dot(y3_ref[...], w5_ref[...], preferred_element_type=f32)
    o_ref[...] = jax.nn.sigmoid(rd + b5_ref[...]).astype(o_ref.dtype)


def fused_head_call(a0, fp, bt, g):
    kdim = a0.shape[1]              # 128
    na = fp["wA"].shape[1]          # 512
    n3 = fp["w3"].shape[1]          # 256
    n4 = fp["w4"].shape[1]          # 256
    n5 = fp["w5"].shape[1]          # 128 (42 padded)

    def resident(arr):
        nd = arr.ndim
        return pl.BlockSpec(arr.shape, lambda i, _nd=nd: (0,) * _nd)

    weights = [fp["wA"], fp["bA"], fp["w3"], fp["b3"],
               fp["w4"], fp["b4"], fp["w5"], fp["b5"]]

    flops = 2 * g * bt * (64 * kdim * na + 16 * (4 * na) * n3
                          + 4 * (4 * n3) * n4 + (4 * n4) * n5)
    bytes_accessed = (a0.size * a0.dtype.itemsize
                      + sum(w.size * w.dtype.itemsize for w in weights)
                      + g * bt * n5 * 4)
    cost = pl.CostEstimate(flops=flops,
                           transcendentals=g * bt * n5,
                           bytes_accessed=bytes_accessed)

    return pl.pallas_call(
        _fused_head_kernel,
        out_shape=jax.ShapeDtypeStruct((g * bt, n5), jnp.float32),
        grid=(g,),
        in_specs=[pl.BlockSpec((64 * bt, kdim), lambda i: (i, 0))]
                 + [resident(w) for w in weights],
        out_specs=pl.BlockSpec((bt, n5), lambda i: (i, 0)),
        scratch_shapes=[
            pltpu.VMEM((16 * bt, 4 * na), jnp.bfloat16),   # y1 column slabs
            pltpu.VMEM((4 * bt, 4 * n3), jnp.bfloat16),    # y2 column slabs
            pltpu.VMEM((bt, 4 * n4), jnp.bfloat16),        # y3 column slabs
        ],
        compiler_params=pltpu.CompilerParams(
            dimension_semantics=("parallel",)),
        cost_estimate=cost,
    )(a0, *weights)


# ---------------------------------------------------------------------------
# Forward pass (mirrors KeyPointsModel.forward)
# ---------------------------------------------------------------------------
def keypoints_forward(fused_params, x, num_points=14):
    B, C, H, W = x.shape
    # Head geometry: the (stand-in) backbone output must be 8x8 so that
    # conv3/conv4/conv5 (each /2) end at 1x1 and flatten->view(-1, P, 3) holds.
    assert H == 32 and W == 32, "stand-in head expects 32x32 input"
    bt = _pick_batch_tile(B)
    a0, g, _ = _im2col_tiled(x, bt)                 # (g*64*bt, 128) bf16
    out = fused_head_call(a0, fused_params, bt, g)  # (g*bt, 128) f32
    out = out[:B, : num_points * 3]                 # drop batch/lane padding
    return out.reshape(-1, num_points, 3)


# ---------------------------------------------------------------------------
# Pure-JAX f32 reference (layer by layer, no folding) for validation.
# ---------------------------------------------------------------------------
def _conv_ref(x, w, b, stride):
    y = jax.lax.conv_general_dilated(
        x, w, window_strides=(stride, stride), padding="VALID",
        dimension_numbers=("NCHW", "OIHW", "NCHW"))
    return y + b[None, :, None, None]


def keypoints_forward_ref(params, x, num_points=14):
    lrelu = lambda v: jnp.where(v >= 0, v, NEG_SLOPE * v)
    y = _conv_ref(x, params["conv1_w"], params["conv1_b"], 2)
    y = _conv_ref(y, params["eff_w"], params["eff_b"], 2)
    y = lrelu(_conv_ref(y, params["conv2_w"], params["conv2_b"], 1))
    y = lrelu(_conv_ref(y, params["conv3_w"], params["conv3_b"], 2))
    y = lrelu(_conv_ref(y, params["conv4_w"], params["conv4_b"], 2))
    y = jax.nn.sigmoid(_conv_ref(y, params["conv5_w"], params["conv5_b"], 2))
    return y.reshape(x.shape[0], -1).reshape(-1, num_points, 3)


if __name__ == "__main__":
    key = jax.random.PRNGKey(0)
    kx, kp = jax.random.split(key)

    x = jax.random.normal(kx, (2, 3, 32, 32), jnp.float32)
    params = init_params(kp, in_channels=3, num_points=14)

    # One-time weight folding / packing (outside the jitted hot path).
    fused = prepare_fused_params(params)

    fwd = jax.jit(partial(keypoints_forward, num_points=14))
    out = fwd(fused, x)
    jax.block_until_ready(out)

    assert out.shape == (2, 14, 3), out.shape
    assert out.dtype == jnp.float32
    # sigmoid output must lie in [0, 1]
    assert bool(jnp.all((out >= 0.0) & (out <= 1.0)))

    # Validate against the straightforward f32 reference (bf16 MXU operands
    # introduce ~1e-3-level differences; f32 epilogue keeps it well below tol).
    ref = keypoints_forward_ref(params, x, num_points=14)
    err = float(jnp.max(jnp.abs(out - ref)))
    assert err < 3e-2, f"max abs err vs f32 reference: {err}"

    print("KERNEL_OK")
</pallas_src>

<mosaic_0001>
module attributes {stable_mosaic.version = 11 : i64} {
  func.func @_fused_head_kernel(%arg0: i32, %arg1: memref<512x128xbf16, #tpu.memory_space<vmem>>, %arg2: memref<128x512xbf16, #tpu.memory_space<vmem>>, %arg3: memref<1x512xf32, #tpu.memory_space<vmem>>, %arg4: memref<2048x256xbf16, #tpu.memory_space<vmem>>, %arg5: memref<1x256xf32, #tpu.memory_space<vmem>>, %arg6: memref<1024x256xbf16, #tpu.memory_space<vmem>>, %arg7: memref<1x256xf32, #tpu.memory_space<vmem>>, %arg8: memref<1024x128xbf16, #tpu.memory_space<vmem>>, %arg9: memref<1x128xf32, #tpu.memory_space<vmem>>, %arg10: memref<8x128xf32, #tpu.memory_space<vmem>>, %arg11: memref<128x2048xbf16, #tpu.memory_space<vmem>>, %arg12: memref<32x1024xbf16, #tpu.memory_space<vmem>>, %arg13: memref<8x1024xbf16, #tpu.memory_space<vmem>>) attributes {dimension_semantics = [#tpu.dimension_semantics<parallel>], iteration_bounds = array<i64: 1>, scalar_prefetch = 0 : i64, scratch_operands = 3 : i64, tpu.core_type = #tpu.core_type<tc>, window_params = [{transform_indices = @transform_0, window_bounds = array<i64: 512, 128>}, {pipeline_mode = #tpu.pipeline_mode<synchronous>, transform_indices = @transform_1, window_bounds = array<i64: 128, 512>}, {pipeline_mode = #tpu.pipeline_mode<synchronous>, transform_indices = @transform_2, window_bounds = array<i64: 1, 512>}, {pipeline_mode = #tpu.pipeline_mode<synchronous>, transform_indices = @transform_3, window_bounds = array<i64: 2048, 256>}, {pipeline_mode = #tpu.pipeline_mode<synchronous>, transform_indices = @transform_4, window_bounds = array<i64: 1, 256>}, {pipeline_mode = #tpu.pipeline_mode<synchronous>, transform_indices = @transform_5, window_bounds = array<i64: 1024, 256>}, {pipeline_mode = #tpu.pipeline_mode<synchronous>, transform_indices = @transform_6, window_bounds = array<i64: 1, 256>}, {pipeline_mode = #tpu.pipeline_mode<synchronous>, transform_indices = @transform_7, window_bounds = array<i64: 1024, 128>}, {pipeline_mode = #tpu.pipeline_mode<synchronous>, transform_indices = @transform_8, window_bounds = array<i64: 1, 128>}, {transform_indices = @transform_9, window_bounds = array<i64: 8, 128>}]} {
    %c0 = arith.constant 0 : index
    %c0_0 = arith.constant 0 : index
    %0 = vector.load %arg1[%c0, %c0_0] : memref<512x128xbf16, #tpu.memory_space<vmem>>, vector<128x128xbf16>
    %c0_1 = arith.constant 0 : index
    %c0_2 = arith.constant 0 : index
    %1 = vector.load %arg2[%c0_1, %c0_2] : memref<128x512xbf16, #tpu.memory_space<vmem>>, vector<128x512xbf16>
    %cst = arith.constant dense<0.000000e+00> : vector<128x512xf32>
    %2 = tpu.matmul %0, %1, %cst {dimension_numbers = #tpu.dot_dimension_numbers<[1], [0], [0], [1], [0, 0, 1, 1], [], []>} : vector<128x128xbf16>, vector<128x512xbf16>, vector<128x512xf32> -> vector<128x512xf32>
    %c0_3 = arith.constant 0 : index
    %c0_4 = arith.constant 0 : index
    %3 = vector.load %arg3[%c0_3, %c0_4] : memref<1x512xf32, #tpu.memory_space<vmem>>, vector<1x512xf32>
    %4 = vector.broadcast %3 : vector<1x512xf32> to vector<128x512xf32>
    %5 = arith.addf %2, %4 : vector<128x512xf32>
    %cst_5 = arith.constant 0.000000e+00 : f32
    %6 = vector.broadcast %cst_5 : f32 to vector<128x512xf32>
    %7 = arith.cmpf oge, %5, %6 : vector<128x512xf32>
    %cst_6 = arith.constant 0.00999999977 : f32
    %8 = vector.broadcast %cst_6 : f32 to vector<128x512xf32>
    %9 = arith.mulf %8, %5 : vector<128x512xf32>
    %10 = arith.select %7, %5, %9 : vector<128x512xi1>, vector<128x512xf32>
    %11 = arith.truncf %10 : vector<128x512xf32> to vector<128x512xbf16>
    %c0_7 = arith.constant 0 : index
    %c0_8 = arith.constant 0 : index
    %12 = vector.load %arg11[%c0_7, %c0_8] : memref<128x2048xbf16, #tpu.memory_space<vmem>>, vector<128x512xbf16>
    tpu.vector_store %arg11[%c0_7, %c0_8], %11 {strides = array<i32>} : memref<128x2048xbf16, #tpu.memory_space<vmem>>, vector<128x512xbf16>,
    %c128 = arith.constant 128 : index
    %c0_9 = arith.constant 0 : index
    %13 = vector.load %arg1[%c128, %c0_9] : memref<512x128xbf16, #tpu.memory_space<vmem>>, vector<128x128xbf16>
    %c0_10 = arith.constant 0 : index
    %c0_11 = arith.constant 0 : index
    %14 = vector.load %arg2[%c0_10, %c0_11] : memref<128x512xbf16, #tpu.memory_space<vmem>>, vector<128x512xbf16>
    %cst_12 = arith.constant dense<0.000000e+00> : vector<128x512xf32>
    %15 = tpu.matmul %13, %14, %cst_12 {dimension_numbers = #tpu.dot_dimension_numbers<[1], [0], [0], [1], [0, 0, 1, 1], [], []>} : vector<128x128xbf16>, vector<128x512xbf16>, vector<128x512xf32> -> vector<128x512xf32>
    %c0_13 = arith.constant 0 : index
    %c0_14 = arith.constant 0 : index
    %16 = vector.load %arg3[%c0_13, %c0_14] : memref<1x512xf32, #tpu.memory_space<vmem>>, vector<1x512xf32>
    %17 = vector.broadcast %16 : vector<1x512xf32> to vector<128x512xf32>
    %18 = arith.addf %15, %17 : vector<128x512xf32>
    %cst_15 = arith.constant 0.000000e+00 : f32
    %19 = vector.broadcast %cst_15 : f32 to vector<128x512xf32>
    %20 = arith.cmpf oge, %18, %19 : vector<128x512xf32>
    %cst_16 = arith.constant 0.00999999977 : f32
    %21 = vector.broadcast %cst_16 : f32 to vector<128x512xf32>
    %22 = arith.mulf %21, %18 : vector<128x512xf32>
    %23 = arith.select %20, %18, %22 : vector<128x512xi1>, vector<128x512xf32>
    %24 = arith.truncf %23 : vector<128x512xf32> to vector<128x512xbf16>
    %c0_17 = arith.constant 0 : index
    %c512 = arith.constant 512 : index
    %25 = vector.load %arg11[%c0_17, %c512] : memref<128x2048xbf16, #tpu.memory_space<vmem>>, vector<128x512xbf16>
    tpu.vector_store %arg11[%c0_17, %c512], %24 {strides = array<i32>} : memref<128x2048xbf16, #tpu.memory_space<vmem>>, vector<128x512xbf16>,
    %c256 = arith.constant 256 : index
    %c0_18 = arith.constant 0 : index
    %26 = vector.load %arg1[%c256, %c0_18] : memref<512x128xbf16, #tpu.memory_space<vmem>>, vector<128x128xbf16>
    %c0_19 = arith.constant 0 : index
    %c0_20 = arith.constant 0 : index
    %27 = vector.load %arg2[%c0_19, %c0_20] : memref<128x512xbf16, #tpu.memory_space<vmem>>, vector<128x512xbf16>
    %cst_21 = arith.constant dense<0.000000e+00> : vector<128x512xf32>
    %28 = tpu.matmul %26, %27, %cst_21 {dimension_numbers = #tpu.dot_dimension_numbers<[1], [0], [0], [1], [0, 0, 1, 1], [], []>} : vector<128x128xbf16>, vector<128x512xbf16>, vector<128x512xf32> -> vector<128x512xf32>
    %c0_22 = arith.constant 0 : index
    %c0_23 = arith.constant 0 : index
    %29 = vector.load %arg3[%c0_22, %c0_23] : memref<1x512xf32, #tpu.memory_space<vmem>>, vector<1x512xf32>
    %30 = vector.broadcast %29 : vector<1x512xf32> to vector<128x512xf32>
    %31 = arith.addf %28, %30 : vector<128x512xf32>
    %cst_24 = arith.constant 0.000000e+00 : f32
    %32 = vector.broadcast %cst_24 : f32 to vector<128x512xf32>
    %33 = arith.cmpf oge, %31, %32 : vector<128x512xf32>
    %cst_25 = arith.constant 0.00999999977 : f32
    %34 = vector.broadcast %cst_25 : f32 to vector<128x512xf32>
    %35 = arith.mulf %34, %31 : vector<128x512xf32>
    %36 = arith.select %33, %31, %35 : vector<128x512xi1>, vector<128x512xf32>
    %37 = arith.truncf %36 : vector<128x512xf32> to vector<128x512xbf16>
    %c0_26 = arith.constant 0 : index
    %c1024 = arith.constant 1024 : index
    %38 = vector.load %arg11[%c0_26, %c1024] : memref<128x2048xbf16, #tpu.memory_space<vmem>>, vector<128x512xbf16>
    tpu.vector_store %arg11[%c0_26, %c1024], %37 {strides = array<i32>} : memref<128x2048xbf16, #tpu.memory_space<vmem>>, vector<128x512xbf16>,
    %c384 = arith.constant 384 : index
    %c0_27 = arith.constant 0 : index
    %39 = vector.load %arg1[%c384, %c0_27] : memref<512x128xbf16, #tpu.memory_space<vmem>>, vector<128x128xbf16>
    %c0_28 = arith.constant 0 : index
    %c0_29 = arith.constant 0 : index
    %40 = vector.load %arg2[%c0_28, %c0_29] : memref<128x512xbf16, #tpu.memory_space<vmem>>, vector<128x512xbf16>
    %cst_30 = arith.constant dense<0.000000e+00> : vector<128x512xf32>
    %41 = tpu.matmul %39, %40, %cst_30 {dimension_numbers = #tpu.dot_dimension_numbers<[1], [0], [0], [1], [0, 0, 1, 1], [], []>} : vector<128x128xbf16>, vector<128x512xbf16>, vector<128x512xf32> -> vector<128x512xf32>
    %c0_31 = arith.constant 0 : index
    %c0_32 = arith.constant 0 : index
    %42 = vector.load %arg3[%c0_31, %c0_32] : memref<1x512xf32, #tpu.memory_space<vmem>>, vector<1x512xf32>
    %43 = vector.broadcast %42 : vector<1x512xf32> to vector<128x512xf32>
    %44 = arith.addf %41, %43 : vector<128x512xf32>
    %cst_33 = arith.constant 0.000000e+00 : f32
    %45 = vector.broadcast %cst_33 : f32 to vector<128x512xf32>
    %46 = arith.cmpf oge, %44, %45 : vector<128x512xf32>
    %cst_34 = arith.constant 0.00999999977 : f32
    %47 = vector.broadcast %cst_34 : f32 to vector<128x512xf32>
    %48 = arith.mulf %47, %44 : vector<128x512xf32>
    %49 = arith.select %46, %44, %48 : vector<128x512xi1>, vector<128x512xf32>
    %50 = arith.truncf %49 : vector<128x512xf32> to vector<128x512xbf16>
    %c0_35 = arith.constant 0 : index
    %c1536 = arith.constant 1536 : index
    %51 = vector.load %arg11[%c0_35, %c1536] : memref<128x2048xbf16, #tpu.memory_space<vmem>>, vector<128x512xbf16>
    tpu.vector_store %arg11[%c0_35, %c1536], %50 {strides = array<i32>} : memref<128x2048xbf16, #tpu.memory_space<vmem>>, vector<128x512xbf16>,
    %c0_36 = arith.constant 0 : index
    %c0_37 = arith.constant 0 : index
    %52 = vector.load %arg11[%c0_36, %c0_37] : memref<128x2048xbf16, #tpu.memory_space<vmem>>, vector<128x2048xbf16>
    %c0_38 = arith.constant 0 : index
    %c0_39 = arith.constant 0 : index
    %53 = vector.load %arg4[%c0_38, %c0_39] : memref<2048x256xbf16, #tpu.memory_space<vmem>>, vector<2048x256xbf16>
    %cst_40 = arith.constant dense<0.000000e+00> : vector<128x256xf32>
    %54 = tpu.matmul %52, %53, %cst_40 {dimension_numbers = #tpu.dot_dimension_numbers<[1], [0], [0], [1], [0, 0, 1, 1], [], []>} : vector<128x2048xbf16>, vector<2048x256xbf16>, vector<128x256xf32> -> vector<128x256xf32>
    %c0_41 = arith.constant 0 : index
    %c0_42 = arith.constant 0 : index
    %55 = vector.load %arg5[%c0_41, %c0_42] : memref<1x256xf32, #tpu.memory_space<vmem>>, vector<1x256xf32>
    %56 = vector.broadcast %55 : vector<1x256xf32> to vector<128x256xf32>
    %57 = arith.addf %54, %56 : vector<128x256xf32>
    %cst_43 = arith.constant 0.000000e+00 : f32
    %58 = vector.broadcast %cst_43 : f32 to vector<128x256xf32>
    %59 = arith.cmpf oge, %57, %58 : vector<128x256xf32>
    %cst_44 = arith.constant 0.00999999977 : f32
    %60 = vector.broadcast %cst_44 : f32 to vector<128x256xf32>
    %61 = arith.mulf %60, %57 : vector<128x256xf32>
    %62 = arith.select %59, %57, %61 : vector<128x256xi1>, vector<128x256xf32>
    %63 = vector.extract_strided_slice %62 {offsets = [0, 0], sizes = [32, 256], strides = [1, 1]} : vector<128x256xf32> to vector<32x256xf32>
    %64 = arith.truncf %63 : vector<32x256xf32> to vector<32x256xbf16>
    %c0_45 = arith.constant 0 : index
    %c0_46 = arith.constant 0 : index
    %65 = vector.load %arg12[%c0_45, %c0_46] : memref<32x1024xbf16, #tpu.memory_space<vmem>>, vector<32x256xbf16>
    tpu.vector_store %arg12[%c0_45, %c0_46], %64 {strides = array<i32>} : memref<32x1024xbf16, #tpu.memory_space<vmem>>, vector<32x256xbf16>,
    %66 = vector.extract_strided_slice %62 {offsets = [32, 0], sizes = [32, 256], strides = [1, 1]} : vector<128x256xf32> to vector<32x256xf32>
    %67 = arith.truncf %66 : vector<32x256xf32> to vector<32x256xbf16>
    %c0_47 = arith.constant 0 : index
    %c256_48 = arith.constant 256 : index
    %68 = vector.load %arg12[%c0_47, %c256_48] : memref<32x1024xbf16, #tpu.memory_space<vmem>>, vector<32x256xbf16>
    tpu.vector_store %arg12[%c0_47, %c256_48], %67 {strides = array<i32>} : memref<32x1024xbf16, #tpu.memory_space<vmem>>, vector<32x256xbf16>,
    %69 = vector.extract_strided_slice %62 {offsets = [64, 0], sizes = [32, 256], strides = [1, 1]} : vector<128x256xf32> to vector<32x256xf32>
    %70 = arith.truncf %69 : vector<32x256xf32> to vector<32x256xbf16>
    %c0_49 = arith.constant 0 : index
    %c512_50 = arith.constant 512 : index
    %71 = vector.load %arg12[%c0_49, %c512_50] : memref<32x1024xbf16, #tpu.memory_space<vmem>>, vector<32x256xbf16>
    tpu.vector_store %arg12[%c0_49, %c512_50], %70 {strides = array<i32>} : memref<32x1024xbf16, #tpu.memory_space<vmem>>, vector<32x256xbf16>,
    %72 = vector.extract_strided_slice %62 {offsets = [96, 0], sizes = [32, 256], strides = [1, 1]} : vector<128x256xf32> to vector<32x256xf32>
    %73 = arith.truncf %72 : vector<32x256xf32> to vector<32x256xbf16>
    %c0_51 = arith.constant 0 : index
    %c768 = arith.constant 768 : index
    %74 = vector.load %arg12[%c0_51, %c768] : memref<32x1024xbf16, #tpu.memory_space<vmem>>, vector<32x256xbf16>
    tpu.vector_store %arg12[%c0_51, %c768], %73 {strides = array<i32>} : memref<32x1024xbf16, #tpu.memory_space<vmem>>, vector<32x256xbf16>,
    %c0_52 = arith.constant 0 : index
    %c0_53 = arith.constant 0 : index
    %75 = vector.load %arg12[%c0_52, %c0_53] : memref<32x1024xbf16, #tpu.memory_space<vmem>>, vector<32x1024xbf16>
    %c0_54 = arith.constant 0 : index
    %c0_55 = arith.constant 0 : index
    %76 = vector.load %arg6[%c0_54, %c0_55] : memref<1024x256xbf16, #tpu.memory_space<vmem>>, vector<1024x256xbf16>
    %cst_56 = arith.constant dense<0.000000e+00> : vector<32x256xf32>
    %77 = tpu.matmul %75, %76, %cst_56 {dimension_numbers = #tpu.dot_dimension_numbers<[1], [0], [0], [1], [0, 0, 1, 1], [], []>} : vector<32x1024xbf16>, vector<1024x256xbf16>, vector<32x256xf32> -> vector<32x256xf32>
    %c0_57 = arith.constant 0 : index
    %c0_58 = arith.constant 0 : index
    %78 = vector.load %arg7[%c0_57, %c0_58] : memref<1x256xf32, #tpu.memory_space<vmem>>, vector<1x256xf32>
    %79 = vector.broadcast %78 : vector<1x256xf32> to vector<32x256xf32>
    %80 = arith.addf %77, %79 : vector<32x256xf32>
    %cst_59 = arith.constant 0.000000e+00 : f32
    %81 = vector.broadcast %cst_59 : f32 to vector<32x256xf32>
    %82 = arith.cmpf oge, %80, %81 : vector<32x256xf32>
    %cst_60 = arith.constant 0.00999999977 : f32
    %83 = vector.broadcast %cst_60 : f32 to vector<32x256xf32>
    %84 = arith.mulf %83, %80 : vector<32x256xf32>
    %85 = arith.select %82, %80, %84 : vector<32x256xi1>, vector<32x256xf32>
    %86 = vector.extract_strided_slice %85 {offsets = [0, 0], sizes = [8, 256], strides = [1, 1]} : vector<32x256xf32> to vector<8x256xf32>
    %87 = arith.truncf %86 : vector<8x256xf32> to vector<8x256xbf16>
    %c0_61 = arith.constant 0 : index
    %c0_62 = arith.constant 0 : index
    %88 = vector.load %arg13[%c0_61, %c0_62] : memref<8x1024xbf16, #tpu.memory_space<vmem>>, vector<8x256xbf16>
    tpu.vector_store %arg13[%c0_61, %c0_62], %87 {strides = array<i32>} : memref<8x1024xbf16, #tpu.memory_space<vmem>>, vector<8x256xbf16>,
    %89 = vector.extract_strided_slice %85 {offsets = [8, 0], sizes = [8, 256], strides = [1, 1]} : vector<32x256xf32> to vector<8x256xf32>
    %90 = arith.truncf %89 : vector<8x256xf32> to vector<8x256xbf16>
    %c0_63 = arith.constant 0 : index
    %c256_64 = arith.constant 256 : index
    %91 = vector.load %arg13[%c0_63, %c256_64] : memref<8x1024xbf16, #tpu.memory_space<vmem>>, vector<8x256xbf16>
    tpu.vector_store %arg13[%c0_63, %c256_64], %90 {strides = array<i32>} : memref<8x1024xbf16, #tpu.memory_space<vmem>>, vector<8x256xbf16>,
    %92 = vector.extract_strided_slice %85 {offsets = [16, 0], sizes = [8, 256], strides = [1, 1]} : vector<32x256xf32> to vector<8x256xf32>
    %93 = arith.truncf %92 : vector<8x256xf32> to vector<8x256xbf16>
    %c0_65 = arith.constant 0 : index
    %c512_66 = arith.constant 512 : index
    %94 = vector.load %arg13[%c0_65, %c512_66] : memref<8x1024xbf16, #tpu.memory_space<vmem>>, vector<8x256xbf16>
    tpu.vector_store %arg13[%c0_65, %c512_66], %93 {strides = array<i32>} : memref<8x1024xbf16, #tpu.memory_space<vmem>>, vector<8x256xbf16>,
    %95 = vector.extract_strided_slice %85 {offsets = [24, 0], sizes = [8, 256], strides = [1, 1]} : vector<32x256xf32> to vector<8x256xf32>
    %96 = arith.truncf %95 : vector<8x256xf32> to vector<8x256xbf16>
    %c0_67 = arith.constant 0 : index
    %c768_68 = arith.constant 768 : index
    %97 = vector.load %arg13[%c0_67, %c768_68] : memref<8x1024xbf16, #tpu.memory_space<vmem>>, vector<8x256xbf16>
    tpu.vector_store %arg13[%c0_67, %c768_68], %96 {strides = array<i32>} : memref<8x1024xbf16, #tpu.memory_space<vmem>>, vector<8x256xbf16>,
    %c0_69 = arith.constant 0 : index
    %c0_70 = arith.constant 0 : index
    %98 = vector.load %arg13[%c0_69, %c0_70] : memref<8x1024xbf16, #tpu.memory_space<vmem>>, vector<8x1024xbf16>
    %c0_71 = arith.constant 0 : index
    %c0_72 = arith.constant 0 : index
    %99 = vector.load %arg8[%c0_71, %c0_72] : memref<1024x128xbf16, #tpu.memory_space<vmem>>, vector<1024x128xbf16>
    %cst_73 = arith.constant dense<0.000000e+00> : vector<8x128xf32>
    %100 = tpu.matmul %98, %99, %cst_73 {dimension_numbers = #tpu.dot_dimension_numbers<[1], [0], [0], [1], [0, 0, 1, 1], [], []>} : vector<8x1024xbf16>, vector<1024x128xbf16>, vector<8x128xf32> -> vector<8x128xf32>
    %c0_74 = arith.constant 0 : index
    %c0_75 = arith.constant 0 : index
    %101 = vector.load %arg9[%c0_74, %c0_75] : memref<1x128xf32, #tpu.memory_space<vmem>>, vector<1x128xf32>
    %102 = vector.broadcast %101 : vector<1x128xf32> to vector<8x128xf32>
    %103 = arith.addf %100, %102 : vector<8x128xf32>
    %104 = arith.negf %103 : vector<8x128xf32>
    %105 = math.exp %104 : vector<8x128xf32>
    %cst_76 = arith.constant 1.000000e+00 : f32
    %106 = vector.broadcast %cst_76 : f32 to vector<8x128xf32>
    %107 = arith.addf %106, %105 : vector<8x128xf32>
    %108 = arith.divf %106, %107 : vector<8x128xf32>
    %c0_77 = arith.constant 0 : index
    %c0_78 = arith.constant 0 : index
    %109 = vector.load %arg10[%c0_77, %c0_78] : memref<8x128xf32, #tpu.memory_space<vmem>>, vector<8x128xf32>
    tpu.vector_store %arg10[%c0_77, %c0_78], %108 {strides = array<i32>} : memref<8x128xf32, #tpu.memory_space<vmem>>, vector<8x128xf32>,
    return
  }
  func.func @transform_0(%arg0: i32) -> (i32, i32) {
    %c0_i32 = arith.constant 0 : i32
    %c0_i32_0 = arith.constant 0 : i32
    return %arg0, %c0_i32 : i32, i32
  }
  func.func @transform_1(%arg0: i32) -> (i32, i32) {
    %c0_i32 = arith.constant 0 : i32
    %c0_i32_0 = arith.constant 0 : i32
    %c0_i32_1 = arith.constant 0 : i32
    return %c0_i32, %c0_i32_0 : i32, i32
  }
  func.func @transform_2(%arg0: i32) -> (i32, i32) {
    %c0_i32 = arith.constant 0 : i32
    %c0_i32_0 = arith.constant 0 : i32
    %c0_i32_1 = arith.constant 0 : i32
    return %c0_i32, %c0_i32_0 : i32, i32
  }
  func.func @transform_3(%arg0: i32) -> (i32, i32) {
    %c0_i32 = arith.constant 0 : i32
    %c0_i32_0 = arith.constant 0 : i32
    %c0_i32_1 = arith.constant 0 : i32
    return %c0_i32, %c0_i32_0 : i32, i32
  }
  func.func @transform_4(%arg0: i32) -> (i32, i32) {
    %c0_i32 = arith.constant 0 : i32
    %c0_i32_0 = arith.constant 0 : i32
    %c0_i32_1 = arith.constant 0 : i32
    return %c0_i32, %c0_i32_0 : i32, i32
  }
  func.func @transform_5(%arg0: i32) -> (i32, i32) {
    %c0_i32 = arith.constant 0 : i32
    %c0_i32_0 = arith.constant 0 : i32
    %c0_i32_1 = arith.constant 0 : i32
    return %c0_i32, %c0_i32_0 : i32, i32
  }
  func.func @transform_6(%arg0: i32) -> (i32, i32) {
    %c0_i32 = arith.constant 0 : i32
    %c0_i32_0 = arith.constant 0 : i32
    %c0_i32_1 = arith.constant 0 : i32
    return %c0_i32, %c0_i32_0 : i32, i32
  }
  func.func @transform_7(%arg0: i32) -> (i32, i32) {
    %c0_i32 = arith.constant 0 : i32
    %c0_i32_0 = arith.constant 0 : i32
    %c0_i32_1 = arith.constant 0 : i32
    return %c0_i32, %c0_i32_0 : i32, i32
  }
  func.func @transform_8(%arg0: i32) -> (i32, i32) {
    %c0_i32 = arith.constant 0 : i32
    %c0_i32_0 = arith.constant 0 : i32
    %c0_i32_1 = arith.constant 0 : i32
    return %c0_i32, %c0_i32_0 : i32, i32
  }
  func.func @transform_9(%arg0: i32) -> (i32, i32) {
    %c0_i32 = arith.constant 0 : i32
    %c0_i32_0 = arith.constant 0 : i32
    return %arg0, %c0_i32 : i32, i32
  }
}

</mosaic_0001>

<llo_original>
// kernel: keypoints_forward.1
$region0: #{keypoints_forward.1}
  #allocation0 [shape = 'u32[]', space=smem, size = 0x4, offset = 0x4, fixed_abs, tag = 'smem constant byte address 0x4 - core index']
  #allocation1 [shape = 'u32[144,128]{1,0:T(1,128)}', space=vmem, size = 0x12000, scoped, tag = 'internal scratch']
  #allocation2 [shape = 'bf16[128,2048]{1,0:T(8,128)(2,1)}', space=vmem, size = 0x80000, scoped, tag = 'scratch operand']
  #allocation3 [shape = 'bf16[32,1024]{1,0:T(8,128)(2,1)}', space=vmem, size = 0x10000, scoped, tag = 'scratch operand']
  #allocation4 [shape = 'bf16[8,1024]{1,0:T(8,128)(2,1)}', space=vmem, size = 0x4000, scoped, tag = 'scratch operand']
  %s0 = inlined_call_operand.vmem [shape: bf16[512,128], index: 0, kind: input, shape index: {}]
  %s1 = inlined_call_operand.vmem [shape: bf16[128,512], index: 1, kind: input, shape index: {}]
  %s2 = inlined_call_operand.vmem [shape: f32[1,512], index: 2, kind: input, shape index: {}]
  %s3 = inlined_call_operand.vmem [shape: bf16[2048,256], index: 3, kind: input, shape index: {}]
  %s4 = inlined_call_operand.vmem [shape: f32[1,256], index: 4, kind: input, shape index: {}]
  %s5 = inlined_call_operand.vmem [shape: bf16[1024,256], index: 5, kind: input, shape index: {}]
  %s6 = inlined_call_operand.vmem [shape: f32[1,256], index: 6, kind: input, shape index: {}]
  %s7 = inlined_call_operand.vmem [shape: bf16[1024,128], index: 7, kind: input, shape index: {}]
  %s8 = inlined_call_operand.vmem [shape: f32[1,128], index: 8, kind: input, shape index: {}]
  %s9 = inlined_call_operand.vmem [shape: f32[8,128], index: 9, kind: output, shape index: {}]
  %s10 = sld [smem:[#allocation0]]
  $region46: #{keypoints_forward.1} parent=0
    _
  %s12 = ssub.s32 1, %s10
  %s13 = scalar_select 0, %s12, %s10
  // Predicated region
  $region2: #{keypoints_forward.1} parent=0 // pred_check
    _
  $region3: #{keypoints_forward.1} parent=0 // pred_check_branch
    %15 = sbr.rel (0) target = $region5
  $region4: #{keypoints_forward.1} parent=0 // pred_region
    _
  $region5: #{keypoints_forward.1} parent=0 // pred_fallthru
    _
  // Predicated region
  $region6: #{keypoints_forward.1} parent=0 // pred_check
    _
  $region7: #{keypoints_forward.1} parent=0 // pred_check_branch
    %17 = sbr.rel (0) target = $region9
  $region8: #{keypoints_forward.1} parent=0 // pred_region
    _
  $region9: #{keypoints_forward.1} parent=0 // pred_fallthru
    _
  // Predicated region
  $region10: #{keypoints_forward.1} parent=0 // pred_check
    _
  $region11: #{keypoints_forward.1} parent=0 // pred_check_branch
    %19 = sbr.rel (0) target = $region13
  $region12: #{keypoints_forward.1} parent=0 // pred_region
    _
  $region13: #{keypoints_forward.1} parent=0 // pred_fallthru
    _
  // Predicated region
  $region14: #{keypoints_forward.1} parent=0 // pred_check
    _
  $region15: #{keypoints_forward.1} parent=0 // pred_check_branch
    %21 = sbr.rel (0) target = $region17
  $region16: #{keypoints_forward.1} parent=0 // pred_region
    _
  $region17: #{keypoints_forward.1} parent=0 // pred_fallthru
    _
  // Predicated region
  $region18: #{keypoints_forward.1} parent=0 // pred_check
    _
  $region19: #{keypoints_forward.1} parent=0 // pred_check_branch
    %23 = sbr.rel (0) target = $region21
  $region20: #{keypoints_forward.1} parent=0 // pred_region
    _
  $region21: #{keypoints_forward.1} parent=0 // pred_fallthru
    _
  // Predicated region
  $region22: #{keypoints_forward.1} parent=0 // pred_check
    _
  $region23: #{keypoints_forward.1} parent=0 // pred_check_branch
    %25 = sbr.rel (0) target = $region25
  $region24: #{keypoints_forward.1} parent=0 // pred_region
    _
  $region25: #{keypoints_forward.1} parent=0 // pred_fallthru
    _
  // Predicated region
  $region26: #{keypoints_forward.1} parent=0 // pred_check
    _
  $region27: #{keypoints_forward.1} parent=0 // pred_check_branch
    %27 = sbr.rel (0) target = $region29
  $region28: #{keypoints_forward.1} parent=0 // pred_region
    _
  $region29: #{keypoints_forward.1} parent=0 // pred_fallthru
    _
  // Predicated region
  $region30: #{keypoints_forward.1} parent=0 // pred_check
    _
  $region31: #{keypoints_forward.1} parent=0 // pred_check_branch
    %29 = sbr.rel (0) target = $region33
  $region32: #{keypoints_forward.1} parent=0 // pred_region
    _
  $region33: #{keypoints_forward.1} parent=0 // pred_fallthru
    _
  // Predicated region
  $region34: #{keypoints_forward.1} parent=0 // pred_check
    _
  $region35: #{keypoints_forward.1} parent=0 // pred_check_branch
    %31 = sbr.rel (0) target = $region37
  $region36: #{keypoints_forward.1} parent=0 // pred_region
    _
  $region37: #{keypoints_forward.1} parent=0 // pred_fallthru
    _
  %v33 = vld [vmem:[%s0] sm:$0xf]
  %v34 = vld [vmem:[%s0 + $0x4] sm:$0xf]
  %v35 = vld [vmem:[%s0 + $0x8] sm:$0xf]
  %v36 = vld [vmem:[%s0 + $0xc] sm:$0xf]
  %v37 = vld [vmem:[%s0 + $0x10] sm:$0xf]
  %v38 = vld [vmem:[%s0 + $0x14] sm:$0xf]
  %v39 = vld [vmem:[%s0 + $0x18] sm:$0xf]
  %v40 = vld [vmem:[%s0 + $0x1c] sm:$0xf]
  %v41 = vld [vmem:[%s0 + $0x20] sm:$0xf]
  %v42 = vld [vmem:[%s0 + $0x24] sm:$0xf]
  %v43 = vld [vmem:[%s0 + $0x28] sm:$0xf]
  %v44 = vld [vmem:[%s0 + $0x2c] sm:$0xf]
  %v45 = vld [vmem:[%s0 + $0x30] sm:$0xf]
  %v46 = vld [vmem:[%s0 + $0x34] sm:$0xf]
  %v47 = vld [vmem:[%s0 + $0x38] sm:$0xf]
  %v48 = vld [vmem:[%s0 + $0x3c] sm:$0xf]
  %v49 = vld [vmem:[%s1] sm:$0xff]
  %v50 = vld [vmem:[%s1 + $0x8] sm:$0xff]
  %v51 = vld [vmem:[%s1 + $0x10] sm:$0xff]
  %v52 = vld [vmem:[%s1 + $0x18] sm:$0xff]
  %v53 = vld [vmem:[%s1 + $0x20] sm:$0xff]
  %v54 = vld [vmem:[%s1 + $0x28] sm:$0xff]
  %v55 = vld [vmem:[%s1 + $0x30] sm:$0xff]
  %v56 = vld [vmem:[%s1 + $0x38] sm:$0xff]
  %v57 = vld [vmem:[%s1 + $0x40] sm:$0xff]
  %v58 = vld [vmem:[%s1 + $0x48] sm:$0xff]
  %v59 = vld [vmem:[%s1 + $0x50] sm:$0xff]
  %v60 = vld [vmem:[%s1 + $0x58] sm:$0xff]
  %v61 = vld [vmem:[%s1 + $0x60] sm:$0xff]
  %v62 = vld [vmem:[%s1 + $0x68] sm:$0xff]
  %v63 = vld [vmem:[%s1 + $0x70] sm:$0xff]
  %v64 = vld [vmem:[%s1 + $0x78] sm:$0xff]
  %v65 = vld [vmem:[%s1 + $0x80] sm:$0xff]
  %v66 = vld [vmem:[%s1 + $0x88] sm:$0xff]
  %v67 = vld [vmem:[%s1 + $0x90] sm:$0xff]
  %v68 = vld [vmem:[%s1 + $0x98] sm:$0xff]
  %v69 = vld [vmem:[%s1 + $0xa0] sm:$0xff]
  %v70 = vld [vmem:[%s1 + $0xa8] sm:$0xff]
  %v71 = vld [vmem:[%s1 + $0xb0] sm:$0xff]
  %v72 = vld [vmem:[%s1 + $0xb8] sm:$0xff]
  %v73 = vld [vmem:[%s1 + $0xc0] sm:$0xff]
  %v74 = vld [vmem:[%s1 + $0xc8] sm:$0xff]
  %v75 = vld [vmem:[%s1 + $0xd0] sm:$0xff]
  %v76 = vld [vmem:[%s1 + $0xd8] sm:$0xff]
  %v77 = vld [vmem:[%s1 + $0xe0] sm:$0xff]
  %v78 = vld [vmem:[%s1 + $0xe8] sm:$0xff]
  %v79 = vld [vmem:[%s1 + $0xf0] sm:$0xff]
  %v80 = vld [vmem:[%s1 + $0xf8] sm:$0xff]
  %v81 = vld [vmem:[%s2] sm:$0xf]
  %v83 = vlaneseq
  %v84 = vshrl.u32 %v83, 7
  %v85 = vsub.s32 0, %v84
  %v86 = vrot.slane %v81, %v85
  %v87 = vlaneseq
  %v88 = vshrl.u32 %v87, 7
  %v89 = vsub.s32 1, %v88
  %v90 = vrot.slane %v81, %v89
  %v91 = vlaneseq
  %v92 = vshrl.u32 %v91, 7
  %v93 = vsub.s32 2, %v92
  %v94 = vrot.slane %v81, %v93
  %v95 = vlaneseq
  %v96 = vshrl.u32 %v95, 7
  %v97 = vsub.s32 3, %v96
  %v98 = vrot.slane %v81, %v97
  %v119 = vunpack.c.l.b16 %v33
  %v120 = vunpack.c.l.b16 %v34
  %v121 = vunpack.c.l.b16 %v35
  %v122 = vunpack.c.l.b16 %v36
  %v123 = vunpack.c.l.b16 %v37
  %v124 = vunpack.c.l.b16 %v38
  %v125 = vunpack.c.l.b16 %v39
  %v126 = vunpack.c.l.b16 %v40
  %v127 = vunpack.c.l.b16 %v41
  %v128 = vunpack.c.l.b16 %v42
  %v129 = vunpack.c.l.b16 %v43
  %v130 = vunpack.c.l.b16 %v44
  %v131 = vunpack.c.l.b16 %v45
  %v132 = vunpack.c.l.b16 %v46
  %v133 = vunpack.c.l.b16 %v47
  %v134 = vunpack.c.l.b16 %v48
  %v135 = vpack.c.b16 %v120, %v119
  %v136 = vpack.c.b16 %v122, %v121
  %v137 = vpack.c.b16 %v124, %v123
  %v138 = vpack.c.b16 %v126, %v125
  %v139 = vpack.c.b16 %v128, %v127
  %v140 = vpack.c.b16 %v130, %v129
  %v141 = vpack.c.b16 %v132, %v131
  %v142 = vpack.c.b16 %v134, %v133
  %v183 = vunpack.c.l.b16 %v49
  %v184 = vunpack.c.h.b16 %v49
  %v185 = vunpack.c.l.b16 %v50
  %v186 = vunpack.c.h.b16 %v50
  %v187 = vunpack.c.l.b16 %v51
  %v188 = vunpack.c.h.b16 %v51
  %v189 = vunpack.c.l.b16 %v52
  %v190 = vunpack.c.h.b16 %v52
  %v191 = vunpack.c.l.b16 %v53
  %v192 = vunpack.c.h.b16 %v53
  %v193 = vunpack.c.l.b16 %v54
  %v194 = vunpack.c.h.b16 %v54
  %v195 = vunpack.c.l.b16 %v55
  %v196 = vunpack.c.h.b16 %v55
  %v197 = vunpack.c.l.b16 %v56
  %v198 = vunpack.c.h.b16 %v56
  %v199 = vunpack.c.l.b16 %v57
  %v200 = vunpack.c.h.b16 %v57
  %v201 = vunpack.c.l.b16 %v58
  %v202 = vunpack.c.h.b16 %v58
  %v203 = vunpack.c.l.b16 %v59
  %v204 = vunpack.c.h.b16 %v59
  %v205 = vunpack.c.l.b16 %v60
  %v206 = vunpack.c.h.b16 %v60
  %v207 = vunpack.c.l.b16 %v61
  %v208 = vunpack.c.h.b16 %v61
  %v209 = vunpack.c.l.b16 %v62
  %v210 = vunpack.c.h.b16 %v62
  %v211 = vunpack.c.l.b16 %v63
  %v212 = vunpack.c.h.b16 %v63
  %v213 = vunpack.c.l.b16 %v64
  %v214 = vunpack.c.h.b16 %v64
  %v215 = vunpack.c.l.b16 %v65
  %v216 = vunpack.c.h.b16 %v65
  %v217 = vunpack.c.l.b16 %v66
  %v218 = vunpack.c.h.b16 %v66
  %v219 = vunpack.c.l.b16 %v67
  %v220 = vunpack.c.h.b16 %v67
  %v221 = vunpack.c.l.b16 %v68
  %v222 = vunpack.c.h.b16 %v68
  %v223 = vunpack.c.l.b16 %v69
  %v224 = vunpack.c.h.b16 %v69
  %v225 = vunpack.c.l.b16 %v70
  %v226 = vunpack.c.h.b16 %v70
  %v227 = vunpack.c.l.b16 %v71
  %v228 = vunpack.c.h.b16 %v71
  %v229 = vunpack.c.l.b16 %v72
  %v230 = vunpack.c.h.b16 %v72
  %v231 = vunpack.c.l.b16 %v73
  %v232 = vunpack.c.h.b16 %v73
  %v233 = vunpack.c.l.b16 %v74
  %v234 = vunpack.c.h.b16 %v74
  %v235 = vunpack.c.l.b16 %v75
  %v236 = vunpack.c.h.b16 %v75
  %v237 = vunpack.c.l.b16 %v76
  %v238 = vunpack.c.h.b16 %v76
  %v239 = vunpack.c.l.b16 %v77
  %v240 = vunpack.c.h.b16 %v77
  %v241 = vunpack.c.l.b16 %v78
  %v242 = vunpack.c.h.b16 %v78
  %v243 = vunpack.c.l.b16 %v79
  %v244 = vunpack.c.h.b16 %v79
  %v245 = vunpack.c.l.b16 %v80
  %v246 = vunpack.c.h.b16 %v80
  %v247 = vpack.c.b16 %v187, %v183
  %v248 = vpack.c.b16 %v188, %v184
  %v249 = vpack.c.b16 %v189, %v185
  %v250 = vpack.c.b16 %v190, %v186
  %v251 = vpack.c.b16 %v195, %v191
  %v252 = vpack.c.b16 %v196, %v192
  %v253 = vpack.c.b16 %v197, %v193
  %v254 = vpack.c.b16 %v198, %v194
  %v255 = vpack.c.b16 %v203, %v199
  %v256 = vpack.c.b16 %v204, %v200
  %v257 = vpack.c.b16 %v205, %v201
  %v258 = vpack.c.b16 %v206, %v202
  %v259 = vpack.c.b16 %v211, %v207
  %v260 = vpack.c.b16 %v212, %v208
  %v261 = vpack.c.b16 %v213, %v209
  %v262 = vpack.c.b16 %v214, %v210
  %v263 = vpack.c.b16 %v219, %v215
  %v264 = vpack.c.b16 %v220, %v216
  %v265 = vpack.c.b16 %v221, %v217
  %v266 = vpack.c.b16 %v222, %v218
  %v267 = vpack.c.b16 %v227, %v223
  %v268 = vpack.c.b16 %v228, %v224
  %v269 = vpack.c.b16 %v229, %v225
  %v270 = vpack.c.b16 %v230, %v226
  %v271 = vpack.c.b16 %v235, %v231
  %v272 = vpack.c.b16 %v236, %v232
  %v273 = vpack.c.b16 %v237, %v233
  %v274 = vpack.c.b16 %v238, %v234
  %v275 = vpack.c.b16 %v243, %v239
  %v276 = vpack.c.b16 %v244, %v240
  %v277 = vpack.c.b16 %v245, %v241
  %v278 = vpack.c.b16 %v246, %v242
  %311 = vmatprep.subr.bf16.mxu0 %v276
  %312 = vmatpush1.bf16.msra.mxu0 %v275
  %313 = vmatprep.subr.bf16.mxu0 %v272
  %314 = vmatpush1.bf16.msra.mxu0 %v271
  %315 = vmatprep.subr.bf16.mxu0 %v268
  %316 = vmatpush1.bf16.msra.mxu0 %v267
  %317 = vmatprep.subr.bf16.mxu0 %v264
  %318 = vmatpush1.bf16.msra.mxu0 %v263
  %319 = vmatprep.subr.bf16.mxu0 %v260
  %320 = vmatpush1.bf16.msra.mxu0 %v259
  %321 = vmatprep.subr.bf16.mxu0 %v256
  %322 = vmatpush1.bf16.msra.mxu0 %v255
  %323 = vmatprep.subr.bf16.mxu0 %v252
  %324 = vmatpush1.bf16.msra.mxu0 %v251
  %325 = vmatprep.subr.bf16.mxu0 %v248
  %326 = vmatpush1.bf16.msra.mxu0 %v247
  %327 = vmatprep.subr.bf16.mxu0 0
  %328 = vmatpush2.bf16.msra.mxu0 0
  %329 = vmatprep.subr.bf16.mxu0 0
  %330 = vmatpush2.bf16.msra.mxu0 0
  %331 = vmatprep.subr.bf16.mxu0 0
  %332 = vmatpush2.bf16.msra.mxu0 0
  %333 = vmatprep.subr.bf16.mxu0 0
  %334 = vmatpush2.bf16.msra.mxu0 0
  %335 = vmatprep.subr.bf16.mxu0 0
  %336 = vmatpush2.bf16.msra.mxu0 0
  %337 = vmatprep.subr.bf16.mxu0 0
  %338 = vmatpush2.bf16.msra.mxu0 0
  %339 = vmatprep.subr.bf16.mxu0 0
  %340 = vmatpush2.bf16.msra.mxu0 0
  %341 = vmatprep.subr.bf16.mxu0 0
  %342 = vmatpush2.bf16.msra.mxu0 0
  %343 = vmatprep.mubr.bf16.mxu0 0
  %344 = vmatmul.mubr.bf16.gmra.mxu0 %v135
  %v345 = vpop.f32.mrf.mxu0
  %v346 = vadd.f32 %v86, %v345
  %v347 = vpop.f32.mrf.mxu0
  %v348 = vadd.f32 %v90, %v347
  %v349 = vpop.f32.mrf.mxu0
  %v350 = vadd.f32 %v86, %v349
  %v351 = vpop.f32.mrf.mxu0
  %v352 = vadd.f32 %v90, %v351
  %353 = vmatprep.mubr.bf16.mxu0 0
  %354 = vmatmul.mubr.bf16.gmra.mxu0 %v136
  %v355 = vpop.f32.mrf.mxu0
  %v356 = vadd.f32 %v86, %v355
  %v357 = vpop.f32.mrf.mxu0
  %v358 = vadd.f32 %v90, %v357
  %v359 = vpop.f32.mrf.mxu0
  %v360 = vadd.f32 %v86, %v359
  %v361 = vpop.f32.mrf.mxu0
  %v362 = vadd.f32 %v90, %v361
  %363 = vmatprep.mubr.bf16.mxu0 0
  %364 = vmatmul.mubr.bf16.gmra.mxu0 %v137
  %v365 = vpop.f32.mrf.mxu0
  %v366 = vadd.f32 %v86, %v365
  %v367 = vpop.f32.mrf.mxu0
  %v368 = vadd.f32 %v90, %v367
  %v369 = vpop.f32.mrf.mxu0
  %v370 = vadd.f32 %v86, %v369
  %v371 = vpop.f32.mrf.mxu0
  %v372 = vadd.f32 %v90, %v371
  %373 = vmatprep.mubr.bf16.mxu0 0
  %374 = vmatmul.mubr.bf16.gmra.mxu0 %v138
  %v375 = vpop.f32.mrf.mxu0
  %v376 = vadd.f32 %v86, %v375
  %v377 = vpop.f32.mrf.mxu0
  %v378 = vadd.f32 %v90, %v377
  %v379 = vpop.f32.mrf.mxu0
  %v380 = vadd.f32 %v86, %v379
  %v381 = vpop.f32.mrf.mxu0
  %v382 = vadd.f32 %v90, %v381
  %383 = vmatprep.mubr.bf16.mxu0 0
  %384 = vmatmul.mubr.bf16.gmra.mxu0 %v139
  %v385 = vpop.f32.mrf.mxu0
  %v386 = vadd.f32 %v86, %v385
  %v387 = vpop.f32.mrf.mxu0
  %v388 = vadd.f32 %v90, %v387
  %v389 = vpop.f32.mrf.mxu0
  %v390 = vadd.f32 %v86, %v389
  %v391 = vpop.f32.mrf.mxu0
  %v392 = vadd.f32 %v90, %v391
  %393 = vmatprep.mubr.bf16.mxu0 0
  %394 = vmatmul.mubr.bf16.gmra.mxu0 %v140
  %v395 = vpop.f32.mrf.mxu0
  %v396 = vadd.f32 %v86, %v395
  %v397 = vpop.f32.mrf.mxu0
  %v398 = vadd.f32 %v90, %v397
  %v399 = vpop.f32.mrf.mxu0
  %v400 = vadd.f32 %v86, %v399
  %v401 = vpop.f32.mrf.mxu0
  %v402 = vadd.f32 %v90, %v401
  %403 = vmatprep.mubr.bf16.mxu0 0
  %404 = vmatmul.mubr.bf16.gmra.mxu0 %v141
  %v405 = vpop.f32.mrf.mxu0
  %v406 = vadd.f32 %v86, %v405
  %v407 = vpop.f32.mrf.mxu0
  %v408 = vadd.f32 %v90, %v407
  %v409 = vpop.f32.mrf.mxu0
  %v410 = vadd.f32 %v86, %v409
  %v411 = vpop.f32.mrf.mxu0
  %v412 = vadd.f32 %v90, %v411
  %413 = vmatprep.mubr.bf16.mxu0 0
  %414 = vmatmul.mubr.bf16.gmra.mxu0 %v142
  %v415 = vpop.f32.mrf.mxu0
  %v416 = vadd.f32 %v86, %v415
  %v417 = vpop.f32.mrf.mxu0
  %v418 = vadd.f32 %v90, %v417
  %v419 = vpop.f32.mrf.mxu0
  %v420 = vadd.f32 %v86, %v419
  %v421 = vpop.f32.mrf.mxu0
  %v422 = vadd.f32 %v90, %v421
  %423 = vdwg.mxu0
  %424 = vmatprep.subr.bf16.mxu0 %v278
  %425 = vmatpush1.bf16.msra.mxu0 %v277
  %426 = vmatprep.subr.bf16.mxu0 %v274
  %427 = vmatpush1.bf16.msra.mxu0 %v273
  %428 = vmatprep.subr.bf16.mxu0 %v270
  %429 = vmatpush1.bf16.msra.mxu0 %v269
  %430 = vmatprep.subr.bf16.mxu0 %v266
  %431 = vmatpush1.bf16.msra.mxu0 %v265
  %432 = vmatprep.subr.bf16.mxu0 %v262
  %433 = vmatpush1.bf16.msra.mxu0 %v261
  %434 = vmatprep.subr.bf16.mxu0 %v258
  %435 = vmatpush1.bf16.msra.mxu0 %v257
  %436 = vmatprep.subr.bf16.mxu0 %v254
  %437 = vmatpush1.bf16.msra.mxu0 %v253
  %438 = vmatprep.subr.bf16.mxu0 %v250
  %439 = vmatpush1.bf16.msra.mxu0 %v249
  %440 = vmatprep.subr.bf16.mxu0 0
  %441 = vmatpush2.bf16.msra.mxu0 0
  %442 = vmatprep.subr.bf16.mxu0 0
  %443 = vmatpush2.bf16.msra.mxu0 0
  %444 = vmatprep.subr.bf16.mxu0 0
  %445 = vmatpush2.bf16.msra.mxu0 0
  %446 = vmatprep.subr.bf16.mxu0 0
  %447 = vmatpush2.bf16.msra.mxu0 0
  %448 = vmatprep.subr.bf16.mxu0 0
  %449 = vmatpush2.bf16.msra.mxu0 0
  %450 = vmatprep.subr.bf16.mxu0 0
  %451 = vmatpush2.bf16.msra.mxu0 0
  %452 = vmatprep.subr.bf16.mxu0 0
  %453 = vmatpush2.bf16.msra.mxu0 0
  %454 = vmatprep.subr.bf16.mxu0 0
  %455 = vmatpush2.bf16.msra.mxu0 0
  %456 = vmatprep.mubr.bf16.mxu0 0
  %457 = vmatmul.mubr.bf16.gmra.mxu0 %v135
  %v458 = vpop.f32.mrf.mxu0
  %v459 = vadd.f32 %v94, %v458
  %v460 = vpop.f32.mrf.mxu0
  %v461 = vadd.f32 %v98, %v460
  %v462 = vpop.f32.mrf.mxu0
  %v463 = vadd.f32 %v94, %v462
  %v464 = vpop.f32.mrf.mxu0
  %v465 = vadd.f32 %v98, %v464
  %466 = vmatprep.mubr.bf16.mxu0 0
  %467 = vmatmul.mubr.bf16.gmra.mxu0 %v136
  %v468 = vpop.f32.mrf.mxu0
  %v469 = vadd.f32 %v94, %v468
  %v470 = vpop.f32.mrf.mxu0
  %v471 = vadd.f32 %v98, %v470
  %v472 = vpop.f32.mrf.mxu0
  %v473 = vadd.f32 %v94, %v472
  %v474 = vpop.f32.mrf.mxu0
  %v475 = vadd.f32 %v98, %v474
  %476 = vmatprep.mubr.bf16.mxu0 0
  %477 = vmatmul.mubr.bf16.gmra.mxu0 %v137
  %v478 = vpop.f32.mrf.mxu0
  %v479 = vadd.f32 %v94, %v478
  %v480 = vpop.f32.mrf.mxu0
  %v481 = vadd.f32 %v98, %v480
  %v482 = vpop.f32.mrf.mxu0
  %v483 = vadd.f32 %v94, %v482
  %v484 = vpop.f32.mrf.mxu0
  %v485 = vadd.f32 %v98, %v484
  %486 = vmatprep.mubr.bf16.mxu0 0
  %487 = vmatmul.mubr.bf16.gmra.mxu0 %v138
  %v488 = vpop.f32.mrf.mxu0
  %v489 = vadd.f32 %v94, %v488
  %v490 = vpop.f32.mrf.mxu0
  %v491 = vadd.f32 %v98, %v490
  %v492 = vpop.f32.mrf.mxu0
  %v493 = vadd.f32 %v94, %v492
  %v494 = vpop.f32.mrf.mxu0
  %v495 = vadd.f32 %v98, %v494
  %496 = vmatprep.mubr.bf16.mxu0 0
  %497 = vmatmul.mubr.bf16.gmra.mxu0 %v139
  %v498 = vpop.f32.mrf.mxu0
  %v499 = vadd.f32 %v94, %v498
  %v500 = vpop.f32.mrf.mxu0
  %v501 = vadd.f32 %v98, %v500
  %v502 = vpop.f32.mrf.mxu0
  %v503 = vadd.f32 %v94, %v502
  %v504 = vpop.f32.mrf.mxu0
  %v505 = vadd.f32 %v98, %v504
  %506 = vmatprep.mubr.bf16.mxu0 0
  %507 = vmatmul.mubr.bf16.gmra.mxu0 %v140
  %v508 = vpop.f32.mrf.mxu0
  %v509 = vadd.f32 %v94, %v508
  %v510 = vpop.f32.mrf.mxu0
  %v511 = vadd.f32 %v98, %v510
  %v512 = vpop.f32.mrf.mxu0
  %v513 = vadd.f32 %v94, %v512
  %v514 = vpop.f32.mrf.mxu0
  %v515 = vadd.f32 %v98, %v514
  %516 = vmatprep.mubr.bf16.mxu0 0
  %517 = vmatmul.mubr.bf16.gmra.mxu0 %v141
  %v518 = vpop.f32.mrf.mxu0
  %v519 = vadd.f32 %v94, %v518
  %v520 = vpop.f32.mrf.mxu0
  %v521 = vadd.f32 %v98, %v520
  %v522 = vpop.f32.mrf.mxu0
  %v523 = vadd.f32 %v94, %v522
  %v524 = vpop.f32.mrf.mxu0
  %v525 = vadd.f32 %v98, %v524
  %526 = vmatprep.mubr.bf16.mxu0 0
  %527 = vmatmul.mubr.bf16.gmra.mxu0 %v142
  %v528 = vpop.f32.mrf.mxu0
  %v529 = vadd.f32 %v94, %v528
  %v530 = vpop.f32.mrf.mxu0
  %v531 = vadd.f32 %v98, %v530
  %v532 = vpop.f32.mrf.mxu0
  %v533 = vadd.f32 %v94, %v532
  %v534 = vpop.f32.mrf.mxu0
  %v535 = vadd.f32 %v98, %v534
  %536 = vdwg.mxu0
  %vm537 = vcmp.ge.f32.partialorder %v346, 0.0
  %vm538 = vcmp.ge.f32.partialorder %v348, 0.0
  %vm539 = vcmp.ge.f32.partialorder %v459, 0.0
  %vm540 = vcmp.ge.f32.partialorder %v461, 0.0
  %vm541 = vcmp.ge.f32.partialorder %v350, 0.0
  %vm542 = vcmp.ge.f32.partialorder %v352, 0.0
  %vm543 = vcmp.ge.f32.partialorder %v463, 0.0
  %vm544 = vcmp.ge.f32.partialorder %v465, 0.0
  %vm545 = vcmp.ge.f32.partialorder %v356, 0.0
  %vm546 = vcmp.ge.f32.partialorder %v358, 0.0
  %vm547 = vcmp.ge.f32.partialorder %v469, 0.0
  %vm548 = vcmp.ge.f32.partialorder %v471, 0.0
  %vm549 = vcmp.ge.f32.partialorder %v360, 0.0
  %vm550 = vcmp.ge.f32.partialorder %v362, 0.0
  %vm551 = vcmp.ge.f32.partialorder %v473, 0.0
  %vm552 = vcmp.ge.f32.partialorder %v475, 0.0
  %vm553 = vcmp.ge.f32.partialorder %v366, 0.0
  %vm554 = vcmp.ge.f32.partialorder %v368, 0.0
  %vm555 = vcmp.ge.f32.partialorder %v479, 0.0
  %vm556 = vcmp.ge.f32.partialorder %v481, 0.0
  %vm557 = vcmp.ge.f32.partialorder %v370, 0.0
  %vm558 = vcmp.ge.f32.partialorder %v372, 0.0
  %vm559 = vcmp.ge.f32.partialorder %v483, 0.0
  %vm560 = vcmp.ge.f32.partialorder %v485, 0.0
  %vm561 = vcmp.ge.f32.partialorder %v376, 0.0
  %vm562 = vcmp.ge.f32.partialorder %v378, 0.0
  %vm563 = vcmp.ge.f32.partialorder %v489, 0.0
  %vm564 = vcmp.ge.f32.partialorder %v491, 0.0
  %vm565 = vcmp.ge.f32.partialorder %v380, 0.0
  %vm566 = vcmp.ge.f32.partialorder %v382, 0.0
  %vm567 = vcmp.ge.f32.partialorder %v493, 0.0
  %vm568 = vcmp.ge.f32.partialorder %v495, 0.0
  %vm569 = vcmp.ge.f32.partialorder %v386, 0.0
  %vm570 = vcmp.ge.f32.partialorder %v388, 0.0
  %vm571 = vcmp.ge.f32.partialorder %v499, 0.0
  %vm572 = vcmp.ge.f32.partialorder %v501, 0.0
  %vm573 = vcmp.ge.f32.partialorder %v390, 0.0
  %vm574 = vcmp.ge.f32.partialorder %v392, 0.0
  %vm575 = vcmp.ge.f32.partialorder %v503, 0.0
  %vm576 = vcmp.ge.f32.partialorder %v505, 0.0
  %vm577 = vcmp.ge.f32.partialorder %v396, 0.0
  %vm578 = vcmp.ge.f32.partialorder %v398, 0.0
  %vm579 = vcmp.ge.f32.partialorder %v509, 0.0
  %vm580 = vcmp.ge.f32.partialorder %v511, 0.0
  %vm581 = vcmp.ge.f32.partialorder %v400, 0.0
  %vm582 = vcmp.ge.f32.partialorder %v402, 0.0
  %vm583 = vcmp.ge.f32.partialorder %v513, 0.0
  %vm584 = vcmp.ge.f32.partialorder %v515, 0.0
  %vm585 = vcmp.ge.f32.partialorder %v406, 0.0
  %vm586 = vcmp.ge.f32.partialorder %v408, 0.0
  %vm587 = vcmp.ge.f32.partialorder %v519, 0.0
  %vm588 = vcmp.ge.f32.partialorder %v521, 0.0
  %vm589 = vcmp.ge.f32.partialorder %v410, 0.0
  %vm590 = vcmp.ge.f32.partialorder %v412, 0.0
  %vm591 = vcmp.ge.f32.partialorder %v523, 0.0
  %vm592 = vcmp.ge.f32.partialorder %v525, 0.0
  %vm593 = vcmp.ge.f32.partialorder %v416, 0.0
  %vm594 = vcmp.ge.f32.partialorder %v418, 0.0
  %vm595 = vcmp.ge.f32.partialorder %v529, 0.0
  %vm596 = vcmp.ge.f32.partialorder %v531, 0.0
  %vm597 = vcmp.ge.f32.partialorder %v420, 0.0
  %vm598 = vcmp.ge.f32.partialorder %v422, 0.0
  %vm599 = vcmp.ge.f32.partialorder %v533, 0.0
  %vm600 = vcmp.ge.f32.partialorder %v535, 0.0
  %v601 = vmul.f32 %v346, 0.01
  %v602 = vmul.f32 %v348, 0.01
  %v603 = vmul.f32 %v459, 0.01
  %v604 = vmul.f32 %v461, 0.01
  %v605 = vmul.f32 %v350, 0.01
  %v606 = vmul.f32 %v352, 0.01
  %v607 = vmul.f32 %v463, 0.01
  %v608 = vmul.f32 %v465, 0.01
  %v609 = vmul.f32 %v356, 0.01
  %v610 = vmul.f32 %v358, 0.01
  %v611 = vmul.f32 %v469, 0.01
  %v612 = vmul.f32 %v471, 0.01
  %v613 = vmul.f32 %v360, 0.01
  %v614 = vmul.f32 %v362, 0.01
  %v615 = vmul.f32 %v473, 0.01
  %v616 = vmul.f32 %v475, 0.01
  %v617 = vmul.f32 %v366, 0.01
  %v618 = vmul.f32 %v368, 0.01
  %v619 = vmul.f32 %v479, 0.01
  %v620 = vmul.f32 %v481, 0.01
  %v621 = vmul.f32 %v370, 0.01
  %v622 = vmul.f32 %v372, 0.01
  %v623 = vmul.f32 %v483, 0.01
  %v624 = vmul.f32 %v485, 0.01
  %v625 = vmul.f32 %v376, 0.01
  %v626 = vmul.f32 %v378, 0.01
  %v627 = vmul.f32 %v489, 0.01
  %v628 = vmul.f32 %v491, 0.01
  %v629 = vmul.f32 %v380, 0.01
  %v630 = vmul.f32 %v382, 0.01
  %v631 = vmul.f32 %v493, 0.01
  %v632 = vmul.f32 %v495, 0.01
  %v633 = vmul.f32 %v386, 0.01
  %v634 = vmul.f32 %v388, 0.01
  %v635 = vmul.f32 %v499, 0.01
  %v636 = vmul.f32 %v501, 0.01
  %v637 = vmul.f32 %v390, 0.01
  %v638 = vmul.f32 %v392, 0.01
  %v639 = vmul.f32 %v503, 0.01
  %v640 = vmul.f32 %v505, 0.01
  %v641 = vmul.f32 %v396, 0.01
  %v642 = vmul.f32 %v398, 0.01
  %v643 = vmul.f32 %v509, 0.01
  %v644 = vmul.f32 %v511, 0.01
  %v645 = vmul.f32 %v400, 0.01
  %v646 = vmul.f32 %v402, 0.01
  %v647 = vmul.f32 %v513, 0.01
  %v648 = vmul.f32 %v515, 0.01
  %v649 = vmul.f32 %v406, 0.01
  %v650 = vmul.f32 %v408, 0.01
  %v651 = vmul.f32 %v519, 0.01
  %v652 = vmul.f32 %v521, 0.01
  %v653 = vmul.f32 %v410, 0.01
  %v654 = vmul.f32 %v412, 0.01
  %v655 = vmul.f32 %v523, 0.01
  %v656 = vmul.f32 %v525, 0.01
  %v657 = vmul.f32 %v416, 0.01
  %v658 = vmul.f32 %v418, 0.01
  %v659 = vmul.f32 %v529, 0.01
  %v660 = vmul.f32 %v531, 0.01
  %v661 = vmul.f32 %v420, 0.01
  %v662 = vmul.f32 %v422, 0.01
  %v663 = vmul.f32 %v533, 0.01
  %v664 = vmul.f32 %v535, 0.01
  %v665 = vsel %vm537, %v346, %v601
  %v666 = vsel %vm538, %v348, %v602
  %v667 = vsel %vm539, %v459, %v603
  %v668 = vsel %vm540, %v461, %v604
  %v669 = vsel %vm541, %v350, %v605
  %v670 = vsel %vm542, %v352, %v606
  %v671 = vsel %vm543, %v463, %v607
  %v672 = vsel %vm544, %v465, %v608
  %v673 = vsel %vm545, %v356, %v609
  %v674 = vsel %vm546, %v358, %v610
  %v675 = vsel %vm547, %v469, %v611
  %v676 = vsel %vm548, %v471, %v612
  %v677 = vsel %vm549, %v360, %v613
  %v678 = vsel %vm550, %v362, %v614
  %v679 = vsel %vm551, %v473, %v615
  %v680 = vsel %vm552, %v475, %v616
  %v681 = vsel %vm553, %v366, %v617
  %v682 = vsel %vm554, %v368, %v618
  %v683 = vsel %vm555, %v479, %v619
  %v684 = vsel %vm556, %v481, %v620
  %v685 = vsel %vm557, %v370, %v621
  %v686 = vsel %vm558, %v372, %v622
  %v687 = vsel %vm559, %v483, %v623
  %v688 = vsel %vm560, %v485, %v624
  %v689 = vsel %vm561, %v376, %v625
  %v690 = vsel %vm562, %v378, %v626
  %v691 = vsel %vm563, %v489, %v627
  %v692 = vsel %vm564, %v491, %v628
  %v693 = vsel %vm565, %v380, %v629
  %v694 = vsel %vm566, %v382, %v630
  %v695 = vsel %vm567, %v493, %v631
  %v696 = vsel %vm568, %v495, %v632
  %v697 = vsel %vm569, %v386, %v633
  %v698 = vsel %vm570, %v388, %v634
  %v699 = vsel %vm571, %v499, %v635
  %v700 = vsel %vm572, %v501, %v636
  %v701 = vsel %vm573, %v390, %v637
  %v702 = vsel %vm574, %v392, %v638
  %v703 = vsel %vm575, %v503, %v639
  %v704 = vsel %vm576, %v505, %v640
  %v705 = vsel %vm577, %v396, %v641
  %v706 = vsel %vm578, %v398, %v642
  %v707 = vsel %vm579, %v509, %v643
  %v708 = vsel %vm580, %v511, %v644
  %v709 = vsel %vm581, %v400, %v645
  %v710 = vsel %vm582, %v402, %v646
  %v711 = vsel %vm583, %v513, %v647
  %v712 = vsel %vm584, %v515, %v648
  %v713 = vsel %vm585, %v406, %v649
  %v714 = vsel %vm586, %v408, %v650
  %v715 = vsel %vm587, %v519, %v651
  %v716 = vsel %vm588, %v521, %v652
  %v717 = vsel %vm589, %v410, %v653
  %v718 = vsel %vm590, %v412, %v654
  %v719 = vsel %vm591, %v523, %v655
  %v720 = vsel %vm592, %v525, %v656
  %v721 = vsel %vm593, %v416, %v657
  %v722 = vsel %vm594, %v418, %v658
  %v723 = vsel %vm595, %v529, %v659
  %v724 = vsel %vm596, %v531, %v660
  %v725 = vsel %vm597, %v420, %v661
  %v726 = vsel %vm598, %v422, %v662
  %v727 = vsel %vm599, %v533, %v663
  %v728 = vsel %vm600, %v535, %v664
  %v729 = vpack.c.bf16 %v669, %v665
  %v730 = vpack.c.bf16 %v670, %v666
  %v731 = vpack.c.bf16 %v671, %v667
  %v732 = vpack.c.bf16 %v672, %v668
  %v733 = vpack.c.bf16 %v677, %v673
  %v734 = vpack.c.bf16 %v678, %v674
  %v735 = vpack.c.bf16 %v679, %v675
  %v736 = vpack.c.bf16 %v680, %v676
  %v737 = vpack.c.bf16 %v685, %v681
  %v738 = vpack.c.bf16 %v686, %v682
  %v739 = vpack.c.bf16 %v687, %v683
  %v740 = vpack.c.bf16 %v688, %v684
  %v741 = vpack.c.bf16 %v693, %v689
  %v742 = vpack.c.bf16 %v694, %v690
  %v743 = vpack.c.bf16 %v695, %v691
  %v744 = vpack.c.bf16 %v696, %v692
  %v745 = vpack.c.bf16 %v701, %v697
  %v746 = vpack.c.bf16 %v702, %v698
  %v747 = vpack.c.bf16 %v703, %v699
  %v748 = vpack.c.bf16 %v704, %v700
  %v749 = vpack.c.bf16 %v709, %v705
  %v750 = vpack.c.bf16 %v710, %v706
  %v751 = vpack.c.bf16 %v711, %v707
  %v752 = vpack.c.bf16 %v712, %v708
  %v753 = vpack.c.bf16 %v717, %v713
  %v754 = vpack.c.bf16 %v718, %v714
  %v755 = vpack.c.bf16 %v719, %v715
  %v756 = vpack.c.bf16 %v720, %v716
  %v757 = vpack.c.bf16 %v725, %v721
  %v758 = vpack.c.bf16 %v726, %v722
  %v759 = vpack.c.bf16 %v727, %v723
  %v760 = vpack.c.bf16 %v728, %v724
  %v793 = vunpack.c.l.b16 %v729
  %v794 = vunpack.c.l.b16 %v730
  %v795 = vunpack.c.l.b16 %v731
  %v796 = vunpack.c.l.b16 %v732
  %v797 = vunpack.c.h.b16 %v729
  %v798 = vunpack.c.h.b16 %v730
  %v799 = vunpack.c.h.b16 %v731
  %v800 = vunpack.c.h.b16 %v732
  %v801 = vunpack.c.l.b16 %v733
  %v802 = vunpack.c.l.b16 %v734
  %v803 = vunpack.c.l.b16 %v735
  %v804 = vunpack.c.l.b16 %v736
  %v805 = vunpack.c.h.b16 %v733
  %v806 = vunpack.c.h.b16 %v734
  %v807 = vunpack.c.h.b16 %v735
  %v808 = vunpack.c.h.b16 %v736
  %v809 = vunpack.c.l.b16 %v737
  %v810 = vunpack.c.l.b16 %v738
  %v811 = vunpack.c.l.b16 %v739
  %v812 = vunpack.c.l.b16 %v740
  %v813 = vunpack.c.h.b16 %v737
  %v814 = vunpack.c.h.b16 %v738
  %v815 = vunpack.c.h.b16 %v739
  %v816 = vunpack.c.h.b16 %v740
  %v817 = vunpack.c.l.b16 %v741
  %v818 = vunpack.c.l.b16 %v742
  %v819 = vunpack.c.l.b16 %v743
  %v820 = vunpack.c.l.b16 %v744
  %v821 = vunpack.c.h.b16 %v741
  %v822 = vunpack.c.h.b16 %v742
  %v823 = vunpack.c.h.b16 %v743
  %v824 = vunpack.c.h.b16 %v744
  %v825 = vunpack.c.l.b16 %v745
  %v826 = vunpack.c.l.b16 %v746
  %v827 = vunpack.c.l.b16 %v747
  %v828 = vunpack.c.l.b16 %v748
  %v829 = vunpack.c.h.b16 %v745
  %v830 = vunpack.c.h.b16 %v746
  %v831 = vunpack.c.h.b16 %v747
  %v832 = vunpack.c.h.b16 %v748
  %v833 = vunpack.c.l.b16 %v749
  %v834 = vunpack.c.l.b16 %v750
  %v835 = vunpack.c.l.b16 %v751
  %v836 = vunpack.c.l.b16 %v752
  %v837 = vunpack.c.h.b16 %v749
  %v838 = vunpack.c.h.b16 %v750
  %v839 = vunpack.c.h.b16 %v751
  %v840 = vunpack.c.h.b16 %v752
  %v841 = vunpack.c.l.b16 %v753
  %v842 = vunpack.c.l.b16 %v754
  %v843 = vunpack.c.l.b16 %v755
  %v844 = vunpack.c.l.b16 %v756
  %v845 = vunpack.c.h.b16 %v753
  %v846 = vunpack.c.h.b16 %v754
  %v847 = vunpack.c.h.b16 %v755
  %v848 = vunpack.c.h.b16 %v756
  %v849 = vunpack.c.l.b16 %v757
  %v850 = vunpack.c.l.b16 %v758
  %v851 = vunpack.c.l.b16 %v759
  %v852 = vunpack.c.l.b16 %v760
  %v853 = vunpack.c.h.b16 %v757
  %v854 = vunpack.c.h.b16 %v758
  %v855 = vunpack.c.h.b16 %v759
  %v856 = vunpack.c.h.b16 %v760
  %v857 = vpack.c.b16 %v794, %v793
  %v858 = vpack.c.b16 %v796, %v795
  %v859 = vpack.c.b16 %v798, %v797
  %v860 = vpack.c.b16 %v800, %v799
  %v861 = vpack.c.b16 %v802, %v801
  %v862 = vpack.c.b16 %v804, %v803
  %v863 = vpack.c.b16 %v806, %v805
  %v864 = vpack.c.b16 %v808, %v807
  %v865 = vpack.c.b16 %v810, %v809
  %v866 = vpack.c.b16 %v812, %v811
  %v867 = vpack.c.b16 %v814, %v813
  %v868 = vpack.c.b16 %v816, %v815
  %v869 = vpack.c.b16 %v818, %v817
  %v870 = vpack.c.b16 %v820, %v819
  %v871 = vpack.c.b16 %v822, %v821
  %v872 = vpack.c.b16 %v824, %v823
  %v873 = vpack.c.b16 %v826, %v825
  %v874 = vpack.c.b16 %v828, %v827
  %v875 = vpack.c.b16 %v830, %v829
  %v876 = vpack.c.b16 %v832, %v831
  %v877 = vpack.c.b16 %v834, %v833
  %v878 = vpack.c.b16 %v836, %v835
  %v879 = vpack.c.b16 %v838, %v837
  %v880 = vpack.c.b16 %v840, %v839
  %v881 = vpack.c.b16 %v842, %v841
  %v882 = vpack.c.b16 %v844, %v843
  %v883 = vpack.c.b16 %v846, %v845
  %v884 = vpack.c.b16 %v848, %v847
  %v885 = vpack.c.b16 %v850, %v849
  %v886 = vpack.c.b16 %v852, %v851
  %v887 = vpack.c.b16 %v854, %v853
  %v888 = vpack.c.b16 %v856, %v855
  %921 = vst [vmem:[#allocation2] sm:$0xff] %v857
  %922 = vst [vmem:[#allocation2 + $0x8] sm:$0xff] %v858
  %923 = vst [vmem:[#allocation2 + $0x40] sm:$0xff] %v859
  %924 = vst [vmem:[#allocation2 + $0x48] sm:$0xff] %v860
  %925 = vst [vmem:[#allocation2 + $0x80] sm:$0xff] %v861
  %926 = vst [vmem:[#allocation2 + $0x88] sm:$0xff] %v862
  %927 = vst [vmem:[#allocation2 + $0xc0] sm:$0xff] %v863
  %928 = vst [vmem:[#allocation2 + $0xc8] sm:$0xff] %v864
  %929 = vst [vmem:[#allocation2 + $0x100] sm:$0xff] %v865
  %930 = vst [vmem:[#allocation2 + $0x108] sm:$0xff] %v866
  %931 = vst [vmem:[#allocation2 + $0x140] sm:$0xff] %v867
  %932 = vst [vmem:[#allocation2 + $0x148] sm:$0xff] %v868
  %933 = vst [vmem:[#allocation2 + $0x180] sm:$0xff] %v869
  %934 = vst [vmem:[#allocation2 + $0x188] sm:$0xff] %v870
  %935 = vst [vmem:[#allocation2 + $0x1c0] sm:$0xff] %v871
  %936 = vst [vmem:[#allocation2 + $0x1c8] sm:$0xff] %v872
  %937 = vst [vmem:[#allocation2 + $0x200] sm:$0xff] %v873
  %938 = vst [vmem:[#allocation2 + $0x208] sm:$0xff] %v874
  %939 = vst [vmem:[#allocation2 + $0x240] sm:$0xff] %v875
  %940 = vst [vmem:[#allocation2 + $0x248] sm:$0xff] %v876
  %941 = vst [vmem:[#allocation2 + $0x280] sm:$0xff] %v877
  %942 = vst [vmem:[#allocation2 + $0x288] sm:$0xff] %v878
  %943 = vst [vmem:[#allocation2 + $0x2c0] sm:$0xff] %v879
  %944 = vst [vmem:[#allocation2 + $0x2c8] sm:$0xff] %v880
  %945 = vst [vmem:[#allocation2 + $0x300] sm:$0xff] %v881
  %946 = vst [vmem:[#allocation2 + $0x308] sm:$0xff] %v882
  %947 = vst [vmem:[#allocation2 + $0x340] sm:$0xff] %v883
  %948 = vst [vmem:[#allocation2 + $0x348] sm:$0xff] %v884
  %949 = vst [vmem:[#allocation2 + $0x380] sm:$0xff] %v885
  %950 = vst [vmem:[#allocation2 + $0x388] sm:$0xff] %v886
  %951 = vst [vmem:[#allocation2 + $0x3c0] sm:$0xff] %v887
  %952 = vst [vmem:[#allocation2 + $0x3c8] sm:$0xff] %v888
  %v953 = vld [vmem:[%s0 + $0x40] sm:$0xf]
  %v954 = vld [vmem:[%s0 + $0x44] sm:$0xf]
  %v955 = vld [vmem:[%s0 + $0x48] sm:$0xf]
  %v956 = vld [vmem:[%s0 + $0x4c] sm:$0xf]
  %v957 = vld [vmem:[%s0 + $0x50] sm:$0xf]
  %v958 = vld [vmem:[%s0 + $0x54] sm:$0xf]
  %v959 = vld [vmem:[%s0 + $0x58] sm:$0xf]
  %v960 = vld [vmem:[%s0 + $0x5c] sm:$0xf]
  %v961 = vld [vmem:[%s0 + $0x60] sm:$0xf]
  %v962 = vld [vmem:[%s0 + $0x64] sm:$0xf]
  %v963 = vld [vmem:[%s0 + $0x68] sm:$0xf]
  %v964 = vld [vmem:[%s0 + $0x6c] sm:$0xf]
  %v965 = vld [vmem:[%s0 + $0x70] sm:$0xf]
  %v966 = vld [vmem:[%s0 + $0x74] sm:$0xf]
  %v967 = vld [vmem:[%s0 + $0x78] sm:$0xf]
  %v968 = vld [vmem:[%s0 + $0x7c] sm:$0xf]
  %v969 = vld [vmem:[%s1] sm:$0xff]
  %v970 = vld [vmem:[%s1 + $0x8] sm:$0xff]
  %v971 = vld [vmem:[%s1 + $0x10] sm:$0xff]
  %v972 = vld [vmem:[%s1 + $0x18] sm:$0xff]
  %v973 = vld [vmem:[%s1 + $0x20] sm:$0xff]
  %v974 = vld [vmem:[%s1 + $0x28] sm:$0xff]
  %v975 = vld [vmem:[%s1 + $0x30] sm:$0xff]
  %v976 = vld [vmem:[%s1 + $0x38] sm:$0xff]
  %v977 = vld [vmem:[%s1 + $0x40] sm:$0xff]
  %v978 = vld [vmem:[%s1 + $0x48] sm:$0xff]
  %v979 = vld [vmem:[%s1 + $0x50] sm:$0xff]
  %v980 = vld [vmem:[%s1 + $0x58] sm:$0xff]
  %v981 = vld [vmem:[%s1 + $0x60] sm:$0xff]
  %v982 = vld [vmem:[%s1 + $0x68] sm:$0xff]
  %v983 = vld [vmem:[%s1 + $0x70] sm:$0xff]
  %v984 = vld [vmem:[%s1 + $0x78] sm:$0xff]
  %v985 = vld [vmem:[%s1 + $0x80] sm:$0xff]
  %v986 = vld [vmem:[%s1 + $0x88] sm:$0xff]
  %v987 = vld [vmem:[%s1 + $0x90] sm:$0xff]
  %v988 = vld [vmem:[%s1 + $0x98] sm:$0xff]
  %v989 = vld [vmem:[%s1 + $0xa0] sm:$0xff]
  %v990 = vld [vmem:[%s1 + $0xa8] sm:$0xff]
  %v991 = vld [vmem:[%s1 + $0xb0] sm:$0xff]
  %v992 = vld [vmem:[%s1 + $0xb8] sm:$0xff]
  %v993 = vld [vmem:[%s1 + $0xc0] sm:$0xff]
  %v994 = vld [vmem:[%s1 + $0xc8] sm:$0xff]
  %v995 = vld [vmem:[%s1 + $0xd0] sm:$0xff]
  %v996 = vld [vmem:[%s1 + $0xd8] sm:$0xff]
  %v997 = vld [vmem:[%s1 + $0xe0] sm:$0xff]
  %v998 = vld [vmem:[%s1 + $0xe8] sm:$0xff]
  %v999 = vld [vmem:[%s1 + $0xf0] sm:$0xff]
  %v1000 = vld [vmem:[%s1 + $0xf8] sm:$0xff]
  %v1001 = vld [vmem:[%s2] sm:$0xf]
  %v1003 = vlaneseq
  %v1004 = vshrl.u32 %v1003, 7
  %v1005 = vsub.s32 0, %v1004
  %v1006 = vrot.slane %v1001, %v1005
  %v1007 = vlaneseq
  %v1008 = vshrl.u32 %v1007, 7
  %v1009 = vsub.s32 1, %v1008
  %v1010 = vrot.slane %v1001, %v1009
  %v1011 = vlaneseq
  %v1012 = vshrl.u32 %v1011, 7
  %v1013 = vsub.s32 2, %v1012
  %v1014 = vrot.slane %v1001, %v1013
  %v1015 = vlaneseq
  %v1016 = vshrl.u32 %v1015, 7
  %v1017 = vsub.s32 3, %v1016
  %v1018 = vrot.slane %v1001, %v1017
  %v1039 = vunpack.c.l.b16 %v953
  %v1040 = vunpack.c.l.b16 %v954
  %v1041 = vunpack.c.l.b16 %v955
  %v1042 = vunpack.c.l.b16 %v956
  %v1043 = vunpack.c.l.b16 %v957
  %v1044 = vunpack.c.l.b16 %v958
  %v1045 = vunpack.c.l.b16 %v959
  %v1046 = vunpack.c.l.b16 %v960
  %v1047 = vunpack.c.l.b16 %v961
  %v1048 = vunpack.c.l.b16 %v962
  %v1049 = vunpack.c.l.b16 %v963
  %v1050 = vunpack.c.l.b16 %v964
  %v1051 = vunpack.c.l.b16 %v965
  %v1052 = vunpack.c.l.b16 %v966
  %v1053 = vunpack.c.l.b16 %v967
  %v1054 = vunpack.c.l.b16 %v968
  %v1055 = vpack.c.b16 %v1040, %v1039
  %v1056 = vpack.c.b16 %v1042, %v1041
  %v1057 = vpack.c.b16 %v1044, %v1043
  %v1058 = vpack.c.b16 %v1046, %v1045
  %v1059 = vpack.c.b16 %v1048, %v1047
  %v1060 = vpack.c.b16 %v1050, %v1049
  %v1061 = vpack.c.b16 %v1052, %v1051
  %v1062 = vpack.c.b16 %v1054, %v1053
  %v1103 = vunpack.c.l.b16 %v969
  %v1104 = vunpack.c.h.b16 %v969
  %v1105 = vunpack.c.l.b16 %v970
  %v1106 = vunpack.c.h.b16 %v970
  %v1107 = vunpack.c.l.b16 %v971
  %v1108 = vunpack.c.h.b16 %v971
  %v1109 = vunpack.c.l.b16 %v972
  %v1110 = vunpack.c.h.b16 %v972
  %v1111 = vunpack.c.l.b16 %v973
  %v1112 = vunpack.c.h.b16 %v973
  %v1113 = vunpack.c.l.b16 %v974
  %v1114 = vunpack.c.h.b16 %v974
  %v1115 = vunpack.c.l.b16 %v975
  %v1116 = vunpack.c.h.b16 %v975
  %v1117 = vunpack.c.l.b16 %v976
  %v1118 = vunpack.c.h.b16 %v976
  %v1119 = vunpack.c.l.b16 %v977
  %v1120 = vunpack.c.h.b16 %v977
  %v1121 = vunpack.c.l.b16 %v978
  %v1122 = vunpack.c.h.b16 %v978
  %v1123 = vunpack.c.l.b16 %v979
  %v1124 = vunpack.c.h.b16 %v979
  %v1125 = vunpack.c.l.b16 %v980
  %v1126 = vunpack.c.h.b16 %v980
  %v1127 = vunpack.c.l.b16 %v981
  %v1128 = vunpack.c.h.b16 %v981
  %v1129 = vunpack.c.l.b16 %v982
  %v1130 = vunpack.c.h.b16 %v982
  %v1131 = vunpack.c.l.b16 %v983
  %v1132 = vunpack.c.h.b16 %v983
  %v1133 = vunpack.c.l.b16 %v984
  %v1134 = vunpack.c.h.b16 %v984
  %v1135 = vunpack.c.l.b16 %v985
  %v1136 = vunpack.c.h.b16 %v985
  %v1137 = vunpack.c.l.b16 %v986
  %v1138 = vunpack.c.h.b16 %v986
  %v1139 = vunpack.c.l.b16 %v987
  %v1140 = vunpack.c.h.b16 %v987
  %v1141 = vunpack.c.l.b16 %v988
  %v1142 = vunpack.c.h.b16 %v988
  %v1143 = vunpack.c.l.b16 %v989
  %v1144 = vunpack.c.h.b16 %v989
  %v1145 = vunpack.c.l.b16 %v990
  %v1146 = vunpack.c.h.b16 %v990
  %v1147 = vunpack.c.l.b16 %v991
  %v1148 = vunpack.c.h.b16 %v991
  %v1149 = vunpack.c.l.b16 %v992
  %v1150 = vunpack.c.h.b16 %v992
  %v1151 = vunpack.c.l.b16 %v993
  %v1152 = vunpack.c.h.b16 %v993
  %v1153 = vunpack.c.l.b16 %v994
  %v1154 = vunpack.c.h.b16 %v994
  %v1155 = vunpack.c.l.b16 %v995
  %v1156 = vunpack.c.h.b16 %v995
  %v1157 = vunpack.c.l.b16 %v996
  %v1158 = vunpack.c.h.b16 %v996
  %v1159 = vunpack.c.l.b16 %v997
  %v1160 = vunpack.c.h.b16 %v997
  %v1161 = vunpack.c.l.b16 %v998
  %v1162 = vunpack.c.h.b16 %v998
  %v1163 = vunpack.c.l.b16 %v999
  %v1164 = vunpack.c.h.b16 %v999
  %v1165 = vunpack.c.l.b16 %v1000
  %v1166 = vunpack.c.h.b16 %v1000
  %v1167 = vpack.c.b16 %v1107, %v1103
  %v1168 = vpack.c.b16 %v1108, %v1104
  %v1169 = vpack.c.b16 %v1109, %v1105
  %v1170 = vpack.c.b16 %v1110, %v1106
  %v1171 = vpack.c.b16 %v1115, %v1111
  %v1172 = vpack.c.b16 %v1116, %v1112
  %v1173 = vpack.c.b16 %v1117, %v1113
  %v1174 = vpack.c.b16 %v1118, %v1114
  %v1175 = vpack.c.b16 %v1123, %v1119
  %v1176 = vpack.c.b16 %v1124, %v1120
  %v1177 = vpack.c.b16 %v1125, %v1121
  %v1178 = vpack.c.b16 %v1126, %v1122
  %v1179 = vpack.c.b16 %v1131, %v1127
  %v1180 = vpack.c.b16 %v1132, %v1128
  %v1181 = vpack.c.b16 %v1133, %v1129
  %v1182 = vpack.c.b16 %v1134, %v1130
  %v1183 = vpack.c.b16 %v1139, %v1135
  %v1184 = vpack.c.b16 %v1140, %v1136
  %v1185 = vpack.c.b16 %v1141, %v1137
  %v1186 = vpack.c.b16 %v1142, %v1138
  %v1187 = vpack.c.b16 %v1147, %v1143
  %v1188 = vpack.c.b16 %v1148, %v1144
  %v1189 = vpack.c.b16 %v1149, %v1145
  %v1190 = vpack.c.b16 %v1150, %v1146
  %v1191 = vpack.c.b16 %v1155, %v1151
  %v1192 = vpack.c.b16 %v1156, %v1152
  %v1193 = vpack.c.b16 %v1157, %v1153
  %v1194 = vpack.c.b16 %v1158, %v1154
  %v1195 = vpack.c.b16 %v1163, %v1159
  %v1196 = vpack.c.b16 %v1164, %v1160
  %v1197 = vpack.c.b16 %v1165, %v1161
  %v1198 = vpack.c.b16 %v1166, %v1162
  %1231 = vmatprep.subr.bf16.mxu0 %v1196
  %1232 = vmatpush1.bf16.msra.mxu0 %v1195
  %1233 = vmatprep.subr.bf16.mxu0 %v1192
  %1234 = vmatpush1.bf16.msra.mxu0 %v1191
  %1235 = vmatprep.subr.bf16.mxu0 %v1188
  %1236 = vmatpush1.bf16.msra.mxu0 %v1187
  %1237 = vmatprep.subr.bf16.mxu0 %v1184
  %1238 = vmatpush1.bf16.msra.mxu0 %v1183
  %1239 = vmatprep.subr.bf16.mxu0 %v1180
  %1240 = vmatpush1.bf16.msra.mxu0 %v1179
  %1241 = vmatprep.subr.bf16.mxu0 %v1176
  %1242 = vmatpush1.bf16.msra.mxu0 %v1175
  %1243 = vmatprep.subr.bf16.mxu0 %v1172
  %1244 = vmatpush1.bf16.msra.mxu0 %v1171
  %1245 = vmatprep.subr.bf16.mxu0 %v1168
  %1246 = vmatpush1.bf16.msra.mxu0 %v1167
  %1247 = vmatprep.subr.bf16.mxu0 0
  %1248 = vmatpush2.bf16.msra.mxu0 0
  %1249 = vmatprep.subr.bf16.mxu0 0
  %1250 = vmatpush2.bf16.msra.mxu0 0
  %1251 = vmatprep.subr.bf16.mxu0 0
  %1252 = vmatpush2.bf16.msra.mxu0 0
  %1253 = vmatprep.subr.bf16.mxu0 0
  %1254 = vmatpush2.bf16.msra.mxu0 0
  %1255 = vmatprep.subr.bf16.mxu0 0
  %1256 = vmatpush2.bf16.msra.mxu0 0
  %1257 = vmatprep.subr.bf16.mxu0 0
  %1258 = vmatpush2.bf16.msra.mxu0 0
  %1259 = vmatprep.subr.bf16.mxu0 0
  %1260 = vmatpush2.bf16.msra.mxu0 0
  %1261 = vmatprep.subr.bf16.mxu0 0
  %1262 = vmatpush2.bf16.msra.mxu0 0
  %1263 = vmatprep.mubr.bf16.mxu0 0
  %1264 = vmatmul.mubr.bf16.gmra.mxu0 %v1055
  %v1265 = vpop.f32.mrf.mxu0
  %v1266 = vadd.f32 %v1006, %v1265
  %v1267 = vpop.f32.mrf.mxu0
  %v1268 = vadd.f32 %v1010, %v1267
  %v1269 = vpop.f32.mrf.mxu0
  %v1270 = vadd.f32 %v1006, %v1269
  %v1271 = vpop.f32.mrf.mxu0
  %v1272 = vadd.f32 %v1010, %v1271
  %1273 = vmatprep.mubr.bf16.mxu0 0
  %1274 = vmatmul.mubr.bf16.gmra.mxu0 %v1056
  %v1275 = vpop.f32.mrf.mxu0
  %v1276 = vadd.f32 %v1006, %v1275
  %v1277 = vpop.f32.mrf.mxu0
  %v1278 = vadd.f32 %v1010, %v1277
  %v1279 = vpop.f32.mrf.mxu0
  %v1280 = vadd.f32 %v1006, %v1279
  %v1281 = vpop.f32.mrf.mxu0
  %v1282 = vadd.f32 %v1010, %v1281
  %1283 = vmatprep.mubr.bf16.mxu0 0
  %1284 = vmatmul.mubr.bf16.gmra.mxu0 %v1057
  %v1285 = vpop.f32.mrf.mxu0
  %v1286 = vadd.f32 %v1006, %v1285
  %v1287 = vpop.f32.mrf.mxu0
  %v1288 = vadd.f32 %v1010, %v1287
  %v1289 = vpop.f32.mrf.mxu0
  %v1290 = vadd.f32 %v1006, %v1289
  %v1291 = vpop.f32.mrf.mxu0
  %v1292 = vadd.f32 %v1010, %v1291
  %1293 = vmatprep.mubr.bf16.mxu0 0
  %1294 = vmatmul.mubr.bf16.gmra.mxu0 %v1058
  %v1295 = vpop.f32.mrf.mxu0
  %v1296 = vadd.f32 %v1006, %v1295
  %v1297 = vpop.f32.mrf.mxu0
  %v1298 = vadd.f32 %v1010, %v1297
  %v1299 = vpop.f32.mrf.mxu0
  %v1300 = vadd.f32 %v1006, %v1299
  %v1301 = vpop.f32.mrf.mxu0
  %v1302 = vadd.f32 %v1010, %v1301
  %1303 = vmatprep.mubr.bf16.mxu0 0
  %1304 = vmatmul.mubr.bf16.gmra.mxu0 %v1059
  %v1305 = vpop.f32.mrf.mxu0
  %v1306 = vadd.f32 %v1006, %v1305
  %v1307 = vpop.f32.mrf.mxu0
  %v1308 = vadd.f32 %v1010, %v1307
  %v1309 = vpop.f32.mrf.mxu0
  %v1310 = vadd.f32 %v1006, %v1309
  %v1311 = vpop.f32.mrf.mxu0
  %v1312 = vadd.f32 %v1010, %v1311
  %1313 = vmatprep.mubr.bf16.mxu0 0
  %1314 = vmatmul.mubr.bf16.gmra.mxu0 %v1060
  %v1315 = vpop.f32.mrf.mxu0
  %v1316 = vadd.f32 %v1006, %v1315
  %v1317 = vpop.f32.mrf.mxu0
  %v1318 = vadd.f32 %v1010, %v1317
  %v1319 = vpop.f32.mrf.mxu0
  %v1320 = vadd.f32 %v1006, %v1319
  %v1321 = vpop.f32.mrf.mxu0
  %v1322 = vadd.f32 %v1010, %v1321
  %1323 = vmatprep.mubr.bf16.mxu0 0
  %1324 = vmatmul.mubr.bf16.gmra.mxu0 %v1061
  %v1325 = vpop.f32.mrf.mxu0
  %v1326 = vadd.f32 %v1006, %v1325
  %v1327 = vpop.f32.mrf.mxu0
  %v1328 = vadd.f32 %v1010, %v1327
  %v1329 = vpop.f32.mrf.mxu0
  %v1330 = vadd.f32 %v1006, %v1329
  %v1331 = vpop.f32.mrf.mxu0
  %v1332 = vadd.f32 %v1010, %v1331
  %1333 = vmatprep.mubr.bf16.mxu0 0
  %1334 = vmatmul.mubr.bf16.gmra.mxu0 %v1062
  %v1335 = vpop.f32.mrf.mxu0
  %v1336 = vadd.f32 %v1006, %v1335
  %v1337 = vpop.f32.mrf.mxu0
  %v1338 = vadd.f32 %v1010, %v1337
  %v1339 = vpop.f32.mrf.mxu0
  %v1340 = vadd.f32 %v1006, %v1339
  %v1341 = vpop.f32.mrf.mxu0
  %v1342 = vadd.f32 %v1010, %v1341
  %1343 = vdwg.mxu0
  %1344 = vmatprep.subr.bf16.mxu0 %v1198
  %1345 = vmatpush1.bf16.msra.mxu0 %v1197
  %1346 = vmatprep.subr.bf16.mxu0 %v1194
  %1347 = vmatpush1.bf16.msra.mxu0 %v1193
  %1348 = vmatprep.subr.bf16.mxu0 %v1190
  %1349 = vmatpush1.bf16.msra.mxu0 %v1189
  %1350 = vmatprep.subr.bf16.mxu0 %v1186
  %1351 = vmatpush1.bf16.msra.mxu0 %v1185
  %1352 = vmatprep.subr.bf16.mxu0 %v1182
  %1353 = vmatpush1.bf16.msra.mxu0 %v1181
  %1354 = vmatprep.subr.bf16.mxu0 %v1178
  %1355 = vmatpush1.bf16.msra.mxu0 %v1177
  %1356 = vmatprep.subr.bf16.mxu0 %v1174
  %1357 = vmatpush1.bf16.msra.mxu0 %v1173
  %1358 = vmatprep.subr.bf16.mxu0 %v1170
  %1359 = vmatpush1.bf16.msra.mxu0 %v1169
  %1360 = vmatprep.subr.bf16.mxu0 0
  %1361 = vmatpush2.bf16.msra.mxu0 0
  %1362 = vmatprep.subr.bf16.mxu0 0
  %1363 = vmatpush2.bf16.msra.mxu0 0
  %1364 = vmatprep.subr.bf16.mxu0 0
  %1365 = vmatpush2.bf16.msra.mxu0 0
  %1366 = vmatprep.subr.bf16.mxu0 0
  %1367 = vmatpush2.bf16.msra.mxu0 0
  %1368 = vmatprep.subr.bf16.mxu0 0
  %1369 = vmatpush2.bf16.msra.mxu0 0
  %1370 = vmatprep.subr.bf16.mxu0 0
  %1371 = vmatpush2.bf16.msra.mxu0 0
  %1372 = vmatprep.subr.bf16.mxu0 0
  %1373 = vmatpush2.bf16.msra.mxu0 0
  %1374 = vmatprep.subr.bf16.mxu0 0
  %1375 = vmatpush2.bf16.msra.mxu0 0
  %1376 = vmatprep.mubr.bf16.mxu0 0
  %1377 = vmatmul.mubr.bf16.gmra.mxu0 %v1055
  %v1378 = vpop.f32.mrf.mxu0
  %v1379 = vadd.f32 %v1014, %v1378
  %v1380 = vpop.f32.mrf.mxu0
  %v1381 = vadd.f32 %v1018, %v1380
  %v1382 = vpop.f32.mrf.mxu0
  %v1383 = vadd.f32 %v1014, %v1382
  %v1384 = vpop.f32.mrf.mxu0
  %v1385 = vadd.f32 %v1018, %v1384
  %1386 = vmatprep.mubr.bf16.mxu0 0
  %1387 = vmatmul.mubr.bf16.gmra.mxu0 %v1056
  %v1388 = vpop.f32.mrf.mxu0
  %v1389 = vadd.f32 %v1014, %v1388
  %v1390 = vpop.f32.mrf.mxu0
  %v1391 = vadd.f32 %v1018, %v1390
  %v1392 = vpop.f32.mrf.mxu0
  %v1393 = vadd.f32 %v1014, %v1392
  %v1394 = vpop.f32.mrf.mxu0
  %v1395 = vadd.f32 %v1018, %v1394
  %1396 = vmatprep.mubr.bf16.mxu0 0
  %1397 = vmatmul.mubr.bf16.gmra.mxu0 %v1057
  %v1398 = vpop.f32.mrf.mxu0
  %v1399 = vadd.f32 %v1014, %v1398
  %v1400 = vpop.f32.mrf.mxu0
  %v1401 = vadd.f32 %v1018, %v1400
  %v1402 = vpop.f32.mrf.mxu0
  %v1403 = vadd.f32 %v1014, %v1402
  %v1404 = vpop.f32.mrf.mxu0
  %v1405 = vadd.f32 %v1018, %v1404
  %1406 = vmatprep.mubr.bf16.mxu0 0
  %1407 = vmatmul.mubr.bf16.gmra.mxu0 %v1058
  %v1408 = vpop.f32.mrf.mxu0
  %v1409 = vadd.f32 %v1014, %v1408
  %v1410 = vpop.f32.mrf.mxu0
  %v1411 = vadd.f32 %v1018, %v1410
  %v1412 = vpop.f32.mrf.mxu0
  %v1413 = vadd.f32 %v1014, %v1412
  %v1414 = vpop.f32.mrf.mxu0
  %v1415 = vadd.f32 %v1018, %v1414
  %1416 = vmatprep.mubr.bf16.mxu0 0
  %1417 = vmatmul.mubr.bf16.gmra.mxu0 %v1059
  %v1418 = vpop.f32.mrf.mxu0
  %v1419 = vadd.f32 %v1014, %v1418
  %v1420 = vpop.f32.mrf.mxu0
  %v1421 = vadd.f32 %v1018, %v1420
  %v1422 = vpop.f32.mrf.mxu0
  %v1423 = vadd.f32 %v1014, %v1422
  %v1424 = vpop.f32.mrf.mxu0
  %v1425 = vadd.f32 %v1018, %v1424
  %1426 = vmatprep.mubr.bf16.mxu0 0
  %1427 = vmatmul.mubr.bf16.gmra.mxu0 %v1060
  %v1428 = vpop.f32.mrf.mxu0
  %v1429 = vadd.f32 %v1014, %v1428
  %v1430 = vpop.f32.mrf.mxu0
  %v1431 = vadd.f32 %v1018, %v1430
  %v1432 = vpop.f32.mrf.mxu0
  %v1433 = vadd.f32 %v1014, %v1432
  %v1434 = vpop.f32.mrf.mxu0
  %v1435 = vadd.f32 %v1018, %v1434
  %1436 = vmatprep.mubr.bf16.mxu0 0
  %1437 = vmatmul.mubr.bf16.gmra.mxu0 %v1061
  %v1438 = vpop.f32.mrf.mxu0
  %v1439 = vadd.f32 %v1014, %v1438
  %v1440 = vpop.f32.mrf.mxu0
  %v1441 = vadd.f32 %v1018, %v1440
  %v1442 = vpop.f32.mrf.mxu0
  %v1443 = vadd.f32 %v1014, %v1442
  %v1444 = vpop.f32.mrf.mxu0
  %v1445 = vadd.f32 %v1018, %v1444
  %1446 = vmatprep.mubr.bf16.mxu0 0
  %1447 = vmatmul.mubr.bf16.gmra.mxu0 %v1062
  %v1448 = vpop.f32.mrf.mxu0
  %v1449 = vadd.f32 %v1014, %v1448
  %v1450 = vpop.f32.mrf.mxu0
  %v1451 = vadd.f32 %v1018, %v1450
  %v1452 = vpop.f32.mrf.mxu0
  %v1453 = vadd.f32 %v1014, %v1452
  %v1454 = vpop.f32.mrf.mxu0
  %v1455 = vadd.f32 %v1018, %v1454
  %1456 = vdwg.mxu0
  %vm1457 = vcmp.ge.f32.partialorder %v1266, 0.0
  %vm1458 = vcmp.ge.f32.partialorder %v1268, 0.0
  %vm1459 = vcmp.ge.f32.partialorder %v1379, 0.0
  %vm1460 = vcmp.ge.f32.partialorder %v1381, 0.0
  %vm1461 = vcmp.ge.f32.partialorder %v1270, 0.0
  %vm1462 = vcmp.ge.f32.partialorder %v1272, 0.0
  %vm1463 = vcmp.ge.f32.partialorder %v1383, 0.0
  %vm1464 = vcmp.ge.f32.partialorder %v1385, 0.0
  %vm1465 = vcmp.ge.f32.partialorder %v1276, 0.0
  %vm1466 = vcmp.ge.f32.partialorder %v1278, 0.0
  %vm1467 = vcmp.ge.f32.partialorder %v1389, 0.0
  %vm1468 = vcmp.ge.f32.partialorder %v1391, 0.0
  %vm1469 = vcmp.ge.f32.partialorder %v1280, 0.0
  %vm1470 = vcmp.ge.f32.partialorder %v1282, 0.0
  %vm1471 = vcmp.ge.f32.partialorder %v1393, 0.0
  %vm1472 = vcmp.ge.f32.partialorder %v1395, 0.0
  %vm1473 = vcmp.ge.f32.partialorder %v1286, 0.0
  %vm1474 = vcmp.ge.f32.partialorder %v1288, 0.0
  %vm1475 = vcmp.ge.f32.partialorder %v1399, 0.0
  %vm1476 = vcmp.ge.f32.partialorder %v1401, 0.0
  %vm1477 = vcmp.ge.f32.partialorder %v1290, 0.0
  %vm1478 = vcmp.ge.f32.partialorder %v1292, 0.0
  %vm1479 = vcmp.ge.f32.partialorder %v1403, 0.0
  %vm1480 = vcmp.ge.f32.partialorder %v1405, 0.0
  %vm1481 = vcmp.ge.f32.partialorder %v1296, 0.0
  %vm1482 = vcmp.ge.f32.partialorder %v1298, 0.0
  %vm1483 = vcmp.ge.f32.partialorder %v1409, 0.0
  %vm1484 = vcmp.ge.f32.partialorder %v1411, 0.0
  %vm1485 = vcmp.ge.f32.partialorder %v1300, 0.0
  %vm1486 = vcmp.ge.f32.partialorder %v1302, 0.0
  %vm1487 = vcmp.ge.f32.partialorder %v1413, 0.0
  %vm1488 = vcmp.ge.f32.partialorder %v1415, 0.0
  %vm1489 = vcmp.ge.f32.partialorder %v1306, 0.0
  %vm1490 = vcmp.ge.f32.partialorder %v1308, 0.0
  %vm1491 = vcmp.ge.f32.partialorder %v1419, 0.0
  %vm1492 = vcmp.ge.f32.partialorder %v1421, 0.0
  %vm1493 = vcmp.ge.f32.partialorder %v1310, 0.0
  %vm1494 = vcmp.ge.f32.partialorder %v1312, 0.0
  %vm1495 = vcmp.ge.f32.partialorder %v1423, 0.0
  %vm1496 = vcmp.ge.f32.partialorder %v1425, 0.0
  %vm1497 = vcmp.ge.f32.partialorder %v1316, 0.0
  %vm1498 = vcmp.ge.f32.partialorder %v1318, 0.0
  %vm1499 = vcmp.ge.f32.partialorder %v1429, 0.0
  %vm1500 = vcmp.ge.f32.partialorder %v1431, 0.0
  %vm1501 = vcmp.ge.f32.partialorder %v1320, 0.0
  %vm1502 = vcmp.ge.f32.partialorder %v1322, 0.0
  %vm1503 = vcmp.ge.f32.partialorder %v1433, 0.0
  %vm1504 = vcmp.ge.f32.partialorder %v1435, 0.0
  %vm1505 = vcmp.ge.f32.partialorder %v1326, 0.0
  %vm1506 = vcmp.ge.f32.partialorder %v1328, 0.0
  %vm1507 = vcmp.ge.f32.partialorder %v1439, 0.0
  %vm1508 = vcmp.ge.f32.partialorder %v1441, 0.0
  %vm1509 = vcmp.ge.f32.partialorder %v1330, 0.0
  %vm1510 = vcmp.ge.f32.partialorder %v1332, 0.0
  %vm1511 = vcmp.ge.f32.partialorder %v1443, 0.0
  %vm1512 = vcmp.ge.f32.partialorder %v1445, 0.0
  %vm1513 = vcmp.ge.f32.partialorder %v1336, 0.0
  %vm1514 = vcmp.ge.f32.partialorder %v1338, 0.0
  %vm1515 = vcmp.ge.f32.partialorder %v1449, 0.0
  %vm1516 = vcmp.ge.f32.partialorder %v1451, 0.0
  %vm1517 = vcmp.ge.f32.partialorder %v1340, 0.0
  %vm1518 = vcmp.ge.f32.partialorder %v1342, 0.0
  %vm1519 = vcmp.ge.f32.partialorder %v1453, 0.0
  %vm1520 = vcmp.ge.f32.partialorder %v1455, 0.0
  %v1521 = vmul.f32 %v1266, 0.01
  %v1522 = vmul.f32 %v1268, 0.01
  %v1523 = vmul.f32 %v1379, 0.01
  %v1524 = vmul.f32 %v1381, 0.01
  %v1525 = vmul.f32 %v1270, 0.01
  %v1526 = vmul.f32 %v1272, 0.01
  %v1527 = vmul.f32 %v1383, 0.01
  %v1528 = vmul.f32 %v1385, 0.01
  %v1529 = vmul.f32 %v1276, 0.01
  %v1530 = vmul.f32 %v1278, 0.01
  %v1531 = vmul.f32 %v1389, 0.01
  %v1532 = vmul.f32 %v1391, 0.01
  %v1533 = vmul.f32 %v1280, 0.01
  %v1534 = vmul.f32 %v1282, 0.01
  %v1535 = vmul.f32 %v1393, 0.01
  %v1536 = vmul.f32 %v1395, 0.01
  %v1537 = vmul.f32 %v1286, 0.01
  %v1538 = vmul.f32 %v1288, 0.01
  %v1539 = vmul.f32 %v1399, 0.01
  %v1540 = vmul.f32 %v1401, 0.01
  %v1541 = vmul.f32 %v1290, 0.01
  %v1542 = vmul.f32 %v1292, 0.01
  %v1543 = vmul.f32 %v1403, 0.01
  %v1544 = vmul.f32 %v1405, 0.01
  %v1545 = vmul.f32 %v1296, 0.01
  %v1546 = vmul.f32 %v1298, 0.01
  %v1547 = vmul.f32 %v1409, 0.01
  %v1548 = vmul.f32 %v1411, 0.01
  %v1549 = vmul.f32 %v1300, 0.01
  %v1550 = vmul.f32 %v1302, 0.01
  %v1551 = vmul.f32 %v1413, 0.01
  %v1552 = vmul.f32 %v1415, 0.01
  %v1553 = vmul.f32 %v1306, 0.01
  %v1554 = vmul.f32 %v1308, 0.01
  %v1555 = vmul.f32 %v1419, 0.01
  %v1556 = vmul.f32 %v1421, 0.01
  %v1557 = vmul.f32 %v1310, 0.01
  %v1558 = vmul.f32 %v1312, 0.01
  %v1559 = vmul.f32 %v1423, 0.01
  %v1560 = vmul.f32 %v1425, 0.01
  %v1561 = vmul.f32 %v1316, 0.01
  %v1562 = vmul.f32 %v1318, 0.01
  %v1563 = vmul.f32 %v1429, 0.01
  %v1564 = vmul.f32 %v1431, 0.01
  %v1565 = vmul.f32 %v1320, 0.01
  %v1566 = vmul.f32 %v1322, 0.01
  %v1567 = vmul.f32 %v1433, 0.01
  %v1568 = vmul.f32 %v1435, 0.01
  %v1569 = vmul.f32 %v1326, 0.01
  %v1570 = vmul.f32 %v1328, 0.01
  %v1571 = vmul.f32 %v1439, 0.01
  %v1572 = vmul.f32 %v1441, 0.01
  %v1573 = vmul.f32 %v1330, 0.01
  %v1574 = vmul.f32 %v1332, 0.01
  %v1575 = vmul.f32 %v1443, 0.01
  %v1576 = vmul.f32 %v1445, 0.01
  %v1577 = vmul.f32 %v1336, 0.01
  %v1578 = vmul.f32 %v1338, 0.01
  %v1579 = vmul.f32 %v1449, 0.01
  %v1580 = vmul.f32 %v1451, 0.01
  %v1581 = vmul.f32 %v1340, 0.01
  %v1582 = vmul.f32 %v1342, 0.01
  %v1583 = vmul.f32 %v1453, 0.01
  %v1584 = vmul.f32 %v1455, 0.01
  %v1585 = vsel %vm1457, %v1266, %v1521
  %v1586 = vsel %vm1458, %v1268, %v1522
  %v1587 = vsel %vm1459, %v1379, %v1523
  %v1588 = vsel %vm1460, %v1381, %v1524
  %v1589 = vsel %vm1461, %v1270, %v1525
  %v1590 = vsel %vm1462, %v1272, %v1526
  %v1591 = vsel %vm1463, %v1383, %v1527
  %v1592 = vsel %vm1464, %v1385, %v1528
  %v1593 = vsel %vm1465, %v1276, %v1529
  %v1594 = vsel %vm1466, %v1278, %v1530
  %v1595 = vsel %vm1467, %v1389, %v1531
  %v1596 = vsel %vm1468, %v1391, %v1532
  %v1597 = vsel %vm1469, %v1280, %v1533
  %v1598 = vsel %vm1470, %v1282, %v1534
  %v1599 = vsel %vm1471, %v1393, %v1535
  %v1600 = vsel %vm1472, %v1395, %v1536
  %v1601 = vsel %vm1473, %v1286, %v1537
  %v1602 = vsel %vm1474, %v1288, %v1538
  %v1603 = vsel %vm1475, %v1399, %v1539
  %v1604 = vsel %vm1476, %v1401, %v1540
  %v1605 = vsel %vm1477, %v1290, %v1541
  %v1606 = vsel %vm1478, %v1292, %v1542
  %v1607 = vsel %vm1479, %v1403, %v1543
  %v1608 = vsel %vm1480, %v1405, %v1544
  %v1609 = vsel %vm1481, %v1296, %v1545
  %v1610 = vsel %vm1482, %v1298, %v1546
  %v1611 = vsel %vm1483, %v1409, %v1547
  %v1612 = vsel %vm1484, %v1411, %v1548
  %v1613 = vsel %vm1485, %v1300, %v1549
  %v1614 = vsel %vm1486, %v1302, %v1550
  %v1615 = vsel %vm1487, %v1413, %v1551
  %v1616 = vsel %vm1488, %v1415, %v1552
  %v1617 = vsel %vm1489, %v1306, %v1553
  %v1618 = vsel %vm1490, %v1308, %v1554
  %v1619 = vsel %vm1491, %v1419, %v1555
  %v1620 = vsel %vm1492, %v1421, %v1556
  %v1621 = vsel %vm1493, %v1310, %v1557
  %v1622 = vsel %vm1494, %v1312, %v1558
  %v1623 = vsel %vm1495, %v1423, %v1559
  %v1624 = vsel %vm1496, %v1425, %v1560
  %v1625 = vsel %vm1497, %v1316, %v1561
  %v1626 = vsel %vm1498, %v1318, %v1562
  %v1627 = vsel %vm1499, %v1429, %v1563
  %v1628 = vsel %vm1500, %v1431, %v1564
  %v1629 = vsel %vm1501, %v1320, %v1565
  %v1630 = vsel %vm1502, %v1322, %v1566
  %v1631 = vsel %vm1503, %v1433, %v1567
  %v1632 = vsel %vm1504, %v1435, %v1568
  %v1633 = vsel %vm1505, %v1326, %v1569
  %v1634 = vsel %vm1506, %v1328, %v1570
  %v1635 = vsel %vm1507, %v1439, %v1571
  %v1636 = vsel %vm1508, %v1441, %v1572
  %v1637 = vsel %vm1509, %v1330, %v1573
  %v1638 = vsel %vm1510, %v1332, %v1574
  %v1639 = vsel %vm1511, %v1443, %v1575
  %v1640 = vsel %vm1512, %v1445, %v1576
  %v1641 = vsel %vm1513, %v1336, %v1577
  %v1642 = vsel %vm1514, %v1338, %v1578
  %v1643 = vsel %vm1515, %v1449, %v1579
  %v1644 = vsel %vm1516, %v1451, %v1580
  %v1645 = vsel %vm1517, %v1340, %v1581
  %v1646 = vsel %vm1518, %v1342, %v1582
  %v1647 = vsel %vm1519, %v1453, %v1583
  %v1648 = vsel %vm1520, %v1455, %v1584
  %v1649 = vpack.c.bf16 %v1589, %v1585
  %v1650 = vpack.c.bf16 %v1590, %v1586
  %v1651 = vpack.c.bf16 %v1591, %v1587
  %v1652 = vpack.c.bf16 %v1592, %v1588
  %v1653 = vpack.c.bf16 %v1597, %v1593
  %v1654 = vpack.c.bf16 %v1598, %v1594
  %v1655 = vpack.c.bf16 %v1599, %v1595
  %v1656 = vpack.c.bf16 %v1600, %v1596
  %v1657 = vpack.c.bf16 %v1605, %v1601
  %v1658 = vpack.c.bf16 %v1606, %v1602
  %v1659 = vpack.c.bf16 %v1607, %v1603
  %v1660 = vpack.c.bf16 %v1608, %v1604
  %v1661 = vpack.c.bf16 %v1613, %v1609
  %v1662 = vpack.c.bf16 %v1614, %v1610
  %v1663 = vpack.c.bf16 %v1615, %v1611
  %v1664 = vpack.c.bf16 %v1616, %v1612
  %v1665 = vpack.c.bf16 %v1621, %v1617
  %v1666 = vpack.c.bf16 %v1622, %v1618
  %v1667 = vpack.c.bf16 %v1623, %v1619
  %v1668 = vpack.c.bf16 %v1624, %v1620
  %v1669 = vpack.c.bf16 %v1629, %v1625
  %v1670 = vpack.c.bf16 %v1630, %v1626
  %v1671 = vpack.c.bf16 %v1631, %v1627
  %v1672 = vpack.c.bf16 %v1632, %v1628
  %v1673 = vpack.c.bf16 %v1637, %v1633
  %v1674 = vpack.c.bf16 %v1638, %v1634
  %v1675 = vpack.c.bf16 %v1639, %v1635
  %v1676 = vpack.c.bf16 %v1640, %v1636
  %v1677 = vpack.c.bf16 %v1645, %v1641
  %v1678 = vpack.c.bf16 %v1646, %v1642
  %v1679 = vpack.c.bf16 %v1647, %v1643
  %v1680 = vpack.c.bf16 %v1648, %v1644
  %v1713 = vunpack.c.l.b16 %v1649
  %v1714 = vunpack.c.l.b16 %v1650
  %v1715 = vunpack.c.l.b16 %v1651
  %v1716 = vunpack.c.l.b16 %v1652
  %v1717 = vunpack.c.h.b16 %v1649
  %v1718 = vunpack.c.h.b16 %v1650
  %v1719 = vunpack.c.h.b16 %v1651
  %v1720 = vunpack.c.h.b16 %v1652
  %v1721 = vunpack.c.l.b16 %v1653
  %v1722 = vunpack.c.l.b16 %v1654
  %v1723 = vunpack.c.l.b16 %v1655
  %v1724 = vunpack.c.l.b16 %v1656
  %v1725 = vunpack.c.h.b16 %v1653
  %v1726 = vunpack.c.h.b16 %v1654
  %v1727 = vunpack.c.h.b16 %v1655
  %v1728 = vunpack.c.h.b16 %v1656
  %v1729 = vunpack.c.l.b16 %v1657
  %v1730 = vunpack.c.l.b16 %v1658
  %v1731 = vunpack.c.l.b16 %v1659
  %v1732 = vunpack.c.l.b16 %v1660
  %v1733 = vunpack.c.h.b16 %v1657
  %v1734 = vunpack.c.h.b16 %v1658
  %v1735 = vunpack.c.h.b16 %v1659
  %v1736 = vunpack.c.h.b16 %v1660
  %v1737 = vunpack.c.l.b16 %v1661
  %v1738 = vunpack.c.l.b16 %v1662
  %v1739 = vunpack.c.l.b16 %v1663
  %v1740 = vunpack.c.l.b16 %v1664
  %v1741 = vunpack.c.h.b16 %v1661
  %v1742 = vunpack.c.h.b16 %v1662
  %v1743 = vunpack.c.h.b16 %v1663
  %v1744 = vunpack.c.h.b16 %v1664
  %v1745 = vunpack.c.l.b16 %v1665
  %v1746 = vunpack.c.l.b16 %v1666
  %v1747 = vunpack.c.l.b16 %v1667
  %v1748 = vunpack.c.l.b16 %v1668
  %v1749 = vunpack.c.h.b16 %v1665
  %v1750 = vunpack.c.h.b16 %v1666
  %v1751 = vunpack.c.h.b16 %v1667
  %v1752 = vunpack.c.h.b16 %v1668
  %v1753 = vunpack.c.l.b16 %v1669
  %v1754 = vunpack.c.l.b16 %v1670
  %v1755 = vunpack.c.l.b16 %v1671
  %v1756 = vunpack.c.l.b16 %v1672
  %v1757 = vunpack.c.h.b16 %v1669
  %v1758 = vunpack.c.h.b16 %v1670
  %v1759 = vunpack.c.h.b16 %v1671
  %v1760 = vunpack.c.h.b16 %v1672
  %v1761 = vunpack.c.l.b16 %v1673
  %v1762 = vunpack.c.l.b16 %v1674
  %v1763 = vunpack.c.l.b16 %v1675
  %v1764 = vunpack.c.l.b16 %v1676
  %v1765 = vunpack.c.h.b16 %v1673
  %v1766 = vunpack.c.h.b16 %v1674
  %v1767 = vunpack.c.h.b16 %v1675
  %v1768 = vunpack.c.h.b16 %v1676
  %v1769 = vunpack.c.l.b16 %v1677
  %v1770 = vunpack.c.l.b16 %v1678
  %v1771 = vunpack.c.l.b16 %v1679
  %v1772 = vunpack.c.l.b16 %v1680
  %v1773 = vunpack.c.h.b16 %v1677
  %v1774 = vunpack.c.h.b16 %v1678
  %v1775 = vunpack.c.h.b16 %v1679
  %v1776 = vunpack.c.h.b16 %v1680
  %v1777 = vpack.c.b16 %v1714, %v1713
  %v1778 = vpack.c.b16 %v1716, %v1715
  %v1779 = vpack.c.b16 %v1718, %v1717
  %v1780 = vpack.c.b16 %v1720, %v1719
  %v1781 = vpack.c.b16 %v1722, %v1721
  %v1782 = vpack.c.b16 %v1724, %v1723
  %v1783 = vpack.c.b16 %v1726, %v1725
  %v1784 = vpack.c.b16 %v1728, %v1727
  %v1785 = vpack.c.b16 %v1730, %v1729
  %v1786 = vpack.c.b16 %v1732, %v1731
  %v1787 = vpack.c.b16 %v1734, %v1733
  %v1788 = vpack.c.b16 %v1736, %v1735
  %v1789 = vpack.c.b16 %v1738, %v1737
  %v1790 = vpack.c.b16 %v1740, %v1739
  %v1791 = vpack.c.b16 %v1742, %v1741
  %v1792 = vpack.c.b16 %v1744, %v1743
  %v1793 = vpack.c.b16 %v1746, %v1745
  %v1794 = vpack.c.b16 %v1748, %v1747
  %v1795 = vpack.c.b16 %v1750, %v1749
  %v1796 = vpack.c.b16 %v1752, %v1751
  %v1797 = vpack.c.b16 %v1754, %v1753
  %v1798 = vpack.c.b16 %v1756, %v1755
  %v1799 = vpack.c.b16 %v1758, %v1757
  %v1800 = vpack.c.b16 %v1760, %v1759
  %v1801 = vpack.c.b16 %v1762, %v1761
  %v1802 = vpack.c.b16 %v1764, %v1763
  %v1803 = vpack.c.b16 %v1766, %v1765
  %v1804 = vpack.c.b16 %v1768, %v1767
  %v1805 = vpack.c.b16 %v1770, %v1769
  %v1806 = vpack.c.b16 %v1772, %v1771
  %v1807 = vpack.c.b16 %v1774, %v1773
  %v1808 = vpack.c.b16 %v1776, %v1775
  %1841 = vst [vmem:[#allocation2 + $0x10] sm:$0xff] %v1777
  %1842 = vst [vmem:[#allocation2 + $0x18] sm:$0xff] %v1778
  %1843 = vst [vmem:[#allocation2 + $0x50] sm:$0xff] %v1779
  %1844 = vst [vmem:[#allocation2 + $0x58] sm:$0xff] %v1780
  %1845 = vst [vmem:[#allocation2 + $0x90] sm:$0xff] %v1781
  %1846 = vst [vmem:[#allocation2 + $0x98] sm:$0xff] %v1782
  %1847 = vst [vmem:[#allocation2 + $0xd0] sm:$0xff] %v1783
  %1848 = vst [vmem:[#allocation2 + $0xd8] sm:$0xff] %v1784
  %1849 = vst [vmem:[#allocation2 + $0x110] sm:$0xff] %v1785
  %1850 = vst [vmem:[#allocation2 + $0x118] sm:$0xff] %v1786
  %1851 = vst [vmem:[#allocation2 + $0x150] sm:$0xff] %v1787
  %1852 = vst [vmem:[#allocation2 + $0x158] sm:$0xff] %v1788
  %1853 = vst [vmem:[#allocation2 + $0x190] sm:$0xff] %v1789
  %1854 = vst [vmem:[#allocation2 + $0x198] sm:$0xff] %v1790
  %1855 = vst [vmem:[#allocation2 + $0x1d0] sm:$0xff] %v1791
  %1856 = vst [vmem:[#allocation2 + $0x1d8] sm:$0xff] %v1792
  %1857 = vst [vmem:[#allocation2 + $0x210] sm:$0xff] %v1793
  %1858 = vst [vmem:[#allocation2 + $0x218] sm:$0xff] %v1794
  %1859 = vst [vmem:[#allocation2 + $0x250] sm:$0xff] %v1795
  %1860 = vst [vmem:[#allocation2 + $0x258] sm:$0xff] %v1796
  %1861 = vst [vmem:[#allocation2 + $0x290] sm:$0xff] %v1797
  %1862 = vst [vmem:[#allocation2 + $0x298] sm:$0xff] %v1798
  %1863 = vst [vmem:[#allocation2 + $0x2d0] sm:$0xff] %v1799
  %1864 = vst [vmem:[#allocation2 + $0x2d8] sm:$0xff] %v1800
  %1865 = vst [vmem:[#allocation2 + $0x310] sm:$0xff] %v1801
  %1866 = vst [vmem:[#allocation2 + $0x318] sm:$0xff] %v1802
  %1867 = vst [vmem:[#allocation2 + $0x350] sm:$0xff] %v1803
  %1868 = vst [vmem:[#allocation2 + $0x358] sm:$0xff] %v1804
  %1869 = vst [vmem:[#allocation2 + $0x390] sm:$0xff] %v1805
  %1870 = vst [vmem:[#allocation2 + $0x398] sm:$0xff] %v1806
  %1871 = vst [vmem:[#allocation2 + $0x3d0] sm:$0xff] %v1807
  %1872 = vst [vmem:[#allocation2 + $0x3d8] sm:$0xff] %v1808
  %v1873 = vld [vmem:[%s0 + $0x80] sm:$0xf]
  %v1874 = vld [vmem:[%s0 + $0x84] sm:$0xf]
  %v1875 = vld [vmem:[%s0 + $0x88] sm:$0xf]
  %v1876 = vld [vmem:[%s0 + $0x8c] sm:$0xf]
  %v1877 = vld [vmem:[%s0 + $0x90] sm:$0xf]
  %v1878 = vld [vmem:[%s0 + $0x94] sm:$0xf]
  %v1879 = vld [vmem:[%s0 + $0x98] sm:$0xf]
  %v1880 = vld [vmem:[%s0 + $0x9c] sm:$0xf]
  %v1881 = vld [vmem:[%s0 + $0xa0] sm:$0xf]
  %v1882 = vld [vmem:[%s0 + $0xa4] sm:$0xf]
  %v1883 = vld [vmem:[%s0 + $0xa8] sm:$0xf]
  %v1884 = vld [vmem:[%s0 + $0xac] sm:$0xf]
  %v1885 = vld [vmem:[%s0 + $0xb0] sm:$0xf]
  %v1886 = vld [vmem:[%s0 + $0xb4] sm:$0xf]
  %v1887 = vld [vmem:[%s0 + $0xb8] sm:$0xf]
  %v1888 = vld [vmem:[%s0 + $0xbc] sm:$0xf]
  %v1889 = vld [vmem:[%s1] sm:$0xff]
  %v1890 = vld [vmem:[%s1 + $0x8] sm:$0xff]
  %v1891 = vld [vmem:[%s1 + $0x10] sm:$0xff]
  %v1892 = vld [vmem:[%s1 + $0x18] sm:$0xff]
  %v1893 = vld [vmem:[%s1 + $0x20] sm:$0xff]
  %v1894 = vld [vmem:[%s1 + $0x28] sm:$0xff]
  %v1895 = vld [vmem:[%s1 + $0x30] sm:$0xff]
  %v1896 = vld [vmem:[%s1 + $0x38] sm:$0xff]
  %v1897 = vld [vmem:[%s1 + $0x40] sm:$0xff]
  %v1898 = vld [vmem:[%s1 + $0x48] sm:$0xff]
  %v1899 = vld [vmem:[%s1 + $0x50] sm:$0xff]
  %v1900 = vld [vmem:[%s1 + $0x58] sm:$0xff]
  %v1901 = vld [vmem:[%s1 + $0x60] sm:$0xff]
  %v1902 = vld [vmem:[%s1 + $0x68] sm:$0xff]
  %v1903 = vld [vmem:[%s1 + $0x70] sm:$0xff]
  %v1904 = vld [vmem:[%s1 + $0x78] sm:$0xff]
  %v1905 = vld [vmem:[%s1 + $0x80] sm:$0xff]
  %v1906 = vld [vmem:[%s1 + $0x88] sm:$0xff]
  %v1907 = vld [vmem:[%s1 + $0x90] sm:$0xff]
  %v1908 = vld [vmem:[%s1 + $0x98] sm:$0xff]
  %v1909 = vld [vmem:[%s1 + $0xa0] sm:$0xff]
  %v1910 = vld [vmem:[%s1 + $0xa8] sm:$0xff]
  %v1911 = vld [vmem:[%s1 + $0xb0] sm:$0xff]
  %v1912 = vld [vmem:[%s1 + $0xb8] sm:$0xff]
  %v1913 = vld [vmem:[%s1 + $0xc0] sm:$0xff]
  %v1914 = vld [vmem:[%s1 + $0xc8] sm:$0xff]
  %v1915 = vld [vmem:[%s1 + $0xd0] sm:$0xff]
  %v1916 = vld [vmem:[%s1 + $0xd8] sm:$0xff]
  %v1917 = vld [vmem:[%s1 + $0xe0] sm:$0xff]
  %v1918 = vld [vmem:[%s1 + $0xe8] sm:$0xff]
  %v1919 = vld [vmem:[%s1 + $0xf0] sm:$0xff]
  %v1920 = vld [vmem:[%s1 + $0xf8] sm:$0xff]
  %v1921 = vld [vmem:[%s2] sm:$0xf]
  %v1923 = vlaneseq
  %v1924 = vshrl.u32 %v1923, 7
  %v1925 = vsub.s32 0, %v1924
  %v1926 = vrot.slane %v1921, %v1925
  %v1927 = vlaneseq
  %v1928 = vshrl.u32 %v1927, 7
  %v1929 = vsub.s32 1, %v1928
  %v1930 = vrot.slane %v1921, %v1929
  %v1931 = vlaneseq
  %v1932 = vshrl.u32 %v1931, 7
  %v1933 = vsub.s32 2, %v1932
  %v1934 = vrot.slane %v1921, %v1933
  %v1935 = vlaneseq
  %v1936 = vshrl.u32 %v1935, 7
  %v1937 = vsub.s32 3, %v1936
  %v1938 = vrot.slane %v1921, %v1937
  %v1959 = vunpack.c.l.b16 %v1873
  %v1960 = vunpack.c.l.b16 %v1874
  %v1961 = vunpack.c.l.b16 %v1875
  %v1962 = vunpack.c.l.b16 %v1876
  %v1963 = vunpack.c.l.b16 %v1877
  %v1964 = vunpack.c.l.b16 %v1878
  %v1965 = vunpack.c.l.b16 %v1879
  %v1966 = vunpack.c.l.b16 %v1880
  %v1967 = vunpack.c.l.b16 %v1881
  %v1968 = vunpack.c.l.b16 %v1882
  %v1969 = vunpack.c.l.b16 %v1883
  %v1970 = vunpack.c.l.b16 %v1884
  %v1971 = vunpack.c.l.b16 %v1885
  %v1972 = vunpack.c.l.b16 %v1886
  %v1973 = vunpack.c.l.b16 %v1887
  %v1974 = vunpack.c.l.b16 %v1888
  %v1975 = vpack.c.b16 %v1960, %v1959
  %v1976 = vpack.c.b16 %v1962, %v1961
  %v1977 = vpack.c.b16 %v1964, %v1963
  %v1978 = vpack.c.b16 %v1966, %v1965
  %v1979 = vpack.c.b16 %v1968, %v1967
  %v1980 = vpack.c.b16 %v1970, %v1969
  %v1981 = vpack.c.b16 %v1972, %v1971
  %v1982 = vpack.c.b16 %v1974, %v1973
  %v2023 = vunpack.c.l.b16 %v1889
  %v2024 = vunpack.c.h.b16 %v1889
  %v2025 = vunpack.c.l.b16 %v1890
  %v2026 = vunpack.c.h.b16 %v1890
  %v2027 = vunpack.c.l.b16 %v1891
  %v2028 = vunpack.c.h.b16 %v1891
  %v2029 = vunpack.c.l.b16 %v1892
  %v2030 = vunpack.c.h.b16 %v1892
  %v2031 = vunpack.c.l.b16 %v1893
  %v2032 = vunpack.c.h.b16 %v1893
  %v2033 = vunpack.c.l.b16 %v1894
  %v2034 = vunpack.c.h.b16 %v1894
  %v2035 = vunpack.c.l.b16 %v1895
  %v2036 = vunpack.c.h.b16 %v1895
  %v2037 = vunpack.c.l.b16 %v1896
  %v2038 = vunpack.c.h.b16 %v1896
  %v2039 = vunpack.c.l.b16 %v1897
  %v2040 = vunpack.c.h.b16 %v1897
  %v2041 = vunpack.c.l.b16 %v1898
  %v2042 = vunpack.c.h.b16 %v1898
  %v2043 = vunpack.c.l.b16 %v1899
  %v2044 = vunpack.c.h.b16 %v1899
  %v2045 = vunpack.c.l.b16 %v1900
  %v2046 = vunpack.c.h.b16 %v1900
  %v2047 = vunpack.c.l.b16 %v1901
  %v2048 = vunpack.c.h.b16 %v1901
  %v2049 = vunpack.c.l.b16 %v1902
  %v2050 = vunpack.c.h.b16 %v1902
  %v2051 = vunpack.c.l.b16 %v1903
  %v2052 = vunpack.c.h.b16 %v1903
  %v2053 = vunpack.c.l.b16 %v1904
  %v2054 = vunpack.c.h.b16 %v1904
  %v2055 = vunpack.c.l.b16 %v1905
  %v2056 = vunpack.c.h.b16 %v1905
  %v2057 = vunpack.c.l.b16 %v1906
  %v2058 = vunpack.c.h.b16 %v1906
  %v2059 = vunpack.c.l.b16 %v1907
  %v2060 = vunpack.c.h.b16 %v1907
  %v2061 = vunpack.c.l.b16 %v1908
  %v2062 = vunpack.c.h.b16 %v1908
  %v2063 = vunpack.c.l.b16 %v1909
  %v2064 = vunpack.c.h.b16 %v1909
  %v2065 = vunpack.c.l.b16 %v1910
  %v2066 = vunpack.c.h.b16 %v1910
  %v2067 = vunpack.c.l.b16 %v1911
  %v2068 = vunpack.c.h.b16 %v1911
  %v2069 = vunpack.c.l.b16 %v1912
  %v2070 = vunpack.c.h.b16 %v1912
  %v2071 = vunpack.c.l.b16 %v1913
  %v2072 = vunpack.c.h.b16 %v1913
  %v2073 = vunpack.c.l.b16 %v1914
  %v2074 = vunpack.c.h.b16 %v1914
  %v2075 = vunpack.c.l.b16 %v1915
  %v2076 = vunpack.c.h.b16 %v1915
  %v2077 = vunpack.c.l.b16 %v1916
  %v2078 = vunpack.c.h.b16 %v1916
  %v2079 = vunpack.c.l.b16 %v1917
  %v2080 = vunpack.c.h.b16 %v1917
  %v2081 = vunpack.c.l.b16 %v1918
  %v2082 = vunpack.c.h.b16 %v1918
  %v2083 = vunpack.c.l.b16 %v1919
  %v2084 = vunpack.c.h.b16 %v1919
  %v2085 = vunpack.c.l.b16 %v1920
  %v2086 = vunpack.c.h.b16 %v1920
  %v2087 = vpack.c.b16 %v2027, %v2023
  %v2088 = vpack.c.b16 %v2028, %v2024
  %v2089 = vpack.c.b16 %v2029, %v2025
  %v2090 = vpack.c.b16 %v2030, %v2026
  %v2091 = vpack.c.b16 %v2035, %v2031
  %v2092 = vpack.c.b16 %v2036, %v2032
  %v2093 = vpack.c.b16 %v2037, %v2033
  %v2094 = vpack.c.b16 %v2038, %v2034
  %v2095 = vpack.c.b16 %v2043, %v2039
  %v2096 = vpack.c.b16 %v2044, %v2040
  %v2097 = vpack.c.b16 %v2045, %v2041
  %v2098 = vpack.c.b16 %v2046, %v2042
  %v2099 = vpack.c.b16 %v2051, %v2047
  %v2100 = vpack.c.b16 %v2052, %v2048
  %v2101 = vpack.c.b16 %v2053, %v2049
  %v2102 = vpack.c.b16 %v2054, %v2050
  %v2103 = vpack.c.b16 %v2059, %v2055
  %v2104 = vpack.c.b16 %v2060, %v2056
  %v2105 = vpack.c.b16 %v2061, %v2057
  %v2106 = vpack.c.b16 %v2062, %v2058
  %v2107 = vpack.c.b16 %v2067, %v2063
  %v2108 = vpack.c.b16 %v2068, %v2064
  %v2109 = vpack.c.b16 %v2069, %v2065
  %v2110 = vpack.c.b16 %v2070, %v2066
  %v2111 = vpack.c.b16 %v2075, %v2071
  %v2112 = vpack.c.b16 %v2076, %v2072
  %v2113 = vpack.c.b16 %v2077, %v2073
  %v2114 = vpack.c.b16 %v2078, %v2074
  %v2115 = vpack.c.b16 %v2083, %v2079
  %v2116 = vpack.c.b16 %v2084, %v2080
  %v2117 = vpack.c.b16 %v2085, %v2081
  %v2118 = vpack.c.b16 %v2086, %v2082
  %2151 = vmatprep.subr.bf16.mxu0 %v2116
  %2152 = vmatpush1.bf16.msra.mxu0 %v2115
  %2153 = vmatprep.subr.bf16.mxu0 %v2112
  %2154 = vmatpush1.bf16.msra.mxu0 %v2111
  %2155 = vmatprep.subr.bf16.mxu0 %v2108
  %2156 = vmatpush1.bf16.msra.mxu0 %v2107
  %2157 = vmatprep.subr.bf16.mxu0 %v2104
  %2158 = vmatpush1.bf16.msra.mxu0 %v2103
  %2159 = vmatprep.subr.bf16.mxu0 %v2100
  %2160 = vmatpush1.bf16.msra.mxu0 %v2099
  %2161 = vmatprep.subr.bf16.mxu0 %v2096
  %2162 = vmatpush1.bf16.msra.mxu0 %v2095
  %2163 = vmatprep.subr.bf16.mxu0 %v2092
  %2164 = vmatpush1.bf16.msra.mxu0 %v2091
  %2165 = vmatprep.subr.bf16.mxu0 %v2088
  %2166 = vmatpush1.bf16.msra.mxu0 %v2087
  %2167 = vmatprep.subr.bf16.mxu0 0
  %2168 = vmatpush2.bf16.msra.mxu0 0
  %2169 = vmatprep.subr.bf16.mxu0 0
  %2170 = vmatpush2.bf16.msra.mxu0 0
  %2171 = vmatprep.subr.bf16.mxu0 0
  %2172 = vmatpush2.bf16.msra.mxu0 0
  %2173 = vmatprep.subr.bf16.mxu0 0
  %2174 = vmatpush2.bf16.msra.mxu0 0
  %2175 = vmatprep.subr.bf16.mxu0 0
  %2176 = vmatpush2.bf16.msra.mxu0 0
  %2177 = vmatprep.subr.bf16.mxu0 0
  %2178 = vmatpush2.bf16.msra.mxu0 0
  %2179 = vmatprep.subr.bf16.mxu0 0
  %2180 = vmatpush2.bf16.msra.mxu0 0
  %2181 = vmatprep.subr.bf16.mxu0 0
  %2182 = vmatpush2.bf16.msra.mxu0 0
  %2183 = vmatprep.mubr.bf16.mxu0 0
  %2184 = vmatmul.mubr.bf16.gmra.mxu0 %v1975
  %v2185 = vpop.f32.mrf.mxu0
  %v2186 = vadd.f32 %v1926, %v2185
  %v2187 = vpop.f32.mrf.mxu0
  %v2188 = vadd.f32 %v1930, %v2187
  %v2189 = vpop.f32.mrf.mxu0
  %v2190 = vadd.f32 %v1926, %v2189
  %v2191 = vpop.f32.mrf.mxu0
  %v2192 = vadd.f32 %v1930, %v2191
  %2193 = vmatprep.mubr.bf16.mxu0 0
  %2194 = vmatmul.mubr.bf16.gmra.mxu0 %v1976
  %v2195 = vpop.f32.mrf.mxu0
  %v2196 = vadd.f32 %v1926, %v2195
  %v2197 = vpop.f32.mrf.mxu0
  %v2198 = vadd.f32 %v1930, %v2197
  %v2199 = vpop.f32.mrf.mxu0
  %v2200 = vadd.f32 %v1926, %v2199
  %v2201 = vpop.f32.mrf.mxu0
  %v2202 = vadd.f32 %v1930, %v2201
  %2203 = vmatprep.mubr.bf16.mxu0 0
  %2204 = vmatmul.mubr.bf16.gmra.mxu0 %v1977
  %v2205 = vpop.f32.mrf.mxu0
  %v2206 = vadd.f32 %v1926, %v2205
  %v2207 = vpop.f32.mrf.mxu0
  %v2208 = vadd.f32 %v1930, %v2207
  %v2209 = vpop.f32.mrf.mxu0
  %v2210 = vadd.f32 %v1926, %v2209
  %v2211 = vpop.f32.mrf.mxu0
  %v2212 = vadd.f32 %v1930, %v2211
  %2213 = vmatprep.mubr.bf16.mxu0 0
  %2214 = vmatmul.mubr.bf16.gmra.mxu0 %v1978
  %v2215 = vpop.f32.mrf.mxu0
  %v2216 = vadd.f32 %v1926, %v2215
  %v2217 = vpop.f32.mrf.mxu0
  %v2218 = vadd.f32 %v1930, %v2217
  %v2219 = vpop.f32.mrf.mxu0
  %v2220 = vadd.f32 %v1926, %v2219
  %v2221 = vpop.f32.mrf.mxu0
  %v2222 = vadd.f32 %v1930, %v2221
  %2223 = vmatprep.mubr.bf16.mxu0 0
  %2224 = vmatmul.mubr.bf16.gmra.mxu0 %v1979
  %v2225 = vpop.f32.mrf.mxu0
  %v2226 = vadd.f32 %v1926, %v2225
  %v2227 = vpop.f32.mrf.mxu0
  %v2228 = vadd.f32 %v1930, %v2227
  %v2229 = vpop.f32.mrf.mxu0
  %v2230 = vadd.f32 %v1926, %v2229
  %v2231 = vpop.f32.mrf.mxu0
  %v2232 = vadd.f32 %v1930, %v2231
  %2233 = vmatprep.mubr.bf16.mxu0 0
  %2234 = vmatmul.mubr.bf16.gmra.mxu0 %v1980
  %v2235 = vpop.f32.mrf.mxu0
  %v2236 = vadd.f32 %v1926, %v2235
  %v2237 = vpop.f32.mrf.mxu0
  %v2238 = vadd.f32 %v1930, %v2237
  %v2239 = vpop.f32.mrf.mxu0
  %v2240 = vadd.f32 %v1926, %v2239
  %v2241 = vpop.f32.mrf.mxu0
  %v2242 = vadd.f32 %v1930, %v2241
  %2243 = vmatprep.mubr.bf16.mxu0 0
  %2244 = vmatmul.mubr.bf16.gmra.mxu0 %v1981
  %v2245 = vpop.f32.mrf.mxu0
  %v2246 = vadd.f32 %v1926, %v2245
  %v2247 = vpop.f32.mrf.mxu0
  %v2248 = vadd.f32 %v1930, %v2247
  %v2249 = vpop.f32.mrf.mxu0
  %v2250 = vadd.f32 %v1926, %v2249
  %v2251 = vpop.f32.mrf.mxu0
  %v2252 = vadd.f32 %v1930, %v2251
  %2253 = vmatprep.mubr.bf16.mxu0 0
  %2254 = vmatmul.mubr.bf16.gmra.mxu0 %v1982
  %v2255 = vpop.f32.mrf.mxu0
  %v2256 = vadd.f32 %v1926, %v2255
  %v2257 = vpop.f32.mrf.mxu0
  %v2258 = vadd.f32 %v1930, %v2257
  %v2259 = vpop.f32.mrf.mxu0
  %v2260 = vadd.f32 %v1926, %v2259
  %v2261 = vpop.f32.mrf.mxu0
  %v2262 = vadd.f32 %v1930, %v2261
  %2263 = vdwg.mxu0
  %2264 = vmatprep.subr.bf16.mxu0 %v2118
  %2265 = vmatpush1.bf16.msra.mxu0 %v2117
  %2266 = vmatprep.subr.bf16.mxu0 %v2114
  %2267 = vmatpush1.bf16.msra.mxu0 %v2113
  %2268 = vmatprep.subr.bf16.mxu0 %v2110
  %2269 = vmatpush1.bf16.msra.mxu0 %v2109
  %2270 = vmatprep.subr.bf16.mxu0 %v2106
  %2271 = vmatpush1.bf16.msra.mxu0 %v2105
  %2272 = vmatprep.subr.bf16.mxu0 %v2102
  %2273 = vmatpush1.bf16.msra.mxu0 %v2101
  %2274 = vmatprep.subr.bf16.mxu0 %v2098
  %2275 = vmatpush1.bf16.msra.mxu0 %v2097
  %2276 = vmatprep.subr.bf16.mxu0 %v2094
  %2277 = vmatpush1.bf16.msra.mxu0 %v2093
  %2278 = vmatprep.subr.bf16.mxu0 %v2090
  %2279 = vmatpush1.bf16.msra.mxu0 %v2089
  %2280 = vmatprep.subr.bf16.mxu0 0
  %2281 = vmatpush2.bf16.msra.mxu0 0
  %2282 = vmatprep.subr.bf16.mxu0 0
  %2283 = vmatpush2.bf16.msra.mxu0 0
  %2284 = vmatprep.subr.bf16.mxu0 0
  %2285 = vmatpush2.bf16.msra.mxu0 0
  %2286 = vmatprep.subr.bf16.mxu0 0
  %2287 = vmatpush2.bf16.msra.mxu0 0
  %2288 = vmatprep.subr.bf16.mxu0 0
  %2289 = vmatpush2.bf16.msra.mxu0 0
  %2290 = vmatprep.subr.bf16.mxu0 0
  %2291 = vmatpush2.bf16.msra.mxu0 0
  %2292 = vmatprep.subr.bf16.mxu0 0
  %2293 = vmatpush2.bf16.msra.mxu0 0
  %2294 = vmatprep.subr.bf16.mxu0 0
  %2295 = vmatpush2.bf16.msra.mxu0 0
  %2296 = vmatprep.mubr.bf16.mxu0 0
  %2297 = vmatmul.mubr.bf16.gmra.mxu0 %v1975
  %v2298 = vpop.f32.mrf.mxu0
  %v2299 = vadd.f32 %v1934, %v2298
  %v2300 = vpop.f32.mrf.mxu0
  %v2301 = vadd.f32 %v1938, %v2300
  %v2302 = vpop.f32.mrf.mxu0
  %v2303 = vadd.f32 %v1934, %v2302
  %v2304 = vpop.f32.mrf.mxu0
  %v2305 = vadd.f32 %v1938, %v2304
  %2306 = vmatprep.mubr.bf16.mxu0 0
  %2307 = vmatmul.mubr.bf16.gmra.mxu0 %v1976
  %v2308 = vpop.f32.mrf.mxu0
  %v2309 = vadd.f32 %v1934, %v2308
  %v2310 = vpop.f32.mrf.mxu0
  %v2311 = vadd.f32 %v1938, %v2310
  %v2312 = vpop.f32.mrf.mxu0
  %v2313 = vadd.f32 %v1934, %v2312
  %v2314 = vpop.f32.mrf.mxu0
  %v2315 = vadd.f32 %v1938, %v2314
  %2316 = vmatprep.mubr.bf16.mxu0 0
  %2317 = vmatmul.mubr.bf16.gmra.mxu0 %v1977
  %v2318 = vpop.f32.mrf.mxu0
  %v2319 = vadd.f32 %v1934, %v2318
  %v2320 = vpop.f32.mrf.mxu0
  %v2321 = vadd.f32 %v1938, %v2320
  %v2322 = vpop.f32.mrf.mxu0
  %v2323 = vadd.f32 %v1934, %v2322
  %v2324 = vpop.f32.mrf.mxu0
  %v2325 = vadd.f32 %v1938, %v2324
  %2326 = vmatprep.mubr.bf16.mxu0 0
  %2327 = vmatmul.mubr.bf16.gmra.mxu0 %v1978
  %v2328 = vpop.f32.mrf.mxu0
  %v2329 = vadd.f32 %v1934, %v2328
  %v2330 = vpop.f32.mrf.mxu0
  %v2331 = vadd.f32 %v1938, %v2330
  %v2332 = vpop.f32.mrf.mxu0
  %v2333 = vadd.f32 %v1934, %v2332
  %v2334 = vpop.f32.mrf.mxu0
  %v2335 = vadd.f32 %v1938, %v2334
  %2336 = vmatprep.mubr.bf16.mxu0 0
  %2337 = vmatmul.mubr.bf16.gmra.mxu0 %v1979
  %v2338 = vpop.f32.mrf.mxu0
  %v2339 = vadd.f32 %v1934, %v2338
  %v2340 = vpop.f32.mrf.mxu0
  %v2341 = vadd.f32 %v1938, %v2340
  %v2342 = vpop.f32.mrf.mxu0
  %v2343 = vadd.f32 %v1934, %v2342
  %v2344 = vpop.f32.mrf.mxu0
  %v2345 = vadd.f32 %v1938, %v2344
  %2346 = vmatprep.mubr.bf16.mxu0 0
  %2347 = vmatmul.mubr.bf16.gmra.mxu0 %v1980
  %v2348 = vpop.f32.mrf.mxu0
  %v2349 = vadd.f32 %v1934, %v2348
  %v2350 = vpop.f32.mrf.mxu0
  %v2351 = vadd.f32 %v1938, %v2350
  %v2352 = vpop.f32.mrf.mxu0
  %v2353 = vadd.f32 %v1934, %v2352
  %v2354 = vpop.f32.mrf.mxu0
  %v2355 = vadd.f32 %v1938, %v2354
  %2356 = vmatprep.mubr.bf16.mxu0 0
  %2357 = vmatmul.mubr.bf16.gmra.mxu0 %v1981
  %v2358 = vpop.f32.mrf.mxu0
  %v2359 = vadd.f32 %v1934, %v2358
  %v2360 = vpop.f32.mrf.mxu0
  %v2361 = vadd.f32 %v1938, %v2360
  %v2362 = vpop.f32.mrf.mxu0
  %v2363 = vadd.f32 %v1934, %v2362
  %v2364 = vpop.f32.mrf.mxu0
  %v2365 = vadd.f32 %v1938, %v2364
  %2366 = vmatprep.mubr.bf16.mxu0 0
  %2367 = vmatmul.mubr.bf16.gmra.mxu0 %v1982
  %v2368 = vpop.f32.mrf.mxu0
  %v2369 = vadd.f32 %v1934, %v2368
  %v2370 = vpop.f32.mrf.mxu0
  %v2371 = vadd.f32 %v1938, %v2370
  %v2372 = vpop.f32.mrf.mxu0
  %v2373 = vadd.f32 %v1934, %v2372
  %v2374 = vpop.f32.mrf.mxu0
  %v2375 = vadd.f32 %v1938, %v2374
  %2376 = vdwg.mxu0
  %vm2377 = vcmp.ge.f32.partialorder %v2186, 0.0
  %vm2378 = vcmp.ge.f32.partialorder %v2188, 0.0
  %vm2379 = vcmp.ge.f32.partialorder %v2299, 0.0
  %vm2380 = vcmp.ge.f32.partialorder %v2301, 0.0
  %vm2381 = vcmp.ge.f32.partialorder %v2190, 0.0
  %vm2382 = vcmp.ge.f32.partialorder %v2192, 0.0
  %vm2383 = vcmp.ge.f32.partialorder %v2303, 0.0
  %vm2384 = vcmp.ge.f32.partialorder %v2305, 0.0
  %vm2385 = vcmp.ge.f32.partialorder %v2196, 0.0
  %vm2386 = vcmp.ge.f32.partialorder %v2198, 0.0
  %vm2387 = vcmp.ge.f32.partialorder %v2309, 0.0
  %vm2388 = vcmp.ge.f32.partialorder %v2311, 0.0
  %vm2389 = vcmp.ge.f32.partialorder %v2200, 0.0
  %vm2390 = vcmp.ge.f32.partialorder %v2202, 0.0
  %vm2391 = vcmp.ge.f32.partialorder %v2313, 0.0
  %vm2392 = vcmp.ge.f32.partialorder %v2315, 0.0
  %vm2393 = vcmp.ge.f32.partialorder %v2206, 0.0
  %vm2394 = vcmp.ge.f32.partialorder %v2208, 0.0
  %vm2395 = vcmp.ge.f32.partialorder %v2319, 0.0
  %vm2396 = vcmp.ge.f32.partialorder %v2321, 0.0
  %vm2397 = vcmp.ge.f32.partialorder %v2210, 0.0
  %vm2398 = vcmp.ge.f32.partialorder %v2212, 0.0
  %vm2399 = vcmp.ge.f32.partialorder %v2323, 0.0
  %vm2400 = vcmp.ge.f32.partialorder %v2325, 0.0
  %vm2401 = vcmp.ge.f32.partialorder %v2216, 0.0
  %vm2402 = vcmp.ge.f32.partialorder %v2218, 0.0
  %vm2403 = vcmp.ge.f32.partialorder %v2329, 0.0
  %vm2404 = vcmp.ge.f32.partialorder %v2331, 0.0
  %vm2405 = vcmp.ge.f32.partialorder %v2220, 0.0
  %vm2406 = vcmp.ge.f32.partialorder %v2222, 0.0
  %vm2407 = vcmp.ge.f32.partialorder %v2333, 0.0
  %vm2408 = vcmp.ge.f32.partialorder %v2335, 0.0
  %vm2409 = vcmp.ge.f32.partialorder %v2226, 0.0
  %vm2410 = vcmp.ge.f32.partialorder %v2228, 0.0
  %vm2411 = vcmp.ge.f32.partialorder %v2339, 0.0
  %vm2412 = vcmp.ge.f32.partialorder %v2341, 0.0
  %vm2413 = vcmp.ge.f32.partialorder %v2230, 0.0
  %vm2414 = vcmp.ge.f32.partialorder %v2232, 0.0
  %vm2415 = vcmp.ge.f32.partialorder %v2343, 0.0
  %vm2416 = vcmp.ge.f32.partialorder %v2345, 0.0
  %vm2417 = vcmp.ge.f32.partialorder %v2236, 0.0
  %vm2418 = vcmp.ge.f32.partialorder %v2238, 0.0
  %vm2419 = vcmp.ge.f32.partialorder %v2349, 0.0
  %vm2420 = vcmp.ge.f32.partialorder %v2351, 0.0
  %vm2421 = vcmp.ge.f32.partialorder %v2240, 0.0
  %vm2422 = vcmp.ge.f32.partialorder %v2242, 0.0
  %vm2423 = vcmp.ge.f32.partialorder %v2353, 0.0
  %vm2424 = vcmp.ge.f32.partialorder %v2355, 0.0
  %vm2425 = vcmp.ge.f32.partialorder %v2246, 0.0
  %vm2426 = vcmp.ge.f32.partialorder %v2248, 0.0
  %vm2427 = vcmp.ge.f32.partialorder %v2359, 0.0
  %vm2428 = vcmp.ge.f32.partialorder %v2361, 0.0
  %vm2429 = vcmp.ge.f32.partialorder %v2250, 0.0
  %vm2430 = vcmp.ge.f32.partialorder %v2252, 0.0
  %vm2431 = vcmp.ge.f32.partialorder %v2363, 0.0
  %vm2432 = vcmp.ge.f32.partialorder %v2365, 0.0
  %vm2433 = vcmp.ge.f32.partialorder %v2256, 0.0
  %vm2434 = vcmp.ge.f32.partialorder %v2258, 0.0
  %vm2435 = vcmp.ge.f32.partialorder %v2369, 0.0
  %vm2436 = vcmp.ge.f32.partialorder %v2371, 0.0
  %vm2437 = vcmp.ge.f32.partialorder %v2260, 0.0
  %vm2438 = vcmp.ge.f32.partialorder %v2262, 0.0
  %vm2439 = vcmp.ge.f32.partialorder %v2373, 0.0
  %vm2440 = vcmp.ge.f32.partialorder %v2375, 0.0
  %v2441 = vmul.f32 %v2186, 0.01
  %v2442 = vmul.f32 %v2188, 0.01
  %v2443 = vmul.f32 %v2299, 0.01
  %v2444 = vmul.f32 %v2301, 0.01
  %v2445 = vmul.f32 %v2190, 0.01
  %v2446 = vmul.f32 %v2192, 0.01
  %v2447 = vmul.f32 %v2303, 0.01
  %v2448 = vmul.f32 %v2305, 0.01
  %v2449 = vmul.f32 %v2196, 0.01
  %v2450 = vmul.f32 %v2198, 0.01
  %v2451 = vmul.f32 %v2309, 0.01
  %v2452 = vmul.f32 %v2311, 0.01
  %v2453 = vmul.f32 %v2200, 0.01
  %v2454 = vmul.f32 %v2202, 0.01
  %v2455 = vmul.f32 %v2313, 0.01
  %v2456 = vmul.f32 %v2315, 0.01
  %v2457 = vmul.f32 %v2206, 0.01
  %v2458 = vmul.f32 %v2208, 0.01
  %v2459 = vmul.f32 %v2319, 0.01
  %v2460 = vmul.f32 %v2321, 0.01
  %v2461 = vmul.f32 %v2210, 0.01
  %v2462 = vmul.f32 %v2212, 0.01
  %v2463 = vmul.f32 %v2323, 0.01
  %v2464 = vmul.f32 %v2325, 0.01
  %v2465 = vmul.f32 %v2216, 0.01
  %v2466 = vmul.f32 %v2218, 0.01
  %v2467 = vmul.f32 %v2329, 0.01
  %v2468 = vmul.f32 %v2331, 0.01
  %v2469 = vmul.f32 %v2220, 0.01
  %v2470 = vmul.f32 %v2222, 0.01
  %v2471 = vmul.f32 %v2333, 0.01
  %v2472 = vmul.f32 %v2335, 0.01
  %v2473 = vmul.f32 %v2226, 0.01
  %v2474 = vmul.f32 %v2228, 0.01
  %v2475 = vmul.f32 %v2339, 0.01
  %v2476 = vmul.f32 %v2341, 0.01
  %v2477 = vmul.f32 %v2230, 0.01
  %v2478 = vmul.f32 %v2232, 0.01
  %v2479 = vmul.f32 %v2343, 0.01
  %v2480 = vmul.f32 %v2345, 0.01
  %v2481 = vmul.f32 %v2236, 0.01
  %v2482 = vmul.f32 %v2238, 0.01
  %v2483 = vmul.f32 %v2349, 0.01
  %v2484 = vmul.f32 %v2351, 0.01
  %v2485 = vmul.f32 %v2240, 0.01
  %v2486 = vmul.f32 %v2242, 0.01
  %v2487 = vmul.f32 %v2353, 0.01
  %v2488 = vmul.f32 %v2355, 0.01
  %v2489 = vmul.f32 %v2246, 0.01
  %v2490 = vmul.f32 %v2248, 0.01
  %v2491 = vmul.f32 %v2359, 0.01
  %v2492 = vmul.f32 %v2361, 0.01
  %v2493 = vmul.f32 %v2250, 0.01
  %v2494 = vmul.f32 %v2252, 0.01
  %v2495 = vmul.f32 %v2363, 0.01
  %v2496 = vmul.f32 %v2365, 0.01
  %v2497 = vmul.f32 %v2256, 0.01
  %v2498 = vmul.f32 %v2258, 0.01
  %v2499 = vmul.f32 %v2369, 0.01
  %v2500 = vmul.f32 %v2371, 0.01
  %v2501 = vmul.f32 %v2260, 0.01
  %v2502 = vmul.f32 %v2262, 0.01
  %v2503 = vmul.f32 %v2373, 0.01
  %v2504 = vmul.f32 %v2375, 0.01
  %v2505 = vsel %vm2377, %v2186, %v2441
  %v2506 = vsel %vm2378, %v2188, %v2442
  %v2507 = vsel %vm2379, %v2299, %v2443
  %v2508 = vsel %vm2380, %v2301, %v2444
  %v2509 = vsel %vm2381, %v2190, %v2445
  %v2510 = vsel %vm2382, %v2192, %v2446
  %v2511 = vsel %vm2383, %v2303, %v2447
  %v2512 = vsel %vm2384, %v2305, %v2448
  %v2513 = vsel %vm2385, %v2196, %v2449
  %v2514 = vsel %vm2386, %v2198, %v2450
  %v2515 = vsel %vm2387, %v2309, %v2451
  %v2516 = vsel %vm2388, %v2311, %v2452
  %v2517 = vsel %vm2389, %v2200, %v2453
  %v2518 = vsel %vm2390, %v2202, %v2454
  %v2519 = vsel %vm2391, %v2313, %v2455
  %v2520 = vsel %vm2392, %v2315, %v2456
  %v2521 = vsel %vm2393, %v2206, %v2457
  %v2522 = vsel %vm2394, %v2208, %v2458
  %v2523 = vsel %vm2395, %v2319, %v2459
  %v2524 = vsel %vm2396, %v2321, %v2460
  %v2525 = vsel %vm2397, %v2210, %v2461
  %v2526 = vsel %vm2398, %v2212, %v2462
  %v2527 = vsel %vm2399, %v2323, %v2463
  %v2528 = vsel %vm2400, %v2325, %v2464
  %v2529 = vsel %vm2401, %v2216, %v2465
  %v2530 = vsel %vm2402, %v2218, %v2466
  %v2531 = vsel %vm2403, %v2329, %v2467
  %v2532 = vsel %vm2404, %v2331, %v2468
  %v2533 = vsel %vm2405, %v2220, %v2469
  %v2534 = vsel %vm2406, %v2222, %v2470
  %v2535 = vsel %vm2407, %v2333, %v2471
  %v2536 = vsel %vm2408, %v2335, %v2472
  %v2537 = vsel %vm2409, %v2226, %v2473
  %v2538 = vsel %vm2410, %v2228, %v2474
  %v2539 = vsel %vm2411, %v2339, %v2475
  %v2540 = vsel %vm2412, %v2341, %v2476
  %v2541 = vsel %vm2413, %v2230, %v2477
  %v2542 = vsel %vm2414, %v2232, %v2478
  %v2543 = vsel %vm2415, %v2343, %v2479
  %v2544 = vsel %vm2416, %v2345, %v2480
  %v2545 = vsel %vm2417, %v2236, %v2481
  %v2546 = vsel %vm2418, %v2238, %v2482
  %v2547 = vsel %vm2419, %v2349, %v2483
  %v2548 = vsel %vm2420, %v2351, %v2484
  %v2549 = vsel %vm2421, %v2240, %v2485
  %v2550 = vsel %vm2422, %v2242, %v2486
  %v2551 = vsel %vm2423, %v2353, %v2487
  %v2552 = vsel %vm2424, %v2355, %v2488
  %v2553 = vsel %vm2425, %v2246, %v2489
  %v2554 = vsel %vm2426, %v2248, %v2490
  %v2555 = vsel %vm2427, %v2359, %v2491
  %v2556 = vsel %vm2428, %v2361, %v2492
  %v2557 = vsel %vm2429, %v2250, %v2493
  %v2558 = vsel %vm2430, %v2252, %v2494
  %v2559 = vsel %vm2431, %v2363, %v2495
  %v2560 = vsel %vm2432, %v2365, %v2496
  %v2561 = vsel %vm2433, %v2256, %v2497
  %v2562 = vsel %vm2434, %v2258, %v2498
  %v2563 = vsel %vm2435, %v2369, %v2499
  %v2564 = vsel %vm2436, %v2371, %v2500
  %v2565 = vsel %vm2437, %v2260, %v2501
  %v2566 = vsel %vm2438, %v2262, %v2502
  %v2567 = vsel %vm2439, %v2373, %v2503
  %v2568 = vsel %vm2440, %v2375, %v2504
  %v2569 = vpack.c.bf16 %v2509, %v2505
  %v2570 = vpack.c.bf16 %v2510, %v2506
  %v2571 = vpack.c.bf16 %v2511, %v2507
  %v2572 = vpack.c.bf16 %v2512, %v2508
  %v2573 = vpack.c.bf16 %v2517, %v2513
  %v2574 = vpack.c.bf16 %v2518, %v2514
  %v2575 = vpack.c.bf16 %v2519, %v2515
  %v2576 = vpack.c.bf16 %v2520, %v2516
  %v2577 = vpack.c.bf16 %v2525, %v2521
  %v2578 = vpack.c.bf16 %v2526, %v2522
  %v2579 = vpack.c.bf16 %v2527, %v2523
  %v2580 = vpack.c.bf16 %v2528, %v2524
  %v2581 = vpack.c.bf16 %v2533, %v2529
  %v2582 = vpack.c.bf16 %v2534, %v2530
  %v2583 = vpack.c.bf16 %v2535, %v2531
  %v2584 = vpack.c.bf16 %v2536, %v2532
  %v2585 = vpack.c.bf16 %v2541, %v2537
  %v2586 = vpack.c.bf16 %v2542, %v2538
  %v2587 = vpack.c.bf16 %v2543, %v2539
  %v2588 = vpack.c.bf16 %v2544, %v2540
  %v2589 = vpack.c.bf16 %v2549, %v2545
  %v2590 = vpack.c.bf16 %v2550, %v2546
  %v2591 = vpack.c.bf16 %v2551, %v2547
  %v2592 = vpack.c.bf16 %v2552, %v2548
  %v2593 = vpack.c.bf16 %v2557, %v2553
  %v2594 = vpack.c.bf16 %v2558, %v2554
  %v2595 = vpack.c.bf16 %v2559, %v2555
  %v2596 = vpack.c.bf16 %v2560, %v2556
  %v2597 = vpack.c.bf16 %v2565, %v2561
  %v2598 = vpack.c.bf16 %v2566, %v2562
  %v2599 = vpack.c.bf16 %v2567, %v2563
  %v2600 = vpack.c.bf16 %v2568, %v2564
  %v2633 = vunpack.c.l.b16 %v2569
  %v2634 = vunpack.c.l.b16 %v2570
  %v2635 = vunpack.c.l.b16 %v2571
  %v2636 = vunpack.c.l.b16 %v2572
  %v2637 = vunpack.c.h.b16 %v2569
  %v2638 = vunpack.c.h.b16 %v2570
  %v2639 = vunpack.c.h.b16 %v2571
  %v2640 = vunpack.c.h.b16 %v2572
  %v2641 = vunpack.c.l.b16 %v2573
  %v2642 = vunpack.c.l.b16 %v2574
  %v2643 = vunpack.c.l.b16 %v2575
  %v2644 = vunpack.c.l.b16 %v2576
  %v2645 = vunpack.c.h.b16 %v2573
  %v2646 = vunpack.c.h.b16 %v2574
  %v2647 = vunpack.c.h.b16 %v2575
  %v2648 = vunpack.c.h.b16 %v2576
  %v2649 = vunpack.c.l.b16 %v2577
  %v2650 = vunpack.c.l.b16 %v2578
  %v2651 = vunpack.c.l.b16 %v2579
  %v2652 = vunpack.c.l.b16 %v2580
  %v2653 = vunpack.c.h.b16 %v2577
  %v2654 = vunpack.c.h.b16 %v2578
  %v2655 = vunpack.c.h.b16 %v2579
  %v2656 = vunpack.c.h.b16 %v2580
  %v2657 = vunpack.c.l.b16 %v2581
  %v2658 = vunpack.c.l.b16 %v2582
  %v2659 = vunpack.c.l.b16 %v2583
  %v2660 = vunpack.c.l.b16 %v2584
  %v2661 = vunpack.c.h.b16 %v2581
  %v2662 = vunpack.c.h.b16 %v2582
  %v2663 = vunpack.c.h.b16 %v2583
  %v2664 = vunpack.c.h.b16 %v2584
  %v2665 = vunpack.c.l.b16 %v2585
  %v2666 = vunpack.c.l.b16 %v2586
  %v2667 = vunpack.c.l.b16 %v2587
  %v2668 = vunpack.c.l.b16 %v2588
  %v2669 = vunpack.c.h.b16 %v2585
  %v2670 = vunpack.c.h.b16 %v2586
  %v2671 = vunpack.c.h.b16 %v2587
  %v2672 = vunpack.c.h.b16 %v2588
  %v2673 = vunpack.c.l.b16 %v2589
  %v2674 = vunpack.c.l.b16 %v2590
  %v2675 = vunpack.c.l.b16 %v2591
  %v2676 = vunpack.c.l.b16 %v2592
  %v2677 = vunpack.c.h.b16 %v2589
  %v2678 = vunpack.c.h.b16 %v2590
  %v2679 = vunpack.c.h.b16 %v2591
  %v2680 = vunpack.c.h.b16 %v2592
  %v2681 = vunpack.c.l.b16 %v2593
  %v2682 = vunpack.c.l.b16 %v2594
  %v2683 = vunpack.c.l.b16 %v2595
  %v2684 = vunpack.c.l.b16 %v2596
  %v2685 = vunpack.c.h.b16 %v2593
  %v2686 = vunpack.c.h.b16 %v2594
  %v2687 = vunpack.c.h.b16 %v2595
  %v2688 = vunpack.c.h.b16 %v2596
  %v2689 = vunpack.c.l.b16 %v2597
  %v2690 = vunpack.c.l.b16 %v2598
  %v2691 = vunpack.c.l.b16 %v2599
  %v2692 = vunpack.c.l.b16 %v2600
  %v2693 = vunpack.c.h.b16 %v2597
  %v2694 = vunpack.c.h.b16 %v2598
  %v2695 = vunpack.c.h.b16 %v2599
  %v2696 = vunpack.c.h.b16 %v2600
  %v2697 = vpack.c.b16 %v2634, %v2633
  %v2698 = vpack.c.b16 %v2636, %v2635
  %v2699 = vpack.c.b16 %v2638, %v2637
  %v2700 = vpack.c.b16 %v2640, %v2639
  %v2701 = vpack.c.b16 %v2642, %v2641
  %v2702 = vpack.c.b16 %v2644, %v2643
  %v2703 = vpack.c.b16 %v2646, %v2645
  %v2704 = vpack.c.b16 %v2648, %v2647
  %v2705 = vpack.c.b16 %v2650, %v2649
  %v2706 = vpack.c.b16 %v2652, %v2651
  %v2707 = vpack.c.b16 %v2654, %v2653
  %v2708 = vpack.c.b16 %v2656, %v2655
  %v2709 = vpack.c.b16 %v2658, %v2657
  %v2710 = vpack.c.b16 %v2660, %v2659
  %v2711 = vpack.c.b16 %v2662, %v2661
  %v2712 = vpack.c.b16 %v2664, %v2663
  %v2713 = vpack.c.b16 %v2666, %v2665
  %v2714 = vpack.c.b16 %v2668, %v2667
  %v2715 = vpack.c.b16 %v2670, %v2669
  %v2716 = vpack.c.b16 %v2672, %v2671
  %v2717 = vpack.c.b16 %v2674, %v2673
  %v2718 = vpack.c.b16 %v2676, %v2675
  %v2719 = vpack.c.b16 %v2678, %v2677
  %v2720 = vpack.c.b16 %v2680, %v2679
  %v2721 = vpack.c.b16 %v2682, %v2681
  %v2722 = vpack.c.b16 %v2684, %v2683
  %v2723 = vpack.c.b16 %v2686, %v2685
  %v2724 = vpack.c.b16 %v2688, %v2687
  %v2725 = vpack.c.b16 %v2690, %v2689
  %v2726 = vpack.c.b16 %v2692, %v2691
  %v2727 = vpack.c.b16 %v2694, %v2693
  %v2728 = vpack.c.b16 %v2696, %v2695
  %2761 = vst [vmem:[#allocation2 + $0x20] sm:$0xff] %v2697
  %2762 = vst [vmem:[#allocation2 + $0x28] sm:$0xff] %v2698
  %2763 = vst [vmem:[#allocation2 + $0x60] sm:$0xff] %v2699
  %2764 = vst [vmem:[#allocation2 + $0x68] sm:$0xff] %v2700
  %2765 = vst [vmem:[#allocation2 + $0xa0] sm:$0xff] %v2701
  %2766 = vst [vmem:[#allocation2 + $0xa8] sm:$0xff] %v2702
  %2767 = vst [vmem:[#allocation2 + $0xe0] sm:$0xff] %v2703
  %2768 = vst [vmem:[#allocation2 + $0xe8] sm:$0xff] %v2704
  %2769 = vst [vmem:[#allocation2 + $0x120] sm:$0xff] %v2705
  %2770 = vst [vmem:[#allocation2 + $0x128] sm:$0xff] %v2706
  %2771 = vst [vmem:[#allocation2 + $0x160] sm:$0xff] %v2707
  %2772 = vst [vmem:[#allocation2 + $0x168] sm:$0xff] %v2708
  %2773 = vst [vmem:[#allocation2 + $0x1a0] sm:$0xff] %v2709
  %2774 = vst [vmem:[#allocation2 + $0x1a8] sm:$0xff] %v2710
  %2775 = vst [vmem:[#allocation2 + $0x1e0] sm:$0xff] %v2711
  %2776 = vst [vmem:[#allocation2 + $0x1e8] sm:$0xff] %v2712
  %2777 = vst [vmem:[#allocation2 + $0x220] sm:$0xff] %v2713
  %2778 = vst [vmem:[#allocation2 + $0x228] sm:$0xff] %v2714
  %2779 = vst [vmem:[#allocation2 + $0x260] sm:$0xff] %v2715
  %2780 = vst [vmem:[#allocation2 + $0x268] sm:$0xff] %v2716
  %2781 = vst [vmem:[#allocation2 + $0x2a0] sm:$0xff] %v2717
  %2782 = vst [vmem:[#allocation2 + $0x2a8] sm:$0xff] %v2718
  %2783 = vst [vmem:[#allocation2 + $0x2e0] sm:$0xff] %v2719
  %2784 = vst [vmem:[#allocation2 + $0x2e8] sm:$0xff] %v2720
  %2785 = vst [vmem:[#allocation2 + $0x320] sm:$0xff] %v2721
  %2786 = vst [vmem:[#allocation2 + $0x328] sm:$0xff] %v2722
  %2787 = vst [vmem:[#allocation2 + $0x360] sm:$0xff] %v2723
  %2788 = vst [vmem:[#allocation2 + $0x368] sm:$0xff] %v2724
  %2789 = vst [vmem:[#allocation2 + $0x3a0] sm:$0xff] %v2725
  %2790 = vst [vmem:[#allocation2 + $0x3a8] sm:$0xff] %v2726
  %2791 = vst [vmem:[#allocation2 + $0x3e0] sm:$0xff] %v2727
  %2792 = vst [vmem:[#allocation2 + $0x3e8] sm:$0xff] %v2728
  %v2793 = vld [vmem:[%s0 + $0xc0] sm:$0xf]
  %v2794 = vld [vmem:[%s0 + $0xc4] sm:$0xf]
  %v2795 = vld [vmem:[%s0 + $0xc8] sm:$0xf]
  %v2796 = vld [vmem:[%s0 + $0xcc] sm:$0xf]
  %v2797 = vld [vmem:[%s0 + $0xd0] sm:$0xf]
  %v2798 = vld [vmem:[%s0 + $0xd4] sm:$0xf]
  %v2799 = vld [vmem:[%s0 + $0xd8] sm:$0xf]
  %v2800 = vld [vmem:[%s0 + $0xdc] sm:$0xf]
  %v2801 = vld [vmem:[%s0 + $0xe0] sm:$0xf]
  %v2802 = vld [vmem:[%s0 + $0xe4] sm:$0xf]
  %v2803 = vld [vmem:[%s0 + $0xe8] sm:$0xf]
  %v2804 = vld [vmem:[%s0 + $0xec] sm:$0xf]
  %v2805 = vld [vmem:[%s0 + $0xf0] sm:$0xf]
  %v2806 = vld [vmem:[%s0 + $0xf4] sm:$0xf]
  %v2807 = vld [vmem:[%s0 + $0xf8] sm:$0xf]
  %v2808 = vld [vmem:[%s0 + $0xfc] sm:$0xf]
  %v2809 = vld [vmem:[%s1] sm:$0xff]
  %v2810 = vld [vmem:[%s1 + $0x8] sm:$0xff]
  %v2811 = vld [vmem:[%s1 + $0x10] sm:$0xff]
  %v2812 = vld [vmem:[%s1 + $0x18] sm:$0xff]
  %v2813 = vld [vmem:[%s1 + $0x20] sm:$0xff]
  %v2814 = vld [vmem:[%s1 + $0x28] sm:$0xff]
  %v2815 = vld [vmem:[%s1 + $0x30] sm:$0xff]
  %v2816 = vld [vmem:[%s1 + $0x38] sm:$0xff]
  %v2817 = vld [vmem:[%s1 + $0x40] sm:$0xff]
  %v2818 = vld [vmem:[%s1 + $0x48] sm:$0xff]
  %v2819 = vld [vmem:[%s1 + $0x50] sm:$0xff]
  %v2820 = vld [vmem:[%s1 + $0x58] sm:$0xff]
  %v2821 = vld [vmem:[%s1 + $0x60] sm:$0xff]
  %v2822 = vld [vmem:[%s1 + $0x68] sm:$0xff]
  %v2823 = vld [vmem:[%s1 + $0x70] sm:$0xff]
  %v2824 = vld [vmem:[%s1 + $0x78] sm:$0xff]
  %v2825 = vld [vmem:[%s1 + $0x80] sm:$0xff]
  %v2826 = vld [vmem:[%s1 + $0x88] sm:$0xff]
  %v2827 = vld [vmem:[%s1 + $0x90] sm:$0xff]
  %v2828 = vld [vmem:[%s1 + $0x98] sm:$0xff]
  %v2829 = vld [vmem:[%s1 + $0xa0] sm:$0xff]
  %v2830 = vld [vmem:[%s1 + $0xa8] sm:$0xff]
  %v2831 = vld [vmem:[%s1 + $0xb0] sm:$0xff]
  %v2832 = vld [vmem:[%s1 + $0xb8] sm:$0xff]
  %v2833 = vld [vmem:[%s1 + $0xc0] sm:$0xff]
  %v2834 = vld [vmem:[%s1 + $0xc8] sm:$0xff]
  %v2835 = vld [vmem:[%s1 + $0xd0] sm:$0xff]
  %v2836 = vld [vmem:[%s1 + $0xd8] sm:$0xff]
  %v2837 = vld [vmem:[%s1 + $0xe0] sm:$0xff]
  %v2838 = vld [vmem:[%s1 + $0xe8] sm:$0xff]
  %v2839 = vld [vmem:[%s1 + $0xf0] sm:$0xff]
  %v2840 = vld [vmem:[%s1 + $0xf8] sm:$0xff]
  %v2841 = vld [vmem:[%s2] sm:$0xf]
  %v2843 = vlaneseq
  %v2844 = vshrl.u32 %v2843, 7
  %v2845 = vsub.s32 0, %v2844
  %v2846 = vrot.slane %v2841, %v2845
  %v2847 = vlaneseq
  %v2848 = vshrl.u32 %v2847, 7
  %v2849 = vsub.s32 1, %v2848
  %v2850 = vrot.slane %v2841, %v2849
  %v2851 = vlaneseq
  %v2852 = vshrl.u32 %v2851, 7
  %v2853 = vsub.s32 2, %v2852
  %v2854 = vrot.slane %v2841, %v2853
  %v2855 = vlaneseq
  %v2856 = vshrl.u32 %v2855, 7
  %v2857 = vsub.s32 3, %v2856
  %v2858 = vrot.slane %v2841, %v2857
  %v2879 = vunpack.c.l.b16 %v2793
  %v2880 = vunpack.c.l.b16 %v2794
  %v2881 = vunpack.c.l.b16 %v2795
  %v2882 = vunpack.c.l.b16 %v2796
  %v2883 = vunpack.c.l.b16 %v2797
  %v2884 = vunpack.c.l.b16 %v2798
  %v2885 = vunpack.c.l.b16 %v2799
  %v2886 = vunpack.c.l.b16 %v2800
  %v2887 = vunpack.c.l.b16 %v2801
  %v2888 = vunpack.c.l.b16 %v2802
  %v2889 = vunpack.c.l.b16 %v2803
  %v2890 = vunpack.c.l.b16 %v2804
  %v2891 = vunpack.c.l.b16 %v2805
  %v2892 = vunpack.c.l.b16 %v2806
  %v2893 = vunpack.c.l.b16 %v2807
  %v2894 = vunpack.c.l.b16 %v2808
  %v2895 = vpack.c.b16 %v2880, %v2879
  %v2896 = vpack.c.b16 %v2882, %v2881
  %v2897 = vpack.c.b16 %v2884, %v2883
  %v2898 = vpack.c.b16 %v2886, %v2885
  %v2899 = vpack.c.b16 %v2888, %v2887
  %v2900 = vpack.c.b16 %v2890, %v2889
  %v2901 = vpack.c.b16 %v2892, %v2891
  %v2902 = vpack.c.b16 %v2894, %v2893
  %v2943 = vunpack.c.l.b16 %v2809
  %v2944 = vunpack.c.h.b16 %v2809
  %v2945 = vunpack.c.l.b16 %v2810
  %v2946 = vunpack.c.h.b16 %v2810
  %v2947 = vunpack.c.l.b16 %v2811
  %v2948 = vunpack.c.h.b16 %v2811
  %v2949 = vunpack.c.l.b16 %v2812
  %v2950 = vunpack.c.h.b16 %v2812
  %v2951 = vunpack.c.l.b16 %v2813
  %v2952 = vunpack.c.h.b16 %v2813
  %v2953 = vunpack.c.l.b16 %v2814
  %v2954 = vunpack.c.h.b16 %v2814
  %v2955 = vunpack.c.l.b16 %v2815
  %v2956 = vunpack.c.h.b16 %v2815
  %v2957 = vunpack.c.l.b16 %v2816
  %v2958 = vunpack.c.h.b16 %v2816
  %v2959 = vunpack.c.l.b16 %v2817
  %v2960 = vunpack.c.h.b16 %v2817
  %v2961 = vunpack.c.l.b16 %v2818
  %v2962 = vunpack.c.h.b16 %v2818
  %v2963 = vunpack.c.l.b16 %v2819
  %v2964 = vunpack.c.h.b16 %v2819
  %v2965 = vunpack.c.l.b16 %v2820
  %v2966 = vunpack.c.h.b16 %v2820
  %v2967 = vunpack.c.l.b16 %v2821
  %v2968 = vunpack.c.h.b16 %v2821
  %v2969 = vunpack.c.l.b16 %v2822
  %v2970 = vunpack.c.h.b16 %v2822
  %v2971 = vunpack.c.l.b16 %v2823
  %v2972 = vunpack.c.h.b16 %v2823
  %v2973 = vunpack.c.l.b16 %v2824
  %v2974 = vunpack.c.h.b16 %v2824
  %v2975 = vunpack.c.l.b16 %v2825
  %v2976 = vunpack.c.h.b16 %v2825
  %v2977 = vunpack.c.l.b16 %v2826
  %v2978 = vunpack.c.h.b16 %v2826
  %v2979 = vunpack.c.l.b16 %v2827
  %v2980 = vunpack.c.h.b16 %v2827
  %v2981 = vunpack.c.l.b16 %v2828
  %v2982 = vunpack.c.h.b16 %v2828
  %v2983 = vunpack.c.l.b16 %v2829
  %v2984 = vunpack.c.h.b16 %v2829
  %v2985 = vunpack.c.l.b16 %v2830
  %v2986 = vunpack.c.h.b16 %v2830
  %v2987 = vunpack.c.l.b16 %v2831
  %v2988 = vunpack.c.h.b16 %v2831
  %v2989 = vunpack.c.l.b16 %v2832
  %v2990 = vunpack.c.h.b16 %v2832
  %v2991 = vunpack.c.l.b16 %v2833
  %v2992 = vunpack.c.h.b16 %v2833
  %v2993 = vunpack.c.l.b16 %v2834
  %v2994 = vunpack.c.h.b16 %v2834
  %v2995 = vunpack.c.l.b16 %v2835
  %v2996 = vunpack.c.h.b16 %v2835
  %v2997 = vunpack.c.l.b16 %v2836
  %v2998 = vunpack.c.h.b16 %v2836
  %v2999 = vunpack.c.l.b16 %v2837
  %v3000 = vunpack.c.h.b16 %v2837
  %v3001 = vunpack.c.l.b16 %v2838
  %v3002 = vunpack.c.h.b16 %v2838
  %v3003 = vunpack.c.l.b16 %v2839
  %v3004 = vunpack.c.h.b16 %v2839
  %v3005 = vunpack.c.l.b16 %v2840
  %v3006 = vunpack.c.h.b16 %v2840
  %v3007 = vpack.c.b16 %v2947, %v2943
  %v3008 = vpack.c.b16 %v2948, %v2944
  %v3009 = vpack.c.b16 %v2949, %v2945
  %v3010 = vpack.c.b16 %v2950, %v2946
  %v3011 = vpack.c.b16 %v2955, %v2951
  %v3012 = vpack.c.b16 %v2956, %v2952
  %v3013 = vpack.c.b16 %v2957, %v2953
  %v3014 = vpack.c.b16 %v2958, %v2954
  %v3015 = vpack.c.b16 %v2963, %v2959
  %v3016 = vpack.c.b16 %v2964, %v2960
  %v3017 = vpack.c.b16 %v2965, %v2961
  %v3018 = vpack.c.b16 %v2966, %v2962
  %v3019 = vpack.c.b16 %v2971, %v2967
  %v3020 = vpack.c.b16 %v2972, %v2968
  %v3021 = vpack.c.b16 %v2973, %v2969
  %v3022 = vpack.c.b16 %v2974, %v2970
  %v3023 = vpack.c.b16 %v2979, %v2975
  %v3024 = vpack.c.b16 %v2980, %v2976
  %v3025 = vpack.c.b16 %v2981, %v2977
  %v3026 = vpack.c.b16 %v2982, %v2978
  %v3027 = vpack.c.b16 %v2987, %v2983
  %v3028 = vpack.c.b16 %v2988, %v2984
  %v3029 = vpack.c.b16 %v2989, %v2985
  %v3030 = vpack.c.b16 %v2990, %v2986
  %v3031 = vpack.c.b16 %v2995, %v2991
  %v3032 = vpack.c.b16 %v2996, %v2992
  %v3033 = vpack.c.b16 %v2997, %v2993
  %v3034 = vpack.c.b16 %v2998, %v2994
  %v3035 = vpack.c.b16 %v3003, %v2999
  %v3036 = vpack.c.b16 %v3004, %v3000
  %v3037 = vpack.c.b16 %v3005, %v3001
  %v3038 = vpack.c.b16 %v3006, %v3002
  %3071 = vmatprep.subr.bf16.mxu0 %v3036
  %3072 = vmatpush1.bf16.msra.mxu0 %v3035
  %3073 = vmatprep.subr.bf16.mxu0 %v3032
  %3074 = vmatpush1.bf16.msra.mxu0 %v3031
  %3075 = vmatprep.subr.bf16.mxu0 %v3028
  %3076 = vmatpush1.bf16.msra.mxu0 %v3027
  %3077 = vmatprep.subr.bf16.mxu0 %v3024
  %3078 = vmatpush1.bf16.msra.mxu0 %v3023
  %3079 = vmatprep.subr.bf16.mxu0 %v3020
  %3080 = vmatpush1.bf16.msra.mxu0 %v3019
  %3081 = vmatprep.subr.bf16.mxu0 %v3016
  %3082 = vmatpush1.bf16.msra.mxu0 %v3015
  %3083 = vmatprep.subr.bf16.mxu0 %v3012
  %3084 = vmatpush1.bf16.msra.mxu0 %v3011
  %3085 = vmatprep.subr.bf16.mxu0 %v3008
  %3086 = vmatpush1.bf16.msra.mxu0 %v3007
  %3087 = vmatprep.subr.bf16.mxu0 0
  %3088 = vmatpush2.bf16.msra.mxu0 0
  %3089 = vmatprep.subr.bf16.mxu0 0
  %3090 = vmatpush2.bf16.msra.mxu0 0
  %3091 = vmatprep.subr.bf16.mxu0 0
  %3092 = vmatpush2.bf16.msra.mxu0 0
  %3093 = vmatprep.subr.bf16.mxu0 0
  %3094 = vmatpush2.bf16.msra.mxu0 0
  %3095 = vmatprep.subr.bf16.mxu0 0
  %3096 = vmatpush2.bf16.msra.mxu0 0
  %3097 = vmatprep.subr.bf16.mxu0 0
  %3098 = vmatpush2.bf16.msra.mxu0 0
  %3099 = vmatprep.subr.bf16.mxu0 0
  %3100 = vmatpush2.bf16.msra.mxu0 0
  %3101 = vmatprep.subr.bf16.mxu0 0
  %3102 = vmatpush2.bf16.msra.mxu0 0
  %3103 = vmatprep.mubr.bf16.mxu0 0
  %3104 = vmatmul.mubr.bf16.gmra.mxu0 %v2895
  %v3105 = vpop.f32.mrf.mxu0
  %v3106 = vadd.f32 %v2846, %v3105
  %v3107 = vpop.f32.mrf.mxu0
  %v3108 = vadd.f32 %v2850, %v3107
  %v3109 = vpop.f32.mrf.mxu0
  %v3110 = vadd.f32 %v2846, %v3109
  %v3111 = vpop.f32.mrf.mxu0
  %v3112 = vadd.f32 %v2850, %v3111
  %3113 = vmatprep.mubr.bf16.mxu0 0
  %3114 = vmatmul.mubr.bf16.gmra.mxu0 %v2896
  %v3115 = vpop.f32.mrf.mxu0
  %v3116 = vadd.f32 %v2846, %v3115
  %v3117 = vpop.f32.mrf.mxu0
  %v3118 = vadd.f32 %v2850, %v3117
  %v3119 = vpop.f32.mrf.mxu0
  %v3120 = vadd.f32 %v2846, %v3119
  %v3121 = vpop.f32.mrf.mxu0
  %v3122 = vadd.f32 %v2850, %v3121
  %3123 = vmatprep.mubr.bf16.mxu0 0
  %3124 = vmatmul.mubr.bf16.gmra.mxu0 %v2897
  %v3125 = vpop.f32.mrf.mxu0
  %v3126 = vadd.f32 %v2846, %v3125
  %v3127 = vpop.f32.mrf.mxu0
  %v3128 = vadd.f32 %v2850, %v3127
  %v3129 = vpop.f32.mrf.mxu0
  %v3130 = vadd.f32 %v2846, %v3129
  %v3131 = vpop.f32.mrf.mxu0
  %v3132 = vadd.f32 %v2850, %v3131
  %3133 = vmatprep.mubr.bf16.mxu0 0
  %3134 = vmatmul.mubr.bf16.gmra.mxu0 %v2898
  %v3135 = vpop.f32.mrf.mxu0
  %v3136 = vadd.f32 %v2846, %v3135
  %v3137 = vpop.f32.mrf.mxu0
  %v3138 = vadd.f32 %v2850, %v3137
  %v3139 = vpop.f32.mrf.mxu0
  %v3140 = vadd.f32 %v2846, %v3139
  %v3141 = vpop.f32.mrf.mxu0
  %v3142 = vadd.f32 %v2850, %v3141
  %3143 = vmatprep.mubr.bf16.mxu0 0
  %3144 = vmatmul.mubr.bf16.gmra.mxu0 %v2899
  %v3145 = vpop.f32.mrf.mxu0
  %v3146 = vadd.f32 %v2846, %v3145
  %v3147 = vpop.f32.mrf.mxu0
  %v3148 = vadd.f32 %v2850, %v3147
  %v3149 = vpop.f32.mrf.mxu0
  %v3150 = vadd.f32 %v2846, %v3149
  %v3151 = vpop.f32.mrf.mxu0
  %v3152 = vadd.f32 %v2850, %v3151
  %3153 = vmatprep.mubr.bf16.mxu0 0
  %3154 = vmatmul.mubr.bf16.gmra.mxu0 %v2900
  %v3155 = vpop.f32.mrf.mxu0
  %v3156 = vadd.f32 %v2846, %v3155
  %v3157 = vpop.f32.mrf.mxu0
  %v3158 = vadd.f32 %v2850, %v3157
  %v3159 = vpop.f32.mrf.mxu0
  %v3160 = vadd.f32 %v2846, %v3159
  %v3161 = vpop.f32.mrf.mxu0
  %v3162 = vadd.f32 %v2850, %v3161
  %3163 = vmatprep.mubr.bf16.mxu0 0
  %3164 = vmatmul.mubr.bf16.gmra.mxu0 %v2901
  %v3165 = vpop.f32.mrf.mxu0
  %v3166 = vadd.f32 %v2846, %v3165
  %v3167 = vpop.f32.mrf.mxu0
  %v3168 = vadd.f32 %v2850, %v3167
  %v3169 = vpop.f32.mrf.mxu0
  %v3170 = vadd.f32 %v2846, %v3169
  %v3171 = vpop.f32.mrf.mxu0
  %v3172 = vadd.f32 %v2850, %v3171
  %3173 = vmatprep.mubr.bf16.mxu0 0
  %3174 = vmatmul.mubr.bf16.gmra.mxu0 %v2902
  %v3175 = vpop.f32.mrf.mxu0
  %v3176 = vadd.f32 %v2846, %v3175
  %v3177 = vpop.f32.mrf.mxu0
  %v3178 = vadd.f32 %v2850, %v3177
  %v3179 = vpop.f32.mrf.mxu0
  %v3180 = vadd.f32 %v2846, %v3179
  %v3181 = vpop.f32.mrf.mxu0
  %v3182 = vadd.f32 %v2850, %v3181
  %3183 = vdwg.mxu0
  %3184 = vmatprep.subr.bf16.mxu0 %v3038
  %3185 = vmatpush1.bf16.msra.mxu0 %v3037
  %3186 = vmatprep.subr.bf16.mxu0 %v3034
  %3187 = vmatpush1.bf16.msra.mxu0 %v3033
  %3188 = vmatprep.subr.bf16.mxu0 %v3030
  %3189 = vmatpush1.bf16.msra.mxu0 %v3029
  %3190 = vmatprep.subr.bf16.mxu0 %v3026
  %3191 = vmatpush1.bf16.msra.mxu0 %v3025
  %3192 = vmatprep.subr.bf16.mxu0 %v3022
  %3193 = vmatpush1.bf16.msra.mxu0 %v3021
  %3194 = vmatprep.subr.bf16.mxu0 %v3018
  %3195 = vmatpush1.bf16.msra.mxu0 %v3017
  %3196 = vmatprep.subr.bf16.mxu0 %v3014
  %3197 = vmatpush1.bf16.msra.mxu0 %v3013
  %3198 = vmatprep.subr.bf16.mxu0 %v3010
  %3199 = vmatpush1.bf16.msra.mxu0 %v3009
  %3200 = vmatprep.subr.bf16.mxu0 0
  %3201 = vmatpush2.bf16.msra.mxu0 0
  %3202 = vmatprep.subr.bf16.mxu0 0
  %3203 = vmatpush2.bf16.msra.mxu0 0
  %3204 = vmatprep.subr.bf16.mxu0 0
  %3205 = vmatpush2.bf16.msra.mxu0 0
  %3206 = vmatprep.subr.bf16.mxu0 0
  %3207 = vmatpush2.bf16.msra.mxu0 0
  %3208 = vmatprep.subr.bf16.mxu0 0
  %3209 = vmatpush2.bf16.msra.mxu0 0
  %3210 = vmatprep.subr.bf16.mxu0 0
  %3211 = vmatpush2.bf16.msra.mxu0 0
  %3212 = vmatprep.subr.bf16.mxu0 0
  %3213 = vmatpush2.bf16.msra.mxu0 0
  %3214 = vmatprep.subr.bf16.mxu0 0
  %3215 = vmatpush2.bf16.msra.mxu0 0
  %3216 = vmatprep.mubr.bf16.mxu0 0
  %3217 = vmatmul.mubr.bf16.gmra.mxu0 %v2895
  %v3218 = vpop.f32.mrf.mxu0
  %v3219 = vadd.f32 %v2854, %v3218
  %v3220 = vpop.f32.mrf.mxu0
  %v3221 = vadd.f32 %v2858, %v3220
  %v3222 = vpop.f32.mrf.mxu0
  %v3223 = vadd.f32 %v2854, %v3222
  %v3224 = vpop.f32.mrf.mxu0
  %v3225 = vadd.f32 %v2858, %v3224
  %3226 = vmatprep.mubr.bf16.mxu0 0
  %3227 = vmatmul.mubr.bf16.gmra.mxu0 %v2896
  %v3228 = vpop.f32.mrf.mxu0
  %v3229 = vadd.f32 %v2854, %v3228
  %v3230 = vpop.f32.mrf.mxu0
  %v3231 = vadd.f32 %v2858, %v3230
  %v3232 = vpop.f32.mrf.mxu0
  %v3233 = vadd.f32 %v2854, %v3232
  %v3234 = vpop.f32.mrf.mxu0
  %v3235 = vadd.f32 %v2858, %v3234
  %3236 = vmatprep.mubr.bf16.mxu0 0
  %3237 = vmatmul.mubr.bf16.gmra.mxu0 %v2897
  %v3238 = vpop.f32.mrf.mxu0
  %v3239 = vadd.f32 %v2854, %v3238
  %v3240 = vpop.f32.mrf.mxu0
  %v3241 = vadd.f32 %v2858, %v3240
  %v3242 = vpop.f32.mrf.mxu0
  %v3243 = vadd.f32 %v2854, %v3242
  %v3244 = vpop.f32.mrf.mxu0
  %v3245 = vadd.f32 %v2858, %v3244
  %3246 = vmatprep.mubr.bf16.mxu0 0
  %3247 = vmatmul.mubr.bf16.gmra.mxu0 %v2898
  %v3248 = vpop.f32.mrf.mxu0
  %v3249 = vadd.f32 %v2854, %v3248
  %v3250 = vpop.f32.mrf.mxu0
  %v3251 = vadd.f32 %v2858, %v3250
  %v3252 = vpop.f32.mrf.mxu0
  %v3253 = vadd.f32 %v2854, %v3252
  %v3254 = vpop.f32.mrf.mxu0
  %v3255 = vadd.f32 %v2858, %v3254
  %3256 = vmatprep.mubr.bf16.mxu0 0
  %3257 = vmatmul.mubr.bf16.gmra.mxu0 %v2899
  %v3258 = vpop.f32.mrf.mxu0
  %v3259 = vadd.f32 %v2854, %v3258
  %v3260 = vpop.f32.mrf.mxu0
  %v3261 = vadd.f32 %v2858, %v3260
  %v3262 = vpop.f32.mrf.mxu0
  %v3263 = vadd.f32 %v2854, %v3262
  %v3264 = vpop.f32.mrf.mxu0
  %v3265 = vadd.f32 %v2858, %v3264
  %3266 = vmatprep.mubr.bf16.mxu0 0
  %3267 = vmatmul.mubr.bf16.gmra.mxu0 %v2900
  %v3268 = vpop.f32.mrf.mxu0
  %v3269 = vadd.f32 %v2854, %v3268
  %v3270 = vpop.f32.mrf.mxu0
  %v3271 = vadd.f32 %v2858, %v3270
  %v3272 = vpop.f32.mrf.mxu0
  %v3273 = vadd.f32 %v2854, %v3272
  %v3274 = vpop.f32.mrf.mxu0
  %v3275 = vadd.f32 %v2858, %v3274
  %3276 = vmatprep.mubr.bf16.mxu0 0
  %3277 = vmatmul.mubr.bf16.gmra.mxu0 %v2901
  %v3278 = vpop.f32.mrf.mxu0
  %v3279 = vadd.f32 %v2854, %v3278
  %v3280 = vpop.f32.mrf.mxu0
  %v3281 = vadd.f32 %v2858, %v3280
  %v3282 = vpop.f32.mrf.mxu0
  %v3283 = vadd.f32 %v2854, %v3282
  %v3284 = vpop.f32.mrf.mxu0
  %v3285 = vadd.f32 %v2858, %v3284
  %3286 = vmatprep.mubr.bf16.mxu0 0
  %3287 = vmatmul.mubr.bf16.gmra.mxu0 %v2902
  %v3288 = vpop.f32.mrf.mxu0
  %v3289 = vadd.f32 %v2854, %v3288
  %v3290 = vpop.f32.mrf.mxu0
  %v3291 = vadd.f32 %v2858, %v3290
  %v3292 = vpop.f32.mrf.mxu0
  %v3293 = vadd.f32 %v2854, %v3292
  %v3294 = vpop.f32.mrf.mxu0
  %v3295 = vadd.f32 %v2858, %v3294
  %3296 = vdwg.mxu0
  %vm3297 = vcmp.ge.f32.partialorder %v3106, 0.0
  %vm3298 = vcmp.ge.f32.partialorder %v3108, 0.0
  %vm3299 = vcmp.ge.f32.partialorder %v3219, 0.0
  %vm3300 = vcmp.ge.f32.partialorder %v3221, 0.0
  %vm3301 = vcmp.ge.f32.partialorder %v3110, 0.0
  %vm3302 = vcmp.ge.f32.partialorder %v3112, 0.0
  %vm3303 = vcmp.ge.f32.partialorder %v3223, 0.0
  %vm3304 = vcmp.ge.f32.partialorder %v3225, 0.0
  %vm3305 = vcmp.ge.f32.partialorder %v3116, 0.0
  %vm3306 = vcmp.ge.f32.partialorder %v3118, 0.0
  %vm3307 = vcmp.ge.f32.partialorder %v3229, 0.0
  %vm3308 = vcmp.ge.f32.partialorder %v3231, 0.0
  %vm3309 = vcmp.ge.f32.partialorder %v3120, 0.0
  %vm3310 = vcmp.ge.f32.partialorder %v3122, 0.0
  %vm3311 = vcmp.ge.f32.partialorder %v3233, 0.0
  %vm3312 = vcmp.ge.f32.partialorder %v3235, 0.0
  %vm3313 = vcmp.ge.f32.partialorder %v3126, 0.0
  %vm3314 = vcmp.ge.f32.partialorder %v3128, 0.0
  %vm3315 = vcmp.ge.f32.partialorder %v3239, 0.0
  %vm3316 = vcmp.ge.f32.partialorder %v3241, 0.0
  %vm3317 = vcmp.ge.f32.partialorder %v3130, 0.0
  %vm3318 = vcmp.ge.f32.partialorder %v3132, 0.0
  %vm3319 = vcmp.ge.f32.partialorder %v3243, 0.0
  %vm3320 = vcmp.ge.f32.partialorder %v3245, 0.0
  %vm3321 = vcmp.ge.f32.partialorder %v3136, 0.0
  %vm3322 = vcmp.ge.f32.partialorder %v3138, 0.0
  %vm3323 = vcmp.ge.f32.partialorder %v3249, 0.0
  %vm3324 = vcmp.ge.f32.partialorder %v3251, 0.0
  %vm3325 = vcmp.ge.f32.partialorder %v3140, 0.0
  %vm3326 = vcmp.ge.f32.partialorder %v3142, 0.0
  %vm3327 = vcmp.ge.f32.partialorder %v3253, 0.0
  %vm3328 = vcmp.ge.f32.partialorder %v3255, 0.0
  %vm3329 = vcmp.ge.f32.partialorder %v3146, 0.0
  %vm3330 = vcmp.ge.f32.partialorder %v3148, 0.0
  %vm3331 = vcmp.ge.f32.partialorder %v3259, 0.0
  %vm3332 = vcmp.ge.f32.partialorder %v3261, 0.0
  %vm3333 = vcmp.ge.f32.partialorder %v3150, 0.0
  %vm3334 = vcmp.ge.f32.partialorder %v3152, 0.0
  %vm3335 = vcmp.ge.f32.partialorder %v3263, 0.0
  %vm3336 = vcmp.ge.f32.partialorder %v3265, 0.0
  %vm3337 = vcmp.ge.f32.partialorder %v3156, 0.0
  %vm3338 = vcmp.ge.f32.partialorder %v3158, 0.0
  %vm3339 = vcmp.ge.f32.partialorder %v3269, 0.0
  %vm3340 = vcmp.ge.f32.partialorder %v3271, 0.0
  %vm3341 = vcmp.ge.f32.partialorder %v3160, 0.0
  %vm3342 = vcmp.ge.f32.partialorder %v3162, 0.0
  %vm3343 = vcmp.ge.f32.partialorder %v3273, 0.0
  %vm3344 = vcmp.ge.f32.partialorder %v3275, 0.0
  %vm3345 = vcmp.ge.f32.partialorder %v3166, 0.0
  %vm3346 = vcmp.ge.f32.partialorder %v3168, 0.0
  %vm3347 = vcmp.ge.f32.partialorder %v3279, 0.0
  %vm3348 = vcmp.ge.f32.partialorder %v3281, 0.0
  %vm3349 = vcmp.ge.f32.partialorder %v3170, 0.0
  %vm3350 = vcmp.ge.f32.partialorder %v3172, 0.0
  %vm3351 = vcmp.ge.f32.partialorder %v3283, 0.0
  %vm3352 = vcmp.ge.f32.partialorder %v3285, 0.0
  %vm3353 = vcmp.ge.f32.partialorder %v3176, 0.0
  %vm3354 = vcmp.ge.f32.partialorder %v3178, 0.0
  %vm3355 = vcmp.ge.f32.partialorder %v3289, 0.0
  %vm3356 = vcmp.ge.f32.partialorder %v3291, 0.0
  %vm3357 = vcmp.ge.f32.partialorder %v3180, 0.0
  %vm3358 = vcmp.ge.f32.partialorder %v3182, 0.0
  %vm3359 = vcmp.ge.f32.partialorder %v3293, 0.0
  %vm3360 = vcmp.ge.f32.partialorder %v3295, 0.0
  %v3361 = vmul.f32 %v3106, 0.01
  %v3362 = vmul.f32 %v3108, 0.01
  %v3363 = vmul.f32 %v3219, 0.01
  %v3364 = vmul.f32 %v3221, 0.01
  %v3365 = vmul.f32 %v3110, 0.01
  %v3366 = vmul.f32 %v3112, 0.01
  %v3367 = vmul.f32 %v3223, 0.01
  %v3368 = vmul.f32 %v3225, 0.01
  %v3369 = vmul.f32 %v3116, 0.01
  %v3370 = vmul.f32 %v3118, 0.01
  %v3371 = vmul.f32 %v3229, 0.01
  %v3372 = vmul.f32 %v3231, 0.01
  %v3373 = vmul.f32 %v3120, 0.01
  %v3374 = vmul.f32 %v3122, 0.01
  %v3375 = vmul.f32 %v3233, 0.01
  %v3376 = vmul.f32 %v3235, 0.01
  %v3377 = vmul.f32 %v3126, 0.01
  %v3378 = vmul.f32 %v3128, 0.01
  %v3379 = vmul.f32 %v3239, 0.01
  %v3380 = vmul.f32 %v3241, 0.01
  %v3381 = vmul.f32 %v3130, 0.01
  %v3382 = vmul.f32 %v3132, 0.01
  %v3383 = vmul.f32 %v3243, 0.01
  %v3384 = vmul.f32 %v3245, 0.01
  %v3385 = vmul.f32 %v3136, 0.01
  %v3386 = vmul.f32 %v3138, 0.01
  %v3387 = vmul.f32 %v3249, 0.01
  %v3388 = vmul.f32 %v3251, 0.01
  %v3389 = vmul.f32 %v3140, 0.01
  %v3390 = vmul.f32 %v3142, 0.01
  %v3391 = vmul.f32 %v3253, 0.01
  %v3392 = vmul.f32 %v3255, 0.01
  %v3393 = vmul.f32 %v3146, 0.01
  %v3394 = vmul.f32 %v3148, 0.01
  %v3395 = vmul.f32 %v3259, 0.01
  %v3396 = vmul.f32 %v3261, 0.01
  %v3397 = vmul.f32 %v3150, 0.01
  %v3398 = vmul.f32 %v3152, 0.01
  %v3399 = vmul.f32 %v3263, 0.01
  %v3400 = vmul.f32 %v3265, 0.01
  %v3401 = vmul.f32 %v3156, 0.01
  %v3402 = vmul.f32 %v3158, 0.01
  %v3403 = vmul.f32 %v3269, 0.01
  %v3404 = vmul.f32 %v3271, 0.01
  %v3405 = vmul.f32 %v3160, 0.01
  %v3406 = vmul.f32 %v3162, 0.01
  %v3407 = vmul.f32 %v3273, 0.01
  %v3408 = vmul.f32 %v3275, 0.01
  %v3409 = vmul.f32 %v3166, 0.01
  %v3410 = vmul.f32 %v3168, 0.01
  %v3411 = vmul.f32 %v3279, 0.01
  %v3412 = vmul.f32 %v3281, 0.01
  %v3413 = vmul.f32 %v3170, 0.01
  %v3414 = vmul.f32 %v3172, 0.01
  %v3415 = vmul.f32 %v3283, 0.01
  %v3416 = vmul.f32 %v3285, 0.01
  %v3417 = vmul.f32 %v3176, 0.01
  %v3418 = vmul.f32 %v3178, 0.01
  %v3419 = vmul.f32 %v3289, 0.01
  %v3420 = vmul.f32 %v3291, 0.01
  %v3421 = vmul.f32 %v3180, 0.01
  %v3422 = vmul.f32 %v3182, 0.01
  %v3423 = vmul.f32 %v3293, 0.01
  %v3424 = vmul.f32 %v3295, 0.01
  %v3425 = vsel %vm3297, %v3106, %v3361
  %v3426 = vsel %vm3298, %v3108, %v3362
  %v3427 = vsel %vm3299, %v3219, %v3363
  %v3428 = vsel %vm3300, %v3221, %v3364
  %v3429 = vsel %vm3301, %v3110, %v3365
  %v3430 = vsel %vm3302, %v3112, %v3366
  %v3431 = vsel %vm3303, %v3223, %v3367
  %v3432 = vsel %vm3304, %v3225, %v3368
  %v3433 = vsel %vm3305, %v3116, %v3369
  %v3434 = vsel %vm3306, %v3118, %v3370
  %v3435 = vsel %vm3307, %v3229, %v3371
  %v3436 = vsel %vm3308, %v3231, %v3372
  %v3437 = vsel %vm3309, %v3120, %v3373
  %v3438 = vsel %vm3310, %v3122, %v3374
  %v3439 = vsel %vm3311, %v3233, %v3375
  %v3440 = vsel %vm3312, %v3235, %v3376
  %v3441 = vsel %vm3313, %v3126, %v3377
  %v3442 = vsel %vm3314, %v3128, %v3378
  %v3443 = vsel %vm3315, %v3239, %v3379
  %v3444 = vsel %vm3316, %v3241, %v3380
  %v3445 = vsel %vm3317, %v3130, %v3381
  %v3446 = vsel %vm3318, %v3132, %v3382
  %v3447 = vsel %vm3319, %v3243, %v3383
  %v3448 = vsel %vm3320, %v3245, %v3384
  %v3449 = vsel %vm3321, %v3136, %v3385
  %v3450 = vsel %vm3322, %v3138, %v3386
  %v3451 = vsel %vm3323, %v3249, %v3387
  %v3452 = vsel %vm3324, %v3251, %v3388
  %v3453 = vsel %vm3325, %v3140, %v3389
  %v3454 = vsel %vm3326, %v3142, %v3390
  %v3455 = vsel %vm3327, %v3253, %v3391
  %v3456 = vsel %vm3328, %v3255, %v3392
  %v3457 = vsel %vm3329, %v3146, %v3393
  %v3458 = vsel %vm3330, %v3148, %v3394
  %v3459 = vsel %vm3331, %v3259, %v3395
  %v3460 = vsel %vm3332, %v3261, %v3396
  %v3461 = vsel %vm3333, %v3150, %v3397
  %v3462 = vsel %vm3334, %v3152, %v3398
  %v3463 = vsel %vm3335, %v3263, %v3399
  %v3464 = vsel %vm3336, %v3265, %v3400
  %v3465 = vsel %vm3337, %v3156, %v3401
  %v3466 = vsel %vm3338, %v3158, %v3402
  %v3467 = vsel %vm3339, %v3269, %v3403
  %v3468 = vsel %vm3340, %v3271, %v3404
  %v3469 = vsel %vm3341, %v3160, %v3405
  %v3470 = vsel %vm3342, %v3162, %v3406
  %v3471 = vsel %vm3343, %v3273, %v3407
  %v3472 = vsel %vm3344, %v3275, %v3408
  %v3473 = vsel %vm3345, %v3166, %v3409
  %v3474 = vsel %vm3346, %v3168, %v3410
  %v3475 = vsel %vm3347, %v3279, %v3411
  %v3476 = vsel %vm3348, %v3281, %v3412
  %v3477 = vsel %vm3349, %v3170, %v3413
  %v3478 = vsel %vm3350, %v3172, %v3414
  %v3479 = vsel %vm3351, %v3283, %v3415
  %v3480 = vsel %vm3352, %v3285, %v3416
  %v3481 = vsel %vm3353, %v3176, %v3417
  %v3482 = vsel %vm3354, %v3178, %v3418
  %v3483 = vsel %vm3355, %v3289, %v3419
  %v3484 = vsel %vm3356, %v3291, %v3420
  %v3485 = vsel %vm3357, %v3180, %v3421
  %v3486 = vsel %vm3358, %v3182, %v3422
  %v3487 = vsel %vm3359, %v3293, %v3423
  %v3488 = vsel %vm3360, %v3295, %v3424
  %v3489 = vpack.c.bf16 %v3429, %v3425
  %v3490 = vpack.c.bf16 %v3430, %v3426
  %v3491 = vpack.c.bf16 %v3431, %v3427
  %v3492 = vpack.c.bf16 %v3432, %v3428
  %v3493 = vpack.c.bf16 %v3437, %v3433
  %v3494 = vpack.c.bf16 %v3438, %v3434
  %v3495 = vpack.c.bf16 %v3439, %v3435
  %v3496 = vpack.c.bf16 %v3440, %v3436
  %v3497 = vpack.c.bf16 %v3445, %v3441
  %v3498 = vpack.c.bf16 %v3446, %v3442
  %v3499 = vpack.c.bf16 %v3447, %v3443
  %v3500 = vpack.c.bf16 %v3448, %v3444
  %v3501 = vpack.c.bf16 %v3453, %v3449
  %v3502 = vpack.c.bf16 %v3454, %v3450
  %v3503 = vpack.c.bf16 %v3455, %v3451
  %v3504 = vpack.c.bf16 %v3456, %v3452
  %v3505 = vpack.c.bf16 %v3461, %v3457
  %v3506 = vpack.c.bf16 %v3462, %v3458
  %v3507 = vpack.c.bf16 %v3463, %v3459
  %v3508 = vpack.c.bf16 %v3464, %v3460
  %v3509 = vpack.c.bf16 %v3469, %v3465
  %v3510 = vpack.c.bf16 %v3470, %v3466
  %v3511 = vpack.c.bf16 %v3471, %v3467
  %v3512 = vpack.c.bf16 %v3472, %v3468
  %v3513 = vpack.c.bf16 %v3477, %v3473
  %v3514 = vpack.c.bf16 %v3478, %v3474
  %v3515 = vpack.c.bf16 %v3479, %v3475
  %v3516 = vpack.c.bf16 %v3480, %v3476
  %v3517 = vpack.c.bf16 %v3485, %v3481
  %v3518 = vpack.c.bf16 %v3486, %v3482
  %v3519 = vpack.c.bf16 %v3487, %v3483
  %v3520 = vpack.c.bf16 %v3488, %v3484
  %v3553 = vunpack.c.l.b16 %v3489
  %v3554 = vunpack.c.l.b16 %v3490
  %v3555 = vunpack.c.l.b16 %v3491
  %v3556 = vunpack.c.l.b16 %v3492
  %v3557 = vunpack.c.h.b16 %v3489
  %v3558 = vunpack.c.h.b16 %v3490
  %v3559 = vunpack.c.h.b16 %v3491
  %v3560 = vunpack.c.h.b16 %v3492
  %v3561 = vunpack.c.l.b16 %v3493
  %v3562 = vunpack.c.l.b16 %v3494
  %v3563 = vunpack.c.l.b16 %v3495
  %v3564 = vunpack.c.l.b16 %v3496
  %v3565 = vunpack.c.h.b16 %v3493
  %v3566 = vunpack.c.h.b16 %v3494
  %v3567 = vunpack.c.h.b16 %v3495
  %v3568 = vunpack.c.h.b16 %v3496
  %v3569 = vunpack.c.l.b16 %v3497
  %v3570 = vunpack.c.l.b16 %v3498
  %v3571 = vunpack.c.l.b16 %v3499
  %v3572 = vunpack.c.l.b16 %v3500
  %v3573 = vunpack.c.h.b16 %v3497
  %v3574 = vunpack.c.h.b16 %v3498
  %v3575 = vunpack.c.h.b16 %v3499
  %v3576 = vunpack.c.h.b16 %v3500
  %v3577 = vunpack.c.l.b16 %v3501
  %v3578 = vunpack.c.l.b16 %v3502
  %v3579 = vunpack.c.l.b16 %v3503
  %v3580 = vunpack.c.l.b16 %v3504
  %v3581 = vunpack.c.h.b16 %v3501
  %v3582 = vunpack.c.h.b16 %v3502
  %v3583 = vunpack.c.h.b16 %v3503
  %v3584 = vunpack.c.h.b16 %v3504
  %v3585 = vunpack.c.l.b16 %v3505
  %v3586 = vunpack.c.l.b16 %v3506
  %v3587 = vunpack.c.l.b16 %v3507
  %v3588 = vunpack.c.l.b16 %v3508
  %v3589 = vunpack.c.h.b16 %v3505
  %v3590 = vunpack.c.h.b16 %v3506
  %v3591 = vunpack.c.h.b16 %v3507
  %v3592 = vunpack.c.h.b16 %v3508
  %v3593 = vunpack.c.l.b16 %v3509
  %v3594 = vunpack.c.l.b16 %v3510
  %v3595 = vunpack.c.l.b16 %v3511
  %v3596 = vunpack.c.l.b16 %v3512
  %v3597 = vunpack.c.h.b16 %v3509
  %v3598 = vunpack.c.h.b16 %v3510
  %v3599 = vunpack.c.h.b16 %v3511
  %v3600 = vunpack.c.h.b16 %v3512
  %v3601 = vunpack.c.l.b16 %v3513
  %v3602 = vunpack.c.l.b16 %v3514
  %v3603 = vunpack.c.l.b16 %v3515
  %v3604 = vunpack.c.l.b16 %v3516
  %v3605 = vunpack.c.h.b16 %v3513
  %v3606 = vunpack.c.h.b16 %v3514
  %v3607 = vunpack.c.h.b16 %v3515
  %v3608 = vunpack.c.h.b16 %v3516
  %v3609 = vunpack.c.l.b16 %v3517
  %v3610 = vunpack.c.l.b16 %v3518
  %v3611 = vunpack.c.l.b16 %v3519
  %v3612 = vunpack.c.l.b16 %v3520
  %v3613 = vunpack.c.h.b16 %v3517
  %v3614 = vunpack.c.h.b16 %v3518
  %v3615 = vunpack.c.h.b16 %v3519
  %v3616 = vunpack.c.h.b16 %v3520
  %v3617 = vpack.c.b16 %v3554, %v3553
  %v3618 = vpack.c.b16 %v3556, %v3555
  %v3619 = vpack.c.b16 %v3558, %v3557
  %v3620 = vpack.c.b16 %v3560, %v3559
  %v3621 = vpack.c.b16 %v3562, %v3561
  %v3622 = vpack.c.b16 %v3564, %v3563
  %v3623 = vpack.c.b16 %v3566, %v3565
  %v3624 = vpack.c.b16 %v3568, %v3567
  %v3625 = vpack.c.b16 %v3570, %v3569
  %v3626 = vpack.c.b16 %v3572, %v3571
  %v3627 = vpack.c.b16 %v3574, %v3573
  %v3628 = vpack.c.b16 %v3576, %v3575
  %v3629 = vpack.c.b16 %v3578, %v3577
  %v3630 = vpack.c.b16 %v3580, %v3579
  %v3631 = vpack.c.b16 %v3582, %v3581
  %v3632 = vpack.c.b16 %v3584, %v3583
  %v3633 = vpack.c.b16 %v3586, %v3585
  %v3634 = vpack.c.b16 %v3588, %v3587
  %v3635 = vpack.c.b16 %v3590, %v3589
  %v3636 = vpack.c.b16 %v3592, %v3591
  %v3637 = vpack.c.b16 %v3594, %v3593
  %v3638 = vpack.c.b16 %v3596, %v3595
  %v3639 = vpack.c.b16 %v3598, %v3597
  %v3640 = vpack.c.b16 %v3600, %v3599
  %v3641 = vpack.c.b16 %v3602, %v3601
  %v3642 = vpack.c.b16 %v3604, %v3603
  %v3643 = vpack.c.b16 %v3606, %v3605
  %v3644 = vpack.c.b16 %v3608, %v3607
  %v3645 = vpack.c.b16 %v3610, %v3609
  %v3646 = vpack.c.b16 %v3612, %v3611
  %v3647 = vpack.c.b16 %v3614, %v3613
  %v3648 = vpack.c.b16 %v3616, %v3615
  %3681 = vst [vmem:[#allocation2 + $0x30] sm:$0xff] %v3617
  %3682 = vst [vmem:[#allocation2 + $0x38] sm:$0xff] %v3618
  %3683 = vst [vmem:[#allocation2 + $0x70] sm:$0xff] %v3619
  %3684 = vst [vmem:[#allocation2 + $0x78] sm:$0xff] %v3620
  %3685 = vst [vmem:[#allocation2 + $0xb0] sm:$0xff] %v3621
  %3686 = vst [vmem:[#allocation2 + $0xb8] sm:$0xff] %v3622
  %3687 = vst [vmem:[#allocation2 + $0xf0] sm:$0xff] %v3623
  %3688 = vst [vmem:[#allocation2 + $0xf8] sm:$0xff] %v3624
  %3689 = vst [vmem:[#allocation2 + $0x130] sm:$0xff] %v3625
  %3690 = vst [vmem:[#allocation2 + $0x138] sm:$0xff] %v3626
  %3691 = vst [vmem:[#allocation2 + $0x170] sm:$0xff] %v3627
  %3692 = vst [vmem:[#allocation2 + $0x178] sm:$0xff] %v3628
  %3693 = vst [vmem:[#allocation2 + $0x1b0] sm:$0xff] %v3629
  %3694 = vst [vmem:[#allocation2 + $0x1b8] sm:$0xff] %v3630
  %3695 = vst [vmem:[#allocation2 + $0x1f0] sm:$0xff] %v3631
  %3696 = vst [vmem:[#allocation2 + $0x1f8] sm:$0xff] %v3632
  %3697 = vst [vmem:[#allocation2 + $0x230] sm:$0xff] %v3633
  %3698 = vst [vmem:[#allocation2 + $0x238] sm:$0xff] %v3634
  %3699 = vst [vmem:[#allocation2 + $0x270] sm:$0xff] %v3635
  %3700 = vst [vmem:[#allocation2 + $0x278] sm:$0xff] %v3636
  %3701 = vst [vmem:[#allocation2 + $0x2b0] sm:$0xff] %v3637
  %3702 = vst [vmem:[#allocation2 + $0x2b8] sm:$0xff] %v3638
  %3703 = vst [vmem:[#allocation2 + $0x2f0] sm:$0xff] %v3639
  %3704 = vst [vmem:[#allocation2 + $0x2f8] sm:$0xff] %v3640
  %3705 = vst [vmem:[#allocation2 + $0x330] sm:$0xff] %v3641
  %3706 = vst [vmem:[#allocation2 + $0x338] sm:$0xff] %v3642
  %3707 = vst [vmem:[#allocation2 + $0x370] sm:$0xff] %v3643
  %3708 = vst [vmem:[#allocation2 + $0x378] sm:$0xff] %v3644
  %3709 = vst [vmem:[#allocation2 + $0x3b0] sm:$0xff] %v3645
  %3710 = vst [vmem:[#allocation2 + $0x3b8] sm:$0xff] %v3646
  %3711 = vst [vmem:[#allocation2 + $0x3f0] sm:$0xff] %v3647
  %3712 = vst [vmem:[#allocation2 + $0x3f8] sm:$0xff] %v3648
  %v3713 = vld [vmem:[#allocation2] sm:$0xff]
  %v3714 = vld [vmem:[#allocation2 + $0x8] sm:$0xff]
  %v3715 = vld [vmem:[#allocation2 + $0x10] sm:$0xff]
  %v3716 = vld [vmem:[#allocation2 + $0x18] sm:$0xff]
  %v3717 = vld [vmem:[#allocation2 + $0x20] sm:$0xff]
  %v3718 = vld [vmem:[#allocation2 + $0x28] sm:$0xff]
  %v3719 = vld [vmem:[#allocation2 + $0x30] sm:$0xff]
  %v3720 = vld [vmem:[#allocation2 + $0x38] sm:$0xff]
  %v3721 = vld [vmem:[#allocation2 + $0x40] sm:$0xff]
  %v3722 = vld [vmem:[#allocation2 + $0x48] sm:$0xff]
  %v3723 = vld [vmem:[#allocation2 + $0x50] sm:$0xff]
  %v3724 = vld [vmem:[#allocation2 + $0x58] sm:$0xff]
  %v3725 = vld [vmem:[#allocation2 + $0x60] sm:$0xff]
  %v3726 = vld [vmem:[#allocation2 + $0x68] sm:$0xff]
  %v3727 = vld [vmem:[#allocation2 + $0x70] sm:$0xff]
  %v3728 = vld [vmem:[#allocation2 + $0x78] sm:$0xff]
  %v3729 = vld [vmem:[#allocation2 + $0x80] sm:$0xff]
  %v3730 = vld [vmem:[#allocation2 + $0x88] sm:$0xff]
  %v3731 = vld [vmem:[#allocation2 + $0x90] sm:$0xff]
  %v3732 = vld [vmem:[#allocation2 + $0x98] sm:$0xff]
  %v3733 = vld [vmem:[#allocation2 + $0xa0] sm:$0xff]
  %v3734 = vld [vmem:[#allocation2 + $0xa8] sm:$0xff]
  %v3735 = vld [vmem:[#allocation2 + $0xb0] sm:$0xff]
  %v3736 = vld [vmem:[#allocation2 + $0xb8] sm:$0xff]
  %v3737 = vld [vmem:[#allocation2 + $0xc0] sm:$0xff]
  %v3738 = vld [vmem:[#allocation2 + $0xc8] sm:$0xff]
  %v3739 = vld [vmem:[#allocation2 + $0xd0] sm:$0xff]
  %v3740 = vld [vmem:[#allocation2 + $0xd8] sm:$0xff]
  %v3741 = vld [vmem:[#allocation2 + $0xe0] sm:$0xff]
  %v3742 = vld [vmem:[#allocation2 + $0xe8] sm:$0xff]
  %v3743 = vld [vmem:[#allocation2 + $0xf0] sm:$0xff]
  %v3744 = vld [vmem:[#allocation2 + $0xf8] sm:$0xff]
  %v3745 = vld [vmem:[#allocation2 + $0x100] sm:$0xff]
  %v3746 = vld [vmem:[#allocation2 + $0x108] sm:$0xff]
  %v3747 = vld [vmem:[#allocation2 + $0x110] sm:$0xff]
  %v3748 = vld [vmem:[#allocation2 + $0x118] sm:$0xff]
  %v3749 = vld [vmem:[#allocation2 + $0x120] sm:$0xff]
  %v3750 = vld [vmem:[#allocation2 + $0x128] sm:$0xff]
  %v3751 = vld [vmem:[#allocation2 + $0x130] sm:$0xff]
  %v3752 = vld [vmem:[#allocation2 + $0x138] sm:$0xff]
  %v3753 = vld [vmem:[#allocation2 + $0x140] sm:$0xff]
  %v3754 = vld [vmem:[#allocation2 + $0x148] sm:$0xff]
  %v3755 = vld [vmem:[#allocation2 + $0x150] sm:$0xff]
  %v3756 = vld [vmem:[#allocation2 + $0x158] sm:$0xff]
  %v3757 = vld [vmem:[#allocation2 + $0x160] sm:$0xff]
  %v3758 = vld [vmem:[#allocation2 + $0x168] sm:$0xff]
  %v3759 = vld [vmem:[#allocation2 + $0x170] sm:$0xff]
  %v3760 = vld [vmem:[#allocation2 + $0x178] sm:$0xff]
  %v3761 = vld [vmem:[#allocation2 + $0x180] sm:$0xff]
  %v3762 = vld [vmem:[#allocation2 + $0x188] sm:$0xff]
  %v3763 = vld [vmem:[#allocation2 + $0x190] sm:$0xff]
  %v3764 = vld [vmem:[#allocation2 + $0x198] sm:$0xff]
  %v3765 = vld [vmem:[#allocation2 + $0x1a0] sm:$0xff]
  %v3766 = vld [vmem:[#allocation2 + $0x1a8] sm:$0xff]
  %v3767 = vld [vmem:[#allocation2 + $0x1b0] sm:$0xff]
  %v3768 = vld [vmem:[#allocation2 + $0x1b8] sm:$0xff]
  %v3769 = vld [vmem:[#allocation2 + $0x1c0] sm:$0xff]
  %v3770 = vld [vmem:[#allocation2 + $0x1c8] sm:$0xff]
  %v3771 = vld [vmem:[#allocation2 + $0x1d0] sm:$0xff]
  %v3772 = vld [vmem:[#allocation2 + $0x1d8] sm:$0xff]
  %v3773 = vld [vmem:[#allocation2 + $0x1e0] sm:$0xff]
  %v3774 = vld [vmem:[#allocation2 + $0x1e8] sm:$0xff]
  %v3775 = vld [vmem:[#allocation2 + $0x1f0] sm:$0xff]
  %v3776 = vld [vmem:[#allocation2 + $0x1f8] sm:$0xff]
  %v3777 = vld [vmem:[#allocation2 + $0x200] sm:$0xff]
  %v3778 = vld [vmem:[#allocation2 + $0x208] sm:$0xff]
  %v3779 = vld [vmem:[#allocation2 + $0x210] sm:$0xff]
  %v3780 = vld [vmem:[#allocation2 + $0x218] sm:$0xff]
  %v3781 = vld [vmem:[#allocation2 + $0x220] sm:$0xff]
  %v3782 = vld [vmem:[#allocation2 + $0x228] sm:$0xff]
  %v3783 = vld [vmem:[#allocation2 + $0x230] sm:$0xff]
  %v3784 = vld [vmem:[#allocation2 + $0x238] sm:$0xff]
  %v3785 = vld [vmem:[#allocation2 + $0x240] sm:$0xff]
  %v3786 = vld [vmem:[#allocation2 + $0x248] sm:$0xff]
  %v3787 = vld [vmem:[#allocation2 + $0x250] sm:$0xff]
  %v3788 = vld [vmem:[#allocation2 + $0x258] sm:$0xff]
  %v3789 = vld [vmem:[#allocation2 + $0x260] sm:$0xff]
  %v3790 = vld [vmem:[#allocation2 + $0x268] sm:$0xff]
  %v3791 = vld [vmem:[#allocation2 + $0x270] sm:$0xff]
  %v3792 = vld [vmem:[#allocation2 + $0x278] sm:$0xff]
  %v3793 = vld [vmem:[#allocation2 + $0x280] sm:$0xff]
  %v3794 = vld [vmem:[#allocation2 + $0x288] sm:$0xff]
  %v3795 = vld [vmem:[#allocation2 + $0x290] sm:$0xff]
  %v3796 = vld [vmem:[#allocation2 + $0x298] sm:$0xff]
  %v3797 = vld [vmem:[#allocation2 + $0x2a0] sm:$0xff]
  %v3798 = vld [vmem:[#allocation2 + $0x2a8] sm:$0xff]
  %v3799 = vld [vmem:[#allocation2 + $0x2b0] sm:$0xff]
  %v3800 = vld [vmem:[#allocation2 + $0x2b8] sm:$0xff]
  %v3801 = vld [vmem:[#allocation2 + $0x2c0] sm:$0xff]
  %v3802 = vld [vmem:[#allocation2 + $0x2c8] sm:$0xff]
  %v3803 = vld [vmem:[#allocation2 + $0x2d0] sm:$0xff]
  %v3804 = vld [vmem:[#allocation2 + $0x2d8] sm:$0xff]
  %v3805 = vld [vmem:[#allocation2 + $0x2e0] sm:$0xff]
  %v3806 = vld [vmem:[#allocation2 + $0x2e8] sm:$0xff]
  %v3807 = vld [vmem:[#allocation2 + $0x2f0] sm:$0xff]
  %v3808 = vld [vmem:[#allocation2 + $0x2f8] sm:$0xff]
  %v3809 = vld [vmem:[#allocation2 + $0x300] sm:$0xff]
  %v3810 = vld [vmem:[#allocation2 + $0x308] sm:$0xff]
  %v3811 = vld [vmem:[#allocation2 + $0x310] sm:$0xff]
  %v3812 = vld [vmem:[#allocation2 + $0x318] sm:$0xff]
  %v3813 = vld [vmem:[#allocation2 + $0x320] sm:$0xff]
  %v3814 = vld [vmem:[#allocation2 + $0x328] sm:$0xff]
  %v3815 = vld [vmem:[#allocation2 + $0x330] sm:$0xff]
  %v3816 = vld [vmem:[#allocation2 + $0x338] sm:$0xff]
  %v3817 = vld [vmem:[#allocation2 + $0x340] sm:$0xff]
  %v3818 = vld [vmem:[#allocation2 + $0x348] sm:$0xff]
  %v3819 = vld [vmem:[#allocation2 + $0x350] sm:$0xff]
  %v3820 = vld [vmem:[#allocation2 + $0x358] sm:$0xff]
  %v3821 = vld [vmem:[#allocation2 + $0x360] sm:$0xff]
  %v3822 = vld [vmem:[#allocation2 + $0x368] sm:$0xff]
  %v3823 = vld [vmem:[#allocation2 + $0x370] sm:$0xff]
  %v3824 = vld [vmem:[#allocation2 + $0x378] sm:$0xff]
  %v3825 = vld [vmem:[#allocation2 + $0x380] sm:$0xff]
  %v3826 = vld [vmem:[#allocation2 + $0x388] sm:$0xff]
  %v3827 = vld [vmem:[#allocation2 + $0x390] sm:$0xff]
  %v3828 = vld [vmem:[#allocation2 + $0x398] sm:$0xff]
  %v3829 = vld [vmem:[#allocation2 + $0x3a0] sm:$0xff]
  %v3830 = vld [vmem:[#allocation2 + $0x3a8] sm:$0xff]
  %v3831 = vld [vmem:[#allocation2 + $0x3b0] sm:$0xff]
  %v3832 = vld [vmem:[#allocation2 + $0x3b8] sm:$0xff]
  %v3833 = vld [vmem:[#allocation2 + $0x3c0] sm:$0xff]
  %v3834 = vld [vmem:[#allocation2 + $0x3c8] sm:$0xff]
  %v3835 = vld [vmem:[#allocation2 + $0x3d0] sm:$0xff]
  %v3836 = vld [vmem:[#allocation2 + $0x3d8] sm:$0xff]
  %v3837 = vld [vmem:[#allocation2 + $0x3e0] sm:$0xff]
  %v3838 = vld [vmem:[#allocation2 + $0x3e8] sm:$0xff]
  %v3839 = vld [vmem:[#allocation2 + $0x3f0] sm:$0xff]
  %v3840 = vld [vmem:[#allocation2 + $0x3f8] sm:$0xff]
  %v3841 = vld [vmem:[%s3] sm:$0xff]
  %v3842 = vld [vmem:[%s3 + $0x8] sm:$0xff]
  %v3843 = vld [vmem:[%s3 + $0x10] sm:$0xff]
  %v3844 = vld [vmem:[%s3 + $0x18] sm:$0xff]
  %v3845 = vld [vmem:[%s3 + $0x20] sm:$0xff]
  %v3846 = vld [vmem:[%s3 + $0x28] sm:$0xff]
  %v3847 = vld [vmem:[%s3 + $0x30] sm:$0xff]
  %v3848 = vld [vmem:[%s3 + $0x38] sm:$0xff]
  %v3849 = vld [vmem:[%s3 + $0x40] sm:$0xff]
  %v3850 = vld [vmem:[%s3 + $0x48] sm:$0xff]
  %v3851 = vld [vmem:[%s3 + $0x50] sm:$0xff]
  %v3852 = vld [vmem:[%s3 + $0x58] sm:$0xff]
  %v3853 = vld [vmem:[%s3 + $0x60] sm:$0xff]
  %v3854 = vld [vmem:[%s3 + $0x68] sm:$0xff]
  %v3855 = vld [vmem:[%s3 + $0x70] sm:$0xff]
  %v3856 = vld [vmem:[%s3 + $0x78] sm:$0xff]
  %v3857 = vld [vmem:[%s3 + $0x80] sm:$0xff]
  %v3858 = vld [vmem:[%s3 + $0x88] sm:$0xff]
  %v3859 = vld [vmem:[%s3 + $0x90] sm:$0xff]
  %v3860 = vld [vmem:[%s3 + $0x98] sm:$0xff]
  %v3861 = vld [vmem:[%s3 + $0xa0] sm:$0xff]
  %v3862 = vld [vmem:[%s3 + $0xa8] sm:$0xff]
  %v3863 = vld [vmem:[%s3 + $0xb0] sm:$0xff]
  %v3864 = vld [vmem:[%s3 + $0xb8] sm:$0xff]
  %v3865 = vld [vmem:[%s3 + $0xc0] sm:$0xff]
  %v3866 = vld [vmem:[%s3 + $0xc8] sm:$0xff]
  %v3867 = vld [vmem:[%s3 + $0xd0] sm:$0xff]
  %v3868 = vld [vmem:[%s3 + $0xd8] sm:$0xff]
  %v3869 = vld [vmem:[%s3 + $0xe0] sm:$0xff]
  %v3870 = vld [vmem:[%s3 + $0xe8] sm:$0xff]
  %v3871 = vld [vmem:[%s3 + $0xf0] sm:$0xff]
  %v3872 = vld [vmem:[%s3 + $0xf8] sm:$0xff]
  %v3873 = vld [vmem:[%s3 + $0x100] sm:$0xff]
  %v3874 = vld [vmem:[%s3 + $0x108] sm:$0xff]
  %v3875 = vld [vmem:[%s3 + $0x110] sm:$0xff]
  %v3876 = vld [vmem:[%s3 + $0x118] sm:$0xff]
  %v3877 = vld [vmem:[%s3 + $0x120] sm:$0xff]
  %v3878 = vld [vmem:[%s3 + $0x128] sm:$0xff]
  %v3879 = vld [vmem:[%s3 + $0x130] sm:$0xff]
  %v3880 = vld [vmem:[%s3 + $0x138] sm:$0xff]
  %v3881 = vld [vmem:[%s3 + $0x140] sm:$0xff]
  %v3882 = vld [vmem:[%s3 + $0x148] sm:$0xff]
  %v3883 = vld [vmem:[%s3 + $0x150] sm:$0xff]
  %v3884 = vld [vmem:[%s3 + $0x158] sm:$0xff]
  %v3885 = vld [vmem:[%s3 + $0x160] sm:$0xff]
  %v3886 = vld [vmem:[%s3 + $0x168] sm:$0xff]
  %v3887 = vld [vmem:[%s3 + $0x170] sm:$0xff]
  %v3888 = vld [vmem:[%s3 + $0x178] sm:$0xff]
  %v3889 = vld [vmem:[%s3 + $0x180] sm:$0xff]
  %v3890 = vld [vmem:[%s3 + $0x188] sm:$0xff]
  %v3891 = vld [vmem:[%s3 + $0x190] sm:$0xff]
  %v3892 = vld [vmem:[%s3 + $0x198] sm:$0xff]
  %v3893 = vld [vmem:[%s3 + $0x1a0] sm:$0xff]
  %v3894 = vld [vmem:[%s3 + $0x1a8] sm:$0xff]
  %v3895 = vld [vmem:[%s3 + $0x1b0] sm:$0xff]
  %v3896 = vld [vmem:[%s3 + $0x1b8] sm:$0xff]
  %v3897 = vld [vmem:[%s3 + $0x1c0] sm:$0xff]
  %v3898 = vld [vmem:[%s3 + $0x1c8] sm:$0xff]
  %v3899 = vld [vmem:[%s3 + $0x1d0] sm:$0xff]
  %v3900 = vld [vmem:[%s3 + $0x1d8] sm:$0xff]
  %v3901 = vld [vmem:[%s3 + $0x1e0] sm:$0xff]
  %v3902 = vld [vmem:[%s3 + $0x1e8] sm:$0xff]
  %v3903 = vld [vmem:[%s3 + $0x1f0] sm:$0xff]
  %v3904 = vld [vmem:[%s3 + $0x1f8] sm:$0xff]
  %v3905 = vld [vmem:[%s3 + $0x200] sm:$0xff]
  %v3906 = vld [vmem:[%s3 + $0x208] sm:$0xff]
  %v3907 = vld [vmem:[%s3 + $0x210] sm:$0xff]
  %v3908 = vld [vmem:[%s3 + $0x218] sm:$0xff]
  %v3909 = vld [vmem:[%s3 + $0x220] sm:$0xff]
  %v3910 = vld [vmem:[%s3 + $0x228] sm:$0xff]
  %v3911 = vld [vmem:[%s3 + $0x230] sm:$0xff]
  %v3912 = vld [vmem:[%s3 + $0x238] sm:$0xff]
  %v3913 = vld [vmem:[%s3 + $0x240] sm:$0xff]
  %v3914 = vld [vmem:[%s3 + $0x248] sm:$0xff]
  %v3915 = vld [vmem:[%s3 + $0x250] sm:$0xff]
  %v3916 = vld [vmem:[%s3 + $0x258] sm:$0xff]
  %v3917 = vld [vmem:[%s3 + $0x260] sm:$0xff]
  %v3918 = vld [vmem:[%s3 + $0x268] sm:$0xff]
  %v3919 = vld [vmem:[%s3 + $0x270] sm:$0xff]
  %v3920 = vld [vmem:[%s3 + $0x278] sm:$0xff]
  %v3921 = vld [vmem:[%s3 + $0x280] sm:$0xff]
  %v3922 = vld [vmem:[%s3 + $0x288] sm:$0xff]
  %v3923 = vld [vmem:[%s3 + $0x290] sm:$0xff]
  %v3924 = vld [vmem:[%s3 + $0x298] sm:$0xff]
  %v3925 = vld [vmem:[%s3 + $0x2a0] sm:$0xff]
  %v3926 = vld [vmem:[%s3 + $0x2a8] sm:$0xff]
  %v3927 = vld [vmem:[%s3 + $0x2b0] sm:$0xff]
  %v3928 = vld [vmem:[%s3 + $0x2b8] sm:$0xff]
  %v3929 = vld [vmem:[%s3 + $0x2c0] sm:$0xff]
  %v3930 = vld [vmem:[%s3 + $0x2c8] sm:$0xff]
  %v3931 = vld [vmem:[%s3 + $0x2d0] sm:$0xff]
  %v3932 = vld [vmem:[%s3 + $0x2d8] sm:$0xff]
  %v3933 = vld [vmem:[%s3 + $0x2e0] sm:$0xff]
  %v3934 = vld [vmem:[%s3 + $0x2e8] sm:$0xff]
  %v3935 = vld [vmem:[%s3 + $0x2f0] sm:$0xff]
  %v3936 = vld [vmem:[%s3 + $0x2f8] sm:$0xff]
  %v3937 = vld [vmem:[%s3 + $0x300] sm:$0xff]
  %v3938 = vld [vmem:[%s3 + $0x308] sm:$0xff]
  %v3939 = vld [vmem:[%s3 + $0x310] sm:$0xff]
  %v3940 = vld [vmem:[%s3 + $0x318] sm:$0xff]
  %v3941 = vld [vmem:[%s3 + $0x320] sm:$0xff]
  %v3942 = vld [vmem:[%s3 + $0x328] sm:$0xff]
  %v3943 = vld [vmem:[%s3 + $0x330] sm:$0xff]
  %v3944 = vld [vmem:[%s3 + $0x338] sm:$0xff]
  %v3945 = vld [vmem:[%s3 + $0x340] sm:$0xff]
  %v3946 = vld [vmem:[%s3 + $0x348] sm:$0xff]
  %v3947 = vld [vmem:[%s3 + $0x350] sm:$0xff]
  %v3948 = vld [vmem:[%s3 + $0x358] sm:$0xff]
  %v3949 = vld [vmem:[%s3 + $0x360] sm:$0xff]
  %v3950 = vld [vmem:[%s3 + $0x368] sm:$0xff]
  %v3951 = vld [vmem:[%s3 + $0x370] sm:$0xff]
  %v3952 = vld [vmem:[%s3 + $0x378] sm:$0xff]
  %v3953 = vld [vmem:[%s3 + $0x380] sm:$0xff]
  %v3954 = vld [vmem:[%s3 + $0x388] sm:$0xff]
  %v3955 = vld [vmem:[%s3 + $0x390] sm:$0xff]
  %v3956 = vld [vmem:[%s3 + $0x398] sm:$0xff]
  %v3957 = vld [vmem:[%s3 + $0x3a0] sm:$0xff]
  %v3958 = vld [vmem:[%s3 + $0x3a8] sm:$0xff]
  %v3959 = vld [vmem:[%s3 + $0x3b0] sm:$0xff]
  %v3960 = vld [vmem:[%s3 + $0x3b8] sm:$0xff]
  %v3961 = vld [vmem:[%s3 + $0x3c0] sm:$0xff]
  %v3962 = vld [vmem:[%s3 + $0x3c8] sm:$0xff]
  %v3963 = vld [vmem:[%s3 + $0x3d0] sm:$0xff]
  %v3964 = vld [vmem:[%s3 + $0x3d8] sm:$0xff]
  %v3965 = vld [vmem:[%s3 + $0x3e0] sm:$0xff]
  %v3966 = vld [vmem:[%s3 + $0x3e8] sm:$0xff]
  %v3967 = vld [vmem:[%s3 + $0x3f0] sm:$0xff]
  %v3968 = vld [vmem:[%s3 + $0x3f8] sm:$0xff]
  %v3969 = vld [vmem:[%s3 + $0x400] sm:$0xff]
  %v3970 = vld [vmem:[%s3 + $0x408] sm:$0xff]
  %v3971 = vld [vmem:[%s3 + $0x410] sm:$0xff]
  %v3972 = vld [vmem:[%s3 + $0x418] sm:$0xff]
  %v3973 = vld [vmem:[%s3 + $0x420] sm:$0xff]
  %v3974 = vld [vmem:[%s3 + $0x428] sm:$0xff]
  %v3975 = vld [vmem:[%s3 + $0x430] sm:$0xff]
  %v3976 = vld [vmem:[%s3 + $0x438] sm:$0xff]
  %v3977 = vld [vmem:[%s3 + $0x440] sm:$0xff]
  %v3978 = vld [vmem:[%s3 + $0x448] sm:$0xff]
  %v3979 = vld [vmem:[%s3 + $0x450] sm:$0xff]
  %v3980 = vld [vmem:[%s3 + $0x458] sm:$0xff]
  %v3981 = vld [vmem:[%s3 + $0x460] sm:$0xff]
  %v3982 = vld [vmem:[%s3 + $0x468] sm:$0xff]
  %v3983 = vld [vmem:[%s3 + $0x470] sm:$0xff]
  %v3984 = vld [vmem:[%s3 + $0x478] sm:$0xff]
  %v3985 = vld [vmem:[%s3 + $0x480] sm:$0xff]
  %v3986 = vld [vmem:[%s3 + $0x488] sm:$0xff]
  %v3987 = vld [vmem:[%s3 + $0x490] sm:$0xff]
  %v3988 = vld [vmem:[%s3 + $0x498] sm:$0xff]
  %v3989 = vld [vmem:[%s3 + $0x4a0] sm:$0xff]
  %v3990 = vld [vmem:[%s3 + $0x4a8] sm:$0xff]
  %v3991 = vld [vmem:[%s3 + $0x4b0] sm:$0xff]
  %v3992 = vld [vmem:[%s3 + $0x4b8] sm:$0xff]
  %v3993 = vld [vmem:[%s3 + $0x4c0] sm:$0xff]
  %v3994 = vld [vmem:[%s3 + $0x4c8] sm:$0xff]
  %v3995 = vld [vmem:[%s3 + $0x4d0] sm:$0xff]
  %v3996 = vld [vmem:[%s3 + $0x4d8] sm:$0xff]
  %v3997 = vld [vmem:[%s3 + $0x4e0] sm:$0xff]
  %v3998 = vld [vmem:[%s3 + $0x4e8] sm:$0xff]
  %v3999 = vld [vmem:[%s3 + $0x4f0] sm:$0xff]
  %v4000 = vld [vmem:[%s3 + $0x4f8] sm:$0xff]
  %v4001 = vld [vmem:[%s3 + $0x500] sm:$0xff]
  %v4002 = vld [vmem:[%s3 + $0x508] sm:$0xff]
  %v4003 = vld [vmem:[%s3 + $0x510] sm:$0xff]
  %v4004 = vld [vmem:[%s3 + $0x518] sm:$0xff]
  %v4005 = vld [vmem:[%s3 + $0x520] sm:$0xff]
  %v4006 = vld [vmem:[%s3 + $0x528] sm:$0xff]
  %v4007 = vld [vmem:[%s3 + $0x530] sm:$0xff]
  %v4008 = vld [vmem:[%s3 + $0x538] sm:$0xff]
  %v4009 = vld [vmem:[%s3 + $0x540] sm:$0xff]
  %v4010 = vld [vmem:[%s3 + $0x548] sm:$0xff]
  %v4011 = vld [vmem:[%s3 + $0x550] sm:$0xff]
  %v4012 = vld [vmem:[%s3 + $0x558] sm:$0xff]
  %v4013 = vld [vmem:[%s3 + $0x560] sm:$0xff]
  %v4014 = vld [vmem:[%s3 + $0x568] sm:$0xff]
  %v4015 = vld [vmem:[%s3 + $0x570] sm:$0xff]
  %v4016 = vld [vmem:[%s3 + $0x578] sm:$0xff]
  %v4017 = vld [vmem:[%s3 + $0x580] sm:$0xff]
  %v4018 = vld [vmem:[%s3 + $0x588] sm:$0xff]
  %v4019 = vld [vmem:[%s3 + $0x590] sm:$0xff]
  %v4020 = vld [vmem:[%s3 + $0x598] sm:$0xff]
  %v4021 = vld [vmem:[%s3 + $0x5a0] sm:$0xff]
  %v4022 = vld [vmem:[%s3 + $0x5a8] sm:$0xff]
  %v4023 = vld [vmem:[%s3 + $0x5b0] sm:$0xff]
  %v4024 = vld [vmem:[%s3 + $0x5b8] sm:$0xff]
  %v4025 = vld [vmem:[%s3 + $0x5c0] sm:$0xff]
  %v4026 = vld [vmem:[%s3 + $0x5c8] sm:$0xff]
  %v4027 = vld [vmem:[%s3 + $0x5d0] sm:$0xff]
  %v4028 = vld [vmem:[%s3 + $0x5d8] sm:$0xff]
  %v4029 = vld [vmem:[%s3 + $0x5e0] sm:$0xff]
  %v4030 = vld [vmem:[%s3 + $0x5e8] sm:$0xff]
  %v4031 = vld [vmem:[%s3 + $0x5f0] sm:$0xff]
  %v4032 = vld [vmem:[%s3 + $0x5f8] sm:$0xff]
  %v4033 = vld [vmem:[%s3 + $0x600] sm:$0xff]
  %v4034 = vld [vmem:[%s3 + $0x608] sm:$0xff]
  %v4035 = vld [vmem:[%s3 + $0x610] sm:$0xff]
  %v4036 = vld [vmem:[%s3 + $0x618] sm:$0xff]
  %v4037 = vld [vmem:[%s3 + $0x620] sm:$0xff]
  %v4038 = vld [vmem:[%s3 + $0x628] sm:$0xff]
  %v4039 = vld [vmem:[%s3 + $0x630] sm:$0xff]
  %v4040 = vld [vmem:[%s3 + $0x638] sm:$0xff]
  %v4041 = vld [vmem:[%s3 + $0x640] sm:$0xff]
  %v4042 = vld [vmem:[%s3 + $0x648] sm:$0xff]
  %v4043 = vld [vmem:[%s3 + $0x650] sm:$0xff]
  %v4044 = vld [vmem:[%s3 + $0x658] sm:$0xff]
  %v4045 = vld [vmem:[%s3 + $0x660] sm:$0xff]
  %v4046 = vld [vmem:[%s3 + $0x668] sm:$0xff]
  %v4047 = vld [vmem:[%s3 + $0x670] sm:$0xff]
  %v4048 = vld [vmem:[%s3 + $0x678] sm:$0xff]
  %v4049 = vld [vmem:[%s3 + $0x680] sm:$0xff]
  %v4050 = vld [vmem:[%s3 + $0x688] sm:$0xff]
  %v4051 = vld [vmem:[%s3 + $0x690] sm:$0xff]
  %v4052 = vld [vmem:[%s3 + $0x698] sm:$0xff]
  %v4053 = vld [vmem:[%s3 + $0x6a0] sm:$0xff]
  %v4054 = vld [vmem:[%s3 + $0x6a8] sm:$0xff]
  %v4055 = vld [vmem:[%s3 + $0x6b0] sm:$0xff]
  %v4056 = vld [vmem:[%s3 + $0x6b8] sm:$0xff]
  %v4057 = vld [vmem:[%s3 + $0x6c0] sm:$0xff]
  %v4058 = vld [vmem:[%s3 + $0x6c8] sm:$0xff]
  %v4059 = vld [vmem:[%s3 + $0x6d0] sm:$0xff]
  %v4060 = vld [vmem:[%s3 + $0x6d8] sm:$0xff]
  %v4061 = vld [vmem:[%s3 + $0x6e0] sm:$0xff]
  %v4062 = vld [vmem:[%s3 + $0x6e8] sm:$0xff]
  %v4063 = vld [vmem:[%s3 + $0x6f0] sm:$0xff]
  %v4064 = vld [vmem:[%s3 + $0x6f8] sm:$0xff]
  %v4065 = vld [vmem:[%s3 + $0x700] sm:$0xff]
  %v4066 = vld [vmem:[%s3 + $0x708] sm:$0xff]
  %v4067 = vld [vmem:[%s3 + $0x710] sm:$0xff]
  %v4068 = vld [vmem:[%s3 + $0x718] sm:$0xff]
  %v4069 = vld [vmem:[%s3 + $0x720] sm:$0xff]
  %v4070 = vld [vmem:[%s3 + $0x728] sm:$0xff]
  %v4071 = vld [vmem:[%s3 + $0x730] sm:$0xff]
  %v4072 = vld [vmem:[%s3 + $0x738] sm:$0xff]
  %v4073 = vld [vmem:[%s3 + $0x740] sm:$0xff]
  %v4074 = vld [vmem:[%s3 + $0x748] sm:$0xff]
  %v4075 = vld [vmem:[%s3 + $0x750] sm:$0xff]
  %v4076 = vld [vmem:[%s3 + $0x758] sm:$0xff]
  %v4077 = vld [vmem:[%s3 + $0x760] sm:$0xff]
  %v4078 = vld [vmem:[%s3 + $0x768] sm:$0xff]
  %v4079 = vld [vmem:[%s3 + $0x770] sm:$0xff]
  %v4080 = vld [vmem:[%s3 + $0x778] sm:$0xff]
  %v4081 = vld [vmem:[%s3 + $0x780] sm:$0xff]
  %v4082 = vld [vmem:[%s3 + $0x788] sm:$0xff]
  %v4083 = vld [vmem:[%s3 + $0x790] sm:$0xff]
  %v4084 = vld [vmem:[%s3 + $0x798] sm:$0xff]
  %v4085 = vld [vmem:[%s3 + $0x7a0] sm:$0xff]
  %v4086 = vld [vmem:[%s3 + $0x7a8] sm:$0xff]
  %v4087 = vld [vmem:[%s3 + $0x7b0] sm:$0xff]
  %v4088 = vld [vmem:[%s3 + $0x7b8] sm:$0xff]
  %v4089 = vld [vmem:[%s3 + $0x7c0] sm:$0xff]
  %v4090 = vld [vmem:[%s3 + $0x7c8] sm:$0xff]
  %v4091 = vld [vmem:[%s3 + $0x7d0] sm:$0xff]
  %v4092 = vld [vmem:[%s3 + $0x7d8] sm:$0xff]
  %v4093 = vld [vmem:[%s3 + $0x7e0] sm:$0xff]
  %v4094 = vld [vmem:[%s3 + $0x7e8] sm:$0xff]
  %v4095 = vld [vmem:[%s3 + $0x7f0] sm:$0xff]
  %v4096 = vld [vmem:[%s3 + $0x7f8] sm:$0xff]
  %v4097 = vld [vmem:[%s4] sm:$0x3]
  %v4099 = vlaneseq
  %v4100 = vshrl.u32 %v4099, 7
  %v4101 = vsub.s32 0, %v4100
  %v4102 = vrot.slane %v4097, %v4101
  %v4103 = vlaneseq
  %v4104 = vshrl.u32 %v4103, 7
  %v4105 = vsub.s32 1, %v4104
  %v4106 = vrot.slane %v4097, %v4105
  %v4237 = vunpack.c.l.b16 %v3713
  %v4238 = vunpack.c.h.b16 %v3713
  %v4239 = vunpack.c.l.b16 %v3714
  %v4240 = vunpack.c.h.b16 %v3714
  %v4241 = vunpack.c.l.b16 %v3715
  %v4242 = vunpack.c.h.b16 %v3715
  %v4243 = vunpack.c.l.b16 %v3716
  %v4244 = vunpack.c.h.b16 %v3716
  %v4245 = vunpack.c.l.b16 %v3717
  %v4246 = vunpack.c.h.b16 %v3717
  %v4247 = vunpack.c.l.b16 %v3718
  %v4248 = vunpack.c.h.b16 %v3718
  %v4249 = vunpack.c.l.b16 %v3719
  %v4250 = vunpack.c.h.b16 %v3719
  %v4251 = vunpack.c.l.b16 %v3720
  %v4252 = vunpack.c.h.b16 %v3720
  %v4253 = vunpack.c.l.b16 %v3721
  %v4254 = vunpack.c.h.b16 %v3721
  %v4255 = vunpack.c.l.b16 %v3722
  %v4256 = vunpack.c.h.b16 %v3722
  %v4257 = vunpack.c.l.b16 %v3723
  %v4258 = vunpack.c.h.b16 %v3723
  %v4259 = vunpack.c.l.b16 %v3724
  %v4260 = vunpack.c.h.b16 %v3724
  %v4261 = vunpack.c.l.b16 %v3725
  %v4262 = vunpack.c.h.b16 %v3725
  %v4263 = vunpack.c.l.b16 %v3726
  %v4264 = vunpack.c.h.b16 %v3726
  %v4265 = vunpack.c.l.b16 %v3727
  %v4266 = vunpack.c.h.b16 %v3727
  %v4267 = vunpack.c.l.b16 %v3728
  %v4268 = vunpack.c.h.b16 %v3728
  %v4269 = vunpack.c.l.b16 %v3729
  %v4270 = vunpack.c.h.b16 %v3729
  %v4271 = vunpack.c.l.b16 %v3730
  %v4272 = vunpack.c.h.b16 %v3730
  %v4273 = vunpack.c.l.b16 %v3731
  %v4274 = vunpack.c.h.b16 %v3731
  %v4275 = vunpack.c.l.b16 %v3732
  %v4276 = vunpack.c.h.b16 %v3732
  %v4277 = vunpack.c.l.b16 %v3733
  %v4278 = vunpack.c.h.b16 %v3733
  %v4279 = vunpack.c.l.b16 %v3734
  %v4280 = vunpack.c.h.b16 %v3734
  %v4281 = vunpack.c.l.b16 %v3735
  %v4282 = vunpack.c.h.b16 %v3735
  %v4283 = vunpack.c.l.b16 %v3736
  %v4284 = vunpack.c.h.b16 %v3736
  %v4285 = vunpack.c.l.b16 %v3737
  %v4286 = vunpack.c.h.b16 %v3737
  %v4287 = vunpack.c.l.b16 %v3738
  %v4288 = vunpack.c.h.b16 %v3738
  %v4289 = vunpack.c.l.b16 %v3739
  %v4290 = vunpack.c.h.b16 %v3739
  %v4291 = vunpack.c.l.b16 %v3740
  %v4292 = vunpack.c.h.b16 %v3740
  %v4293 = vunpack.c.l.b16 %v3741
  %v4294 = vunpack.c.h.b16 %v3741
  %v4295 = vunpack.c.l.b16 %v3742
  %v4296 = vunpack.c.h.b16 %v3742
  %v4297 = vunpack.c.l.b16 %v3743
  %v4298 = vunpack.c.h.b16 %v3743
  %v4299 = vunpack.c.l.b16 %v3744
  %v4300 = vunpack.c.h.b16 %v3744
  %v4301 = vunpack.c.l.b16 %v3745
  %v4302 = vunpack.c.h.b16 %v3745
  %v4303 = vunpack.c.l.b16 %v3746
  %v4304 = vunpack.c.h.b16 %v3746
  %v4305 = vunpack.c.l.b16 %v3747
  %v4306 = vunpack.c.h.b16 %v3747
  %v4307 = vunpack.c.l.b16 %v3748
  %v4308 = vunpack.c.h.b16 %v3748
  %v4309 = vunpack.c.l.b16 %v3749
  %v4310 = vunpack.c.h.b16 %v3749
  %v4311 = vunpack.c.l.b16 %v3750
  %v4312 = vunpack.c.h.b16 %v3750
  %v4313 = vunpack.c.l.b16 %v3751
  %v4314 = vunpack.c.h.b16 %v3751
  %v4315 = vunpack.c.l.b16 %v3752
  %v4316 = vunpack.c.h.b16 %v3752
  %v4317 = vunpack.c.l.b16 %v3753
  %v4318 = vunpack.c.h.b16 %v3753
  %v4319 = vunpack.c.l.b16 %v3754
  %v4320 = vunpack.c.h.b16 %v3754
  %v4321 = vunpack.c.l.b16 %v3755
  %v4322 = vunpack.c.h.b16 %v3755
  %v4323 = vunpack.c.l.b16 %v3756
  %v4324 = vunpack.c.h.b16 %v3756
  %v4325 = vunpack.c.l.b16 %v3757
  %v4326 = vunpack.c.h.b16 %v3757
  %v4327 = vunpack.c.l.b16 %v3758
  %v4328 = vunpack.c.h.b16 %v3758
  %v4329 = vunpack.c.l.b16 %v3759
  %v4330 = vunpack.c.h.b16 %v3759
  %v4331 = vunpack.c.l.b16 %v3760
  %v4332 = vunpack.c.h.b16 %v3760
  %v4333 = vunpack.c.l.b16 %v3761
  %v4334 = vunpack.c.h.b16 %v3761
  %v4335 = vunpack.c.l.b16 %v3762
  %v4336 = vunpack.c.h.b16 %v3762
  %v4337 = vunpack.c.l.b16 %v3763
  %v4338 = vunpack.c.h.b16 %v3763
  %v4339 = vunpack.c.l.b16 %v3764
  %v4340 = vunpack.c.h.b16 %v3764
  %v4341 = vunpack.c.l.b16 %v3765
  %v4342 = vunpack.c.h.b16 %v3765
  %v4343 = vunpack.c.l.b16 %v3766
  %v4344 = vunpack.c.h.b16 %v3766
  %v4345 = vunpack.c.l.b16 %v3767
  %v4346 = vunpack.c.h.b16 %v3767
  %v4347 = vunpack.c.l.b16 %v3768
  %v4348 = vunpack.c.h.b16 %v3768
  %v4349 = vunpack.c.l.b16 %v3769
  %v4350 = vunpack.c.h.b16 %v3769
  %v4351 = vunpack.c.l.b16 %v3770
  %v4352 = vunpack.c.h.b16 %v3770
  %v4353 = vunpack.c.l.b16 %v3771
  %v4354 = vunpack.c.h.b16 %v3771
  %v4355 = vunpack.c.l.b16 %v3772
  %v4356 = vunpack.c.h.b16 %v3772
  %v4357 = vunpack.c.l.b16 %v3773
  %v4358 = vunpack.c.h.b16 %v3773
  %v4359 = vunpack.c.l.b16 %v3774
  %v4360 = vunpack.c.h.b16 %v3774
  %v4361 = vunpack.c.l.b16 %v3775
  %v4362 = vunpack.c.h.b16 %v3775
  %v4363 = vunpack.c.l.b16 %v3776
  %v4364 = vunpack.c.h.b16 %v3776
  %v4365 = vunpack.c.l.b16 %v3777
  %v4366 = vunpack.c.h.b16 %v3777
  %v4367 = vunpack.c.l.b16 %v3778
  %v4368 = vunpack.c.h.b16 %v3778
  %v4369 = vunpack.c.l.b16 %v3779
  %v4370 = vunpack.c.h.b16 %v3779
  %v4371 = vunpack.c.l.b16 %v3780
  %v4372 = vunpack.c.h.b16 %v3780
  %v4373 = vunpack.c.l.b16 %v3781
  %v4374 = vunpack.c.h.b16 %v3781
  %v4375 = vunpack.c.l.b16 %v3782
  %v4376 = vunpack.c.h.b16 %v3782
  %v4377 = vunpack.c.l.b16 %v3783
  %v4378 = vunpack.c.h.b16 %v3783
  %v4379 = vunpack.c.l.b16 %v3784
  %v4380 = vunpack.c.h.b16 %v3784
  %v4381 = vunpack.c.l.b16 %v3785
  %v4382 = vunpack.c.h.b16 %v3785
  %v4383 = vunpack.c.l.b16 %v3786
  %v4384 = vunpack.c.h.b16 %v3786
  %v4385 = vunpack.c.l.b16 %v3787
  %v4386 = vunpack.c.h.b16 %v3787
  %v4387 = vunpack.c.l.b16 %v3788
  %v4388 = vunpack.c.h.b16 %v3788
  %v4389 = vunpack.c.l.b16 %v3789
  %v4390 = vunpack.c.h.b16 %v3789
  %v4391 = vunpack.c.l.b16 %v3790
  %v4392 = vunpack.c.h.b16 %v3790
  %v4393 = vunpack.c.l.b16 %v3791
  %v4394 = vunpack.c.h.b16 %v3791
  %v4395 = vunpack.c.l.b16 %v3792
  %v4396 = vunpack.c.h.b16 %v3792
  %v4397 = vunpack.c.l.b16 %v3793
  %v4398 = vunpack.c.h.b16 %v3793
  %v4399 = vunpack.c.l.b16 %v3794
  %v4400 = vunpack.c.h.b16 %v3794
  %v4401 = vunpack.c.l.b16 %v3795
  %v4402 = vunpack.c.h.b16 %v3795
  %v4403 = vunpack.c.l.b16 %v3796
  %v4404 = vunpack.c.h.b16 %v3796
  %v4405 = vunpack.c.l.b16 %v3797
  %v4406 = vunpack.c.h.b16 %v3797
  %v4407 = vunpack.c.l.b16 %v3798
  %v4408 = vunpack.c.h.b16 %v3798
  %v4409 = vunpack.c.l.b16 %v3799
  %v4410 = vunpack.c.h.b16 %v3799
  %v4411 = vunpack.c.l.b16 %v3800
  %v4412 = vunpack.c.h.b16 %v3800
  %v4413 = vunpack.c.l.b16 %v3801
  %v4414 = vunpack.c.h.b16 %v3801
  %v4415 = vunpack.c.l.b16 %v3802
  %v4416 = vunpack.c.h.b16 %v3802
  %v4417 = vunpack.c.l.b16 %v3803
  %v4418 = vunpack.c.h.b16 %v3803
  %v4419 = vunpack.c.l.b16 %v3804
  %v4420 = vunpack.c.h.b16 %v3804
  %v4421 = vunpack.c.l.b16 %v3805
  %v4422 = vunpack.c.h.b16 %v3805
  %v4423 = vunpack.c.l.b16 %v3806
  %v4424 = vunpack.c.h.b16 %v3806
  %v4425 = vunpack.c.l.b16 %v3807
  %v4426 = vunpack.c.h.b16 %v3807
  %v4427 = vunpack.c.l.b16 %v3808
  %v4428 = vunpack.c.h.b16 %v3808
  %v4429 = vunpack.c.l.b16 %v3809
  %v4430 = vunpack.c.h.b16 %v3809
  %v4431 = vunpack.c.l.b16 %v3810
  %v4432 = vunpack.c.h.b16 %v3810
  %v4433 = vunpack.c.l.b16 %v3811
  %v4434 = vunpack.c.h.b16 %v3811
  %v4435 = vunpack.c.l.b16 %v3812
  %v4436 = vunpack.c.h.b16 %v3812
  %v4437 = vunpack.c.l.b16 %v3813
  %v4438 = vunpack.c.h.b16 %v3813
  %v4439 = vunpack.c.l.b16 %v3814
  %v4440 = vunpack.c.h.b16 %v3814
  %v4441 = vunpack.c.l.b16 %v3815
  %v4442 = vunpack.c.h.b16 %v3815
  %v4443 = vunpack.c.l.b16 %v3816
  %v4444 = vunpack.c.h.b16 %v3816
  %v4445 = vunpack.c.l.b16 %v3817
  %v4446 = vunpack.c.h.b16 %v3817
  %v4447 = vunpack.c.l.b16 %v3818
  %v4448 = vunpack.c.h.b16 %v3818
  %v4449 = vunpack.c.l.b16 %v3819
  %v4450 = vunpack.c.h.b16 %v3819
  %v4451 = vunpack.c.l.b16 %v3820
  %v4452 = vunpack.c.h.b16 %v3820
  %v4453 = vunpack.c.l.b16 %v3821
  %v4454 = vunpack.c.h.b16 %v3821
  %v4455 = vunpack.c.l.b16 %v3822
  %v4456 = vunpack.c.h.b16 %v3822
  %v4457 = vunpack.c.l.b16 %v3823
  %v4458 = vunpack.c.h.b16 %v3823
  %v4459 = vunpack.c.l.b16 %v3824
  %v4460 = vunpack.c.h.b16 %v3824
  %v4461 = vunpack.c.l.b16 %v3825
  %v4462 = vunpack.c.h.b16 %v3825
  %v4463 = vunpack.c.l.b16 %v3826
  %v4464 = vunpack.c.h.b16 %v3826
  %v4465 = vunpack.c.l.b16 %v3827
  %v4466 = vunpack.c.h.b16 %v3827
  %v4467 = vunpack.c.l.b16 %v3828
  %v4468 = vunpack.c.h.b16 %v3828
  %v4469 = vunpack.c.l.b16 %v3829
  %v4470 = vunpack.c.h.b16 %v3829
  %v4471 = vunpack.c.l.b16 %v3830
  %v4472 = vunpack.c.h.b16 %v3830
  %v4473 = vunpack.c.l.b16 %v3831
  %v4474 = vunpack.c.h.b16 %v3831
  %v4475 = vunpack.c.l.b16 %v3832
  %v4476 = vunpack.c.h.b16 %v3832
  %v4477 = vunpack.c.l.b16 %v3833
  %v4478 = vunpack.c.h.b16 %v3833
  %v4479 = vunpack.c.l.b16 %v3834
  %v4480 = vunpack.c.h.b16 %v3834
  %v4481 = vunpack.c.l.b16 %v3835
  %v4482 = vunpack.c.h.b16 %v3835
  %v4483 = vunpack.c.l.b16 %v3836
  %v4484 = vunpack.c.h.b16 %v3836
  %v4485 = vunpack.c.l.b16 %v3837
  %v4486 = vunpack.c.h.b16 %v3837
  %v4487 = vunpack.c.l.b16 %v3838
  %v4488 = vunpack.c.h.b16 %v3838
  %v4489 = vunpack.c.l.b16 %v3839
  %v4490 = vunpack.c.h.b16 %v3839
  %v4491 = vunpack.c.l.b16 %v3840
  %v4492 = vunpack.c.h.b16 %v3840
  %v4493 = vpack.c.b16 %v4253, %v4237
  %v4494 = vpack.c.b16 %v4254, %v4238
  %v4495 = vpack.c.b16 %v4255, %v4239
  %v4496 = vpack.c.b16 %v4256, %v4240
  %v4497 = vpack.c.b16 %v4257, %v4241
  %v4498 = vpack.c.b16 %v4258, %v4242
  %v4499 = vpack.c.b16 %v4259, %v4243
  %v4500 = vpack.c.b16 %v4260, %v4244
  %v4501 = vpack.c.b16 %v4261, %v4245
  %v4502 = vpack.c.b16 %v4262, %v4246
  %v4503 = vpack.c.b16 %v4263, %v4247
  %v4504 = vpack.c.b16 %v4264, %v4248
  %v4505 = vpack.c.b16 %v4265, %v4249
  %v4506 = vpack.c.b16 %v4266, %v4250
  %v4507 = vpack.c.b16 %v4267, %v4251
  %v4508 = vpack.c.b16 %v4268, %v4252
  %v4509 = vpack.c.b16 %v4285, %v4269
  %v4510 = vpack.c.b16 %v4286, %v4270
  %v4511 = vpack.c.b16 %v4287, %v4271
  %v4512 = vpack.c.b16 %v4288, %v4272
  %v4513 = vpack.c.b16 %v4289, %v4273
  %v4514 = vpack.c.b16 %v4290, %v4274
  %v4515 = vpack.c.b16 %v4291, %v4275
  %v4516 = vpack.c.b16 %v4292, %v4276
  %v4517 = vpack.c.b16 %v4293, %v4277
  %v4518 = vpack.c.b16 %v4294, %v4278
  %v4519 = vpack.c.b16 %v4295, %v4279
  %v4520 = vpack.c.b16 %v4296, %v4280
  %v4521 = vpack.c.b16 %v4297, %v4281
  %v4522 = vpack.c.b16 %v4298, %v4282
  %v4523 = vpack.c.b16 %v4299, %v4283
  %v4524 = vpack.c.b16 %v4300, %v4284
  %v4525 = vpack.c.b16 %v4317, %v4301
  %v4526 = vpack.c.b16 %v4318, %v4302
  %v4527 = vpack.c.b16 %v4319, %v4303
  %v4528 = vpack.c.b16 %v4320, %v4304
  %v4529 = vpack.c.b16 %v4321, %v4305
  %v4530 = vpack.c.b16 %v4322, %v4306
  %v4531 = vpack.c.b16 %v4323, %v4307
  %v4532 = vpack.c.b16 %v4324, %v4308
  %v4533 = vpack.c.b16 %v4325, %v4309
  %v4534 = vpack.c.b16 %v4326, %v4310
  %v4535 = vpack.c.b16 %v4327, %v4311
  %v4536 = vpack.c.b16 %v4328, %v4312
  %v4537 = vpack.c.b16 %v4329, %v4313
  %v4538 = vpack.c.b16 %v4330, %v4314
  %v4539 = vpack.c.b16 %v4331, %v4315
  %v4540 = vpack.c.b16 %v4332, %v4316
  %v4541 = vpack.c.b16 %v4349, %v4333
  %v4542 = vpack.c.b16 %v4350, %v4334
  %v4543 = vpack.c.b16 %v4351, %v4335
  %v4544 = vpack.c.b16 %v4352, %v4336
  %v4545 = vpack.c.b16 %v4353, %v4337
  %v4546 = vpack.c.b16 %v4354, %v4338
  %v4547 = vpack.c.b16 %v4355, %v4339
  %v4548 = vpack.c.b16 %v4356, %v4340
  %v4549 = vpack.c.b16 %v4357, %v4341
  %v4550 = vpack.c.b16 %v4358, %v4342
  %v4551 = vpack.c.b16 %v4359, %v4343
  %v4552 = vpack.c.b16 %v4360, %v4344
  %v4553 = vpack.c.b16 %v4361, %v4345
  %v4554 = vpack.c.b16 %v4362, %v4346
  %v4555 = vpack.c.b16 %v4363, %v4347
  %v4556 = vpack.c.b16 %v4364, %v4348
  %v4557 = vpack.c.b16 %v4381, %v4365
  %v4558 = vpack.c.b16 %v4382, %v4366
  %v4559 = vpack.c.b16 %v4383, %v4367
  %v4560 = vpack.c.b16 %v4384, %v4368
  %v4561 = vpack.c.b16 %v4385, %v4369
  %v4562 = vpack.c.b16 %v4386, %v4370
  %v4563 = vpack.c.b16 %v4387, %v4371
  %v4564 = vpack.c.b16 %v4388, %v4372
  %v4565 = vpack.c.b16 %v4389, %v4373
  %v4566 = vpack.c.b16 %v4390, %v4374
  %v4567 = vpack.c.b16 %v4391, %v4375
  %v4568 = vpack.c.b16 %v4392, %v4376
  %v4569 = vpack.c.b16 %v4393, %v4377
  %v4570 = vpack.c.b16 %v4394, %v4378
  %v4571 = vpack.c.b16 %v4395, %v4379
  %v4572 = vpack.c.b16 %v4396, %v4380
  %v4573 = vpack.c.b16 %v4413, %v4397
  %v4574 = vpack.c.b16 %v4414, %v4398
  %v4575 = vpack.c.b16 %v4415, %v4399
  %v4576 = vpack.c.b16 %v4416, %v4400
  %v4577 = vpack.c.b16 %v4417, %v4401
  %v4578 = vpack.c.b16 %v4418, %v4402
  %v4579 = vpack.c.b16 %v4419, %v4403
  %v4580 = vpack.c.b16 %v4420, %v4404
  %v4581 = vpack.c.b16 %v4421, %v4405
  %v4582 = vpack.c.b16 %v4422, %v4406
  %v4583 = vpack.c.b16 %v4423, %v4407
  %v4584 = vpack.c.b16 %v4424, %v4408
  %v4585 = vpack.c.b16 %v4425, %v4409
  %v4586 = vpack.c.b16 %v4426, %v4410
  %v4587 = vpack.c.b16 %v4427, %v4411
  %v4588 = vpack.c.b16 %v4428, %v4412
  %v4589 = vpack.c.b16 %v4445, %v4429
  %v4590 = vpack.c.b16 %v4446, %v4430
  %v4591 = vpack.c.b16 %v4447, %v4431
  %v4592 = vpack.c.b16 %v4448, %v4432
  %v4593 = vpack.c.b16 %v4449, %v4433
  %v4594 = vpack.c.b16 %v4450, %v4434
  %v4595 = vpack.c.b16 %v4451, %v4435
  %v4596 = vpack.c.b16 %v4452, %v4436
  %v4597 = vpack.c.b16 %v4453, %v4437
  %v4598 = vpack.c.b16 %v4454, %v4438
  %v4599 = vpack.c.b16 %v4455, %v4439
  %v4600 = vpack.c.b16 %v4456, %v4440
  %v4601 = vpack.c.b16 %v4457, %v4441
  %v4602 = vpack.c.b16 %v4458, %v4442
  %v4603 = vpack.c.b16 %v4459, %v4443
  %v4604 = vpack.c.b16 %v4460, %v4444
  %v4605 = vpack.c.b16 %v4477, %v4461
  %v4606 = vpack.c.b16 %v4478, %v4462
  %v4607 = vpack.c.b16 %v4479, %v4463
  %v4608 = vpack.c.b16 %v4480, %v4464
  %v4609 = vpack.c.b16 %v4481, %v4465
  %v4610 = vpack.c.b16 %v4482, %v4466
  %v4611 = vpack.c.b16 %v4483, %v4467
  %v4612 = vpack.c.b16 %v4484, %v4468
  %v4613 = vpack.c.b16 %v4485, %v4469
  %v4614 = vpack.c.b16 %v4486, %v4470
  %v4615 = vpack.c.b16 %v4487, %v4471
  %v4616 = vpack.c.b16 %v4488, %v4472
  %v4617 = vpack.c.b16 %v4489, %v4473
  %v4618 = vpack.c.b16 %v4490, %v4474
  %v4619 = vpack.c.b16 %v4491, %v4475
  %v4620 = vpack.c.b16 %v4492, %v4476
  %v5005 = vunpack.c.l.b16 %v3841
  %v5006 = vunpack.c.h.b16 %v3841
  %v5007 = vunpack.c.l.b16 %v3842
  %v5008 = vunpack.c.h.b16 %v3842
  %v5009 = vunpack.c.l.b16 %v3843
  %v5010 = vunpack.c.h.b16 %v3843
  %v5011 = vunpack.c.l.b16 %v3844
  %v5012 = vunpack.c.h.b16 %v3844
  %v5013 = vunpack.c.l.b16 %v3845
  %v5014 = vunpack.c.h.b16 %v3845
  %v5015 = vunpack.c.l.b16 %v3846
  %v5016 = vunpack.c.h.b16 %v3846
  %v5017 = vunpack.c.l.b16 %v3847
  %v5018 = vunpack.c.h.b16 %v3847
  %v5019 = vunpack.c.l.b16 %v3848
  %v5020 = vunpack.c.h.b16 %v3848
  %v5021 = vunpack.c.l.b16 %v3849
  %v5022 = vunpack.c.h.b16 %v3849
  %v5023 = vunpack.c.l.b16 %v3850
  %v5024 = vunpack.c.h.b16 %v3850
  %v5025 = vunpack.c.l.b16 %v3851
  %v5026 = vunpack.c.h.b16 %v3851
  %v5027 = vunpack.c.l.b16 %v3852
  %v5028 = vunpack.c.h.b16 %v3852
  %v5029 = vunpack.c.l.b16 %v3853
  %v5030 = vunpack.c.h.b16 %v3853
  %v5031 = vunpack.c.l.b16 %v3854
  %v5032 = vunpack.c.h.b16 %v3854
  %v5033 = vunpack.c.l.b16 %v3855
  %v5034 = vunpack.c.h.b16 %v3855
  %v5035 = vunpack.c.l.b16 %v3856
  %v5036 = vunpack.c.h.b16 %v3856
  %v5037 = vunpack.c.l.b16 %v3857
  %v5038 = vunpack.c.h.b16 %v3857
  %v5039 = vunpack.c.l.b16 %v3858
  %v5040 = vunpack.c.h.b16 %v3858
  %v5041 = vunpack.c.l.b16 %v3859
  %v5042 = vunpack.c.h.b16 %v3859
  %v5043 = vunpack.c.l.b16 %v3860
  %v5044 = vunpack.c.h.b16 %v3860
  %v5045 = vunpack.c.l.b16 %v3861
  %v5046 = vunpack.c.h.b16 %v3861
  %v5047 = vunpack.c.l.b16 %v3862
  %v5048 = vunpack.c.h.b16 %v3862
  %v5049 = vunpack.c.l.b16 %v3863
  %v5050 = vunpack.c.h.b16 %v3863
  %v5051 = vunpack.c.l.b16 %v3864
  %v5052 = vunpack.c.h.b16 %v3864
  %v5053 = vunpack.c.l.b16 %v3865
  %v5054 = vunpack.c.h.b16 %v3865
  %v5055 = vunpack.c.l.b16 %v3866
  %v5056 = vunpack.c.h.b16 %v3866
  %v5057 = vunpack.c.l.b16 %v3867
  %v5058 = vunpack.c.h.b16 %v3867
  %v5059 = vunpack.c.l.b16 %v3868
  %v5060 = vunpack.c.h.b16 %v3868
  %v5061 = vunpack.c.l.b16 %v3869
  %v5062 = vunpack.c.h.b16 %v3869
  %v5063 = vunpack.c.l.b16 %v3870
  %v5064 = vunpack.c.h.b16 %v3870
  %v5065 = vunpack.c.l.b16 %v3871
  %v5066 = vunpack.c.h.b16 %v3871
  %v5067 = vunpack.c.l.b16 %v3872
  %v5068 = vunpack.c.h.b16 %v3872
  %v5069 = vunpack.c.l.b16 %v3873
  %v5070 = vunpack.c.h.b16 %v3873
  %v5071 = vunpack.c.l.b16 %v3874
  %v5072 = vunpack.c.h.b16 %v3874
  %v5073 = vunpack.c.l.b16 %v3875
  %v5074 = vunpack.c.h.b16 %v3875
  %v5075 = vunpack.c.l.b16 %v3876
  %v5076 = vunpack.c.h.b16 %v3876
  %v5077 = vunpack.c.l.b16 %v3877
  %v5078 = vunpack.c.h.b16 %v3877
  %v5079 = vunpack.c.l.b16 %v3878
  %v5080 = vunpack.c.h.b16 %v3878
  %v5081 = vunpack.c.l.b16 %v3879
  %v5082 = vunpack.c.h.b16 %v3879
  %v5083 = vunpack.c.l.b16 %v3880
  %v5084 = vunpack.c.h.b16 %v3880
  %v5085 = vunpack.c.l.b16 %v3881
  %v5086 = vunpack.c.h.b16 %v3881
  %v5087 = vunpack.c.l.b16 %v3882
  %v5088 = vunpack.c.h.b16 %v3882
  %v5089 = vunpack.c.l.b16 %v3883
  %v5090 = vunpack.c.h.b16 %v3883
  %v5091 = vunpack.c.l.b16 %v3884
  %v5092 = vunpack.c.h.b16 %v3884
  %v5093 = vunpack.c.l.b16 %v3885
  %v5094 = vunpack.c.h.b16 %v3885
  %v5095 = vunpack.c.l.b16 %v3886
  %v5096 = vunpack.c.h.b16 %v3886
  %v5097 = vunpack.c.l.b16 %v3887
  %v5098 = vunpack.c.h.b16 %v3887
  %v5099 = vunpack.c.l.b16 %v3888
  %v5100 = vunpack.c.h.b16 %v3888
  %v5101 = vunpack.c.l.b16 %v3889
  %v5102 = vunpack.c.h.b16 %v3889
  %v5103 = vunpack.c.l.b16 %v3890
  %v5104 = vunpack.c.h.b16 %v3890
  %v5105 = vunpack.c.l.b16 %v3891
  %v5106 = vunpack.c.h.b16 %v3891
  %v5107 = vunpack.c.l.b16 %v3892
  %v5108 = vunpack.c.h.b16 %v3892
  %v5109 = vunpack.c.l.b16 %v3893
  %v5110 = vunpack.c.h.b16 %v3893
  %v5111 = vunpack.c.l.b16 %v3894
  %v5112 = vunpack.c.h.b16 %v3894
  %v5113 = vunpack.c.l.b16 %v3895
  %v5114 = vunpack.c.h.b16 %v3895
  %v5115 = vunpack.c.l.b16 %v3896
  %v5116 = vunpack.c.h.b16 %v3896
  %v5117 = vunpack.c.l.b16 %v3897
  %v5118 = vunpack.c.h.b16 %v3897
  %v5119 = vunpack.c.l.b16 %v3898
  %v5120 = vunpack.c.h.b16 %v3898
  %v5121 = vunpack.c.l.b16 %v3899
  %v5122 = vunpack.c.h.b16 %v3899
  %v5123 = vunpack.c.l.b16 %v3900
  %v5124 = vunpack.c.h.b16 %v3900
  %v5125 = vunpack.c.l.b16 %v3901
  %v5126 = vunpack.c.h.b16 %v3901
  %v5127 = vunpack.c.l.b16 %v3902
  %v5128 = vunpack.c.h.b16 %v3902
  %v5129 = vunpack.c.l.b16 %v3903
  %v5130 = vunpack.c.h.b16 %v3903
  %v5131 = vunpack.c.l.b16 %v3904
  %v5132 = vunpack.c.h.b16 %v3904
  %v5133 = vunpack.c.l.b16 %v3905
  %v5134 = vunpack.c.h.b16 %v3905
  %v5135 = vunpack.c.l.b16 %v3906
  %v5136 = vunpack.c.h.b16 %v3906
  %v5137 = vunpack.c.l.b16 %v3907
  %v5138 = vunpack.c.h.b16 %v3907
  %v5139 = vunpack.c.l.b16 %v3908
  %v5140 = vunpack.c.h.b16 %v3908
  %v5141 = vunpack.c.l.b16 %v3909
  %v5142 = vunpack.c.h.b16 %v3909
  %v5143 = vunpack.c.l.b16 %v3910
  %v5144 = vunpack.c.h.b16 %v3910
  %v5145 = vunpack.c.l.b16 %v3911
  %v5146 = vunpack.c.h.b16 %v3911
  %v5147 = vunpack.c.l.b16 %v3912
  %v5148 = vunpack.c.h.b16 %v3912
  %v5149 = vunpack.c.l.b16 %v3913
  %v5150 = vunpack.c.h.b16 %v3913
  %v5151 = vunpack.c.l.b16 %v3914
  %v5152 = vunpack.c.h.b16 %v3914
  %v5153 = vunpack.c.l.b16 %v3915
  %v5154 = vunpack.c.h.b16 %v3915
  %v5155 = vunpack.c.l.b16 %v3916
  %v5156 = vunpack.c.h.b16 %v3916
  %v5157 = vunpack.c.l.b16 %v3917
  %v5158 = vunpack.c.h.b16 %v3917
  %v5159 = vunpack.c.l.b16 %v3918
  %v5160 = vunpack.c.h.b16 %v3918
  %v5161 = vunpack.c.l.b16 %v3919
  %v5162 = vunpack.c.h.b16 %v3919
  %v5163 = vunpack.c.l.b16 %v3920
  %v5164 = vunpack.c.h.b16 %v3920
  %v5165 = vunpack.c.l.b16 %v3921
  %v5166 = vunpack.c.h.b16 %v3921
  %v5167 = vunpack.c.l.b16 %v3922
  %v5168 = vunpack.c.h.b16 %v3922
  %v5169 = vunpack.c.l.b16 %v3923
  %v5170 = vunpack.c.h.b16 %v3923
  %v5171 = vunpack.c.l.b16 %v3924
  %v5172 = vunpack.c.h.b16 %v3924
  %v5173 = vunpack.c.l.b16 %v3925
  %v5174 = vunpack.c.h.b16 %v3925
  %v5175 = vunpack.c.l.b16 %v3926
  %v5176 = vunpack.c.h.b16 %v3926
  %v5177 = vunpack.c.l.b16 %v3927
  %v5178 = vunpack.c.h.b16 %v3927
  %v5179 = vunpack.c.l.b16 %v3928
  %v5180 = vunpack.c.h.b16 %v3928
  %v5181 = vunpack.c.l.b16 %v3929
  %v5182 = vunpack.c.h.b16 %v3929
  %v5183 = vunpack.c.l.b16 %v3930
  %v5184 = vunpack.c.h.b16 %v3930
  %v5185 = vunpack.c.l.b16 %v3931
  %v5186 = vunpack.c.h.b16 %v3931
  %v5187 = vunpack.c.l.b16 %v3932
  %v5188 = vunpack.c.h.b16 %v3932
  %v5189 = vunpack.c.l.b16 %v3933
  %v5190 = vunpack.c.h.b16 %v3933
  %v5191 = vunpack.c.l.b16 %v3934
  %v5192 = vunpack.c.h.b16 %v3934
  %v5193 = vunpack.c.l.b16 %v3935
  %v5194 = vunpack.c.h.b16 %v3935
  %v5195 = vunpack.c.l.b16 %v3936
  %v5196 = vunpack.c.h.b16 %v3936
  %v5197 = vunpack.c.l.b16 %v3937
  %v5198 = vunpack.c.h.b16 %v3937
  %v5199 = vunpack.c.l.b16 %v3938
  %v5200 = vunpack.c.h.b16 %v3938
  %v5201 = vunpack.c.l.b16 %v3939
  %v5202 = vunpack.c.h.b16 %v3939
  %v5203 = vunpack.c.l.b16 %v3940
  %v5204 = vunpack.c.h.b16 %v3940
  %v5205 = vunpack.c.l.b16 %v3941
  %v5206 = vunpack.c.h.b16 %v3941
  %v5207 = vunpack.c.l.b16 %v3942
  %v5208 = vunpack.c.h.b16 %v3942
  %v5209 = vunpack.c.l.b16 %v3943
  %v5210 = vunpack.c.h.b16 %v3943
  %v5211 = vunpack.c.l.b16 %v3944
  %v5212 = vunpack.c.h.b16 %v3944
  %v5213 = vunpack.c.l.b16 %v3945
  %v5214 = vunpack.c.h.b16 %v3945
  %v5215 = vunpack.c.l.b16 %v3946
  %v5216 = vunpack.c.h.b16 %v3946
  %v5217 = vunpack.c.l.b16 %v3947
  %v5218 = vunpack.c.h.b16 %v3947
  %v5219 = vunpack.c.l.b16 %v3948
  %v5220 = vunpack.c.h.b16 %v3948
  %v5221 = vunpack.c.l.b16 %v3949
  %v5222 = vunpack.c.h.b16 %v3949
  %v5223 = vunpack.c.l.b16 %v3950
  %v5224 = vunpack.c.h.b16 %v3950
  %v5225 = vunpack.c.l.b16 %v3951
  %v5226 = vunpack.c.h.b16 %v3951
  %v5227 = vunpack.c.l.b16 %v3952
  %v5228 = vunpack.c.h.b16 %v3952
  %v5229 = vunpack.c.l.b16 %v3953
  %v5230 = vunpack.c.h.b16 %v3953
  %v5231 = vunpack.c.l.b16 %v3954
  %v5232 = vunpack.c.h.b16 %v3954
  %v5233 = vunpack.c.l.b16 %v3955
  %v5234 = vunpack.c.h.b16 %v3955
  %v5235 = vunpack.c.l.b16 %v3956
  %v5236 = vunpack.c.h.b16 %v3956
  %v5237 = vunpack.c.l.b16 %v3957
  %v5238 = vunpack.c.h.b16 %v3957
  %v5239 = vunpack.c.l.b16 %v3958
  %v5240 = vunpack.c.h.b16 %v3958
  %v5241 = vunpack.c.l.b16 %v3959
  %v5242 = vunpack.c.h.b16 %v3959
  %v5243 = vunpack.c.l.b16 %v3960
  %v5244 = vunpack.c.h.b16 %v3960
  %v5245 = vunpack.c.l.b16 %v3961
  %v5246 = vunpack.c.h.b16 %v3961
  %v5247 = vunpack.c.l.b16 %v3962
  %v5248 = vunpack.c.h.b16 %v3962
  %v5249 = vunpack.c.l.b16 %v3963
  %v5250 = vunpack.c.h.b16 %v3963
  %v5251 = vunpack.c.l.b16 %v3964
  %v5252 = vunpack.c.h.b16 %v3964
  %v5253 = vunpack.c.l.b16 %v3965
  %v5254 = vunpack.c.h.b16 %v3965
  %v5255 = vunpack.c.l.b16 %v3966
  %v5256 = vunpack.c.h.b16 %v3966
  %v5257 = vunpack.c.l.b16 %v3967
  %v5258 = vunpack.c.h.b16 %v3967
  %v5259 = vunpack.c.l.b16 %v3968
  %v5260 = vunpack.c.h.b16 %v3968
  %v5261 = vunpack.c.l.b16 %v3969
  %v5262 = vunpack.c.h.b16 %v3969
  %v5263 = vunpack.c.l.b16 %v3970
  %v5264 = vunpack.c.h.b16 %v3970
  %v5265 = vunpack.c.l.b16 %v3971
  %v5266 = vunpack.c.h.b16 %v3971
  %v5267 = vunpack.c.l.b16 %v3972
  %v5268 = vunpack.c.h.b16 %v3972
  %v5269 = vunpack.c.l.b16 %v3973
  %v5270 = vunpack.c.h.b16 %v3973
  %v5271 = vunpack.c.l.b16 %v3974
  %v5272 = vunpack.c.h.b16 %v3974
  %v5273 = vunpack.c.l.b16 %v3975
  %v5274 = vunpack.c.h.b16 %v3975
  %v5275 = vunpack.c.l.b16 %v3976
  %v5276 = vunpack.c.h.b16 %v3976
  %v5277 = vunpack.c.l.b16 %v3977
  %v5278 = vunpack.c.h.b16 %v3977
  %v5279 = vunpack.c.l.b16 %v3978
  %v5280 = vunpack.c.h.b16 %v3978
  %v5281 = vunpack.c.l.b16 %v3979
  %v5282 = vunpack.c.h.b16 %v3979
  %v5283 = vunpack.c.l.b16 %v3980
  %v5284 = vunpack.c.h.b16 %v3980
  %v5285 = vunpack.c.l.b16 %v3981
  %v5286 = vunpack.c.h.b16 %v3981
  %v5287 = vunpack.c.l.b16 %v3982
  %v5288 = vunpack.c.h.b16 %v3982
  %v5289 = vunpack.c.l.b16 %v3983
  %v5290 = vunpack.c.h.b16 %v3983
  %v5291 = vunpack.c.l.b16 %v3984
  %v5292 = vunpack.c.h.b16 %v3984
  %v5293 = vunpack.c.l.b16 %v3985
  %v5294 = vunpack.c.h.b16 %v3985
  %v5295 = vunpack.c.l.b16 %v3986
  %v5296 = vunpack.c.h.b16 %v3986
  %v5297 = vunpack.c.l.b16 %v3987
  %v5298 = vunpack.c.h.b16 %v3987
  %v5299 = vunpack.c.l.b16 %v3988
  %v5300 = vunpack.c.h.b16 %v3988
  %v5301 = vunpack.c.l.b16 %v3989
  %v5302 = vunpack.c.h.b16 %v3989
  %v5303 = vunpack.c.l.b16 %v3990
  %v5304 = vunpack.c.h.b16 %v3990
  %v5305 = vunpack.c.l.b16 %v3991
  %v5306 = vunpack.c.h.b16 %v3991
  %v5307 = vunpack.c.l.b16 %v3992
  %v5308 = vunpack.c.h.b16 %v3992
  %v5309 = vunpack.c.l.b16 %v3993
  %v5310 = vunpack.c.h.b16 %v3993
  %v5311 = vunpack.c.l.b16 %v3994
  %v5312 = vunpack.c.h.b16 %v3994
  %v5313 = vunpack.c.l.b16 %v3995
  %v5314 = vunpack.c.h.b16 %v3995
  %v5315 = vunpack.c.l.b16 %v3996
  %v5316 = vunpack.c.h.b16 %v3996
  %v5317 = vunpack.c.l.b16 %v3997
  %v5318 = vunpack.c.h.b16 %v3997
  %v5319 = vunpack.c.l.b16 %v3998
  %v5320 = vunpack.c.h.b16 %v3998
  %v5321 = vunpack.c.l.b16 %v3999
  %v5322 = vunpack.c.h.b16 %v3999
  %v5323 = vunpack.c.l.b16 %v4000
  %v5324 = vunpack.c.h.b16 %v4000
  %v5325 = vunpack.c.l.b16 %v4001
  %v5326 = vunpack.c.h.b16 %v4001
  %v5327 = vunpack.c.l.b16 %v4002
  %v5328 = vunpack.c.h.b16 %v4002
  %v5329 = vunpack.c.l.b16 %v4003
  %v5330 = vunpack.c.h.b16 %v4003
  %v5331 = vunpack.c.l.b16 %v4004
  %v5332 = vunpack.c.h.b16 %v4004
  %v5333 = vunpack.c.l.b16 %v4005
  %v5334 = vunpack.c.h.b16 %v4005
  %v5335 = vunpack.c.l.b16 %v4006
  %v5336 = vunpack.c.h.b16 %v4006
  %v5337 = vunpack.c.l.b16 %v4007
  %v5338 = vunpack.c.h.b16 %v4007
  %v5339 = vunpack.c.l.b16 %v4008
  %v5340 = vunpack.c.h.b16 %v4008
  %v5341 = vunpack.c.l.b16 %v4009
  %v5342 = vunpack.c.h.b16 %v4009
  %v5343 = vunpack.c.l.b16 %v4010
  %v5344 = vunpack.c.h.b16 %v4010
  %v5345 = vunpack.c.l.b16 %v4011
  %v5346 = vunpack.c.h.b16 %v4011
  %v5347 = vunpack.c.l.b16 %v4012
  %v5348 = vunpack.c.h.b16 %v4012
  %v5349 = vunpack.c.l.b16 %v4013
  %v5350 = vunpack.c.h.b16 %v4013
  %v5351 = vunpack.c.l.b16 %v4014
  %v5352 = vunpack.c.h.b16 %v4014
  %v5353 = vunpack.c.l.b16 %v4015
  %v5354 = vunpack.c.h.b16 %v4015
  %v5355 = vunpack.c.l.b16 %v4016
  %v5356 = vunpack.c.h.b16 %v4016
  %v5357 = vunpack.c.l.b16 %v4017
  %v5358 = vunpack.c.h.b16 %v4017
  %v5359 = vunpack.c.l.b16 %v4018
  %v5360 = vunpack.c.h.b16 %v4018
  %v5361 = vunpack.c.l.b16 %v4019
  %v5362 = vunpack.c.h.b16 %v4019
  %v5363 = vunpack.c.l.b16 %v4020
  %v5364 = vunpack.c.h.b16 %v4020
  %v5365 = vunpack.c.l.b16 %v4021
  %v5366 = vunpack.c.h.b16 %v4021
  %v5367 = vunpack.c.l.b16 %v4022
  %v5368 = vunpack.c.h.b16 %v4022
  %v5369 = vunpack.c.l.b16 %v4023
  %v5370 = vunpack.c.h.b16 %v4023
  %v5371 = vunpack.c.l.b16 %v4024
  %v5372 = vunpack.c.h.b16 %v4024
  %v5373 = vunpack.c.l.b16 %v4025
  %v5374 = vunpack.c.h.b16 %v4025
  %v5375 = vunpack.c.l.b16 %v4026
  %v5376 = vunpack.c.h.b16 %v4026
  %v5377 = vunpack.c.l.b16 %v4027
  %v5378 = vunpack.c.h.b16 %v4027
  %v5379 = vunpack.c.l.b16 %v4028
  %v5380 = vunpack.c.h.b16 %v4028
  %v5381 = vunpack.c.l.b16 %v4029
  %v5382 = vunpack.c.h.b16 %v4029
  %v5383 = vunpack.c.l.b16 %v4030
  %v5384 = vunpack.c.h.b16 %v4030
  %v5385 = vunpack.c.l.b16 %v4031
  %v5386 = vunpack.c.h.b16 %v4031
  %v5387 = vunpack.c.l.b16 %v4032
  %v5388 = vunpack.c.h.b16 %v4032
  %v5389 = vunpack.c.l.b16 %v4033
  %v5390 = vunpack.c.h.b16 %v4033
  %v5391 = vunpack.c.l.b16 %v4034
  %v5392 = vunpack.c.h.b16 %v4034
  %v5393 = vunpack.c.l.b16 %v4035
  %v5394 = vunpack.c.h.b16 %v4035
  %v5395 = vunpack.c.l.b16 %v4036
  %v5396 = vunpack.c.h.b16 %v4036
  %v5397 = vunpack.c.l.b16 %v4037
  %v5398 = vunpack.c.h.b16 %v4037
  %v5399 = vunpack.c.l.b16 %v4038
  %v5400 = vunpack.c.h.b16 %v4038
  %v5401 = vunpack.c.l.b16 %v4039
  %v5402 = vunpack.c.h.b16 %v4039
  %v5403 = vunpack.c.l.b16 %v4040
  %v5404 = vunpack.c.h.b16 %v4040
  %v5405 = vunpack.c.l.b16 %v4041
  %v5406 = vunpack.c.h.b16 %v4041
  %v5407 = vunpack.c.l.b16 %v4042
  %v5408 = vunpack.c.h.b16 %v4042
  %v5409 = vunpack.c.l.b16 %v4043
  %v5410 = vunpack.c.h.b16 %v4043
  %v5411 = vunpack.c.l.b16 %v4044
  %v5412 = vunpack.c.h.b16 %v4044
  %v5413 = vunpack.c.l.b16 %v4045
  %v5414 = vunpack.c.h.b16 %v4045
  %v5415 = vunpack.c.l.b16 %v4046
  %v5416 = vunpack.c.h.b16 %v4046
  %v5417 = vunpack.c.l.b16 %v4047
  %v5418 = vunpack.c.h.b16 %v4047
  %v5419 = vunpack.c.l.b16 %v4048
  %v5420 = vunpack.c.h.b16 %v4048
  %v5421 = vunpack.c.l.b16 %v4049
  %v5422 = vunpack.c.h.b16 %v4049
  %v5423 = vunpack.c.l.b16 %v4050
  %v5424 = vunpack.c.h.b16 %v4050
  %v5425 = vunpack.c.l.b16 %v4051
  %v5426 = vunpack.c.h.b16 %v4051
  %v5427 = vunpack.c.l.b16 %v4052
  %v5428 = vunpack.c.h.b16 %v4052
  %v5429 = vunpack.c.l.b16 %v4053
  %v5430 = vunpack.c.h.b16 %v4053
  %v5431 = vunpack.c.l.b16 %v4054
  %v5432 = vunpack.c.h.b16 %v4054
  %v5433 = vunpack.c.l.b16 %v4055
  %v5434 = vunpack.c.h.b16 %v4055
  %v5435 = vunpack.c.l.b16 %v4056
  %v5436 = vunpack.c.h.b16 %v4056
  %v5437 = vunpack.c.l.b16 %v4057
  %v5438 = vunpack.c.h.b16 %v4057
  %v5439 = vunpack.c.l.b16 %v4058
  %v5440 = vunpack.c.h.b16 %v4058
  %v5441 = vunpack.c.l.b16 %v4059
  %v5442 = vunpack.c.h.b16 %v4059
  %v5443 = vunpack.c.l.b16 %v4060
  %v5444 = vunpack.c.h.b16 %v4060
  %v5445 = vunpack.c.l.b16 %v4061
  %v5446 = vunpack.c.h.b16 %v4061
  %v5447 = vunpack.c.l.b16 %v4062
  %v5448 = vunpack.c.h.b16 %v4062
  %v5449 = vunpack.c.l.b16 %v4063
  %v5450 = vunpack.c.h.b16 %v4063
  %v5451 = vunpack.c.l.b16 %v4064
  %v5452 = vunpack.c.h.b16 %v4064
  %v5453 = vunpack.c.l.b16 %v4065
  %v5454 = vunpack.c.h.b16 %v4065
  %v5455 = vunpack.c.l.b16 %v4066
  %v5456 = vunpack.c.h.b16 %v4066
  %v5457 = vunpack.c.l.b16 %v4067
  %v5458 = vunpack.c.h.b16 %v4067
  %v5459 = vunpack.c.l.b16 %v4068
  %v5460 = vunpack.c.h.b16 %v4068
  %v5461 = vunpack.c.l.b16 %v4069
  %v5462 = vunpack.c.h.b16 %v4069
  %v5463 = vunpack.c.l.b16 %v4070
  %v5464 = vunpack.c.h.b16 %v4070
  %v5465 = vunpack.c.l.b16 %v4071
  %v5466 = vunpack.c.h.b16 %v4071
  %v5467 = vunpack.c.l.b16 %v4072
  %v5468 = vunpack.c.h.b16 %v4072
  %v5469 = vunpack.c.l.b16 %v4073
  %v5470 = vunpack.c.h.b16 %v4073
  %v5471 = vunpack.c.l.b16 %v4074
  %v5472 = vunpack.c.h.b16 %v4074
  %v5473 = vunpack.c.l.b16 %v4075
  %v5474 = vunpack.c.h.b16 %v4075
  %v5475 = vunpack.c.l.b16 %v4076
  %v5476 = vunpack.c.h.b16 %v4076
  %v5477 = vunpack.c.l.b16 %v4077
  %v5478 = vunpack.c.h.b16 %v4077
  %v5479 = vunpack.c.l.b16 %v4078
  %v5480 = vunpack.c.h.b16 %v4078
  %v5481 = vunpack.c.l.b16 %v4079
  %v5482 = vunpack.c.h.b16 %v4079
  %v5483 = vunpack.c.l.b16 %v4080
  %v5484 = vunpack.c.h.b16 %v4080
  %v5485 = vunpack.c.l.b16 %v4081
  %v5486 = vunpack.c.h.b16 %v4081
  %v5487 = vunpack.c.l.b16 %v4082
  %v5488 = vunpack.c.h.b16 %v4082
  %v5489 = vunpack.c.l.b16 %v4083
  %v5490 = vunpack.c.h.b16 %v4083
  %v5491 = vunpack.c.l.b16 %v4084
  %v5492 = vunpack.c.h.b16 %v4084
  %v5493 = vunpack.c.l.b16 %v4085
  %v5494 = vunpack.c.h.b16 %v4085
  %v5495 = vunpack.c.l.b16 %v4086
  %v5496 = vunpack.c.h.b16 %v4086
  %v5497 = vunpack.c.l.b16 %v4087
  %v5498 = vunpack.c.h.b16 %v4087
  %v5499 = vunpack.c.l.b16 %v4088
  %v5500 = vunpack.c.h.b16 %v4088
  %v5501 = vunpack.c.l.b16 %v4089
  %v5502 = vunpack.c.h.b16 %v4089
  %v5503 = vunpack.c.l.b16 %v4090
  %v5504 = vunpack.c.h.b16 %v4090
  %v5505 = vunpack.c.l.b16 %v4091
  %v5506 = vunpack.c.h.b16 %v4091
  %v5507 = vunpack.c.l.b16 %v4092
  %v5508 = vunpack.c.h.b16 %v4092
  %v5509 = vunpack.c.l.b16 %v4093
  %v5510 = vunpack.c.h.b16 %v4093
  %v5511 = vunpack.c.l.b16 %v4094
  %v5512 = vunpack.c.h.b16 %v4094
  %v5513 = vunpack.c.l.b16 %v4095
  %v5514 = vunpack.c.h.b16 %v4095
  %v5515 = vunpack.c.l.b16 %v4096
  %v5516 = vunpack.c.h.b16 %v4096
  %v5517 = vpack.c.b16 %v5007, %v5005
  %v5518 = vpack.c.b16 %v5008, %v5006
  %v5519 = vpack.c.b16 %v5011, %v5009
  %v5520 = vpack.c.b16 %v5012, %v5010
  %v5521 = vpack.c.b16 %v5015, %v5013
  %v5522 = vpack.c.b16 %v5016, %v5014
  %v5523 = vpack.c.b16 %v5019, %v5017
  %v5524 = vpack.c.b16 %v5020, %v5018
  %v5525 = vpack.c.b16 %v5023, %v5021
  %v5526 = vpack.c.b16 %v5024, %v5022
  %v5527 = vpack.c.b16 %v5027, %v5025
  %v5528 = vpack.c.b16 %v5028, %v5026
  %v5529 = vpack.c.b16 %v5031, %v5029
  %v5530 = vpack.c.b16 %v5032, %v5030
  %v5531 = vpack.c.b16 %v5035, %v5033
  %v5532 = vpack.c.b16 %v5036, %v5034
  %v5533 = vpack.c.b16 %v5039, %v5037
  %v5534 = vpack.c.b16 %v5040, %v5038
  %v5535 = vpack.c.b16 %v5043, %v5041
  %v5536 = vpack.c.b16 %v5044, %v5042
  %v5537 = vpack.c.b16 %v5047, %v5045
  %v5538 = vpack.c.b16 %v5048, %v5046
  %v5539 = vpack.c.b16 %v5051, %v5049
  %v5540 = vpack.c.b16 %v5052, %v5050
  %v5541 = vpack.c.b16 %v5055, %v5053
  %v5542 = vpack.c.b16 %v5056, %v5054
  %v5543 = vpack.c.b16 %v5059, %v5057
  %v5544 = vpack.c.b16 %v5060, %v5058
  %v5545 = vpack.c.b16 %v5063, %v5061
  %v5546 = vpack.c.b16 %v5064, %v5062
  %v5547 = vpack.c.b16 %v5067, %v5065
  %v5548 = vpack.c.b16 %v5068, %v5066
  %v5549 = vpack.c.b16 %v5071, %v5069
  %v5550 = vpack.c.b16 %v5072, %v5070
  %v5551 = vpack.c.b16 %v5075, %v5073
  %v5552 = vpack.c.b16 %v5076, %v5074
  %v5553 = vpack.c.b16 %v5079, %v5077
  %v5554 = vpack.c.b16 %v5080, %v5078
  %v5555 = vpack.c.b16 %v5083, %v5081
  %v5556 = vpack.c.b16 %v5084, %v5082
  %v5557 = vpack.c.b16 %v5087, %v5085
  %v5558 = vpack.c.b16 %v5088, %v5086
  %v5559 = vpack.c.b16 %v5091, %v5089
  %v5560 = vpack.c.b16 %v5092, %v5090
  %v5561 = vpack.c.b16 %v5095, %v5093
  %v5562 = vpack.c.b16 %v5096, %v5094
  %v5563 = vpack.c.b16 %v5099, %v5097
  %v5564 = vpack.c.b16 %v5100, %v5098
  %v5565 = vpack.c.b16 %v5103, %v5101
  %v5566 = vpack.c.b16 %v5104, %v5102
  %v5567 = vpack.c.b16 %v5107, %v5105
  %v5568 = vpack.c.b16 %v5108, %v5106
  %v5569 = vpack.c.b16 %v5111, %v5109
  %v5570 = vpack.c.b16 %v5112, %v5110
  %v5571 = vpack.c.b16 %v5115, %v5113
  %v5572 = vpack.c.b16 %v5116, %v5114
  %v5573 = vpack.c.b16 %v5119, %v5117
  %v5574 = vpack.c.b16 %v5120, %v5118
  %v5575 = vpack.c.b16 %v5123, %v5121
  %v5576 = vpack.c.b16 %v5124, %v5122
  %v5577 = vpack.c.b16 %v5127, %v5125
  %v5578 = vpack.c.b16 %v5128, %v5126
  %v5579 = vpack.c.b16 %v5131, %v5129
  %v5580 = vpack.c.b16 %v5132, %v5130
  %v5581 = vpack.c.b16 %v5135, %v5133
  %v5582 = vpack.c.b16 %v5136, %v5134
  %v5583 = vpack.c.b16 %v5139, %v5137
  %v5584 = vpack.c.b16 %v5140, %v5138
  %v5585 = vpack.c.b16 %v5143, %v5141
  %v5586 = vpack.c.b16 %v5144, %v5142
  %v5587 = vpack.c.b16 %v5147, %v5145
  %v5588 = vpack.c.b16 %v5148, %v5146
  %v5589 = vpack.c.b16 %v5151, %v5149
  %v5590 = vpack.c.b16 %v5152, %v5150
  %v5591 = vpack.c.b16 %v5155, %v5153
  %v5592 = vpack.c.b16 %v5156, %v5154
  %v5593 = vpack.c.b16 %v5159, %v5157
  %v5594 = vpack.c.b16 %v5160, %v5158
  %v5595 = vpack.c.b16 %v5163, %v5161
  %v5596 = vpack.c.b16 %v5164, %v5162
  %v5597 = vpack.c.b16 %v5167, %v5165
  %v5598 = vpack.c.b16 %v5168, %v5166
  %v5599 = vpack.c.b16 %v5171, %v5169
  %v5600 = vpack.c.b16 %v5172, %v5170
  %v5601 = vpack.c.b16 %v5175, %v5173
  %v5602 = vpack.c.b16 %v5176, %v5174
  %v5603 = vpack.c.b16 %v5179, %v5177
  %v5604 = vpack.c.b16 %v5180, %v5178
  %v5605 = vpack.c.b16 %v5183, %v5181
  %v5606 = vpack.c.b16 %v5184, %v5182
  %v5607 = vpack.c.b16 %v5187, %v5185
  %v5608 = vpack.c.b16 %v5188, %v5186
  %v5609 = vpack.c.b16 %v5191, %v5189
  %v5610 = vpack.c.b16 %v5192, %v5190
  %v5611 = vpack.c.b16 %v5195, %v5193
  %v5612 = vpack.c.b16 %v5196, %v5194
  %v5613 = vpack.c.b16 %v5199, %v5197
  %v5614 = vpack.c.b16 %v5200, %v5198
  %v5615 = vpack.c.b16 %v5203, %v5201
  %v5616 = vpack.c.b16 %v5204, %v5202
  %v5617 = vpack.c.b16 %v5207, %v5205
  %v5618 = vpack.c.b16 %v5208, %v5206
  %v5619 = vpack.c.b16 %v5211, %v5209
  %v5620 = vpack.c.b16 %v5212, %v5210
  %v5621 = vpack.c.b16 %v5215, %v5213
  %v5622 = vpack.c.b16 %v5216, %v5214
  %v5623 = vpack.c.b16 %v5219, %v5217
  %v5624 = vpack.c.b16 %v5220, %v5218
  %v5625 = vpack.c.b16 %v5223, %v5221
  %v5626 = vpack.c.b16 %v5224, %v5222
  %v5627 = vpack.c.b16 %v5227, %v5225
  %v5628 = vpack.c.b16 %v5228, %v5226
  %v5629 = vpack.c.b16 %v5231, %v5229
  %v5630 = vpack.c.b16 %v5232, %v5230
  %v5631 = vpack.c.b16 %v5235, %v5233
  %v5632 = vpack.c.b16 %v5236, %v5234
  %v5633 = vpack.c.b16 %v5239, %v5237
  %v5634 = vpack.c.b16 %v5240, %v5238
  %v5635 = vpack.c.b16 %v5243, %v5241
  %v5636 = vpack.c.b16 %v5244, %v5242
  %v5637 = vpack.c.b16 %v5247, %v5245
  %v5638 = vpack.c.b16 %v5248, %v5246
  %v5639 = vpack.c.b16 %v5251, %v5249
  %v5640 = vpack.c.b16 %v5252, %v5250
  %v5641 = vpack.c.b16 %v5255, %v5253
  %v5642 = vpack.c.b16 %v5256, %v5254
  %v5643 = vpack.c.b16 %v5259, %v5257
  %v5644 = vpack.c.b16 %v5260, %v5258
  %v5645 = vpack.c.b16 %v5263, %v5261
  %v5646 = vpack.c.b16 %v5264, %v5262
  %v5647 = vpack.c.b16 %v5267, %v5265
  %v5648 = vpack.c.b16 %v5268, %v5266
  %v5649 = vpack.c.b16 %v5271, %v5269
  %v5650 = vpack.c.b16 %v5272, %v5270
  %v5651 = vpack.c.b16 %v5275, %v5273
  %v5652 = vpack.c.b16 %v5276, %v5274
  %v5653 = vpack.c.b16 %v5279, %v5277
  %v5654 = vpack.c.b16 %v5280, %v5278
  %v5655 = vpack.c.b16 %v5283, %v5281
  %v5656 = vpack.c.b16 %v5284, %v5282
  %v5657 = vpack.c.b16 %v5287, %v5285
  %v5658 = vpack.c.b16 %v5288, %v5286
  %v5659 = vpack.c.b16 %v5291, %v5289
  %v5660 = vpack.c.b16 %v5292, %v5290
  %v5661 = vpack.c.b16 %v5295, %v5293
  %v5662 = vpack.c.b16 %v5296, %v5294
  %v5663 = vpack.c.b16 %v5299, %v5297
  %v5664 = vpack.c.b16 %v5300, %v5298
  %v5665 = vpack.c.b16 %v5303, %v5301
  %v5666 = vpack.c.b16 %v5304, %v5302
  %v5667 = vpack.c.b16 %v5307, %v5305
  %v5668 = vpack.c.b16 %v5308, %v5306
  %v5669 = vpack.c.b16 %v5311, %v5309
  %v5670 = vpack.c.b16 %v5312, %v5310
  %v5671 = vpack.c.b16 %v5315, %v5313
  %v5672 = vpack.c.b16 %v5316, %v5314
  %v5673 = vpack.c.b16 %v5319, %v5317
  %v5674 = vpack.c.b16 %v5320, %v5318
  %v5675 = vpack.c.b16 %v5323, %v5321
  %v5676 = vpack.c.b16 %v5324, %v5322
  %v5677 = vpack.c.b16 %v5327, %v5325
  %v5678 = vpack.c.b16 %v5328, %v5326
  %v5679 = vpack.c.b16 %v5331, %v5329
  %v5680 = vpack.c.b16 %v5332, %v5330
  %v5681 = vpack.c.b16 %v5335, %v5333
  %v5682 = vpack.c.b16 %v5336, %v5334
  %v5683 = vpack.c.b16 %v5339, %v5337
  %v5684 = vpack.c.b16 %v5340, %v5338
  %v5685 = vpack.c.b16 %v5343, %v5341
  %v5686 = vpack.c.b16 %v5344, %v5342
  %v5687 = vpack.c.b16 %v5347, %v5345
  %v5688 = vpack.c.b16 %v5348, %v5346
  %v5689 = vpack.c.b16 %v5351, %v5349
  %v5690 = vpack.c.b16 %v5352, %v5350
  %v5691 = vpack.c.b16 %v5355, %v5353
  %v5692 = vpack.c.b16 %v5356, %v5354
  %v5693 = vpack.c.b16 %v5359, %v5357
  %v5694 = vpack.c.b16 %v5360, %v5358
  %v5695 = vpack.c.b16 %v5363, %v5361
  %v5696 = vpack.c.b16 %v5364, %v5362
  %v5697 = vpack.c.b16 %v5367, %v5365
  %v5698 = vpack.c.b16 %v5368, %v5366
  %v5699 = vpack.c.b16 %v5371, %v5369
  %v5700 = vpack.c.b16 %v5372, %v5370
  %v5701 = vpack.c.b16 %v5375, %v5373
  %v5702 = vpack.c.b16 %v5376, %v5374
  %v5703 = vpack.c.b16 %v5379, %v5377
  %v5704 = vpack.c.b16 %v5380, %v5378
  %v5705 = vpack.c.b16 %v5383, %v5381
  %v5706 = vpack.c.b16 %v5384, %v5382
  %v5707 = vpack.c.b16 %v5387, %v5385
  %v5708 = vpack.c.b16 %v5388, %v5386
  %v5709 = vpack.c.b16 %v5391, %v5389
  %v5710 = vpack.c.b16 %v5392, %v5390
  %v5711 = vpack.c.b16 %v5395, %v5393
  %v5712 = vpack.c.b16 %v5396, %v5394
  %v5713 = vpack.c.b16 %v5399, %v5397
  %v5714 = vpack.c.b16 %v5400, %v5398
  %v5715 = vpack.c.b16 %v5403, %v5401
  %v5716 = vpack.c.b16 %v5404, %v5402
  %v5717 = vpack.c.b16 %v5407, %v5405
  %v5718 = vpack.c.b16 %v5408, %v5406
  %v5719 = vpack.c.b16 %v5411, %v5409
  %v5720 = vpack.c.b16 %v5412, %v5410
  %v5721 = vpack.c.b16 %v5415, %v5413
  %v5722 = vpack.c.b16 %v5416, %v5414
  %v5723 = vpack.c.b16 %v5419, %v5417
  %v5724 = vpack.c.b16 %v5420, %v5418
  %v5725 = vpack.c.b16 %v5423, %v5421
  %v5726 = vpack.c.b16 %v5424, %v5422
  %v5727 = vpack.c.b16 %v5427, %v5425
  %v5728 = vpack.c.b16 %v5428, %v5426
  %v5729 = vpack.c.b16 %v5431, %v5429
  %v5730 = vpack.c.b16 %v5432, %v5430
  %v5731 = vpack.c.b16 %v5435, %v5433
  %v5732 = vpack.c.b16 %v5436, %v5434
  %v5733 = vpack.c.b16 %v5439, %v5437
  %v5734 = vpack.c.b16 %v5440, %v5438
  %v5735 = vpack.c.b16 %v5443, %v5441
  %v5736 = vpack.c.b16 %v5444, %v5442
  %v5737 = vpack.c.b16 %v5447, %v5445
  %v5738 = vpack.c.b16 %v5448, %v5446
  %v5739 = vpack.c.b16 %v5451, %v5449
  %v5740 = vpack.c.b16 %v5452, %v5450
  %v5741 = vpack.c.b16 %v5455, %v5453
  %v5742 = vpack.c.b16 %v5456, %v5454
  %v5743 = vpack.c.b16 %v5459, %v5457
  %v5744 = vpack.c.b16 %v5460, %v5458
  %v5745 = vpack.c.b16 %v5463, %v5461
  %v5746 = vpack.c.b16 %v5464, %v5462
  %v5747 = vpack.c.b16 %v5467, %v5465
  %v5748 = vpack.c.b16 %v5468, %v5466
  %v5749 = vpack.c.b16 %v5471, %v5469
  %v5750 = vpack.c.b16 %v5472, %v5470
  %v5751 = vpack.c.b16 %v5475, %v5473
  %v5752 = vpack.c.b16 %v5476, %v5474
  %v5753 = vpack.c.b16 %v5479, %v5477
  %v5754 = vpack.c.b16 %v5480, %v5478
  %v5755 = vpack.c.b16 %v5483, %v5481
  %v5756 = vpack.c.b16 %v5484, %v5482
  %v5757 = vpack.c.b16 %v5487, %v5485
  %v5758 = vpack.c.b16 %v5488, %v5486
  %v5759 = vpack.c.b16 %v5491, %v5489
  %v5760 = vpack.c.b16 %v5492, %v5490
  %v5761 = vpack.c.b16 %v5495, %v5493
  %v5762 = vpack.c.b16 %v5496, %v5494
  %v5763 = vpack.c.b16 %v5499, %v5497
  %v5764 = vpack.c.b16 %v5500, %v5498
  %v5765 = vpack.c.b16 %v5503, %v5501
  %v5766 = vpack.c.b16 %v5504, %v5502
  %v5767 = vpack.c.b16 %v5507, %v5505
  %v5768 = vpack.c.b16 %v5508, %v5506
  %v5769 = vpack.c.b16 %v5511, %v5509
  %v5770 = vpack.c.b16 %v5512, %v5510
  %v5771 = vpack.c.b16 %v5515, %v5513
  %v5772 = vpack.c.b16 %v5516, %v5514
  %6029 = vmatprep.subr.bf16.mxu0 %v5532
  %6030 = vmatpush1.bf16.msra.mxu0 %v5531
  %6031 = vmatprep.subr.bf16.mxu0 %v5530
  %6032 = vmatpush1.bf16.msra.mxu0 %v5529
  %6033 = vmatprep.subr.bf16.mxu0 %v5528
  %6034 = vmatpush1.bf16.msra.mxu0 %v5527
  %6035 = vmatprep.subr.bf16.mxu0 %v5526
  %6036 = vmatpush1.bf16.msra.mxu0 %v5525
  %6037 = vmatprep.subr.bf16.mxu0 %v5524
  %6038 = vmatpush1.bf16.msra.mxu0 %v5523
  %6039 = vmatprep.subr.bf16.mxu0 %v5522
  %6040 = vmatpush1.bf16.msra.mxu0 %v5521
  %6041 = vmatprep.subr.bf16.mxu0 %v5520
  %6042 = vmatpush1.bf16.msra.mxu0 %v5519
  %6043 = vmatprep.subr.bf16.mxu0 %v5518
  %6044 = vmatpush1.bf16.msra.mxu0 %v5517
  %6045 = vmatprep.subr.bf16.mxu0 %v5548
  %6046 = vmatpush2.bf16.msra.mxu0 %v5547
  %6047 = vmatprep.subr.bf16.mxu0 %v5546
  %6048 = vmatpush2.bf16.msra.mxu0 %v5545
  %6049 = vmatprep.subr.bf16.mxu0 %v5544
  %6050 = vmatpush2.bf16.msra.mxu0 %v5543
  %6051 = vmatprep.subr.bf16.mxu0 %v5542
  %6052 = vmatpush2.bf16.msra.mxu0 %v5541
  %6053 = vmatprep.subr.bf16.mxu0 %v5540
  %6054 = vmatpush2.bf16.msra.mxu0 %v5539
  %6055 = vmatprep.subr.bf16.mxu0 %v5538
  %6056 = vmatpush2.bf16.msra.mxu0 %v5537
  %6057 = vmatprep.subr.bf16.mxu0 %v5536
  %6058 = vmatpush2.bf16.msra.mxu0 %v5535
  %6059 = vmatprep.subr.bf16.mxu0 %v5534
  %6060 = vmatpush2.bf16.msra.mxu0 %v5533
  %6061 = vmatprep.mubr.bf16.mxu0 %v4494
  %6062 = vmatmul.mubr.bf16.gmra.mxu0 %v4493
  %v6063 = vpop.f32.mrf.mxu0
  %v6064 = vadd.f32 %v4102, %v6063
  %v6065 = vpop.f32.mrf.mxu0
  %v6066 = vadd.f32 %v4106, %v6065
  %v6067 = vpop.f32.mrf.mxu0
  %v6068 = vadd.f32 %v4102, %v6067
  %v6069 = vpop.f32.mrf.mxu0
  %v6070 = vadd.f32 %v4106, %v6069
  %6071 = vmatprep.mubr.bf16.mxu0 %v4510
  %6072 = vmatmul.mubr.bf16.gmra.mxu0 %v4509
  %v6073 = vpop.f32.mrf.mxu0
  %v6074 = vadd.f32 %v4102, %v6073
  %v6075 = vpop.f32.mrf.mxu0
  %v6076 = vadd.f32 %v4106, %v6075
  %v6077 = vpop.f32.mrf.mxu0
  %v6078 = vadd.f32 %v4102, %v6077
  %v6079 = vpop.f32.mrf.mxu0
  %v6080 = vadd.f32 %v4106, %v6079
  %6081 = vmatprep.mubr.bf16.mxu0 %v4526
  %6082 = vmatmul.mubr.bf16.gmra.mxu0 %v4525
  %v6083 = vpop.f32.mrf.mxu0
  %v6084 = vadd.f32 %v4102, %v6083
  %v6085 = vpop.f32.mrf.mxu0
  %v6086 = vadd.f32 %v4106, %v6085
  %v6087 = vpop.f32.mrf.mxu0
  %v6088 = vadd.f32 %v4102, %v6087
  %v6089 = vpop.f32.mrf.mxu0
  %v6090 = vadd.f32 %v4106, %v6089
  %6091 = vmatprep.mubr.bf16.mxu0 %v4542
  %6092 = vmatmul.mubr.bf16.gmra.mxu0 %v4541
  %v6093 = vpop.f32.mrf.mxu0
  %v6094 = vadd.f32 %v4102, %v6093
  %v6095 = vpop.f32.mrf.mxu0
  %v6096 = vadd.f32 %v4106, %v6095
  %v6097 = vpop.f32.mrf.mxu0
  %v6098 = vadd.f32 %v4102, %v6097
  %v6099 = vpop.f32.mrf.mxu0
  %v6100 = vadd.f32 %v4106, %v6099
  %6101 = vmatprep.mubr.bf16.mxu0 %v4558
  %6102 = vmatmul.mubr.bf16.gmra.mxu0 %v4557
  %v6103 = vpop.f32.mrf.mxu0
  %v6104 = vadd.f32 %v4102, %v6103
  %v6105 = vpop.f32.mrf.mxu0
  %v6106 = vadd.f32 %v4106, %v6105
  %v6107 = vpop.f32.mrf.mxu0
  %v6108 = vadd.f32 %v4102, %v6107
  %v6109 = vpop.f32.mrf.mxu0
  %v6110 = vadd.f32 %v4106, %v6109
  %6111 = vmatprep.mubr.bf16.mxu0 %v4574
  %6112 = vmatmul.mubr.bf16.gmra.mxu0 %v4573
  %v6113 = vpop.f32.mrf.mxu0
  %v6114 = vadd.f32 %v4102, %v6113
  %v6115 = vpop.f32.mrf.mxu0
  %v6116 = vadd.f32 %v4106, %v6115
  %v6117 = vpop.f32.mrf.mxu0
  %v6118 = vadd.f32 %v4102, %v6117
  %v6119 = vpop.f32.mrf.mxu0
  %v6120 = vadd.f32 %v4106, %v6119
  %6121 = vmatprep.mubr.bf16.mxu0 %v4590
  %6122 = vmatmul.mubr.bf16.gmra.mxu0 %v4589
  %v6123 = vpop.f32.mrf.mxu0
  %v6124 = vadd.f32 %v4102, %v6123
  %v6125 = vpop.f32.mrf.mxu0
  %v6126 = vadd.f32 %v4106, %v6125
  %v6127 = vpop.f32.mrf.mxu0
  %v6128 = vadd.f32 %v4102, %v6127
  %v6129 = vpop.f32.mrf.mxu0
  %v6130 = vadd.f32 %v4106, %v6129
  %6131 = vmatprep.mubr.bf16.mxu0 %v4606
  %6132 = vmatmul.mubr.bf16.gmra.mxu0 %v4605
  %v6133 = vpop.f32.mrf.mxu0
  %v6134 = vadd.f32 %v4102, %v6133
  %v6135 = vpop.f32.mrf.mxu0
  %v6136 = vadd.f32 %v4106, %v6135
  %v6137 = vpop.f32.mrf.mxu0
  %v6138 = vadd.f32 %v4102, %v6137
  %v6139 = vpop.f32.mrf.mxu0
  %v6140 = vadd.f32 %v4106, %v6139
  %6141 = vdwg.mxu0
  %6142 = vmatprep.subr.bf16.mxu0 %v5564
  %6143 = vmatpush1.bf16.msra.mxu0 %v5563
  %6144 = vmatprep.subr.bf16.mxu0 %v5562
  %6145 = vmatpush1.bf16.msra.mxu0 %v5561
  %6146 = vmatprep.subr.bf16.mxu0 %v5560
  %6147 = vmatpush1.bf16.msra.mxu0 %v5559
  %6148 = vmatprep.subr.bf16.mxu0 %v5558
  %6149 = vmatpush1.bf16.msra.mxu0 %v5557
  %6150 = vmatprep.subr.bf16.mxu0 %v5556
  %6151 = vmatpush1.bf16.msra.mxu0 %v5555
  %6152 = vmatprep.subr.bf16.mxu0 %v5554
  %6153 = vmatpush1.bf16.msra.mxu0 %v5553
  %6154 = vmatprep.subr.bf16.mxu0 %v5552
  %6155 = vmatpush1.bf16.msra.mxu0 %v5551
  %6156 = vmatprep.subr.bf16.mxu0 %v5550
  %6157 = vmatpush1.bf16.msra.mxu0 %v5549
  %6158 = vmatprep.subr.bf16.mxu0 %v5580
  %6159 = vmatpush2.bf16.msra.mxu0 %v5579
  %6160 = vmatprep.subr.bf16.mxu0 %v5578
  %6161 = vmatpush2.bf16.msra.mxu0 %v5577
  %6162 = vmatprep.subr.bf16.mxu0 %v5576
  %6163 = vmatpush2.bf16.msra.mxu0 %v5575
  %6164 = vmatprep.subr.bf16.mxu0 %v5574
  %6165 = vmatpush2.bf16.msra.mxu0 %v5573
  %6166 = vmatprep.subr.bf16.mxu0 %v5572
  %6167 = vmatpush2.bf16.msra.mxu0 %v5571
  %6168 = vmatprep.subr.bf16.mxu0 %v5570
  %6169 = vmatpush2.bf16.msra.mxu0 %v5569
  %6170 = vmatprep.subr.bf16.mxu0 %v5568
  %6171 = vmatpush2.bf16.msra.mxu0 %v5567
  %6172 = vmatprep.subr.bf16.mxu0 %v5566
  %6173 = vmatpush2.bf16.msra.mxu0 %v5565
  %6174 = vmatprep.mubr.bf16.mxu0 %v4496
  %6175 = vmatmul.mubr.bf16.gmra.mxu0 %v4495
  %v6176 = vpop.f32.mrf.mxu0
  %v6177 = vadd.f32 %v6064, %v6176
  %v6178 = vpop.f32.mrf.mxu0
  %v6179 = vadd.f32 %v6066, %v6178
  %v6180 = vpop.f32.mrf.mxu0
  %v6181 = vadd.f32 %v6068, %v6180
  %v6182 = vpop.f32.mrf.mxu0
  %v6183 = vadd.f32 %v6070, %v6182
  %6184 = vmatprep.mubr.bf16.mxu0 %v4512
  %6185 = vmatmul.mubr.bf16.gmra.mxu0 %v4511
  %v6186 = vpop.f32.mrf.mxu0
  %v6187 = vadd.f32 %v6074, %v6186
  %v6188 = vpop.f32.mrf.mxu0
  %v6189 = vadd.f32 %v6076, %v6188
  %v6190 = vpop.f32.mrf.mxu0
  %v6191 = vadd.f32 %v6078, %v6190
  %v6192 = vpop.f32.mrf.mxu0
  %v6193 = vadd.f32 %v6080, %v6192
  %6194 = vmatprep.mubr.bf16.mxu0 %v4528
  %6195 = vmatmul.mubr.bf16.gmra.mxu0 %v4527
  %v6196 = vpop.f32.mrf.mxu0
  %v6197 = vadd.f32 %v6084, %v6196
  %v6198 = vpop.f32.mrf.mxu0
  %v6199 = vadd.f32 %v6086, %v6198
  %v6200 = vpop.f32.mrf.mxu0
  %v6201 = vadd.f32 %v6088, %v6200
  %v6202 = vpop.f32.mrf.mxu0
  %v6203 = vadd.f32 %v6090, %v6202
  %6204 = vmatprep.mubr.bf16.mxu0 %v4544
  %6205 = vmatmul.mubr.bf16.gmra.mxu0 %v4543
  %v6206 = vpop.f32.mrf.mxu0
  %v6207 = vadd.f32 %v6094, %v6206
  %v6208 = vpop.f32.mrf.mxu0
  %v6209 = vadd.f32 %v6096, %v6208
  %v6210 = vpop.f32.mrf.mxu0
  %v6211 = vadd.f32 %v6098, %v6210
  %v6212 = vpop.f32.mrf.mxu0
  %v6213 = vadd.f32 %v6100, %v6212
  %6214 = vmatprep.mubr.bf16.mxu0 %v4560
  %6215 = vmatmul.mubr.bf16.gmra.mxu0 %v4559
  %v6216 = vpop.f32.mrf.mxu0
  %v6217 = vadd.f32 %v6104, %v6216
  %v6218 = vpop.f32.mrf.mxu0
  %v6219 = vadd.f32 %v6106, %v6218
  %v6220 = vpop.f32.mrf.mxu0
  %v6221 = vadd.f32 %v6108, %v6220
  %v6222 = vpop.f32.mrf.mxu0
  %v6223 = vadd.f32 %v6110, %v6222
  %6224 = vmatprep.mubr.bf16.mxu0 %v4576
  %6225 = vmatmul.mubr.bf16.gmra.mxu0 %v4575
  %v6226 = vpop.f32.mrf.mxu0
  %v6227 = vadd.f32 %v6114, %v6226
  %v6228 = vpop.f32.mrf.mxu0
  %v6229 = vadd.f32 %v6116, %v6228
  %v6230 = vpop.f32.mrf.mxu0
  %v6231 = vadd.f32 %v6118, %v6230
  %v6232 = vpop.f32.mrf.mxu0
  %v6233 = vadd.f32 %v6120, %v6232
  %6234 = vmatprep.mubr.bf16.mxu0 %v4592
  %6235 = vmatmul.mubr.bf16.gmra.mxu0 %v4591
  %v6236 = vpop.f32.mrf.mxu0
  %v6237 = vadd.f32 %v6124, %v6236
  %v6238 = vpop.f32.mrf.mxu0
  %v6239 = vadd.f32 %v6126, %v6238
  %v6240 = vpop.f32.mrf.mxu0
  %v6241 = vadd.f32 %v6128, %v6240
  %v6242 = vpop.f32.mrf.mxu0
  %v6243 = vadd.f32 %v6130, %v6242
  %6244 = vmatprep.mubr.bf16.mxu0 %v4608
  %6245 = vmatmul.mubr.bf16.gmra.mxu0 %v4607
  %v6246 = vpop.f32.mrf.mxu0
  %v6247 = vadd.f32 %v6134, %v6246
  %v6248 = vpop.f32.mrf.mxu0
  %v6249 = vadd.f32 %v6136, %v6248
  %v6250 = vpop.f32.mrf.mxu0
  %v6251 = vadd.f32 %v6138, %v6250
  %v6252 = vpop.f32.mrf.mxu0
  %v6253 = vadd.f32 %v6140, %v6252
  %6254 = vdwg.mxu0
  %6255 = vmatprep.subr.bf16.mxu0 %v5596
  %6256 = vmatpush1.bf16.msra.mxu0 %v5595
  %6257 = vmatprep.subr.bf16.mxu0 %v5594
  %6258 = vmatpush1.bf16.msra.mxu0 %v5593
  %6259 = vmatprep.subr.bf16.mxu0 %v5592
  %6260 = vmatpush1.bf16.msra.mxu0 %v5591
  %6261 = vmatprep.subr.bf16.mxu0 %v5590
  %6262 = vmatpush1.bf16.msra.mxu0 %v5589
  %6263 = vmatprep.subr.bf16.mxu0 %v5588
  %6264 = vmatpush1.bf16.msra.mxu0 %v5587
  %6265 = vmatprep.subr.bf16.mxu0 %v5586
  %6266 = vmatpush1.bf16.msra.mxu0 %v5585
  %6267 = vmatprep.subr.bf16.mxu0 %v5584
  %6268 = vmatpush1.bf16.msra.mxu0 %v5583
  %6269 = vmatprep.subr.bf16.mxu0 %v5582
  %6270 = vmatpush1.bf16.msra.mxu0 %v5581
  %6271 = vmatprep.subr.bf16.mxu0 %v5612
  %6272 = vmatpush2.bf16.msra.mxu0 %v5611
  %6273 = vmatprep.subr.bf16.mxu0 %v5610
  %6274 = vmatpush2.bf16.msra.mxu0 %v5609
  %6275 = vmatprep.subr.bf16.mxu0 %v5608
  %6276 = vmatpush2.bf16.msra.mxu0 %v5607
  %6277 = vmatprep.subr.bf16.mxu0 %v5606
  %6278 = vmatpush2.bf16.msra.mxu0 %v5605
  %6279 = vmatprep.subr.bf16.mxu0 %v5604
  %6280 = vmatpush2.bf16.msra.mxu0 %v5603
  %6281 = vmatprep.subr.bf16.mxu0 %v5602
  %6282 = vmatpush2.bf16.msra.mxu0 %v5601
  %6283 = vmatprep.subr.bf16.mxu0 %v5600
  %6284 = vmatpush2.bf16.msra.mxu0 %v5599
  %6285 = vmatprep.subr.bf16.mxu0 %v5598
  %6286 = vmatpush2.bf16.msra.mxu0 %v5597
  %6287 = vmatprep.mubr.bf16.mxu0 %v4498
  %6288 = vmatmul.mubr.bf16.gmra.mxu0 %v4497
  %v6289 = vpop.f32.mrf.mxu0
  %v6290 = vadd.f32 %v6177, %v6289
  %v6291 = vpop.f32.mrf.mxu0
  %v6292 = vadd.f32 %v6179, %v6291
  %v6293 = vpop.f32.mrf.mxu0
  %v6294 = vadd.f32 %v6181, %v6293
  %v6295 = vpop.f32.mrf.mxu0
  %v6296 = vadd.f32 %v6183, %v6295
  %6297 = vmatprep.mubr.bf16.mxu0 %v4514
  %6298 = vmatmul.mubr.bf16.gmra.mxu0 %v4513
  %v6299 = vpop.f32.mrf.mxu0
  %v6300 = vadd.f32 %v6187, %v6299
  %v6301 = vpop.f32.mrf.mxu0
  %v6302 = vadd.f32 %v6189, %v6301
  %v6303 = vpop.f32.mrf.mxu0
  %v6304 = vadd.f32 %v6191, %v6303
  %v6305 = vpop.f32.mrf.mxu0
  %v6306 = vadd.f32 %v6193, %v6305
  %6307 = vmatprep.mubr.bf16.mxu0 %v4530
  %6308 = vmatmul.mubr.bf16.gmra.mxu0 %v4529
  %v6309 = vpop.f32.mrf.mxu0
  %v6310 = vadd.f32 %v6197, %v6309
  %v6311 = vpop.f32.mrf.mxu0
  %v6312 = vadd.f32 %v6199, %v6311
  %v6313 = vpop.f32.mrf.mxu0
  %v6314 = vadd.f32 %v6201, %v6313
  %v6315 = vpop.f32.mrf.mxu0
  %v6316 = vadd.f32 %v6203, %v6315
  %6317 = vmatprep.mubr.bf16.mxu0 %v4546
  %6318 = vmatmul.mubr.bf16.gmra.mxu0 %v4545
  %v6319 = vpop.f32.mrf.mxu0
  %v6320 = vadd.f32 %v6207, %v6319
  %v6321 = vpop.f32.mrf.mxu0
  %v6322 = vadd.f32 %v6209, %v6321
  %v6323 = vpop.f32.mrf.mxu0
  %v6324 = vadd.f32 %v6211, %v6323
  %v6325 = vpop.f32.mrf.mxu0
  %v6326 = vadd.f32 %v6213, %v6325
  %6327 = vmatprep.mubr.bf16.mxu0 %v4562
  %6328 = vmatmul.mubr.bf16.gmra.mxu0 %v4561
  %v6329 = vpop.f32.mrf.mxu0
  %v6330 = vadd.f32 %v6217, %v6329
  %v6331 = vpop.f32.mrf.mxu0
  %v6332 = vadd.f32 %v6219, %v6331
  %v6333 = vpop.f32.mrf.mxu0
  %v6334 = vadd.f32 %v6221, %v6333
  %v6335 = vpop.f32.mrf.mxu0
  %v6336 = vadd.f32 %v6223, %v6335
  %6337 = vmatprep.mubr.bf16.mxu0 %v4578
  %6338 = vmatmul.mubr.bf16.gmra.mxu0 %v4577
  %v6339 = vpop.f32.mrf.mxu0
  %v6340 = vadd.f32 %v6227, %v6339
  %v6341 = vpop.f32.mrf.mxu0
  %v6342 = vadd.f32 %v6229, %v6341
  %v6343 = vpop.f32.mrf.mxu0
  %v6344 = vadd.f32 %v6231, %v6343
  %v6345 = vpop.f32.mrf.mxu0
  %v6346 = vadd.f32 %v6233, %v6345
  %6347 = vmatprep.mubr.bf16.mxu0 %v4594
  %6348 = vmatmul.mubr.bf16.gmra.mxu0 %v4593
  %v6349 = vpop.f32.mrf.mxu0
  %v6350 = vadd.f32 %v6237, %v6349
  %v6351 = vpop.f32.mrf.mxu0
  %v6352 = vadd.f32 %v6239, %v6351
  %v6353 = vpop.f32.mrf.mxu0
  %v6354 = vadd.f32 %v6241, %v6353
  %v6355 = vpop.f32.mrf.mxu0
  %v6356 = vadd.f32 %v6243, %v6355
  %6357 = vmatprep.mubr.bf16.mxu0 %v4610
  %6358 = vmatmul.mubr.bf16.gmra.mxu0 %v4609
  %v6359 = vpop.f32.mrf.mxu0
  %v6360 = vadd.f32 %v6247, %v6359
  %v6361 = vpop.f32.mrf.mxu0
  %v6362 = vadd.f32 %v6249, %v6361
  %v6363 = vpop.f32.mrf.mxu0
  %v6364 = vadd.f32 %v6251, %v6363
  %v6365 = vpop.f32.mrf.mxu0
  %v6366 = vadd.f32 %v6253, %v6365
  %6367 = vdwg.mxu0
  %6368 = vmatprep.subr.bf16.mxu0 %v5628
  %6369 = vmatpush1.bf16.msra.mxu0 %v5627
  %6370 = vmatprep.subr.bf16.mxu0 %v5626
  %6371 = vmatpush1.bf16.msra.mxu0 %v5625
  %6372 = vmatprep.subr.bf16.mxu0 %v5624
  %6373 = vmatpush1.bf16.msra.mxu0 %v5623
  %6374 = vmatprep.subr.bf16.mxu0 %v5622
  %6375 = vmatpush1.bf16.msra.mxu0 %v5621
  %6376 = vmatprep.subr.bf16.mxu0 %v5620
  %6377 = vmatpush1.bf16.msra.mxu0 %v5619
  %6378 = vmatprep.subr.bf16.mxu0 %v5618
  %6379 = vmatpush1.bf16.msra.mxu0 %v5617
  %6380 = vmatprep.subr.bf16.mxu0 %v5616
  %6381 = vmatpush1.bf16.msra.mxu0 %v5615
  %6382 = vmatprep.subr.bf16.mxu0 %v5614
  %6383 = vmatpush1.bf16.msra.mxu0 %v5613
  %6384 = vmatprep.subr.bf16.mxu0 %v5644
  %6385 = vmatpush2.bf16.msra.mxu0 %v5643
  %6386 = vmatprep.subr.bf16.mxu0 %v5642
  %6387 = vmatpush2.bf16.msra.mxu0 %v5641
  %6388 = vmatprep.subr.bf16.mxu0 %v5640
  %6389 = vmatpush2.bf16.msra.mxu0 %v5639
  %6390 = vmatprep.subr.bf16.mxu0 %v5638
  %6391 = vmatpush2.bf16.msra.mxu0 %v5637
  %6392 = vmatprep.subr.bf16.mxu0 %v5636
  %6393 = vmatpush2.bf16.msra.mxu0 %v5635
  %6394 = vmatprep.subr.bf16.mxu0 %v5634
  %6395 = vmatpush2.bf16.msra.mxu0 %v5633
  %6396 = vmatprep.subr.bf16.mxu0 %v5632
  %6397 = vmatpush2.bf16.msra.mxu0 %v5631
  %6398 = vmatprep.subr.bf16.mxu0 %v5630
  %6399 = vmatpush2.bf16.msra.mxu0 %v5629
  %6400 = vmatprep.mubr.bf16.mxu0 %v4500
  %6401 = vmatmul.mubr.bf16.gmra.mxu0 %v4499
  %v6402 = vpop.f32.mrf.mxu0
  %v6403 = vadd.f32 %v6290, %v6402
  %v6404 = vpop.f32.mrf.mxu0
  %v6405 = vadd.f32 %v6292, %v6404
  %v6406 = vpop.f32.mrf.mxu0
  %v6407 = vadd.f32 %v6294, %v6406
  %v6408 = vpop.f32.mrf.mxu0
  %v6409 = vadd.f32 %v6296, %v6408
  %6410 = vmatprep.mubr.bf16.mxu0 %v4516
  %6411 = vmatmul.mubr.bf16.gmra.mxu0 %v4515
  %v6412 = vpop.f32.mrf.mxu0
  %v6413 = vadd.f32 %v6300, %v6412
  %v6414 = vpop.f32.mrf.mxu0
  %v6415 = vadd.f32 %v6302, %v6414
  %v6416 = vpop.f32.mrf.mxu0
  %v6417 = vadd.f32 %v6304, %v6416
  %v6418 = vpop.f32.mrf.mxu0
  %v6419 = vadd.f32 %v6306, %v6418
  %6420 = vmatprep.mubr.bf16.mxu0 %v4532
  %6421 = vmatmul.mubr.bf16.gmra.mxu0 %v4531
  %v6422 = vpop.f32.mrf.mxu0
  %v6423 = vadd.f32 %v6310, %v6422
  %v6424 = vpop.f32.mrf.mxu0
  %v6425 = vadd.f32 %v6312, %v6424
  %v6426 = vpop.f32.mrf.mxu0
  %v6427 = vadd.f32 %v6314, %v6426
  %v6428 = vpop.f32.mrf.mxu0
  %v6429 = vadd.f32 %v6316, %v6428
  %6430 = vmatprep.mubr.bf16.mxu0 %v4548
  %6431 = vmatmul.mubr.bf16.gmra.mxu0 %v4547
  %v6432 = vpop.f32.mrf.mxu0
  %v6433 = vadd.f32 %v6320, %v6432
  %v6434 = vpop.f32.mrf.mxu0
  %v6435 = vadd.f32 %v6322, %v6434
  %v6436 = vpop.f32.mrf.mxu0
  %v6437 = vadd.f32 %v6324, %v6436
  %v6438 = vpop.f32.mrf.mxu0
  %v6439 = vadd.f32 %v6326, %v6438
  %6440 = vmatprep.mubr.bf16.mxu0 %v4564
  %6441 = vmatmul.mubr.bf16.gmra.mxu0 %v4563
  %v6442 = vpop.f32.mrf.mxu0
  %v6443 = vadd.f32 %v6330, %v6442
  %v6444 = vpop.f32.mrf.mxu0
  %v6445 = vadd.f32 %v6332, %v6444
  %v6446 = vpop.f32.mrf.mxu0
  %v6447 = vadd.f32 %v6334, %v6446
  %v6448 = vpop.f32.mrf.mxu0
  %v6449 = vadd.f32 %v6336, %v6448
  %6450 = vmatprep.mubr.bf16.mxu0 %v4580
  %6451 = vmatmul.mubr.bf16.gmra.mxu0 %v4579
  %v6452 = vpop.f32.mrf.mxu0
  %v6453 = vadd.f32 %v6340, %v6452
  %v6454 = vpop.f32.mrf.mxu0
  %v6455 = vadd.f32 %v6342, %v6454
  %v6456 = vpop.f32.mrf.mxu0
  %v6457 = vadd.f32 %v6344, %v6456
  %v6458 = vpop.f32.mrf.mxu0
  %v6459 = vadd.f32 %v6346, %v6458
  %6460 = vmatprep.mubr.bf16.mxu0 %v4596
  %6461 = vmatmul.mubr.bf16.gmra.mxu0 %v4595
  %v6462 = vpop.f32.mrf.mxu0
  %v6463 = vadd.f32 %v6350, %v6462
  %v6464 = vpop.f32.mrf.mxu0
  %v6465 = vadd.f32 %v6352, %v6464
  %v6466 = vpop.f32.mrf.mxu0
  %v6467 = vadd.f32 %v6354, %v6466
  %v6468 = vpop.f32.mrf.mxu0
  %v6469 = vadd.f32 %v6356, %v6468
  %6470 = vmatprep.mubr.bf16.mxu0 %v4612
  %6471 = vmatmul.mubr.bf16.gmra.mxu0 %v4611
  %v6472 = vpop.f32.mrf.mxu0
  %v6473 = vadd.f32 %v6360, %v6472
  %v6474 = vpop.f32.mrf.mxu0
  %v6475 = vadd.f32 %v6362, %v6474
  %v6476 = vpop.f32.mrf.mxu0
  %v6477 = vadd.f32 %v6364, %v6476
  %v6478 = vpop.f32.mrf.mxu0
  %v6479 = vadd.f32 %v6366, %v6478
  %6480 = vdwg.mxu0
  %6481 = vmatprep.subr.bf16.mxu0 %v5660
  %6482 = vmatpush1.bf16.msra.mxu0 %v5659
  %6483 = vmatprep.subr.bf16.mxu0 %v5658
  %6484 = vmatpush1.bf16.msra.mxu0 %v5657
  %6485 = vmatprep.subr.bf16.mxu0 %v5656
  %6486 = vmatpush1.bf16.msra.mxu0 %v5655
  %6487 = vmatprep.subr.bf16.mxu0 %v5654
  %6488 = vmatpush1.bf16.msra.mxu0 %v5653
  %6489 = vmatprep.subr.bf16.mxu0 %v5652
  %6490 = vmatpush1.bf16.msra.mxu0 %v5651
  %6491 = vmatprep.subr.bf16.mxu0 %v5650
  %6492 = vmatpush1.bf16.msra.mxu0 %v5649
  %6493 = vmatprep.subr.bf16.mxu0 %v5648
  %6494 = vmatpush1.bf16.msra.mxu0 %v5647
  %6495 = vmatprep.subr.bf16.mxu0 %v5646
  %6496 = vmatpush1.bf16.msra.mxu0 %v5645
  %6497 = vmatprep.subr.bf16.mxu0 %v5676
  %6498 = vmatpush2.bf16.msra.mxu0 %v5675
  %6499 = vmatprep.subr.bf16.mxu0 %v5674
  %6500 = vmatpush2.bf16.msra.mxu0 %v5673
  %6501 = vmatprep.subr.bf16.mxu0 %v5672
  %6502 = vmatpush2.bf16.msra.mxu0 %v5671
  %6503 = vmatprep.subr.bf16.mxu0 %v5670
  %6504 = vmatpush2.bf16.msra.mxu0 %v5669
  %6505 = vmatprep.subr.bf16.mxu0 %v5668
  %6506 = vmatpush2.bf16.msra.mxu0 %v5667
  %6507 = vmatprep.subr.bf16.mxu0 %v5666
  %6508 = vmatpush2.bf16.msra.mxu0 %v5665
  %6509 = vmatprep.subr.bf16.mxu0 %v5664
  %6510 = vmatpush2.bf16.msra.mxu0 %v5663
  %6511 = vmatprep.subr.bf16.mxu0 %v5662
  %6512 = vmatpush2.bf16.msra.mxu0 %v5661
  %6513 = vmatprep.mubr.bf16.mxu0 %v4502
  %6514 = vmatmul.mubr.bf16.gmra.mxu0 %v4501
  %v6515 = vpop.f32.mrf.mxu0
  %v6516 = vadd.f32 %v6403, %v6515
  %v6517 = vpop.f32.mrf.mxu0
  %v6518 = vadd.f32 %v6405, %v6517
  %v6519 = vpop.f32.mrf.mxu0
  %v6520 = vadd.f32 %v6407, %v6519
  %v6521 = vpop.f32.mrf.mxu0
  %v6522 = vadd.f32 %v6409, %v6521
  %6523 = vmatprep.mubr.bf16.mxu0 %v4518
  %6524 = vmatmul.mubr.bf16.gmra.mxu0 %v4517
  %v6525 = vpop.f32.mrf.mxu0
  %v6526 = vadd.f32 %v6413, %v6525
  %v6527 = vpop.f32.mrf.mxu0
  %v6528 = vadd.f32 %v6415, %v6527
  %v6529 = vpop.f32.mrf.mxu0
  %v6530 = vadd.f32 %v6417, %v6529
  %v6531 = vpop.f32.mrf.mxu0
  %v6532 = vadd.f32 %v6419, %v6531
  %6533 = vmatprep.mubr.bf16.mxu0 %v4534
  %6534 = vmatmul.mubr.bf16.gmra.mxu0 %v4533
  %v6535 = vpop.f32.mrf.mxu0
  %v6536 = vadd.f32 %v6423, %v6535
  %v6537 = vpop.f32.mrf.mxu0
  %v6538 = vadd.f32 %v6425, %v6537
  %v6539 = vpop.f32.mrf.mxu0
  %v6540 = vadd.f32 %v6427, %v6539
  %v6541 = vpop.f32.mrf.mxu0
  %v6542 = vadd.f32 %v6429, %v6541
  %6543 = vmatprep.mubr.bf16.mxu0 %v4550
  %6544 = vmatmul.mubr.bf16.gmra.mxu0 %v4549
  %v6545 = vpop.f32.mrf.mxu0
  %v6546 = vadd.f32 %v6433, %v6545
  %v6547 = vpop.f32.mrf.mxu0
  %v6548 = vadd.f32 %v6435, %v6547
  %v6549 = vpop.f32.mrf.mxu0
  %v6550 = vadd.f32 %v6437, %v6549
  %v6551 = vpop.f32.mrf.mxu0
  %v6552 = vadd.f32 %v6439, %v6551
  %6553 = vmatprep.mubr.bf16.mxu0 %v4566
  %6554 = vmatmul.mubr.bf16.gmra.mxu0 %v4565
  %v6555 = vpop.f32.mrf.mxu0
  %v6556 = vadd.f32 %v6443, %v6555
  %v6557 = vpop.f32.mrf.mxu0
  %v6558 = vadd.f32 %v6445, %v6557
  %v6559 = vpop.f32.mrf.mxu0
  %v6560 = vadd.f32 %v6447, %v6559
  %v6561 = vpop.f32.mrf.mxu0
  %v6562 = vadd.f32 %v6449, %v6561
  %6563 = vmatprep.mubr.bf16.mxu0 %v4582
  %6564 = vmatmul.mubr.bf16.gmra.mxu0 %v4581
  %v6565 = vpop.f32.mrf.mxu0
  %v6566 = vadd.f32 %v6453, %v6565
  %v6567 = vpop.f32.mrf.mxu0
  %v6568 = vadd.f32 %v6455, %v6567
  %v6569 = vpop.f32.mrf.mxu0
  %v6570 = vadd.f32 %v6457, %v6569
  %v6571 = vpop.f32.mrf.mxu0
  %v6572 = vadd.f32 %v6459, %v6571
  %6573 = vmatprep.mubr.bf16.mxu0 %v4598
  %6574 = vmatmul.mubr.bf16.gmra.mxu0 %v4597
  %v6575 = vpop.f32.mrf.mxu0
  %v6576 = vadd.f32 %v6463, %v6575
  %v6577 = vpop.f32.mrf.mxu0
  %v6578 = vadd.f32 %v6465, %v6577
  %v6579 = vpop.f32.mrf.mxu0
  %v6580 = vadd.f32 %v6467, %v6579
  %v6581 = vpop.f32.mrf.mxu0
  %v6582 = vadd.f32 %v6469, %v6581
  %6583 = vmatprep.mubr.bf16.mxu0 %v4614
  %6584 = vmatmul.mubr.bf16.gmra.mxu0 %v4613
  %v6585 = vpop.f32.mrf.mxu0
  %v6586 = vadd.f32 %v6473, %v6585
  %v6587 = vpop.f32.mrf.mxu0
  %v6588 = vadd.f32 %v6475, %v6587
  %v6589 = vpop.f32.mrf.mxu0
  %v6590 = vadd.f32 %v6477, %v6589
  %v6591 = vpop.f32.mrf.mxu0
  %v6592 = vadd.f32 %v6479, %v6591
  %6593 = vdwg.mxu0
  %6594 = vmatprep.subr.bf16.mxu0 %v5692
  %6595 = vmatpush1.bf16.msra.mxu0 %v5691
  %6596 = vmatprep.subr.bf16.mxu0 %v5690
  %6597 = vmatpush1.bf16.msra.mxu0 %v5689
  %6598 = vmatprep.subr.bf16.mxu0 %v5688
  %6599 = vmatpush1.bf16.msra.mxu0 %v5687
  %6600 = vmatprep.subr.bf16.mxu0 %v5686
  %6601 = vmatpush1.bf16.msra.mxu0 %v5685
  %6602 = vmatprep.subr.bf16.mxu0 %v5684
  %6603 = vmatpush1.bf16.msra.mxu0 %v5683
  %6604 = vmatprep.subr.bf16.mxu0 %v5682
  %6605 = vmatpush1.bf16.msra.mxu0 %v5681
  %6606 = vmatprep.subr.bf16.mxu0 %v5680
  %6607 = vmatpush1.bf16.msra.mxu0 %v5679
  %6608 = vmatprep.subr.bf16.mxu0 %v5678
  %6609 = vmatpush1.bf16.msra.mxu0 %v5677
  %6610 = vmatprep.subr.bf16.mxu0 %v5708
  %6611 = vmatpush2.bf16.msra.mxu0 %v5707
  %6612 = vmatprep.subr.bf16.mxu0 %v5706
  %6613 = vmatpush2.bf16.msra.mxu0 %v5705
  %6614 = vmatprep.subr.bf16.mxu0 %v5704
  %6615 = vmatpush2.bf16.msra.mxu0 %v5703
  %6616 = vmatprep.subr.bf16.mxu0 %v5702
  %6617 = vmatpush2.bf16.msra.mxu0 %v5701
  %6618 = vmatprep.subr.bf16.mxu0 %v5700
  %6619 = vmatpush2.bf16.msra.mxu0 %v5699
  %6620 = vmatprep.subr.bf16.mxu0 %v5698
  %6621 = vmatpush2.bf16.msra.mxu0 %v5697
  %6622 = vmatprep.subr.bf16.mxu0 %v5696
  %6623 = vmatpush2.bf16.msra.mxu0 %v5695
  %6624 = vmatprep.subr.bf16.mxu0 %v5694
  %6625 = vmatpush2.bf16.msra.mxu0 %v5693
  %6626 = vmatprep.mubr.bf16.mxu0 %v4504
  %6627 = vmatmul.mubr.bf16.gmra.mxu0 %v4503
  %v6628 = vpop.f32.mrf.mxu0
  %v6629 = vadd.f32 %v6516, %v6628
  %v6630 = vpop.f32.mrf.mxu0
  %v6631 = vadd.f32 %v6518, %v6630
  %v6632 = vpop.f32.mrf.mxu0
  %v6633 = vadd.f32 %v6520, %v6632
  %v6634 = vpop.f32.mrf.mxu0
  %v6635 = vadd.f32 %v6522, %v6634
  %6636 = vmatprep.mubr.bf16.mxu0 %v4520
  %6637 = vmatmul.mubr.bf16.gmra.mxu0 %v4519
  %v6638 = vpop.f32.mrf.mxu0
  %v6639 = vadd.f32 %v6526, %v6638
  %v6640 = vpop.f32.mrf.mxu0
  %v6641 = vadd.f32 %v6528, %v6640
  %v6642 = vpop.f32.mrf.mxu0
  %v6643 = vadd.f32 %v6530, %v6642
  %v6644 = vpop.f32.mrf.mxu0
  %v6645 = vadd.f32 %v6532, %v6644
  %6646 = vmatprep.mubr.bf16.mxu0 %v4536
  %6647 = vmatmul.mubr.bf16.gmra.mxu0 %v4535
  %v6648 = vpop.f32.mrf.mxu0
  %v6649 = vadd.f32 %v6536, %v6648
  %v6650 = vpop.f32.mrf.mxu0
  %v6651 = vadd.f32 %v6538, %v6650
  %v6652 = vpop.f32.mrf.mxu0
  %v6653 = vadd.f32 %v6540, %v6652
  %v6654 = vpop.f32.mrf.mxu0
  %v6655 = vadd.f32 %v6542, %v6654
  %6656 = vmatprep.mubr.bf16.mxu0 %v4552
  %6657 = vmatmul.mubr.bf16.gmra.mxu0 %v4551
  %v6658 = vpop.f32.mrf.mxu0
  %v6659 = vadd.f32 %v6546, %v6658
  %v6660 = vpop.f32.mrf.mxu0
  %v6661 = vadd.f32 %v6548, %v6660
  %v6662 = vpop.f32.mrf.mxu0
  %v6663 = vadd.f32 %v6550, %v6662
  %v6664 = vpop.f32.mrf.mxu0
  %v6665 = vadd.f32 %v6552, %v6664
  %6666 = vmatprep.mubr.bf16.mxu0 %v4568
  %6667 = vmatmul.mubr.bf16.gmra.mxu0 %v4567
  %v6668 = vpop.f32.mrf.mxu0
  %v6669 = vadd.f32 %v6556, %v6668
  %v6670 = vpop.f32.mrf.mxu0
  %v6671 = vadd.f32 %v6558, %v6670
  %v6672 = vpop.f32.mrf.mxu0
  %v6673 = vadd.f32 %v6560, %v6672
  %v6674 = vpop.f32.mrf.mxu0
  %v6675 = vadd.f32 %v6562, %v6674
  %6676 = vmatprep.mubr.bf16.mxu0 %v4584
  %6677 = vmatmul.mubr.bf16.gmra.mxu0 %v4583
  %v6678 = vpop.f32.mrf.mxu0
  %v6679 = vadd.f32 %v6566, %v6678
  %v6680 = vpop.f32.mrf.mxu0
  %v6681 = vadd.f32 %v6568, %v6680
  %v6682 = vpop.f32.mrf.mxu0
  %v6683 = vadd.f32 %v6570, %v6682
  %v6684 = vpop.f32.mrf.mxu0
  %v6685 = vadd.f32 %v6572, %v6684
  %6686 = vmatprep.mubr.bf16.mxu0 %v4600
  %6687 = vmatmul.mubr.bf16.gmra.mxu0 %v4599
  %v6688 = vpop.f32.mrf.mxu0
  %v6689 = vadd.f32 %v6576, %v6688
  %v6690 = vpop.f32.mrf.mxu0
  %v6691 = vadd.f32 %v6578, %v6690
  %v6692 = vpop.f32.mrf.mxu0
  %v6693 = vadd.f32 %v6580, %v6692
  %v6694 = vpop.f32.mrf.mxu0
  %v6695 = vadd.f32 %v6582, %v6694
  %6696 = vmatprep.mubr.bf16.mxu0 %v4616
  %6697 = vmatmul.mubr.bf16.gmra.mxu0 %v4615
  %v6698 = vpop.f32.mrf.mxu0
  %v6699 = vadd.f32 %v6586, %v6698
  %v6700 = vpop.f32.mrf.mxu0
  %v6701 = vadd.f32 %v6588, %v6700
  %v6702 = vpop.f32.mrf.mxu0
  %v6703 = vadd.f32 %v6590, %v6702
  %v6704 = vpop.f32.mrf.mxu0
  %v6705 = vadd.f32 %v6592, %v6704
  %6706 = vdwg.mxu0
  %6707 = vmatprep.subr.bf16.mxu0 %v5724
  %6708 = vmatpush1.bf16.msra.mxu0 %v5723
  %6709 = vmatprep.subr.bf16.mxu0 %v5722
  %6710 = vmatpush1.bf16.msra.mxu0 %v5721
  %6711 = vmatprep.subr.bf16.mxu0 %v5720
  %6712 = vmatpush1.bf16.msra.mxu0 %v5719
  %6713 = vmatprep.subr.bf16.mxu0 %v5718
  %6714 = vmatpush1.bf16.msra.mxu0 %v5717
  %6715 = vmatprep.subr.bf16.mxu0 %v5716
  %6716 = vmatpush1.bf16.msra.mxu0 %v5715
  %6717 = vmatprep.subr.bf16.mxu0 %v5714
  %6718 = vmatpush1.bf16.msra.mxu0 %v5713
  %6719 = vmatprep.subr.bf16.mxu0 %v5712
  %6720 = vmatpush1.bf16.msra.mxu0 %v5711
  %6721 = vmatprep.subr.bf16.mxu0 %v5710
  %6722 = vmatpush1.bf16.msra.mxu0 %v5709
  %6723 = vmatprep.subr.bf16.mxu0 %v5740
  %6724 = vmatpush2.bf16.msra.mxu0 %v5739
  %6725 = vmatprep.subr.bf16.mxu0 %v5738
  %6726 = vmatpush2.bf16.msra.mxu0 %v5737
  %6727 = vmatprep.subr.bf16.mxu0 %v5736
  %6728 = vmatpush2.bf16.msra.mxu0 %v5735
  %6729 = vmatprep.subr.bf16.mxu0 %v5734
  %6730 = vmatpush2.bf16.msra.mxu0 %v5733
  %6731 = vmatprep.subr.bf16.mxu0 %v5732
  %6732 = vmatpush2.bf16.msra.mxu0 %v5731
  %6733 = vmatprep.subr.bf16.mxu0 %v5730
  %6734 = vmatpush2.bf16.msra.mxu0 %v5729
  %6735 = vmatprep.subr.bf16.mxu0 %v5728
  %6736 = vmatpush2.bf16.msra.mxu0 %v5727
  %6737 = vmatprep.subr.bf16.mxu0 %v5726
  %6738 = vmatpush2.bf16.msra.mxu0 %v5725
  %6739 = vmatprep.mubr.bf16.mxu0 %v4506
  %6740 = vmatmul.mubr.bf16.gmra.mxu0 %v4505
  %v6741 = vpop.f32.mrf.mxu0
  %v6742 = vadd.f32 %v6629, %v6741
  %v6743 = vpop.f32.mrf.mxu0
  %v6744 = vadd.f32 %v6631, %v6743
  %v6745 = vpop.f32.mrf.mxu0
  %v6746 = vadd.f32 %v6633, %v6745
  %v6747 = vpop.f32.mrf.mxu0
  %v6748 = vadd.f32 %v6635, %v6747
  %6749 = vmatprep.mubr.bf16.mxu0 %v4522
  %6750 = vmatmul.mubr.bf16.gmra.mxu0 %v4521
  %v6751 = vpop.f32.mrf.mxu0
  %v6752 = vadd.f32 %v6639, %v6751
  %v6753 = vpop.f32.mrf.mxu0
  %v6754 = vadd.f32 %v6641, %v6753
  %v6755 = vpop.f32.mrf.mxu0
  %v6756 = vadd.f32 %v6643, %v6755
  %v6757 = vpop.f32.mrf.mxu0
  %v6758 = vadd.f32 %v6645, %v6757
  %6759 = vmatprep.mubr.bf16.mxu0 %v4538
  %6760 = vmatmul.mubr.bf16.gmra.mxu0 %v4537
  %v6761 = vpop.f32.mrf.mxu0
  %v6762 = vadd.f32 %v6649, %v6761
  %v6763 = vpop.f32.mrf.mxu0
  %v6764 = vadd.f32 %v6651, %v6763
  %v6765 = vpop.f32.mrf.mxu0
  %v6766 = vadd.f32 %v6653, %v6765
  %v6767 = vpop.f32.mrf.mxu0
  %v6768 = vadd.f32 %v6655, %v6767
  %6769 = vmatprep.mubr.bf16.mxu0 %v4554
  %6770 = vmatmul.mubr.bf16.gmra.mxu0 %v4553
  %v6771 = vpop.f32.mrf.mxu0
  %v6772 = vadd.f32 %v6659, %v6771
  %v6773 = vpop.f32.mrf.mxu0
  %v6774 = vadd.f32 %v6661, %v6773
  %v6775 = vpop.f32.mrf.mxu0
  %v6776 = vadd.f32 %v6663, %v6775
  %v6777 = vpop.f32.mrf.mxu0
  %v6778 = vadd.f32 %v6665, %v6777
  %6779 = vmatprep.mubr.bf16.mxu0 %v4570
  %6780 = vmatmul.mubr.bf16.gmra.mxu0 %v4569
  %v6781 = vpop.f32.mrf.mxu0
  %v6782 = vadd.f32 %v6669, %v6781
  %v6783 = vpop.f32.mrf.mxu0
  %v6784 = vadd.f32 %v6671, %v6783
  %v6785 = vpop.f32.mrf.mxu0
  %v6786 = vadd.f32 %v6673, %v6785
  %v6787 = vpop.f32.mrf.mxu0
  %v6788 = vadd.f32 %v6675, %v6787
  %6789 = vmatprep.mubr.bf16.mxu0 %v4586
  %6790 = vmatmul.mubr.bf16.gmra.mxu0 %v4585
  %v6791 = vpop.f32.mrf.mxu0
  %v6792 = vadd.f32 %v6679, %v6791
  %v6793 = vpop.f32.mrf.mxu0
  %v6794 = vadd.f32 %v6681, %v6793
  %v6795 = vpop.f32.mrf.mxu0
  %v6796 = vadd.f32 %v6683, %v6795
  %v6797 = vpop.f32.mrf.mxu0
  %v6798 = vadd.f32 %v6685, %v6797
  %6799 = vmatprep.mubr.bf16.mxu0 %v4602
  %6800 = vmatmul.mubr.bf16.gmra.mxu0 %v4601
  %v6801 = vpop.f32.mrf.mxu0
  %v6802 = vadd.f32 %v6689, %v6801
  %v6803 = vpop.f32.mrf.mxu0
  %v6804 = vadd.f32 %v6691, %v6803
  %v6805 = vpop.f32.mrf.mxu0
  %v6806 = vadd.f32 %v6693, %v6805
  %v6807 = vpop.f32.mrf.mxu0
  %v6808 = vadd.f32 %v6695, %v6807
  %6809 = vmatprep.mubr.bf16.mxu0 %v4618
  %6810 = vmatmul.mubr.bf16.gmra.mxu0 %v4617
  %v6811 = vpop.f32.mrf.mxu0
  %v6812 = vadd.f32 %v6699, %v6811
  %v6813 = vpop.f32.mrf.mxu0
  %v6814 = vadd.f32 %v6701, %v6813
  %v6815 = vpop.f32.mrf.mxu0
  %v6816 = vadd.f32 %v6703, %v6815
  %v6817 = vpop.f32.mrf.mxu0
  %v6818 = vadd.f32 %v6705, %v6817
  %6819 = vdwg.mxu0
  %6820 = vmatprep.subr.bf16.mxu0 %v5756
  %6821 = vmatpush1.bf16.msra.mxu0 %v5755
  %6822 = vmatprep.subr.bf16.mxu0 %v5754
  %6823 = vmatpush1.bf16.msra.mxu0 %v5753
  %6824 = vmatprep.subr.bf16.mxu0 %v5752
  %6825 = vmatpush1.bf16.msra.mxu0 %v5751
  %6826 = vmatprep.subr.bf16.mxu0 %v5750
  %6827 = vmatpush1.bf16.msra.mxu0 %v5749
  %6828 = vmatprep.subr.bf16.mxu0 %v5748
  %6829 = vmatpush1.bf16.msra.mxu0 %v5747
  %6830 = vmatprep.subr.bf16.mxu0 %v5746
  %6831 = vmatpush1.bf16.msra.mxu0 %v5745
  %6832 = vmatprep.subr.bf16.mxu0 %v5744
  %6833 = vmatpush1.bf16.msra.mxu0 %v5743
  %6834 = vmatprep.subr.bf16.mxu0 %v5742
  %6835 = vmatpush1.bf16.msra.mxu0 %v5741
  %6836 = vmatprep.subr.bf16.mxu0 %v5772
  %6837 = vmatpush2.bf16.msra.mxu0 %v5771
  %6838 = vmatprep.subr.bf16.mxu0 %v5770
  %6839 = vmatpush2.bf16.msra.mxu0 %v5769
  %6840 = vmatprep.subr.bf16.mxu0 %v5768
  %6841 = vmatpush2.bf16.msra.mxu0 %v5767
  %6842 = vmatprep.subr.bf16.mxu0 %v5766
  %6843 = vmatpush2.bf16.msra.mxu0 %v5765
  %6844 = vmatprep.subr.bf16.mxu0 %v5764
  %6845 = vmatpush2.bf16.msra.mxu0 %v5763
  %6846 = vmatprep.subr.bf16.mxu0 %v5762
  %6847 = vmatpush2.bf16.msra.mxu0 %v5761
  %6848 = vmatprep.subr.bf16.mxu0 %v5760
  %6849 = vmatpush2.bf16.msra.mxu0 %v5759
  %6850 = vmatprep.subr.bf16.mxu0 %v5758
  %6851 = vmatpush2.bf16.msra.mxu0 %v5757
  %6852 = vmatprep.mubr.bf16.mxu0 %v4508
  %6853 = vmatmul.mubr.bf16.gmra.mxu0 %v4507
  %v6854 = vpop.f32.mrf.mxu0
  %v6855 = vadd.f32 %v6742, %v6854
  %v6856 = vpop.f32.mrf.mxu0
  %v6857 = vadd.f32 %v6744, %v6856
  %v6858 = vpop.f32.mrf.mxu0
  %v6859 = vadd.f32 %v6746, %v6858
  %v6860 = vpop.f32.mrf.mxu0
  %v6861 = vadd.f32 %v6748, %v6860
  %6862 = vmatprep.mubr.bf16.mxu0 %v4524
  %6863 = vmatmul.mubr.bf16.gmra.mxu0 %v4523
  %v6864 = vpop.f32.mrf.mxu0
  %v6865 = vadd.f32 %v6752, %v6864
  %v6866 = vpop.f32.mrf.mxu0
  %v6867 = vadd.f32 %v6754, %v6866
  %v6868 = vpop.f32.mrf.mxu0
  %v6869 = vadd.f32 %v6756, %v6868
  %v6870 = vpop.f32.mrf.mxu0
  %v6871 = vadd.f32 %v6758, %v6870
  %6872 = vmatprep.mubr.bf16.mxu0 %v4540
  %6873 = vmatmul.mubr.bf16.gmra.mxu0 %v4539
  %v6874 = vpop.f32.mrf.mxu0
  %v6875 = vadd.f32 %v6762, %v6874
  %v6876 = vpop.f32.mrf.mxu0
  %v6877 = vadd.f32 %v6764, %v6876
  %v6878 = vpop.f32.mrf.mxu0
  %v6879 = vadd.f32 %v6766, %v6878
  %v6880 = vpop.f32.mrf.mxu0
  %v6881 = vadd.f32 %v6768, %v6880
  %6882 = vmatprep.mubr.bf16.mxu0 %v4556
  %6883 = vmatmul.mubr.bf16.gmra.mxu0 %v4555
  %v6884 = vpop.f32.mrf.mxu0
  %v6885 = vadd.f32 %v6772, %v6884
  %v6886 = vpop.f32.mrf.mxu0
  %v6887 = vadd.f32 %v6774, %v6886
  %v6888 = vpop.f32.mrf.mxu0
  %v6889 = vadd.f32 %v6776, %v6888
  %v6890 = vpop.f32.mrf.mxu0
  %v6891 = vadd.f32 %v6778, %v6890
  %6892 = vmatprep.mubr.bf16.mxu0 %v4572
  %6893 = vmatmul.mubr.bf16.gmra.mxu0 %v4571
  %v6894 = vpop.f32.mrf.mxu0
  %v6895 = vadd.f32 %v6782, %v6894
  %v6896 = vpop.f32.mrf.mxu0
  %v6897 = vadd.f32 %v6784, %v6896
  %v6898 = vpop.f32.mrf.mxu0
  %v6899 = vadd.f32 %v6786, %v6898
  %v6900 = vpop.f32.mrf.mxu0
  %v6901 = vadd.f32 %v6788, %v6900
  %6902 = vmatprep.mubr.bf16.mxu0 %v4588
  %6903 = vmatmul.mubr.bf16.gmra.mxu0 %v4587
  %v6904 = vpop.f32.mrf.mxu0
  %v6905 = vadd.f32 %v6792, %v6904
  %v6906 = vpop.f32.mrf.mxu0
  %v6907 = vadd.f32 %v6794, %v6906
  %v6908 = vpop.f32.mrf.mxu0
  %v6909 = vadd.f32 %v6796, %v6908
  %v6910 = vpop.f32.mrf.mxu0
  %v6911 = vadd.f32 %v6798, %v6910
  %6912 = vmatprep.mubr.bf16.mxu0 %v4604
  %6913 = vmatmul.mubr.bf16.gmra.mxu0 %v4603
  %v6914 = vpop.f32.mrf.mxu0
  %v6915 = vadd.f32 %v6802, %v6914
  %v6916 = vpop.f32.mrf.mxu0
  %v6917 = vadd.f32 %v6804, %v6916
  %v6918 = vpop.f32.mrf.mxu0
  %v6919 = vadd.f32 %v6806, %v6918
  %v6920 = vpop.f32.mrf.mxu0
  %v6921 = vadd.f32 %v6808, %v6920
  %6922 = vmatprep.mubr.bf16.mxu0 %v4620
  %6923 = vmatmul.mubr.bf16.gmra.mxu0 %v4619
  %v6924 = vpop.f32.mrf.mxu0
  %v6925 = vadd.f32 %v6812, %v6924
  %v6926 = vpop.f32.mrf.mxu0
  %v6927 = vadd.f32 %v6814, %v6926
  %v6928 = vpop.f32.mrf.mxu0
  %v6929 = vadd.f32 %v6816, %v6928
  %v6930 = vpop.f32.mrf.mxu0
  %v6931 = vadd.f32 %v6818, %v6930
  %6932 = vdwg.mxu0
  %vm6933 = vcmp.ge.f32.partialorder %v6855, 0.0
  %vm6934 = vcmp.ge.f32.partialorder %v6857, 0.0
  %vm6935 = vcmp.ge.f32.partialorder %v6859, 0.0
  %vm6936 = vcmp.ge.f32.partialorder %v6861, 0.0
  %vm6937 = vcmp.ge.f32.partialorder %v6865, 0.0
  %vm6938 = vcmp.ge.f32.partialorder %v6867, 0.0
  %vm6939 = vcmp.ge.f32.partialorder %v6869, 0.0
  %vm6940 = vcmp.ge.f32.partialorder %v6871, 0.0
  %vm6941 = vcmp.ge.f32.partialorder %v6875, 0.0
  %vm6942 = vcmp.ge.f32.partialorder %v6877, 0.0
  %vm6943 = vcmp.ge.f32.partialorder %v6879, 0.0
  %vm6944 = vcmp.ge.f32.partialorder %v6881, 0.0
  %vm6945 = vcmp.ge.f32.partialorder %v6885, 0.0
  %vm6946 = vcmp.ge.f32.partialorder %v6887, 0.0
  %vm6947 = vcmp.ge.f32.partialorder %v6889, 0.0
  %vm6948 = vcmp.ge.f32.partialorder %v6891, 0.0
  %vm6949 = vcmp.ge.f32.partialorder %v6895, 0.0
  %vm6950 = vcmp.ge.f32.partialorder %v6897, 0.0
  %vm6951 = vcmp.ge.f32.partialorder %v6899, 0.0
  %vm6952 = vcmp.ge.f32.partialorder %v6901, 0.0
  %vm6953 = vcmp.ge.f32.partialorder %v6905, 0.0
  %vm6954 = vcmp.ge.f32.partialorder %v6907, 0.0
  %vm6955 = vcmp.ge.f32.partialorder %v6909, 0.0
  %vm6956 = vcmp.ge.f32.partialorder %v6911, 0.0
  %vm6957 = vcmp.ge.f32.partialorder %v6915, 0.0
  %vm6958 = vcmp.ge.f32.partialorder %v6917, 0.0
  %vm6959 = vcmp.ge.f32.partialorder %v6919, 0.0
  %vm6960 = vcmp.ge.f32.partialorder %v6921, 0.0
  %vm6961 = vcmp.ge.f32.partialorder %v6925, 0.0
  %vm6962 = vcmp.ge.f32.partialorder %v6927, 0.0
  %vm6963 = vcmp.ge.f32.partialorder %v6929, 0.0
  %vm6964 = vcmp.ge.f32.partialorder %v6931, 0.0
  %v6965 = vmul.f32 %v6855, 0.01
  %v6966 = vmul.f32 %v6857, 0.01
  %v6967 = vmul.f32 %v6859, 0.01
  %v6968 = vmul.f32 %v6861, 0.01
  %v6969 = vmul.f32 %v6865, 0.01
  %v6970 = vmul.f32 %v6867, 0.01
  %v6971 = vmul.f32 %v6869, 0.01
  %v6972 = vmul.f32 %v6871, 0.01
  %v6973 = vmul.f32 %v6875, 0.01
  %v6974 = vmul.f32 %v6877, 0.01
  %v6975 = vmul.f32 %v6879, 0.01
  %v6976 = vmul.f32 %v6881, 0.01
  %v6977 = vmul.f32 %v6885, 0.01
  %v6978 = vmul.f32 %v6887, 0.01
  %v6979 = vmul.f32 %v6889, 0.01
  %v6980 = vmul.f32 %v6891, 0.01
  %v6981 = vmul.f32 %v6895, 0.01
  %v6982 = vmul.f32 %v6897, 0.01
  %v6983 = vmul.f32 %v6899, 0.01
  %v6984 = vmul.f32 %v6901, 0.01
  %v6985 = vmul.f32 %v6905, 0.01
  %v6986 = vmul.f32 %v6907, 0.01
  %v6987 = vmul.f32 %v6909, 0.01
  %v6988 = vmul.f32 %v6911, 0.01
  %v6989 = vmul.f32 %v6915, 0.01
  %v6990 = vmul.f32 %v6917, 0.01
  %v6991 = vmul.f32 %v6919, 0.01
  %v6992 = vmul.f32 %v6921, 0.01
  %v6993 = vmul.f32 %v6925, 0.01
  %v6994 = vmul.f32 %v6927, 0.01
  %v6995 = vmul.f32 %v6929, 0.01
  %v6996 = vmul.f32 %v6931, 0.01
  %v6997 = vsel %vm6933, %v6855, %v6965
  %v6998 = vsel %vm6934, %v6857, %v6966
  %v6999 = vsel %vm6935, %v6859, %v6967
  %v7000 = vsel %vm6936, %v6861, %v6968
  %v7001 = vsel %vm6937, %v6865, %v6969
  %v7002 = vsel %vm6938, %v6867, %v6970
  %v7003 = vsel %vm6939, %v6869, %v6971
  %v7004 = vsel %vm6940, %v6871, %v6972
  %v7005 = vsel %vm6941, %v6875, %v6973
  %v7006 = vsel %vm6942, %v6877, %v6974
  %v7007 = vsel %vm6943, %v6879, %v6975
  %v7008 = vsel %vm6944, %v6881, %v6976
  %v7009 = vsel %vm6945, %v6885, %v6977
  %v7010 = vsel %vm6946, %v6887, %v6978
  %v7011 = vsel %vm6947, %v6889, %v6979
  %v7012 = vsel %vm6948, %v6891, %v6980
  %v7013 = vsel %vm6949, %v6895, %v6981
  %v7014 = vsel %vm6950, %v6897, %v6982
  %v7015 = vsel %vm6951, %v6899, %v6983
  %v7016 = vsel %vm6952, %v6901, %v6984
  %v7017 = vsel %vm6953, %v6905, %v6985
  %v7018 = vsel %vm6954, %v6907, %v6986
  %v7019 = vsel %vm6955, %v6909, %v6987
  %v7020 = vsel %vm6956, %v6911, %v6988
  %v7021 = vsel %vm6957, %v6915, %v6989
  %v7022 = vsel %vm6958, %v6917, %v6990
  %v7023 = vsel %vm6959, %v6919, %v6991
  %v7024 = vsel %vm6960, %v6921, %v6992
  %v7025 = vsel %vm6961, %v6925, %v6993
  %v7026 = vsel %vm6962, %v6927, %v6994
  %v7027 = vsel %vm6963, %v6929, %v6995
  %v7028 = vsel %vm6964, %v6931, %v6996
  %v7029 = vpack.c.bf16 %v6999, %v6997
  %v7030 = vpack.c.bf16 %v7000, %v6998
  %v7031 = vpack.c.bf16 %v7003, %v7001
  %v7032 = vpack.c.bf16 %v7004, %v7002
  %v7037 = vunpack.c.l.b16 %v7029
  %v7038 = vunpack.c.l.b16 %v7030
  %v7039 = vunpack.c.h.b16 %v7029
  %v7040 = vunpack.c.h.b16 %v7030
  %v7041 = vunpack.c.l.b16 %v7031
  %v7042 = vunpack.c.l.b16 %v7032
  %v7043 = vunpack.c.h.b16 %v7031
  %v7044 = vunpack.c.h.b16 %v7032
  %v7045 = vpack.c.b16 %v7038, %v7037
  %v7046 = vpack.c.b16 %v7040, %v7039
  %v7047 = vpack.c.b16 %v7042, %v7041
  %v7048 = vpack.c.b16 %v7044, %v7043
  %7053 = vst [vmem:[#allocation3] sm:$0xff] %v7045
  %7054 = vst [vmem:[#allocation3 + $0x20] sm:$0xff] %v7046
  %7055 = vst [vmem:[#allocation3 + $0x40] sm:$0xff] %v7047
  %7056 = vst [vmem:[#allocation3 + $0x60] sm:$0xff] %v7048
  %v7057 = vpack.c.bf16 %v7007, %v7005
  %v7058 = vpack.c.bf16 %v7008, %v7006
  %v7059 = vpack.c.bf16 %v7011, %v7009
  %v7060 = vpack.c.bf16 %v7012, %v7010
  %v7065 = vunpack.c.l.b16 %v7057
  %v7066 = vunpack.c.l.b16 %v7058
  %v7067 = vunpack.c.h.b16 %v7057
  %v7068 = vunpack.c.h.b16 %v7058
  %v7069 = vunpack.c.l.b16 %v7059
  %v7070 = vunpack.c.l.b16 %v7060
  %v7071 = vunpack.c.h.b16 %v7059
  %v7072 = vunpack.c.h.b16 %v7060
  %v7073 = vpack.c.b16 %v7066, %v7065
  %v7074 = vpack.c.b16 %v7068, %v7067
  %v7075 = vpack.c.b16 %v7070, %v7069
  %v7076 = vpack.c.b16 %v7072, %v7071
  %7081 = vst [vmem:[#allocation3 + $0x8] sm:$0xff] %v7073
  %7082 = vst [vmem:[#allocation3 + $0x28] sm:$0xff] %v7074
  %7083 = vst [vmem:[#allocation3 + $0x48] sm:$0xff] %v7075
  %7084 = vst [vmem:[#allocation3 + $0x68] sm:$0xff] %v7076
  %v7085 = vpack.c.bf16 %v7015, %v7013
  %v7086 = vpack.c.bf16 %v7016, %v7014
  %v7087 = vpack.c.bf16 %v7019, %v7017
  %v7088 = vpack.c.bf16 %v7020, %v7018
  %v7093 = vunpack.c.l.b16 %v7085
  %v7094 = vunpack.c.l.b16 %v7086
  %v7095 = vunpack.c.h.b16 %v7085
  %v7096 = vunpack.c.h.b16 %v7086
  %v7097 = vunpack.c.l.b16 %v7087
  %v7098 = vunpack.c.l.b16 %v7088
  %v7099 = vunpack.c.h.b16 %v7087
  %v7100 = vunpack.c.h.b16 %v7088
  %v7101 = vpack.c.b16 %v7094, %v7093
  %v7102 = vpack.c.b16 %v7096, %v7095
  %v7103 = vpack.c.b16 %v7098, %v7097
  %v7104 = vpack.c.b16 %v7100, %v7099
  %7109 = vst [vmem:[#allocation3 + $0x10] sm:$0xff] %v7101
  %7110 = vst [vmem:[#allocation3 + $0x30] sm:$0xff] %v7102
  %7111 = vst [vmem:[#allocation3 + $0x50] sm:$0xff] %v7103
  %7112 = vst [vmem:[#allocation3 + $0x70] sm:$0xff] %v7104
  %v7113 = vpack.c.bf16 %v7023, %v7021
  %v7114 = vpack.c.bf16 %v7024, %v7022
  %v7115 = vpack.c.bf16 %v7027, %v7025
  %v7116 = vpack.c.bf16 %v7028, %v7026
  %v7121 = vunpack.c.l.b16 %v7113
  %v7122 = vunpack.c.l.b16 %v7114
  %v7123 = vunpack.c.h.b16 %v7113
  %v7124 = vunpack.c.h.b16 %v7114
  %v7125 = vunpack.c.l.b16 %v7115
  %v7126 = vunpack.c.l.b16 %v7116
  %v7127 = vunpack.c.h.b16 %v7115
  %v7128 = vunpack.c.h.b16 %v7116
  %v7129 = vpack.c.b16 %v7122, %v7121
  %v7130 = vpack.c.b16 %v7124, %v7123
  %v7131 = vpack.c.b16 %v7126, %v7125
  %v7132 = vpack.c.b16 %v7128, %v7127
  %7137 = vst [vmem:[#allocation3 + $0x18] sm:$0xff] %v7129
  %7138 = vst [vmem:[#allocation3 + $0x38] sm:$0xff] %v7130
  %7139 = vst [vmem:[#allocation3 + $0x58] sm:$0xff] %v7131
  %7140 = vst [vmem:[#allocation3 + $0x78] sm:$0xff] %v7132
  %v7141 = vld [vmem:[#allocation3] sm:$0xff]
  %v7142 = vld [vmem:[#allocation3 + $0x8] sm:$0xff]
  %v7143 = vld [vmem:[#allocation3 + $0x10] sm:$0xff]
  %v7144 = vld [vmem:[#allocation3 + $0x18] sm:$0xff]
  %v7145 = vld [vmem:[#allocation3 + $0x20] sm:$0xff]
  %v7146 = vld [vmem:[#allocation3 + $0x28] sm:$0xff]
  %v7147 = vld [vmem:[#allocation3 + $0x30] sm:$0xff]
  %v7148 = vld [vmem:[#allocation3 + $0x38] sm:$0xff]
  %v7149 = vld [vmem:[#allocation3 + $0x40] sm:$0xff]
  %v7150 = vld [vmem:[#allocation3 + $0x48] sm:$0xff]
  %v7151 = vld [vmem:[#allocation3 + $0x50] sm:$0xff]
  %v7152 = vld [vmem:[#allocation3 + $0x58] sm:$0xff]
  %v7153 = vld [vmem:[#allocation3 + $0x60] sm:$0xff]
  %v7154 = vld [vmem:[#allocation3 + $0x68] sm:$0xff]
  %v7155 = vld [vmem:[#allocation3 + $0x70] sm:$0xff]
  %v7156 = vld [vmem:[#allocation3 + $0x78] sm:$0xff]
  %v7157 = vld [vmem:[%s5] sm:$0xff]
  %v7158 = vld [vmem:[%s5 + $0x8] sm:$0xff]
  %v7159 = vld [vmem:[%s5 + $0x10] sm:$0xff]
  %v7160 = vld [vmem:[%s5 + $0x18] sm:$0xff]
  %v7161 = vld [vmem:[%s5 + $0x20] sm:$0xff]
  %v7162 = vld [vmem:[%s5 + $0x28] sm:$0xff]
  %v7163 = vld [vmem:[%s5 + $0x30] sm:$0xff]
  %v7164 = vld [vmem:[%s5 + $0x38] sm:$0xff]
  %v7165 = vld [vmem:[%s5 + $0x40] sm:$0xff]
  %v7166 = vld [vmem:[%s5 + $0x48] sm:$0xff]
  %v7167 = vld [vmem:[%s5 + $0x50] sm:$0xff]
  %v7168 = vld [vmem:[%s5 + $0x58] sm:$0xff]
  %v7169 = vld [vmem:[%s5 + $0x60] sm:$0xff]
  %v7170 = vld [vmem:[%s5 + $0x68] sm:$0xff]
  %v7171 = vld [vmem:[%s5 + $0x70] sm:$0xff]
  %v7172 = vld [vmem:[%s5 + $0x78] sm:$0xff]
  %v7173 = vld [vmem:[%s5 + $0x80] sm:$0xff]
  %v7174 = vld [vmem:[%s5 + $0x88] sm:$0xff]
  %v7175 = vld [vmem:[%s5 + $0x90] sm:$0xff]
  %v7176 = vld [vmem:[%s5 + $0x98] sm:$0xff]
  %v7177 = vld [vmem:[%s5 + $0xa0] sm:$0xff]
  %v7178 = vld [vmem:[%s5 + $0xa8] sm:$0xff]
  %v7179 = vld [vmem:[%s5 + $0xb0] sm:$0xff]
  %v7180 = vld [vmem:[%s5 + $0xb8] sm:$0xff]
  %v7181 = vld [vmem:[%s5 + $0xc0] sm:$0xff]
  %v7182 = vld [vmem:[%s5 + $0xc8] sm:$0xff]
  %v7183 = vld [vmem:[%s5 + $0xd0] sm:$0xff]
  %v7184 = vld [vmem:[%s5 + $0xd8] sm:$0xff]
  %v7185 = vld [vmem:[%s5 + $0xe0] sm:$0xff]
  %v7186 = vld [vmem:[%s5 + $0xe8] sm:$0xff]
  %v7187 = vld [vmem:[%s5 + $0xf0] sm:$0xff]
  %v7188 = vld [vmem:[%s5 + $0xf8] sm:$0xff]
  %v7189 = vld [vmem:[%s5 + $0x100] sm:$0xff]
  %v7190 = vld [vmem:[%s5 + $0x108] sm:$0xff]
  %v7191 = vld [vmem:[%s5 + $0x110] sm:$0xff]
  %v7192 = vld [vmem:[%s5 + $0x118] sm:$0xff]
  %v7193 = vld [vmem:[%s5 + $0x120] sm:$0xff]
  %v7194 = vld [vmem:[%s5 + $0x128] sm:$0xff]
  %v7195 = vld [vmem:[%s5 + $0x130] sm:$0xff]
  %v7196 = vld [vmem:[%s5 + $0x138] sm:$0xff]
  %v7197 = vld [vmem:[%s5 + $0x140] sm:$0xff]
  %v7198 = vld [vmem:[%s5 + $0x148] sm:$0xff]
  %v7199 = vld [vmem:[%s5 + $0x150] sm:$0xff]
  %v7200 = vld [vmem:[%s5 + $0x158] sm:$0xff]
  %v7201 = vld [vmem:[%s5 + $0x160] sm:$0xff]
  %v7202 = vld [vmem:[%s5 + $0x168] sm:$0xff]
  %v7203 = vld [vmem:[%s5 + $0x170] sm:$0xff]
  %v7204 = vld [vmem:[%s5 + $0x178] sm:$0xff]
  %v7205 = vld [vmem:[%s5 + $0x180] sm:$0xff]
  %v7206 = vld [vmem:[%s5 + $0x188] sm:$0xff]
  %v7207 = vld [vmem:[%s5 + $0x190] sm:$0xff]
  %v7208 = vld [vmem:[%s5 + $0x198] sm:$0xff]
  %v7209 = vld [vmem:[%s5 + $0x1a0] sm:$0xff]
  %v7210 = vld [vmem:[%s5 + $0x1a8] sm:$0xff]
  %v7211 = vld [vmem:[%s5 + $0x1b0] sm:$0xff]
  %v7212 = vld [vmem:[%s5 + $0x1b8] sm:$0xff]
  %v7213 = vld [vmem:[%s5 + $0x1c0] sm:$0xff]
  %v7214 = vld [vmem:[%s5 + $0x1c8] sm:$0xff]
  %v7215 = vld [vmem:[%s5 + $0x1d0] sm:$0xff]
  %v7216 = vld [vmem:[%s5 + $0x1d8] sm:$0xff]
  %v7217 = vld [vmem:[%s5 + $0x1e0] sm:$0xff]
  %v7218 = vld [vmem:[%s5 + $0x1e8] sm:$0xff]
  %v7219 = vld [vmem:[%s5 + $0x1f0] sm:$0xff]
  %v7220 = vld [vmem:[%s5 + $0x1f8] sm:$0xff]
  %v7221 = vld [vmem:[%s5 + $0x200] sm:$0xff]
  %v7222 = vld [vmem:[%s5 + $0x208] sm:$0xff]
  %v7223 = vld [vmem:[%s5 + $0x210] sm:$0xff]
  %v7224 = vld [vmem:[%s5 + $0x218] sm:$0xff]
  %v7225 = vld [vmem:[%s5 + $0x220] sm:$0xff]
  %v7226 = vld [vmem:[%s5 + $0x228] sm:$0xff]
  %v7227 = vld [vmem:[%s5 + $0x230] sm:$0xff]
  %v7228 = vld [vmem:[%s5 + $0x238] sm:$0xff]
  %v7229 = vld [vmem:[%s5 + $0x240] sm:$0xff]
  %v7230 = vld [vmem:[%s5 + $0x248] sm:$0xff]
  %v7231 = vld [vmem:[%s5 + $0x250] sm:$0xff]
  %v7232 = vld [vmem:[%s5 + $0x258] sm:$0xff]
  %v7233 = vld [vmem:[%s5 + $0x260] sm:$0xff]
  %v7234 = vld [vmem:[%s5 + $0x268] sm:$0xff]
  %v7235 = vld [vmem:[%s5 + $0x270] sm:$0xff]
  %v7236 = vld [vmem:[%s5 + $0x278] sm:$0xff]
  %v7237 = vld [vmem:[%s5 + $0x280] sm:$0xff]
  %v7238 = vld [vmem:[%s5 + $0x288] sm:$0xff]
  %v7239 = vld [vmem:[%s5 + $0x290] sm:$0xff]
  %v7240 = vld [vmem:[%s5 + $0x298] sm:$0xff]
  %v7241 = vld [vmem:[%s5 + $0x2a0] sm:$0xff]
  %v7242 = vld [vmem:[%s5 + $0x2a8] sm:$0xff]
  %v7243 = vld [vmem:[%s5 + $0x2b0] sm:$0xff]
  %v7244 = vld [vmem:[%s5 + $0x2b8] sm:$0xff]
  %v7245 = vld [vmem:[%s5 + $0x2c0] sm:$0xff]
  %v7246 = vld [vmem:[%s5 + $0x2c8] sm:$0xff]
  %v7247 = vld [vmem:[%s5 + $0x2d0] sm:$0xff]
  %v7248 = vld [vmem:[%s5 + $0x2d8] sm:$0xff]
  %v7249 = vld [vmem:[%s5 + $0x2e0] sm:$0xff]
  %v7250 = vld [vmem:[%s5 + $0x2e8] sm:$0xff]
  %v7251 = vld [vmem:[%s5 + $0x2f0] sm:$0xff]
  %v7252 = vld [vmem:[%s5 + $0x2f8] sm:$0xff]
  %v7253 = vld [vmem:[%s5 + $0x300] sm:$0xff]
  %v7254 = vld [vmem:[%s5 + $0x308] sm:$0xff]
  %v7255 = vld [vmem:[%s5 + $0x310] sm:$0xff]
  %v7256 = vld [vmem:[%s5 + $0x318] sm:$0xff]
  %v7257 = vld [vmem:[%s5 + $0x320] sm:$0xff]
  %v7258 = vld [vmem:[%s5 + $0x328] sm:$0xff]
  %v7259 = vld [vmem:[%s5 + $0x330] sm:$0xff]
  %v7260 = vld [vmem:[%s5 + $0x338] sm:$0xff]
  %v7261 = vld [vmem:[%s5 + $0x340] sm:$0xff]
  %v7262 = vld [vmem:[%s5 + $0x348] sm:$0xff]
  %v7263 = vld [vmem:[%s5 + $0x350] sm:$0xff]
  %v7264 = vld [vmem:[%s5 + $0x358] sm:$0xff]
  %v7265 = vld [vmem:[%s5 + $0x360] sm:$0xff]
  %v7266 = vld [vmem:[%s5 + $0x368] sm:$0xff]
  %v7267 = vld [vmem:[%s5 + $0x370] sm:$0xff]
  %v7268 = vld [vmem:[%s5 + $0x378] sm:$0xff]
  %v7269 = vld [vmem:[%s5 + $0x380] sm:$0xff]
  %v7270 = vld [vmem:[%s5 + $0x388] sm:$0xff]
  %v7271 = vld [vmem:[%s5 + $0x390] sm:$0xff]
  %v7272 = vld [vmem:[%s5 + $0x398] sm:$0xff]
  %v7273 = vld [vmem:[%s5 + $0x3a0] sm:$0xff]
  %v7274 = vld [vmem:[%s5 + $0x3a8] sm:$0xff]
  %v7275 = vld [vmem:[%s5 + $0x3b0] sm:$0xff]
  %v7276 = vld [vmem:[%s5 + $0x3b8] sm:$0xff]
  %v7277 = vld [vmem:[%s5 + $0x3c0] sm:$0xff]
  %v7278 = vld [vmem:[%s5 + $0x3c8] sm:$0xff]
  %v7279 = vld [vmem:[%s5 + $0x3d0] sm:$0xff]
  %v7280 = vld [vmem:[%s5 + $0x3d8] sm:$0xff]
  %v7281 = vld [vmem:[%s5 + $0x3e0] sm:$0xff]
  %v7282 = vld [vmem:[%s5 + $0x3e8] sm:$0xff]
  %v7283 = vld [vmem:[%s5 + $0x3f0] sm:$0xff]
  %v7284 = vld [vmem:[%s5 + $0x3f8] sm:$0xff]
  %v7285 = vld [vmem:[%s6] sm:$0x3]
  %v7287 = vlaneseq
  %v7288 = vshrl.u32 %v7287, 7
  %v7289 = vsub.s32 0, %v7288
  %v7290 = vrot.slane %v7285, %v7289
  %v7291 = vlaneseq
  %v7292 = vshrl.u32 %v7291, 7
  %v7293 = vsub.s32 1, %v7292
  %v7294 = vrot.slane %v7285, %v7293
  %v7313 = vunpack.c.l.b16 %v7141
  %v7314 = vunpack.c.h.b16 %v7141
  %v7315 = vunpack.c.l.b16 %v7142
  %v7316 = vunpack.c.h.b16 %v7142
  %v7317 = vunpack.c.l.b16 %v7143
  %v7318 = vunpack.c.h.b16 %v7143
  %v7319 = vunpack.c.l.b16 %v7144
  %v7320 = vunpack.c.h.b16 %v7144
  %v7321 = vunpack.c.l.b16 %v7145
  %v7322 = vunpack.c.h.b16 %v7145
  %v7323 = vunpack.c.l.b16 %v7146
  %v7324 = vunpack.c.h.b16 %v7146
  %v7325 = vunpack.c.l.b16 %v7147
  %v7326 = vunpack.c.h.b16 %v7147
  %v7327 = vunpack.c.l.b16 %v7148
  %v7328 = vunpack.c.h.b16 %v7148
  %v7329 = vunpack.c.l.b16 %v7149
  %v7330 = vunpack.c.h.b16 %v7149
  %v7331 = vunpack.c.l.b16 %v7150
  %v7332 = vunpack.c.h.b16 %v7150
  %v7333 = vunpack.c.l.b16 %v7151
  %v7334 = vunpack.c.h.b16 %v7151
  %v7335 = vunpack.c.l.b16 %v7152
  %v7336 = vunpack.c.h.b16 %v7152
  %v7337 = vunpack.c.l.b16 %v7153
  %v7338 = vunpack.c.h.b16 %v7153
  %v7339 = vunpack.c.l.b16 %v7154
  %v7340 = vunpack.c.h.b16 %v7154
  %v7341 = vunpack.c.l.b16 %v7155
  %v7342 = vunpack.c.h.b16 %v7155
  %v7343 = vunpack.c.l.b16 %v7156
  %v7344 = vunpack.c.h.b16 %v7156
  %v7345 = vpack.c.b16 %v7321, %v7313
  %v7346 = vpack.c.b16 %v7322, %v7314
  %v7347 = vpack.c.b16 %v7323, %v7315
  %v7348 = vpack.c.b16 %v7324, %v7316
  %v7349 = vpack.c.b16 %v7325, %v7317
  %v7350 = vpack.c.b16 %v7326, %v7318
  %v7351 = vpack.c.b16 %v7327, %v7319
  %v7352 = vpack.c.b16 %v7328, %v7320
  %v7353 = vpack.c.b16 %v7337, %v7329
  %v7354 = vpack.c.b16 %v7338, %v7330
  %v7355 = vpack.c.b16 %v7339, %v7331
  %v7356 = vpack.c.b16 %v7340, %v7332
  %v7357 = vpack.c.b16 %v7341, %v7333
  %v7358 = vpack.c.b16 %v7342, %v7334
  %v7359 = vpack.c.b16 %v7343, %v7335
  %v7360 = vpack.c.b16 %v7344, %v7336
  %v7505 = vunpack.c.l.b16 %v7157
  %v7506 = vunpack.c.h.b16 %v7157
  %v7507 = vunpack.c.l.b16 %v7158
  %v7508 = vunpack.c.h.b16 %v7158
  %v7509 = vunpack.c.l.b16 %v7159
  %v7510 = vunpack.c.h.b16 %v7159
  %v7511 = vunpack.c.l.b16 %v7160
  %v7512 = vunpack.c.h.b16 %v7160
  %v7513 = vunpack.c.l.b16 %v7161
  %v7514 = vunpack.c.h.b16 %v7161
  %v7515 = vunpack.c.l.b16 %v7162
  %v7516 = vunpack.c.h.b16 %v7162
  %v7517 = vunpack.c.l.b16 %v7163
  %v7518 = vunpack.c.h.b16 %v7163
  %v7519 = vunpack.c.l.b16 %v7164
  %v7520 = vunpack.c.h.b16 %v7164
  %v7521 = vunpack.c.l.b16 %v7165
  %v7522 = vunpack.c.h.b16 %v7165
  %v7523 = vunpack.c.l.b16 %v7166
  %v7524 = vunpack.c.h.b16 %v7166
  %v7525 = vunpack.c.l.b16 %v7167
  %v7526 = vunpack.c.h.b16 %v7167
  %v7527 = vunpack.c.l.b16 %v7168
  %v7528 = vunpack.c.h.b16 %v7168
  %v7529 = vunpack.c.l.b16 %v7169
  %v7530 = vunpack.c.h.b16 %v7169
  %v7531 = vunpack.c.l.b16 %v7170
  %v7532 = vunpack.c.h.b16 %v7170
  %v7533 = vunpack.c.l.b16 %v7171
  %v7534 = vunpack.c.h.b16 %v7171
  %v7535 = vunpack.c.l.b16 %v7172
  %v7536 = vunpack.c.h.b16 %v7172
  %v7537 = vunpack.c.l.b16 %v7173
  %v7538 = vunpack.c.h.b16 %v7173
  %v7539 = vunpack.c.l.b16 %v7174
  %v7540 = vunpack.c.h.b16 %v7174
  %v7541 = vunpack.c.l.b16 %v7175
  %v7542 = vunpack.c.h.b16 %v7175
  %v7543 = vunpack.c.l.b16 %v7176
  %v7544 = vunpack.c.h.b16 %v7176
  %v7545 = vunpack.c.l.b16 %v7177
  %v7546 = vunpack.c.h.b16 %v7177
  %v7547 = vunpack.c.l.b16 %v7178
  %v7548 = vunpack.c.h.b16 %v7178
  %v7549 = vunpack.c.l.b16 %v7179
  %v7550 = vunpack.c.h.b16 %v7179
  %v7551 = vunpack.c.l.b16 %v7180
  %v7552 = vunpack.c.h.b16 %v7180
  %v7553 = vunpack.c.l.b16 %v7181
  %v7554 = vunpack.c.h.b16 %v7181
  %v7555 = vunpack.c.l.b16 %v7182
  %v7556 = vunpack.c.h.b16 %v7182
  %v7557 = vunpack.c.l.b16 %v7183
  %v7558 = vunpack.c.h.b16 %v7183
  %v7559 = vunpack.c.l.b16 %v7184
  %v7560 = vunpack.c.h.b16 %v7184
  %v7561 = vunpack.c.l.b16 %v7185
  %v7562 = vunpack.c.h.b16 %v7185
  %v7563 = vunpack.c.l.b16 %v7186
  %v7564 = vunpack.c.h.b16 %v7186
  %v7565 = vunpack.c.l.b16 %v7187
  %v7566 = vunpack.c.h.b16 %v7187
  %v7567 = vunpack.c.l.b16 %v7188
  %v7568 = vunpack.c.h.b16 %v7188
  %v7569 = vunpack.c.l.b16 %v7189
  %v7570 = vunpack.c.h.b16 %v7189
  %v7571 = vunpack.c.l.b16 %v7190
  %v7572 = vunpack.c.h.b16 %v7190
  %v7573 = vunpack.c.l.b16 %v7191
  %v7574 = vunpack.c.h.b16 %v7191
  %v7575 = vunpack.c.l.b16 %v7192
  %v7576 = vunpack.c.h.b16 %v7192
  %v7577 = vunpack.c.l.b16 %v7193
  %v7578 = vunpack.c.h.b16 %v7193
  %v7579 = vunpack.c.l.b16 %v7194
  %v7580 = vunpack.c.h.b16 %v7194
  %v7581 = vunpack.c.l.b16 %v7195
  %v7582 = vunpack.c.h.b16 %v7195
  %v7583 = vunpack.c.l.b16 %v7196
  %v7584 = vunpack.c.h.b16 %v7196
  %v7585 = vunpack.c.l.b16 %v7197
  %v7586 = vunpack.c.h.b16 %v7197
  %v7587 = vunpack.c.l.b16 %v7198
  %v7588 = vunpack.c.h.b16 %v7198
  %v7589 = vunpack.c.l.b16 %v7199
  %v7590 = vunpack.c.h.b16 %v7199
  %v7591 = vunpack.c.l.b16 %v7200
  %v7592 = vunpack.c.h.b16 %v7200
  %v7593 = vunpack.c.l.b16 %v7201
  %v7594 = vunpack.c.h.b16 %v7201
  %v7595 = vunpack.c.l.b16 %v7202
  %v7596 = vunpack.c.h.b16 %v7202
  %v7597 = vunpack.c.l.b16 %v7203
  %v7598 = vunpack.c.h.b16 %v7203
  %v7599 = vunpack.c.l.b16 %v7204
  %v7600 = vunpack.c.h.b16 %v7204
  %v7601 = vunpack.c.l.b16 %v7205
  %v7602 = vunpack.c.h.b16 %v7205
  %v7603 = vunpack.c.l.b16 %v7206
  %v7604 = vunpack.c.h.b16 %v7206
  %v7605 = vunpack.c.l.b16 %v7207
  %v7606 = vunpack.c.h.b16 %v7207
  %v7607 = vunpack.c.l.b16 %v7208
  %v7608 = vunpack.c.h.b16 %v7208
  %v7609 = vunpack.c.l.b16 %v7209
  %v7610 = vunpack.c.h.b16 %v7209
  %v7611 = vunpack.c.l.b16 %v7210
  %v7612 = vunpack.c.h.b16 %v7210
  %v7613 = vunpack.c.l.b16 %v7211
  %v7614 = vunpack.c.h.b16 %v7211
  %v7615 = vunpack.c.l.b16 %v7212
  %v7616 = vunpack.c.h.b16 %v7212
  %v7617 = vunpack.c.l.b16 %v7213
  %v7618 = vunpack.c.h.b16 %v7213
  %v7619 = vunpack.c.l.b16 %v7214
  %v7620 = vunpack.c.h.b16 %v7214
  %v7621 = vunpack.c.l.b16 %v7215
  %v7622 = vunpack.c.h.b16 %v7215
  %v7623 = vunpack.c.l.b16 %v7216
  %v7624 = vunpack.c.h.b16 %v7216
  %v7625 = vunpack.c.l.b16 %v7217
  %v7626 = vunpack.c.h.b16 %v7217
  %v7627 = vunpack.c.l.b16 %v7218
  %v7628 = vunpack.c.h.b16 %v7218
  %v7629 = vunpack.c.l.b16 %v7219
  %v7630 = vunpack.c.h.b16 %v7219
  %v7631 = vunpack.c.l.b16 %v7220
  %v7632 = vunpack.c.h.b16 %v7220
  %v7633 = vunpack.c.l.b16 %v7221
  %v7634 = vunpack.c.h.b16 %v7221
  %v7635 = vunpack.c.l.b16 %v7222
  %v7636 = vunpack.c.h.b16 %v7222
  %v7637 = vunpack.c.l.b16 %v7223
  %v7638 = vunpack.c.h.b16 %v7223
  %v7639 = vunpack.c.l.b16 %v7224
  %v7640 = vunpack.c.h.b16 %v7224
  %v7641 = vunpack.c.l.b16 %v7225
  %v7642 = vunpack.c.h.b16 %v7225
  %v7643 = vunpack.c.l.b16 %v7226
  %v7644 = vunpack.c.h.b16 %v7226
  %v7645 = vunpack.c.l.b16 %v7227
  %v7646 = vunpack.c.h.b16 %v7227
  %v7647 = vunpack.c.l.b16 %v7228
  %v7648 = vunpack.c.h.b16 %v7228
  %v7649 = vunpack.c.l.b16 %v7229
  %v7650 = vunpack.c.h.b16 %v7229
  %v7651 = vunpack.c.l.b16 %v7230
  %v7652 = vunpack.c.h.b16 %v7230
  %v7653 = vunpack.c.l.b16 %v7231
  %v7654 = vunpack.c.h.b16 %v7231
  %v7655 = vunpack.c.l.b16 %v7232
  %v7656 = vunpack.c.h.b16 %v7232
  %v7657 = vunpack.c.l.b16 %v7233
  %v7658 = vunpack.c.h.b16 %v7233
  %v7659 = vunpack.c.l.b16 %v7234
  %v7660 = vunpack.c.h.b16 %v7234
  %v7661 = vunpack.c.l.b16 %v7235
  %v7662 = vunpack.c.h.b16 %v7235
  %v7663 = vunpack.c.l.b16 %v7236
  %v7664 = vunpack.c.h.b16 %v7236
  %v7665 = vunpack.c.l.b16 %v7237
  %v7666 = vunpack.c.h.b16 %v7237
  %v7667 = vunpack.c.l.b16 %v7238
  %v7668 = vunpack.c.h.b16 %v7238
  %v7669 = vunpack.c.l.b16 %v7239
  %v7670 = vunpack.c.h.b16 %v7239
  %v7671 = vunpack.c.l.b16 %v7240
  %v7672 = vunpack.c.h.b16 %v7240
  %v7673 = vunpack.c.l.b16 %v7241
  %v7674 = vunpack.c.h.b16 %v7241
  %v7675 = vunpack.c.l.b16 %v7242
  %v7676 = vunpack.c.h.b16 %v7242
  %v7677 = vunpack.c.l.b16 %v7243
  %v7678 = vunpack.c.h.b16 %v7243
  %v7679 = vunpack.c.l.b16 %v7244
  %v7680 = vunpack.c.h.b16 %v7244
  %v7681 = vunpack.c.l.b16 %v7245
  %v7682 = vunpack.c.h.b16 %v7245
  %v7683 = vunpack.c.l.b16 %v7246
  %v7684 = vunpack.c.h.b16 %v7246
  %v7685 = vunpack.c.l.b16 %v7247
  %v7686 = vunpack.c.h.b16 %v7247
  %v7687 = vunpack.c.l.b16 %v7248
  %v7688 = vunpack.c.h.b16 %v7248
  %v7689 = vunpack.c.l.b16 %v7249
  %v7690 = vunpack.c.h.b16 %v7249
  %v7691 = vunpack.c.l.b16 %v7250
  %v7692 = vunpack.c.h.b16 %v7250
  %v7693 = vunpack.c.l.b16 %v7251
  %v7694 = vunpack.c.h.b16 %v7251
  %v7695 = vunpack.c.l.b16 %v7252
  %v7696 = vunpack.c.h.b16 %v7252
  %v7697 = vunpack.c.l.b16 %v7253
  %v7698 = vunpack.c.h.b16 %v7253
  %v7699 = vunpack.c.l.b16 %v7254
  %v7700 = vunpack.c.h.b16 %v7254
  %v7701 = vunpack.c.l.b16 %v7255
  %v7702 = vunpack.c.h.b16 %v7255
  %v7703 = vunpack.c.l.b16 %v7256
  %v7704 = vunpack.c.h.b16 %v7256
  %v7705 = vunpack.c.l.b16 %v7257
  %v7706 = vunpack.c.h.b16 %v7257
  %v7707 = vunpack.c.l.b16 %v7258
  %v7708 = vunpack.c.h.b16 %v7258
  %v7709 = vunpack.c.l.b16 %v7259
  %v7710 = vunpack.c.h.b16 %v7259
  %v7711 = vunpack.c.l.b16 %v7260
  %v7712 = vunpack.c.h.b16 %v7260
  %v7713 = vunpack.c.l.b16 %v7261
  %v7714 = vunpack.c.h.b16 %v7261
  %v7715 = vunpack.c.l.b16 %v7262
  %v7716 = vunpack.c.h.b16 %v7262
  %v7717 = vunpack.c.l.b16 %v7263
  %v7718 = vunpack.c.h.b16 %v7263
  %v7719 = vunpack.c.l.b16 %v7264
  %v7720 = vunpack.c.h.b16 %v7264
  %v7721 = vunpack.c.l.b16 %v7265
  %v7722 = vunpack.c.h.b16 %v7265
  %v7723 = vunpack.c.l.b16 %v7266
  %v7724 = vunpack.c.h.b16 %v7266
  %v7725 = vunpack.c.l.b16 %v7267
  %v7726 = vunpack.c.h.b16 %v7267
  %v7727 = vunpack.c.l.b16 %v7268
  %v7728 = vunpack.c.h.b16 %v7268
  %v7729 = vunpack.c.l.b16 %v7269
  %v7730 = vunpack.c.h.b16 %v7269
  %v7731 = vunpack.c.l.b16 %v7270
  %v7732 = vunpack.c.h.b16 %v7270
  %v7733 = vunpack.c.l.b16 %v7271
  %v7734 = vunpack.c.h.b16 %v7271
  %v7735 = vunpack.c.l.b16 %v7272
  %v7736 = vunpack.c.h.b16 %v7272
  %v7737 = vunpack.c.l.b16 %v7273
  %v7738 = vunpack.c.h.b16 %v7273
  %v7739 = vunpack.c.l.b16 %v7274
  %v7740 = vunpack.c.h.b16 %v7274
  %v7741 = vunpack.c.l.b16 %v7275
  %v7742 = vunpack.c.h.b16 %v7275
  %v7743 = vunpack.c.l.b16 %v7276
  %v7744 = vunpack.c.h.b16 %v7276
  %v7745 = vunpack.c.l.b16 %v7277
  %v7746 = vunpack.c.h.b16 %v7277
  %v7747 = vunpack.c.l.b16 %v7278
  %v7748 = vunpack.c.h.b16 %v7278
  %v7749 = vunpack.c.l.b16 %v7279
  %v7750 = vunpack.c.h.b16 %v7279
  %v7751 = vunpack.c.l.b16 %v7280
  %v7752 = vunpack.c.h.b16 %v7280
  %v7753 = vunpack.c.l.b16 %v7281
  %v7754 = vunpack.c.h.b16 %v7281
  %v7755 = vunpack.c.l.b16 %v7282
  %v7756 = vunpack.c.h.b16 %v7282
  %v7757 = vunpack.c.l.b16 %v7283
  %v7758 = vunpack.c.h.b16 %v7283
  %v7759 = vunpack.c.l.b16 %v7284
  %v7760 = vunpack.c.h.b16 %v7284
  %v7761 = vpack.c.b16 %v7507, %v7505
  %v7762 = vpack.c.b16 %v7508, %v7506
  %v7763 = vpack.c.b16 %v7511, %v7509
  %v7764 = vpack.c.b16 %v7512, %v7510
  %v7765 = vpack.c.b16 %v7515, %v7513
  %v7766 = vpack.c.b16 %v7516, %v7514
  %v7767 = vpack.c.b16 %v7519, %v7517
  %v7768 = vpack.c.b16 %v7520, %v7518
  %v7769 = vpack.c.b16 %v7523, %v7521
  %v7770 = vpack.c.b16 %v7524, %v7522
  %v7771 = vpack.c.b16 %v7527, %v7525
  %v7772 = vpack.c.b16 %v7528, %v7526
  %v7773 = vpack.c.b16 %v7531, %v7529
  %v7774 = vpack.c.b16 %v7532, %v7530
  %v7775 = vpack.c.b16 %v7535, %v7533
  %v7776 = vpack.c.b16 %v7536, %v7534
  %v7777 = vpack.c.b16 %v7539, %v7537
  %v7778 = vpack.c.b16 %v7540, %v7538
  %v7779 = vpack.c.b16 %v7543, %v7541
  %v7780 = vpack.c.b16 %v7544, %v7542
  %v7781 = vpack.c.b16 %v7547, %v7545
  %v7782 = vpack.c.b16 %v7548, %v7546
  %v7783 = vpack.c.b16 %v7551, %v7549
  %v7784 = vpack.c.b16 %v7552, %v7550
  %v7785 = vpack.c.b16 %v7555, %v7553
  %v7786 = vpack.c.b16 %v7556, %v7554
  %v7787 = vpack.c.b16 %v7559, %v7557
  %v7788 = vpack.c.b16 %v7560, %v7558
  %v7789 = vpack.c.b16 %v7563, %v7561
  %v7790 = vpack.c.b16 %v7564, %v7562
  %v7791 = vpack.c.b16 %v7567, %v7565
  %v7792 = vpack.c.b16 %v7568, %v7566
  %v7793 = vpack.c.b16 %v7571, %v7569
  %v7794 = vpack.c.b16 %v7572, %v7570
  %v7795 = vpack.c.b16 %v7575, %v7573
  %v7796 = vpack.c.b16 %v7576, %v7574
  %v7797 = vpack.c.b16 %v7579, %v7577
  %v7798 = vpack.c.b16 %v7580, %v7578
  %v7799 = vpack.c.b16 %v7583, %v7581
  %v7800 = vpack.c.b16 %v7584, %v7582
  %v7801 = vpack.c.b16 %v7587, %v7585
  %v7802 = vpack.c.b16 %v7588, %v7586
  %v7803 = vpack.c.b16 %v7591, %v7589
  %v7804 = vpack.c.b16 %v7592, %v7590
  %v7805 = vpack.c.b16 %v7595, %v7593
  %v7806 = vpack.c.b16 %v7596, %v7594
  %v7807 = vpack.c.b16 %v7599, %v7597
  %v7808 = vpack.c.b16 %v7600, %v7598
  %v7809 = vpack.c.b16 %v7603, %v7601
  %v7810 = vpack.c.b16 %v7604, %v7602
  %v7811 = vpack.c.b16 %v7607, %v7605
  %v7812 = vpack.c.b16 %v7608, %v7606
  %v7813 = vpack.c.b16 %v7611, %v7609
  %v7814 = vpack.c.b16 %v7612, %v7610
  %v7815 = vpack.c.b16 %v7615, %v7613
  %v7816 = vpack.c.b16 %v7616, %v7614
  %v7817 = vpack.c.b16 %v7619, %v7617
  %v7818 = vpack.c.b16 %v7620, %v7618
  %v7819 = vpack.c.b16 %v7623, %v7621
  %v7820 = vpack.c.b16 %v7624, %v7622
  %v7821 = vpack.c.b16 %v7627, %v7625
  %v7822 = vpack.c.b16 %v7628, %v7626
  %v7823 = vpack.c.b16 %v7631, %v7629
  %v7824 = vpack.c.b16 %v7632, %v7630
  %v7825 = vpack.c.b16 %v7635, %v7633
  %v7826 = vpack.c.b16 %v7636, %v7634
  %v7827 = vpack.c.b16 %v7639, %v7637
  %v7828 = vpack.c.b16 %v7640, %v7638
  %v7829 = vpack.c.b16 %v7643, %v7641
  %v7830 = vpack.c.b16 %v7644, %v7642
  %v7831 = vpack.c.b16 %v7647, %v7645
  %v7832 = vpack.c.b16 %v7648, %v7646
  %v7833 = vpack.c.b16 %v7651, %v7649
  %v7834 = vpack.c.b16 %v7652, %v7650
  %v7835 = vpack.c.b16 %v7655, %v7653
  %v7836 = vpack.c.b16 %v7656, %v7654
  %v7837 = vpack.c.b16 %v7659, %v7657
  %v7838 = vpack.c.b16 %v7660, %v7658
  %v7839 = vpack.c.b16 %v7663, %v7661
  %v7840 = vpack.c.b16 %v7664, %v7662
  %v7841 = vpack.c.b16 %v7667, %v7665
  %v7842 = vpack.c.b16 %v7668, %v7666
  %v7843 = vpack.c.b16 %v7671, %v7669
  %v7844 = vpack.c.b16 %v7672, %v7670
  %v7845 = vpack.c.b16 %v7675, %v7673
  %v7846 = vpack.c.b16 %v7676, %v7674
  %v7847 = vpack.c.b16 %v7679, %v7677
  %v7848 = vpack.c.b16 %v7680, %v7678
  %v7849 = vpack.c.b16 %v7683, %v7681
  %v7850 = vpack.c.b16 %v7684, %v7682
  %v7851 = vpack.c.b16 %v7687, %v7685
  %v7852 = vpack.c.b16 %v7688, %v7686
  %v7853 = vpack.c.b16 %v7691, %v7689
  %v7854 = vpack.c.b16 %v7692, %v7690
  %v7855 = vpack.c.b16 %v7695, %v7693
  %v7856 = vpack.c.b16 %v7696, %v7694
  %v7857 = vpack.c.b16 %v7699, %v7697
  %v7858 = vpack.c.b16 %v7700, %v7698
  %v7859 = vpack.c.b16 %v7703, %v7701
  %v7860 = vpack.c.b16 %v7704, %v7702
  %v7861 = vpack.c.b16 %v7707, %v7705
  %v7862 = vpack.c.b16 %v7708, %v7706
  %v7863 = vpack.c.b16 %v7711, %v7709
  %v7864 = vpack.c.b16 %v7712, %v7710
  %v7865 = vpack.c.b16 %v7715, %v7713
  %v7866 = vpack.c.b16 %v7716, %v7714
  %v7867 = vpack.c.b16 %v7719, %v7717
  %v7868 = vpack.c.b16 %v7720, %v7718
  %v7869 = vpack.c.b16 %v7723, %v7721
  %v7870 = vpack.c.b16 %v7724, %v7722
  %v7871 = vpack.c.b16 %v7727, %v7725
  %v7872 = vpack.c.b16 %v7728, %v7726
  %v7873 = vpack.c.b16 %v7731, %v7729
  %v7874 = vpack.c.b16 %v7732, %v7730
  %v7875 = vpack.c.b16 %v7735, %v7733
  %v7876 = vpack.c.b16 %v7736, %v7734
  %v7877 = vpack.c.b16 %v7739, %v7737
  %v7878 = vpack.c.b16 %v7740, %v7738
  %v7879 = vpack.c.b16 %v7743, %v7741
  %v7880 = vpack.c.b16 %v7744, %v7742
  %v7881 = vpack.c.b16 %v7747, %v7745
  %v7882 = vpack.c.b16 %v7748, %v7746
  %v7883 = vpack.c.b16 %v7751, %v7749
  %v7884 = vpack.c.b16 %v7752, %v7750
  %v7885 = vpack.c.b16 %v7755, %v7753
  %v7886 = vpack.c.b16 %v7756, %v7754
  %v7887 = vpack.c.b16 %v7759, %v7757
  %v7888 = vpack.c.b16 %v7760, %v7758
  %8017 = vmatprep.subr.bf16.mxu0 %v7776
  %8018 = vmatpush1.bf16.msra.mxu0 %v7775
  %8019 = vmatprep.subr.bf16.mxu0 %v7774
  %8020 = vmatpush1.bf16.msra.mxu0 %v7773
  %8021 = vmatprep.subr.bf16.mxu0 %v7772
  %8022 = vmatpush1.bf16.msra.mxu0 %v7771
  %8023 = vmatprep.subr.bf16.mxu0 %v7770
  %8024 = vmatpush1.bf16.msra.mxu0 %v7769
  %8025 = vmatprep.subr.bf16.mxu0 %v7768
  %8026 = vmatpush1.bf16.msra.mxu0 %v7767
  %8027 = vmatprep.subr.bf16.mxu0 %v7766
  %8028 = vmatpush1.bf16.msra.mxu0 %v7765
  %8029 = vmatprep.subr.bf16.mxu0 %v7764
  %8030 = vmatpush1.bf16.msra.mxu0 %v7763
  %8031 = vmatprep.subr.bf16.mxu0 %v7762
  %8032 = vmatpush1.bf16.msra.mxu0 %v7761
  %8033 = vmatprep.subr.bf16.mxu0 %v7792
  %8034 = vmatpush2.bf16.msra.mxu0 %v7791
  %8035 = vmatprep.subr.bf16.mxu0 %v7790
  %8036 = vmatpush2.bf16.msra.mxu0 %v7789
  %8037 = vmatprep.subr.bf16.mxu0 %v7788
  %8038 = vmatpush2.bf16.msra.mxu0 %v7787
  %8039 = vmatprep.subr.bf16.mxu0 %v7786
  %8040 = vmatpush2.bf16.msra.mxu0 %v7785
  %8041 = vmatprep.subr.bf16.mxu0 %v7784
  %8042 = vmatpush2.bf16.msra.mxu0 %v7783
  %8043 = vmatprep.subr.bf16.mxu0 %v7782
  %8044 = vmatpush2.bf16.msra.mxu0 %v7781
  %8045 = vmatprep.subr.bf16.mxu0 %v7780
  %8046 = vmatpush2.bf16.msra.mxu0 %v7779
  %8047 = vmatprep.subr.bf16.mxu0 %v7778
  %8048 = vmatpush2.bf16.msra.mxu0 %v7777
  %8049 = vmatprep.mubr.bf16.mxu0 %v7346
  %8050 = vmatmul.mubr.bf16.gmra.mxu0 %v7345
  %v8051 = vpop.f32.mrf.mxu0
  %v8052 = vadd.f32 %v7290, %v8051
  %v8053 = vpop.f32.mrf.mxu0
  %v8054 = vadd.f32 %v7294, %v8053
  %v8055 = vpop.f32.mrf.mxu0
  %v8056 = vadd.f32 %v7290, %v8055
  %v8057 = vpop.f32.mrf.mxu0
  %v8058 = vadd.f32 %v7294, %v8057
  %8059 = vmatprep.mubr.bf16.mxu0 %v7354
  %8060 = vmatmul.mubr.bf16.gmra.mxu0 %v7353
  %v8061 = vpop.f32.mrf.mxu0
  %v8062 = vadd.f32 %v7290, %v8061
  %v8063 = vpop.f32.mrf.mxu0
  %v8064 = vadd.f32 %v7294, %v8063
  %v8065 = vpop.f32.mrf.mxu0
  %v8066 = vadd.f32 %v7290, %v8065
  %v8067 = vpop.f32.mrf.mxu0
  %v8068 = vadd.f32 %v7294, %v8067
  %8069 = vdwg.mxu0
  %8070 = vmatprep.subr.bf16.mxu0 %v7808
  %8071 = vmatpush1.bf16.msra.mxu0 %v7807
  %8072 = vmatprep.subr.bf16.mxu0 %v7806
  %8073 = vmatpush1.bf16.msra.mxu0 %v7805
  %8074 = vmatprep.subr.bf16.mxu0 %v7804
  %8075 = vmatpush1.bf16.msra.mxu0 %v7803
  %8076 = vmatprep.subr.bf16.mxu0 %v7802
  %8077 = vmatpush1.bf16.msra.mxu0 %v7801
  %8078 = vmatprep.subr.bf16.mxu0 %v7800
  %8079 = vmatpush1.bf16.msra.mxu0 %v7799
  %8080 = vmatprep.subr.bf16.mxu0 %v7798
  %8081 = vmatpush1.bf16.msra.mxu0 %v7797
  %8082 = vmatprep.subr.bf16.mxu0 %v7796
  %8083 = vmatpush1.bf16.msra.mxu0 %v7795
  %8084 = vmatprep.subr.bf16.mxu0 %v7794
  %8085 = vmatpush1.bf16.msra.mxu0 %v7793
  %8086 = vmatprep.subr.bf16.mxu0 %v7824
  %8087 = vmatpush2.bf16.msra.mxu0 %v7823
  %8088 = vmatprep.subr.bf16.mxu0 %v7822
  %8089 = vmatpush2.bf16.msra.mxu0 %v7821
  %8090 = vmatprep.subr.bf16.mxu0 %v7820
  %8091 = vmatpush2.bf16.msra.mxu0 %v7819
  %8092 = vmatprep.subr.bf16.mxu0 %v7818
  %8093 = vmatpush2.bf16.msra.mxu0 %v7817
  %8094 = vmatprep.subr.bf16.mxu0 %v7816
  %8095 = vmatpush2.bf16.msra.mxu0 %v7815
  %8096 = vmatprep.subr.bf16.mxu0 %v7814
  %8097 = vmatpush2.bf16.msra.mxu0 %v7813
  %8098 = vmatprep.subr.bf16.mxu0 %v7812
  %8099 = vmatpush2.bf16.msra.mxu0 %v7811
  %8100 = vmatprep.subr.bf16.mxu0 %v7810
  %8101 = vmatpush2.bf16.msra.mxu0 %v7809
  %8102 = vmatprep.mubr.bf16.mxu0 %v7348
  %8103 = vmatmul.mubr.bf16.gmra.mxu0 %v7347
  %v8104 = vpop.f32.mrf.mxu0
  %v8105 = vadd.f32 %v8052, %v8104
  %v8106 = vpop.f32.mrf.mxu0
  %v8107 = vadd.f32 %v8054, %v8106
  %v8108 = vpop.f32.mrf.mxu0
  %v8109 = vadd.f32 %v8056, %v8108
  %v8110 = vpop.f32.mrf.mxu0
  %v8111 = vadd.f32 %v8058, %v8110
  %8112 = vmatprep.mubr.bf16.mxu0 %v7356
  %8113 = vmatmul.mubr.bf16.gmra.mxu0 %v7355
  %v8114 = vpop.f32.mrf.mxu0
  %v8115 = vadd.f32 %v8062, %v8114
  %v8116 = vpop.f32.mrf.mxu0
  %v8117 = vadd.f32 %v8064, %v8116
  %v8118 = vpop.f32.mrf.mxu0
  %v8119 = vadd.f32 %v8066, %v8118
  %v8120 = vpop.f32.mrf.mxu0
  %v8121 = vadd.f32 %v8068, %v8120
  %8122 = vdwg.mxu0
  %8123 = vmatprep.subr.bf16.mxu0 %v7840
  %8124 = vmatpush1.bf16.msra.mxu0 %v7839
  %8125 = vmatprep.subr.bf16.mxu0 %v7838
  %8126 = vmatpush1.bf16.msra.mxu0 %v7837
  %8127 = vmatprep.subr.bf16.mxu0 %v7836
  %8128 = vmatpush1.bf16.msra.mxu0 %v7835
  %8129 = vmatprep.subr.bf16.mxu0 %v7834
  %8130 = vmatpush1.bf16.msra.mxu0 %v7833
  %8131 = vmatprep.subr.bf16.mxu0 %v7832
  %8132 = vmatpush1.bf16.msra.mxu0 %v7831
  %8133 = vmatprep.subr.bf16.mxu0 %v7830
  %8134 = vmatpush1.bf16.msra.mxu0 %v7829
  %8135 = vmatprep.subr.bf16.mxu0 %v7828
  %8136 = vmatpush1.bf16.msra.mxu0 %v7827
  %8137 = vmatprep.subr.bf16.mxu0 %v7826
  %8138 = vmatpush1.bf16.msra.mxu0 %v7825
  %8139 = vmatprep.subr.bf16.mxu0 %v7856
  %8140 = vmatpush2.bf16.msra.mxu0 %v7855
  %8141 = vmatprep.subr.bf16.mxu0 %v7854
  %8142 = vmatpush2.bf16.msra.mxu0 %v7853
  %8143 = vmatprep.subr.bf16.mxu0 %v7852
  %8144 = vmatpush2.bf16.msra.mxu0 %v7851
  %8145 = vmatprep.subr.bf16.mxu0 %v7850
  %8146 = vmatpush2.bf16.msra.mxu0 %v7849
  %8147 = vmatprep.subr.bf16.mxu0 %v7848
  %8148 = vmatpush2.bf16.msra.mxu0 %v7847
  %8149 = vmatprep.subr.bf16.mxu0 %v7846
  %8150 = vmatpush2.bf16.msra.mxu0 %v7845
  %8151 = vmatprep.subr.bf16.mxu0 %v7844
  %8152 = vmatpush2.bf16.msra.mxu0 %v7843
  %8153 = vmatprep.subr.bf16.mxu0 %v7842
  %8154 = vmatpush2.bf16.msra.mxu0 %v7841
  %8155 = vmatprep.mubr.bf16.mxu0 %v7350
  %8156 = vmatmul.mubr.bf16.gmra.mxu0 %v7349
  %v8157 = vpop.f32.mrf.mxu0
  %v8158 = vadd.f32 %v8105, %v8157
  %v8159 = vpop.f32.mrf.mxu0
  %v8160 = vadd.f32 %v8107, %v8159
  %v8161 = vpop.f32.mrf.mxu0
  %v8162 = vadd.f32 %v8109, %v8161
  %v8163 = vpop.f32.mrf.mxu0
  %v8164 = vadd.f32 %v8111, %v8163
  %8165 = vmatprep.mubr.bf16.mxu0 %v7358
  %8166 = vmatmul.mubr.bf16.gmra.mxu0 %v7357
  %v8167 = vpop.f32.mrf.mxu0
  %v8168 = vadd.f32 %v8115, %v8167
  %v8169 = vpop.f32.mrf.mxu0
  %v8170 = vadd.f32 %v8117, %v8169
  %v8171 = vpop.f32.mrf.mxu0
  %v8172 = vadd.f32 %v8119, %v8171
  %v8173 = vpop.f32.mrf.mxu0
  %v8174 = vadd.f32 %v8121, %v8173
  %8175 = vdwg.mxu0
  %8176 = vmatprep.subr.bf16.mxu0 %v7872
  %8177 = vmatpush1.bf16.msra.mxu0 %v7871
  %8178 = vmatprep.subr.bf16.mxu0 %v7870
  %8179 = vmatpush1.bf16.msra.mxu0 %v7869
  %8180 = vmatprep.subr.bf16.mxu0 %v7868
  %8181 = vmatpush1.bf16.msra.mxu0 %v7867
  %8182 = vmatprep.subr.bf16.mxu0 %v7866
  %8183 = vmatpush1.bf16.msra.mxu0 %v7865
  %8184 = vmatprep.subr.bf16.mxu0 %v7864
  %8185 = vmatpush1.bf16.msra.mxu0 %v7863
  %8186 = vmatprep.subr.bf16.mxu0 %v7862
  %8187 = vmatpush1.bf16.msra.mxu0 %v7861
  %8188 = vmatprep.subr.bf16.mxu0 %v7860
  %8189 = vmatpush1.bf16.msra.mxu0 %v7859
  %8190 = vmatprep.subr.bf16.mxu0 %v7858
  %8191 = vmatpush1.bf16.msra.mxu0 %v7857
  %8192 = vmatprep.subr.bf16.mxu0 %v7888
  %8193 = vmatpush2.bf16.msra.mxu0 %v7887
  %8194 = vmatprep.subr.bf16.mxu0 %v7886
  %8195 = vmatpush2.bf16.msra.mxu0 %v7885
  %8196 = vmatprep.subr.bf16.mxu0 %v7884
  %8197 = vmatpush2.bf16.msra.mxu0 %v7883
  %8198 = vmatprep.subr.bf16.mxu0 %v7882
  %8199 = vmatpush2.bf16.msra.mxu0 %v7881
  %8200 = vmatprep.subr.bf16.mxu0 %v7880
  %8201 = vmatpush2.bf16.msra.mxu0 %v7879
  %8202 = vmatprep.subr.bf16.mxu0 %v7878
  %8203 = vmatpush2.bf16.msra.mxu0 %v7877
  %8204 = vmatprep.subr.bf16.mxu0 %v7876
  %8205 = vmatpush2.bf16.msra.mxu0 %v7875
  %8206 = vmatprep.subr.bf16.mxu0 %v7874
  %8207 = vmatpush2.bf16.msra.mxu0 %v7873
  %8208 = vmatprep.mubr.bf16.mxu0 %v7352
  %8209 = vmatmul.mubr.bf16.gmra.mxu0 %v7351
  %v8210 = vpop.f32.mrf.mxu0
  %v8211 = vadd.f32 %v8158, %v8210
  %v8212 = vpop.f32.mrf.mxu0
  %v8213 = vadd.f32 %v8160, %v8212
  %v8214 = vpop.f32.mrf.mxu0
  %v8215 = vadd.f32 %v8162, %v8214
  %v8216 = vpop.f32.mrf.mxu0
  %v8217 = vadd.f32 %v8164, %v8216
  %8218 = vmatprep.mubr.bf16.mxu0 %v7360
  %8219 = vmatmul.mubr.bf16.gmra.mxu0 %v7359
  %v8220 = vpop.f32.mrf.mxu0
  %v8221 = vadd.f32 %v8168, %v8220
  %v8222 = vpop.f32.mrf.mxu0
  %v8223 = vadd.f32 %v8170, %v8222
  %v8224 = vpop.f32.mrf.mxu0
  %v8225 = vadd.f32 %v8172, %v8224
  %v8226 = vpop.f32.mrf.mxu0
  %v8227 = vadd.f32 %v8174, %v8226
  %8228 = vdwg.mxu0
  %vm8229 = vcmp.ge.f32.partialorder %v8211, 0.0
  %vm8230 = vcmp.ge.f32.partialorder %v8213, 0.0
  %vm8231 = vcmp.ge.f32.partialorder %v8215, 0.0
  %vm8232 = vcmp.ge.f32.partialorder %v8217, 0.0
  %vm8233 = vcmp.ge.f32.partialorder %v8221, 0.0
  %vm8234 = vcmp.ge.f32.partialorder %v8223, 0.0
  %vm8235 = vcmp.ge.f32.partialorder %v8225, 0.0
  %vm8236 = vcmp.ge.f32.partialorder %v8227, 0.0
  %v8237 = vmul.f32 %v8211, 0.01
  %v8238 = vmul.f32 %v8213, 0.01
  %v8239 = vmul.f32 %v8215, 0.01
  %v8240 = vmul.f32 %v8217, 0.01
  %v8241 = vmul.f32 %v8221, 0.01
  %v8242 = vmul.f32 %v8223, 0.01
  %v8243 = vmul.f32 %v8225, 0.01
  %v8244 = vmul.f32 %v8227, 0.01
  %v8245 = vsel %vm8229, %v8211, %v8237
  %v8246 = vsel %vm8230, %v8213, %v8238
  %v8247 = vsel %vm8231, %v8215, %v8239
  %v8248 = vsel %vm8232, %v8217, %v8240
  %v8249 = vsel %vm8233, %v8221, %v8241
  %v8250 = vsel %vm8234, %v8223, %v8242
  %v8251 = vsel %vm8235, %v8225, %v8243
  %v8252 = vsel %vm8236, %v8227, %v8244
  %v8253 = vpack.c.bf16 %v8245, %v8245
  %v8254 = vpack.c.bf16 %v8246, %v8246
  %v8257 = vunpack.c.l.b16 %v8253
  %v8258 = vunpack.c.l.b16 %v8254
  %v8259 = vpack.c.b16 %v8258, %v8257
  %8261 = vst [vmem:[#allocation4] sm:$0xff] %v8259
  %v8262 = vpack.c.bf16 %v8247, %v8247
  %v8263 = vpack.c.bf16 %v8248, %v8248
  %v8266 = vunpack.c.l.b16 %v8262
  %v8267 = vunpack.c.l.b16 %v8263
  %v8268 = vpack.c.b16 %v8267, %v8266
  %8270 = vst [vmem:[#allocation4 + $0x8] sm:$0xff] %v8268
  %v8271 = vpack.c.bf16 %v8249, %v8249
  %v8272 = vpack.c.bf16 %v8250, %v8250
  %v8275 = vunpack.c.l.b16 %v8271
  %v8276 = vunpack.c.l.b16 %v8272
  %v8277 = vpack.c.b16 %v8276, %v8275
  %8279 = vst [vmem:[#allocation4 + $0x10] sm:$0xff] %v8277
  %v8280 = vpack.c.bf16 %v8251, %v8251
  %v8281 = vpack.c.bf16 %v8252, %v8252
  %v8284 = vunpack.c.l.b16 %v8280
  %v8285 = vunpack.c.l.b16 %v8281
  %v8286 = vpack.c.b16 %v8285, %v8284
  %8288 = vst [vmem:[#allocation4 + $0x18] sm:$0xff] %v8286
  %v8289 = vld [vmem:[#allocation4] sm:$0xff]
  %v8290 = vld [vmem:[#allocation4 + $0x8] sm:$0xff]
  %v8291 = vld [vmem:[#allocation4 + $0x10] sm:$0xff]
  %v8292 = vld [vmem:[#allocation4 + $0x18] sm:$0xff]
  %v8293 = vld [vmem:[%s7] sm:$0xf]
  %v8294 = vld [vmem:[%s7 + $0x4] sm:$0xf]
  %v8295 = vld [vmem:[%s7 + $0x8] sm:$0xf]
  %v8296 = vld [vmem:[%s7 + $0xc] sm:$0xf]
  %v8297 = vld [vmem:[%s7 + $0x10] sm:$0xf]
  %v8298 = vld [vmem:[%s7 + $0x14] sm:$0xf]
  %v8299 = vld [vmem:[%s7 + $0x18] sm:$0xf]
  %v8300 = vld [vmem:[%s7 + $0x1c] sm:$0xf]
  %v8301 = vld [vmem:[%s7 + $0x20] sm:$0xf]
  %v8302 = vld [vmem:[%s7 + $0x24] sm:$0xf]
  %v8303 = vld [vmem:[%s7 + $0x28] sm:$0xf]
  %v8304 = vld [vmem:[%s7 + $0x2c] sm:$0xf]
  %v8305 = vld [vmem:[%s7 + $0x30] sm:$0xf]
  %v8306 = vld [vmem:[%s7 + $0x34] sm:$0xf]
  %v8307 = vld [vmem:[%s7 + $0x38] sm:$0xf]
  %v8308 = vld [vmem:[%s7 + $0x3c] sm:$0xf]
  %v8309 = vld [vmem:[%s7 + $0x40] sm:$0xf]
  %v8310 = vld [vmem:[%s7 + $0x44] sm:$0xf]
  %v8311 = vld [vmem:[%s7 + $0x48] sm:$0xf]
  %v8312 = vld [vmem:[%s7 + $0x4c] sm:$0xf]
  %v8313 = vld [vmem:[%s7 + $0x50] sm:$0xf]
  %v8314 = vld [vmem:[%s7 + $0x54] sm:$0xf]
  %v8315 = vld [vmem:[%s7 + $0x58] sm:$0xf]
  %v8316 = vld [vmem:[%s7 + $0x5c] sm:$0xf]
  %v8317 = vld [vmem:[%s7 + $0x60] sm:$0xf]
  %v8318 = vld [vmem:[%s7 + $0x64] sm:$0xf]
  %v8319 = vld [vmem:[%s7 + $0x68] sm:$0xf]
  %v8320 = vld [vmem:[%s7 + $0x6c] sm:$0xf]
  %v8321 = vld [vmem:[%s7 + $0x70] sm:$0xf]
  %v8322 = vld [vmem:[%s7 + $0x74] sm:$0xf]
  %v8323 = vld [vmem:[%s7 + $0x78] sm:$0xf]
  %v8324 = vld [vmem:[%s7 + $0x7c] sm:$0xf]
  %v8325 = vld [vmem:[%s7 + $0x80] sm:$0xf]
  %v8326 = vld [vmem:[%s7 + $0x84] sm:$0xf]
  %v8327 = vld [vmem:[%s7 + $0x88] sm:$0xf]
  %v8328 = vld [vmem:[%s7 + $0x8c] sm:$0xf]
  %v8329 = vld [vmem:[%s7 + $0x90] sm:$0xf]
  %v8330 = vld [vmem:[%s7 + $0x94] sm:$0xf]
  %v8331 = vld [vmem:[%s7 + $0x98] sm:$0xf]
  %v8332 = vld [vmem:[%s7 + $0x9c] sm:$0xf]
  %v8333 = vld [vmem:[%s7 + $0xa0] sm:$0xf]
  %v8334 = vld [vmem:[%s7 + $0xa4] sm:$0xf]
  %v8335 = vld [vmem:[%s7 + $0xa8] sm:$0xf]
  %v8336 = vld [vmem:[%s7 + $0xac] sm:$0xf]
  %v8337 = vld [vmem:[%s7 + $0xb0] sm:$0xf]
  %v8338 = vld [vmem:[%s7 + $0xb4] sm:$0xf]
  %v8339 = vld [vmem:[%s7 + $0xb8] sm:$0xf]
  %v8340 = vld [vmem:[%s7 + $0xbc] sm:$0xf]
  %v8341 = vld [vmem:[%s7 + $0xc0] sm:$0xf]
  %v8342 = vld [vmem:[%s7 + $0xc4] sm:$0xf]
  %v8343 = vld [vmem:[%s7 + $0xc8] sm:$0xf]
  %v8344 = vld [vmem:[%s7 + $0xcc] sm:$0xf]
  %v8345 = vld [vmem:[%s7 + $0xd0] sm:$0xf]
  %v8346 = vld [vmem:[%s7 + $0xd4] sm:$0xf]
  %v8347 = vld [vmem:[%s7 + $0xd8] sm:$0xf]
  %v8348 = vld [vmem:[%s7 + $0xdc] sm:$0xf]
  %v8349 = vld [vmem:[%s7 + $0xe0] sm:$0xf]
  %v8350 = vld [vmem:[%s7 + $0xe4] sm:$0xf]
  %v8351 = vld [vmem:[%s7 + $0xe8] sm:$0xf]
  %v8352 = vld [vmem:[%s7 + $0xec] sm:$0xf]
  %v8353 = vld [vmem:[%s7 + $0xf0] sm:$0xf]
  %v8354 = vld [vmem:[%s7 + $0xf4] sm:$0xf]
  %v8355 = vld [vmem:[%s7 + $0xf8] sm:$0xf]
  %v8356 = vld [vmem:[%s7 + $0xfc] sm:$0xf]
  %v8357 = vld [vmem:[%s7 + $0x100] sm:$0xf]
  %v8358 = vld [vmem:[%s7 + $0x104] sm:$0xf]
  %v8359 = vld [vmem:[%s7 + $0x108] sm:$0xf]
  %v8360 = vld [vmem:[%s7 + $0x10c] sm:$0xf]
  %v8361 = vld [vmem:[%s7 + $0x110] sm:$0xf]
  %v8362 = vld [vmem:[%s7 + $0x114] sm:$0xf]
  %v8363 = vld [vmem:[%s7 + $0x118] sm:$0xf]
  %v8364 = vld [vmem:[%s7 + $0x11c] sm:$0xf]
  %v8365 = vld [vmem:[%s7 + $0x120] sm:$0xf]
  %v8366 = vld [vmem:[%s7 + $0x124] sm:$0xf]
  %v8367 = vld [vmem:[%s7 + $0x128] sm:$0xf]
  %v8368 = vld [vmem:[%s7 + $0x12c] sm:$0xf]
  %v8369 = vld [vmem:[%s7 + $0x130] sm:$0xf]
  %v8370 = vld [vmem:[%s7 + $0x134] sm:$0xf]
  %v8371 = vld [vmem:[%s7 + $0x138] sm:$0xf]
  %v8372 = vld [vmem:[%s7 + $0x13c] sm:$0xf]
  %v8373 = vld [vmem:[%s7 + $0x140] sm:$0xf]
  %v8374 = vld [vmem:[%s7 + $0x144] sm:$0xf]
  %v8375 = vld [vmem:[%s7 + $0x148] sm:$0xf]
  %v8376 = vld [vmem:[%s7 + $0x14c] sm:$0xf]
  %v8377 = vld [vmem:[%s7 + $0x150] sm:$0xf]
  %v8378 = vld [vmem:[%s7 + $0x154] sm:$0xf]
  %v8379 = vld [vmem:[%s7 + $0x158] sm:$0xf]
  %v8380 = vld [vmem:[%s7 + $0x15c] sm:$0xf]
  %v8381 = vld [vmem:[%s7 + $0x160] sm:$0xf]
  %v8382 = vld [vmem:[%s7 + $0x164] sm:$0xf]
  %v8383 = vld [vmem:[%s7 + $0x168] sm:$0xf]
  %v8384 = vld [vmem:[%s7 + $0x16c] sm:$0xf]
  %v8385 = vld [vmem:[%s7 + $0x170] sm:$0xf]
  %v8386 = vld [vmem:[%s7 + $0x174] sm:$0xf]
  %v8387 = vld [vmem:[%s7 + $0x178] sm:$0xf]
  %v8388 = vld [vmem:[%s7 + $0x17c] sm:$0xf]
  %v8389 = vld [vmem:[%s7 + $0x180] sm:$0xf]
  %v8390 = vld [vmem:[%s7 + $0x184] sm:$0xf]
  %v8391 = vld [vmem:[%s7 + $0x188] sm:$0xf]
  %v8392 = vld [vmem:[%s7 + $0x18c] sm:$0xf]
  %v8393 = vld [vmem:[%s7 + $0x190] sm:$0xf]
  %v8394 = vld [vmem:[%s7 + $0x194] sm:$0xf]
  %v8395 = vld [vmem:[%s7 + $0x198] sm:$0xf]
  %v8396 = vld [vmem:[%s7 + $0x19c] sm:$0xf]
  %v8397 = vld [vmem:[%s7 + $0x1a0] sm:$0xf]
  %v8398 = vld [vmem:[%s7 + $0x1a4] sm:$0xf]
  %v8399 = vld [vmem:[%s7 + $0x1a8] sm:$0xf]
  %v8400 = vld [vmem:[%s7 + $0x1ac] sm:$0xf]
  %v8401 = vld [vmem:[%s7 + $0x1b0] sm:$0xf]
  %v8402 = vld [vmem:[%s7 + $0x1b4] sm:$0xf]
  %v8403 = vld [vmem:[%s7 + $0x1b8] sm:$0xf]
  %v8404 = vld [vmem:[%s7 + $0x1bc] sm:$0xf]
  %v8405 = vld [vmem:[%s7 + $0x1c0] sm:$0xf]
  %v8406 = vld [vmem:[%s7 + $0x1c4] sm:$0xf]
  %v8407 = vld [vmem:[%s7 + $0x1c8] sm:$0xf]
  %v8408 = vld [vmem:[%s7 + $0x1cc] sm:$0xf]
  %v8409 = vld [vmem:[%s7 + $0x1d0] sm:$0xf]
  %v8410 = vld [vmem:[%s7 + $0x1d4] sm:$0xf]
  %v8411 = vld [vmem:[%s7 + $0x1d8] sm:$0xf]
  %v8412 = vld [vmem:[%s7 + $0x1dc] sm:$0xf]
  %v8413 = vld [vmem:[%s7 + $0x1e0] sm:$0xf]
  %v8414 = vld [vmem:[%s7 + $0x1e4] sm:$0xf]
  %v8415 = vld [vmem:[%s7 + $0x1e8] sm:$0xf]
  %v8416 = vld [vmem:[%s7 + $0x1ec] sm:$0xf]
  %v8417 = vld [vmem:[%s7 + $0x1f0] sm:$0xf]
  %v8418 = vld [vmem:[%s7 + $0x1f4] sm:$0xf]
  %v8419 = vld [vmem:[%s7 + $0x1f8] sm:$0xf]
  %v8420 = vld [vmem:[%s7 + $0x1fc] sm:$0xf]
  %v8421 = vld [vmem:[%s8] sm:$0x1]
  %v8423 = vlaneseq
  %v8424 = vshrl.u32 %v8423, 7
  %v8425 = vsub.s32 0, %v8424
  %v8426 = vrot.slane %v8421, %v8425
  %v8432 = vunpack.c.l.b16 %v8289
  %v8433 = vunpack.c.h.b16 %v8289
  %v8434 = vunpack.c.l.b16 %v8290
  %v8435 = vunpack.c.h.b16 %v8290
  %v8436 = vunpack.c.l.b16 %v8291
  %v8437 = vunpack.c.h.b16 %v8291
  %v8438 = vunpack.c.l.b16 %v8292
  %v8439 = vunpack.c.h.b16 %v8292
  %v8440 = vpack.c.b16 %v8432, %v8432
  %v8441 = vpack.c.b16 %v8433, %v8433
  %v8442 = vpack.c.b16 %v8434, %v8434
  %v8443 = vpack.c.b16 %v8435, %v8435
  %v8444 = vpack.c.b16 %v8436, %v8436
  %v8445 = vpack.c.b16 %v8437, %v8437
  %v8446 = vpack.c.b16 %v8438, %v8438
  %v8447 = vpack.c.b16 %v8439, %v8439
  %v8584 = vunpack.c.l.b16 %v8293
  %v8585 = vunpack.c.l.b16 %v8294
  %v8586 = vunpack.c.l.b16 %v8295
  %v8587 = vunpack.c.l.b16 %v8296
  %v8588 = vunpack.c.l.b16 %v8297
  %v8589 = vunpack.c.l.b16 %v8298
  %v8590 = vunpack.c.l.b16 %v8299
  %v8591 = vunpack.c.l.b16 %v8300
  %v8592 = vunpack.c.l.b16 %v8301
  %v8593 = vunpack.c.l.b16 %v8302
  %v8594 = vunpack.c.l.b16 %v8303
  %v8595 = vunpack.c.l.b16 %v8304
  %v8596 = vunpack.c.l.b16 %v8305
  %v8597 = vunpack.c.l.b16 %v8306
  %v8598 = vunpack.c.l.b16 %v8307
  %v8599 = vunpack.c.l.b16 %v8308
  %v8600 = vunpack.c.l.b16 %v8309
  %v8601 = vunpack.c.l.b16 %v8310
  %v8602 = vunpack.c.l.b16 %v8311
  %v8603 = vunpack.c.l.b16 %v8312
  %v8604 = vunpack.c.l.b16 %v8313
  %v8605 = vunpack.c.l.b16 %v8314
  %v8606 = vunpack.c.l.b16 %v8315
  %v8607 = vunpack.c.l.b16 %v8316
  %v8608 = vunpack.c.l.b16 %v8317
  %v8609 = vunpack.c.l.b16 %v8318
  %v8610 = vunpack.c.l.b16 %v8319
  %v8611 = vunpack.c.l.b16 %v8320
  %v8612 = vunpack.c.l.b16 %v8321
  %v8613 = vunpack.c.l.b16 %v8322
  %v8614 = vunpack.c.l.b16 %v8323
  %v8615 = vunpack.c.l.b16 %v8324
  %v8616 = vunpack.c.l.b16 %v8325
  %v8617 = vunpack.c.l.b16 %v8326
  %v8618 = vunpack.c.l.b16 %v8327
  %v8619 = vunpack.c.l.b16 %v8328
  %v8620 = vunpack.c.l.b16 %v8329
  %v8621 = vunpack.c.l.b16 %v8330
  %v8622 = vunpack.c.l.b16 %v8331
  %v8623 = vunpack.c.l.b16 %v8332
  %v8624 = vunpack.c.l.b16 %v8333
  %v8625 = vunpack.c.l.b16 %v8334
  %v8626 = vunpack.c.l.b16 %v8335
  %v8627 = vunpack.c.l.b16 %v8336
  %v8628 = vunpack.c.l.b16 %v8337
  %v8629 = vunpack.c.l.b16 %v8338
  %v8630 = vunpack.c.l.b16 %v8339
  %v8631 = vunpack.c.l.b16 %v8340
  %v8632 = vunpack.c.l.b16 %v8341
  %v8633 = vunpack.c.l.b16 %v8342
  %v8634 = vunpack.c.l.b16 %v8343
  %v8635 = vunpack.c.l.b16 %v8344
  %v8636 = vunpack.c.l.b16 %v8345
  %v8637 = vunpack.c.l.b16 %v8346
  %v8638 = vunpack.c.l.b16 %v8347
  %v8639 = vunpack.c.l.b16 %v8348
  %v8640 = vunpack.c.l.b16 %v8349
  %v8641 = vunpack.c.l.b16 %v8350
  %v8642 = vunpack.c.l.b16 %v8351
  %v8643 = vunpack.c.l.b16 %v8352
  %v8644 = vunpack.c.l.b16 %v8353
  %v8645 = vunpack.c.l.b16 %v8354
  %v8646 = vunpack.c.l.b16 %v8355
  %v8647 = vunpack.c.l.b16 %v8356
  %v8648 = vunpack.c.l.b16 %v8357
  %v8649 = vunpack.c.l.b16 %v8358
  %v8650 = vunpack.c.l.b16 %v8359
  %v8651 = vunpack.c.l.b16 %v8360
  %v8652 = vunpack.c.l.b16 %v8361
  %v8653 = vunpack.c.l.b16 %v8362
  %v8654 = vunpack.c.l.b16 %v8363
  %v8655 = vunpack.c.l.b16 %v8364
  %v8656 = vunpack.c.l.b16 %v8365
  %v8657 = vunpack.c.l.b16 %v8366
  %v8658 = vunpack.c.l.b16 %v8367
  %v8659 = vunpack.c.l.b16 %v8368
  %v8660 = vunpack.c.l.b16 %v8369
  %v8661 = vunpack.c.l.b16 %v8370
  %v8662 = vunpack.c.l.b16 %v8371
  %v8663 = vunpack.c.l.b16 %v8372
  %v8664 = vunpack.c.l.b16 %v8373
  %v8665 = vunpack.c.l.b16 %v8374
  %v8666 = vunpack.c.l.b16 %v8375
  %v8667 = vunpack.c.l.b16 %v8376
  %v8668 = vunpack.c.l.b16 %v8377
  %v8669 = vunpack.c.l.b16 %v8378
  %v8670 = vunpack.c.l.b16 %v8379
  %v8671 = vunpack.c.l.b16 %v8380
  %v8672 = vunpack.c.l.b16 %v8381
  %v8673 = vunpack.c.l.b16 %v8382
  %v8674 = vunpack.c.l.b16 %v8383
  %v8675 = vunpack.c.l.b16 %v8384
  %v8676 = vunpack.c.l.b16 %v8385
  %v8677 = vunpack.c.l.b16 %v8386
  %v8678 = vunpack.c.l.b16 %v8387
  %v8679 = vunpack.c.l.b16 %v8388
  %v8680 = vunpack.c.l.b16 %v8389
  %v8681 = vunpack.c.l.b16 %v8390
  %v8682 = vunpack.c.l.b16 %v8391
  %v8683 = vunpack.c.l.b16 %v8392
  %v8684 = vunpack.c.l.b16 %v8393
  %v8685 = vunpack.c.l.b16 %v8394
  %v8686 = vunpack.c.l.b16 %v8395
  %v8687 = vunpack.c.l.b16 %v8396
  %v8688 = vunpack.c.l.b16 %v8397
  %v8689 = vunpack.c.l.b16 %v8398
  %v8690 = vunpack.c.l.b16 %v8399
  %v8691 = vunpack.c.l.b16 %v8400
  %v8692 = vunpack.c.l.b16 %v8401
  %v8693 = vunpack.c.l.b16 %v8402
  %v8694 = vunpack.c.l.b16 %v8403
  %v8695 = vunpack.c.l.b16 %v8404
  %v8696 = vunpack.c.l.b16 %v8405
  %v8697 = vunpack.c.l.b16 %v8406
  %v8698 = vunpack.c.l.b16 %v8407
  %v8699 = vunpack.c.l.b16 %v8408
  %v8700 = vunpack.c.l.b16 %v8409
  %v8701 = vunpack.c.l.b16 %v8410
  %v8702 = vunpack.c.l.b16 %v8411
  %v8703 = vunpack.c.l.b16 %v8412
  %v8704 = vunpack.c.l.b16 %v8413
  %v8705 = vunpack.c.l.b16 %v8414
  %v8706 = vunpack.c.l.b16 %v8415
  %v8707 = vunpack.c.l.b16 %v8416
  %v8708 = vunpack.c.l.b16 %v8417
  %v8709 = vunpack.c.l.b16 %v8418
  %v8710 = vunpack.c.l.b16 %v8419
  %v8711 = vunpack.c.l.b16 %v8420
  %v8712 = vpack.c.b16 %v8585, %v8584
  %v8713 = vpack.c.b16 %v8587, %v8586
  %v8714 = vpack.c.b16 %v8589, %v8588
  %v8715 = vpack.c.b16 %v8591, %v8590
  %v8716 = vpack.c.b16 %v8593, %v8592
  %v8717 = vpack.c.b16 %v8595, %v8594
  %v8718 = vpack.c.b16 %v8597, %v8596
  %v8719 = vpack.c.b16 %v8599, %v8598
  %v8720 = vpack.c.b16 %v8601, %v8600
  %v8721 = vpack.c.b16 %v8603, %v8602
  %v8722 = vpack.c.b16 %v8605, %v8604
  %v8723 = vpack.c.b16 %v8607, %v8606
  %v8724 = vpack.c.b16 %v8609, %v8608
  %v8725 = vpack.c.b16 %v8611, %v8610
  %v8726 = vpack.c.b16 %v8613, %v8612
  %v8727 = vpack.c.b16 %v8615, %v8614
  %v8728 = vpack.c.b16 %v8617, %v8616
  %v8729 = vpack.c.b16 %v8619, %v8618
  %v8730 = vpack.c.b16 %v8621, %v8620
  %v8731 = vpack.c.b16 %v8623, %v8622
  %v8732 = vpack.c.b16 %v8625, %v8624
  %v8733 = vpack.c.b16 %v8627, %v8626
  %v8734 = vpack.c.b16 %v8629, %v8628
  %v8735 = vpack.c.b16 %v8631, %v8630
  %v8736 = vpack.c.b16 %v8633, %v8632
  %v8737 = vpack.c.b16 %v8635, %v8634
  %v8738 = vpack.c.b16 %v8637, %v8636
  %v8739 = vpack.c.b16 %v8639, %v8638
  %v8740 = vpack.c.b16 %v8641, %v8640
  %v8741 = vpack.c.b16 %v8643, %v8642
  %v8742 = vpack.c.b16 %v8645, %v8644
  %v8743 = vpack.c.b16 %v8647, %v8646
  %v8744 = vpack.c.b16 %v8649, %v8648
  %v8745 = vpack.c.b16 %v8651, %v8650
  %v8746 = vpack.c.b16 %v8653, %v8652
  %v8747 = vpack.c.b16 %v8655, %v8654
  %v8748 = vpack.c.b16 %v8657, %v8656
  %v8749 = vpack.c.b16 %v8659, %v8658
  %v8750 = vpack.c.b16 %v8661, %v8660
  %v8751 = vpack.c.b16 %v8663, %v8662
  %v8752 = vpack.c.b16 %v8665, %v8664
  %v8753 = vpack.c.b16 %v8667, %v8666
  %v8754 = vpack.c.b16 %v8669, %v8668
  %v8755 = vpack.c.b16 %v8671, %v8670
  %v8756 = vpack.c.b16 %v8673, %v8672
  %v8757 = vpack.c.b16 %v8675, %v8674
  %v8758 = vpack.c.b16 %v8677, %v8676
  %v8759 = vpack.c.b16 %v8679, %v8678
  %v8760 = vpack.c.b16 %v8681, %v8680
  %v8761 = vpack.c.b16 %v8683, %v8682
  %v8762 = vpack.c.b16 %v8685, %v8684
  %v8763 = vpack.c.b16 %v8687, %v8686
  %v8764 = vpack.c.b16 %v8689, %v8688
  %v8765 = vpack.c.b16 %v8691, %v8690
  %v8766 = vpack.c.b16 %v8693, %v8692
  %v8767 = vpack.c.b16 %v8695, %v8694
  %v8768 = vpack.c.b16 %v8697, %v8696
  %v8769 = vpack.c.b16 %v8699, %v8698
  %v8770 = vpack.c.b16 %v8701, %v8700
  %v8771 = vpack.c.b16 %v8703, %v8702
  %v8772 = vpack.c.b16 %v8705, %v8704
  %v8773 = vpack.c.b16 %v8707, %v8706
  %v8774 = vpack.c.b16 %v8709, %v8708
  %v8775 = vpack.c.b16 %v8711, %v8710
  %8840 = vmatprep.subr.bf16.mxu0 0
  %8841 = vmatpush1.bf16.msra.mxu0 %v8719
  %8842 = vmatprep.subr.bf16.mxu0 0
  %8843 = vmatpush1.bf16.msra.mxu0 %v8718
  %8844 = vmatprep.subr.bf16.mxu0 0
  %8845 = vmatpush1.bf16.msra.mxu0 %v8717
  %8846 = vmatprep.subr.bf16.mxu0 0
  %8847 = vmatpush1.bf16.msra.mxu0 %v8716
  %8848 = vmatprep.subr.bf16.mxu0 0
  %8849 = vmatpush1.bf16.msra.mxu0 %v8715
  %8850 = vmatprep.subr.bf16.mxu0 0
  %8851 = vmatpush1.bf16.msra.mxu0 %v8714
  %8852 = vmatprep.subr.bf16.mxu0 0
  %8853 = vmatpush1.bf16.msra.mxu0 %v8713
  %8854 = vmatprep.subr.bf16.mxu0 0
  %8855 = vmatpush1.bf16.msra.mxu0 %v8712
  %8856 = vmatprep.subr.bf16.mxu0 0
  %8857 = vmatpush2.bf16.msra.mxu0 %v8727
  %8858 = vmatprep.subr.bf16.mxu0 0
  %8859 = vmatpush2.bf16.msra.mxu0 %v8726
  %8860 = vmatprep.subr.bf16.mxu0 0
  %8861 = vmatpush2.bf16.msra.mxu0 %v8725
  %8862 = vmatprep.subr.bf16.mxu0 0
  %8863 = vmatpush2.bf16.msra.mxu0 %v8724
  %8864 = vmatprep.subr.bf16.mxu0 0
  %8865 = vmatpush2.bf16.msra.mxu0 %v8723
  %8866 = vmatprep.subr.bf16.mxu0 0
  %8867 = vmatpush2.bf16.msra.mxu0 %v8722
  %8868 = vmatprep.subr.bf16.mxu0 0
  %8869 = vmatpush2.bf16.msra.mxu0 %v8721
  %8870 = vmatprep.subr.bf16.mxu0 0
  %8871 = vmatpush2.bf16.msra.mxu0 %v8720
  %8872 = vmatprep.mubr.bf16.mxu0 %v8441
  %8873 = vmatmul.mubr.bf16.gmra.mxu0 %v8440
  %v8874 = vpop.f32.mrf.mxu0
  %v8875 = vadd.f32 %v8426, %v8874
  %v8876 = vpop.f32.mrf.mxu0
  %v8877 = vpop.f32.mrf.mxu0
  %v8878 = vpop.f32.mrf.mxu0
  %8879 = vdwg.mxu0
  %8880 = vmatprep.subr.bf16.mxu0 0
  %8881 = vmatpush1.bf16.msra.mxu0 %v8735
  %8882 = vmatprep.subr.bf16.mxu0 0
  %8883 = vmatpush1.bf16.msra.mxu0 %v8734
  %8884 = vmatprep.subr.bf16.mxu0 0
  %8885 = vmatpush1.bf16.msra.mxu0 %v8733
  %8886 = vmatprep.subr.bf16.mxu0 0
  %8887 = vmatpush1.bf16.msra.mxu0 %v8732
  %8888 = vmatprep.subr.bf16.mxu0 0
  %8889 = vmatpush1.bf16.msra.mxu0 %v8731
  %8890 = vmatprep.subr.bf16.mxu0 0
  %8891 = vmatpush1.bf16.msra.mxu0 %v8730
  %8892 = vmatprep.subr.bf16.mxu0 0
  %8893 = vmatpush1.bf16.msra.mxu0 %v8729
  %8894 = vmatprep.subr.bf16.mxu0 0
  %8895 = vmatpush1.bf16.msra.mxu0 %v8728
  %8896 = vmatprep.subr.bf16.mxu0 0
  %8897 = vmatpush2.bf16.msra.mxu0 %v8743
  %8898 = vmatprep.subr.bf16.mxu0 0
  %8899 = vmatpush2.bf16.msra.mxu0 %v8742
  %8900 = vmatprep.subr.bf16.mxu0 0
  %8901 = vmatpush2.bf16.msra.mxu0 %v8741
  %8902 = vmatprep.subr.bf16.mxu0 0
  %8903 = vmatpush2.bf16.msra.mxu0 %v8740
  %8904 = vmatprep.subr.bf16.mxu0 0
  %8905 = vmatpush2.bf16.msra.mxu0 %v8739
  %8906 = vmatprep.subr.bf16.mxu0 0
  %8907 = vmatpush2.bf16.msra.mxu0 %v8738
  %8908 = vmatprep.subr.bf16.mxu0 0
  %8909 = vmatpush2.bf16.msra.mxu0 %v8737
  %8910 = vmatprep.subr.bf16.mxu0 0
  %8911 = vmatpush2.bf16.msra.mxu0 %v8736
  %8912 = vmatprep.mubr.bf16.mxu0 %v8443
  %8913 = vmatmul.mubr.bf16.gmra.mxu0 %v8442
  %v8914 = vpop.f32.mrf.mxu0
  %v8915 = vadd.f32 %v8875, %v8914
  %v8916 = vpop.f32.mrf.mxu0
  %v8917 = vpop.f32.mrf.mxu0
  %v8918 = vpop.f32.mrf.mxu0
  %8919 = vdwg.mxu0
  %8920 = vmatprep.subr.bf16.mxu0 0
  %8921 = vmatpush1.bf16.msra.mxu0 %v8751
  %8922 = vmatprep.subr.bf16.mxu0 0
  %8923 = vmatpush1.bf16.msra.mxu0 %v8750
  %8924 = vmatprep.subr.bf16.mxu0 0
  %8925 = vmatpush1.bf16.msra.mxu0 %v8749
  %8926 = vmatprep.subr.bf16.mxu0 0
  %8927 = vmatpush1.bf16.msra.mxu0 %v8748
  %8928 = vmatprep.subr.bf16.mxu0 0
  %8929 = vmatpush1.bf16.msra.mxu0 %v8747
  %8930 = vmatprep.subr.bf16.mxu0 0
  %8931 = vmatpush1.bf16.msra.mxu0 %v8746
  %8932 = vmatprep.subr.bf16.mxu0 0
  %8933 = vmatpush1.bf16.msra.mxu0 %v8745
  %8934 = vmatprep.subr.bf16.mxu0 0
  %8935 = vmatpush1.bf16.msra.mxu0 %v8744
  %8936 = vmatprep.subr.bf16.mxu0 0
  %8937 = vmatpush2.bf16.msra.mxu0 %v8759
  %8938 = vmatprep.subr.bf16.mxu0 0
  %8939 = vmatpush2.bf16.msra.mxu0 %v8758
  %8940 = vmatprep.subr.bf16.mxu0 0
  %8941 = vmatpush2.bf16.msra.mxu0 %v8757
  %8942 = vmatprep.subr.bf16.mxu0 0
  %8943 = vmatpush2.bf16.msra.mxu0 %v8756
  %8944 = vmatprep.subr.bf16.mxu0 0
  %8945 = vmatpush2.bf16.msra.mxu0 %v8755
  %8946 = vmatprep.subr.bf16.mxu0 0
  %8947 = vmatpush2.bf16.msra.mxu0 %v8754
  %8948 = vmatprep.subr.bf16.mxu0 0
  %8949 = vmatpush2.bf16.msra.mxu0 %v8753
  %8950 = vmatprep.subr.bf16.mxu0 0
  %8951 = vmatpush2.bf16.msra.mxu0 %v8752
  %8952 = vmatprep.mubr.bf16.mxu0 %v8445
  %8953 = vmatmul.mubr.bf16.gmra.mxu0 %v8444
  %v8954 = vpop.f32.mrf.mxu0
  %v8955 = vadd.f32 %v8915, %v8954
  %v8956 = vpop.f32.mrf.mxu0
  %v8957 = vpop.f32.mrf.mxu0
  %v8958 = vpop.f32.mrf.mxu0
  %8959 = vdwg.mxu0
  %8960 = vmatprep.subr.bf16.mxu0 0
  %8961 = vmatpush1.bf16.msra.mxu0 %v8767
  %8962 = vmatprep.subr.bf16.mxu0 0
  %8963 = vmatpush1.bf16.msra.mxu0 %v8766
  %8964 = vmatprep.subr.bf16.mxu0 0
  %8965 = vmatpush1.bf16.msra.mxu0 %v8765
  %8966 = vmatprep.subr.bf16.mxu0 0
  %8967 = vmatpush1.bf16.msra.mxu0 %v8764
  %8968 = vmatprep.subr.bf16.mxu0 0
  %8969 = vmatpush1.bf16.msra.mxu0 %v8763
  %8970 = vmatprep.subr.bf16.mxu0 0
  %8971 = vmatpush1.bf16.msra.mxu0 %v8762
  %8972 = vmatprep.subr.bf16.mxu0 0
  %8973 = vmatpush1.bf16.msra.mxu0 %v8761
  %8974 = vmatprep.subr.bf16.mxu0 0
  %8975 = vmatpush1.bf16.msra.mxu0 %v8760
  %8976 = vmatprep.subr.bf16.mxu0 0
  %8977 = vmatpush2.bf16.msra.mxu0 %v8775
  %8978 = vmatprep.subr.bf16.mxu0 0
  %8979 = vmatpush2.bf16.msra.mxu0 %v8774
  %8980 = vmatprep.subr.bf16.mxu0 0
  %8981 = vmatpush2.bf16.msra.mxu0 %v8773
  %8982 = vmatprep.subr.bf16.mxu0 0
  %8983 = vmatpush2.bf16.msra.mxu0 %v8772
  %8984 = vmatprep.subr.bf16.mxu0 0
  %8985 = vmatpush2.bf16.msra.mxu0 %v8771
  %8986 = vmatprep.subr.bf16.mxu0 0
  %8987 = vmatpush2.bf16.msra.mxu0 %v8770
  %8988 = vmatprep.subr.bf16.mxu0 0
  %8989 = vmatpush2.bf16.msra.mxu0 %v8769
  %8990 = vmatprep.subr.bf16.mxu0 0
  %8991 = vmatpush2.bf16.msra.mxu0 %v8768
  %8992 = vmatprep.mubr.bf16.mxu0 %v8447
  %8993 = vmatmul.mubr.bf16.gmra.mxu0 %v8446
  %v8994 = vpop.f32.mrf.mxu0
  %v8995 = vadd.f32 %v8955, %v8994
  %v8996 = vpop.f32.mrf.mxu0
  %v8997 = vpop.f32.mrf.mxu0
  %v8998 = vpop.f32.mrf.mxu0
  %8999 = vdwg.mxu0
  %v9000 = vxor.u32 %v8995, 2147483648
  %v9001 = vmul.f32 %v9000, 1.442695
  %v9002 = vpow.pop %v9001
  %v9003 = vadd.f32 %v9002, 1.0
  %v9004 = vrcp.pop %v9003
  %v9005 = vmul.f32 1.0, %v9004
  %9006 = vst [vmem:[%s9] sm:$0xff] %v9005
  // Predicated region
  $region38: #{keypoints_forward.1} parent=0 // pred_check
    _
  $region39: #{keypoints_forward.1} parent=0 // pred_check_branch
    %9008 = sbr.rel (0) target = $region41
  $region40: #{keypoints_forward.1} parent=0 // pred_region
    _
  $region41: #{keypoints_forward.1} parent=0 // pred_fallthru
    _
  // Predicated region
  $region42: #{keypoints_forward.1} parent=0 // pred_check
    _
  $region43: #{keypoints_forward.1} parent=0 // pred_check_branch
    %9010 = sbr.rel (0) target = $region45
  $region44: #{keypoints_forward.1} parent=0 // pred_region
    _
  $region45: #{keypoints_forward.1} parent=0 // pred_fallthru
    _

</llo_original>
